<compile_context>
chip_gen: v5e
topology: v5e:2x2
jax: 0.10.0
libtpu: 0.0.40
codegen_flags: <defaults>
</compile_context>

<pallas_src>
import functools

import jax
import jax.numpy as jnp
from jax.experimental import pallas as pl
from jax.experimental.pallas import tpu as pltpu

TN = 128  # lane-dense output tile width


# ----------------------------------------------------------------------------- helpers
def _round_up(x, m):
    return ((x + m - 1) // m) * m


def _tile_m(M):
    """Single block for small M (no per-step overhead); cap at 256 so the
    512-row layer becomes a 2-step parallel grid for v7x's two TensorCores."""
    Mp = _round_up(M, 8)
    if Mp <= 256:
        return Mp, Mp
    return 256, _round_up(Mp, 256)


# ----------------------------------------------------------------------------- Pallas kernel
def _mm_kernel(*refs, relu, gated, affine, sigmoid):
    """out = post(A @ W + bias), f32 accumulation, output cast to o_ref.dtype.
    post = [relu] -> [per-column gated relu] -> [affine scale/shift] -> [sigmoid]."""
    a_ref, w_ref, b_ref = refs[0], refs[1], refs[2]
    i = 3
    if gated:
        g_ref = refs[i]; i += 1
    if affine:
        s_ref, t_ref = refs[i], refs[i + 1]; i += 2
    o_ref = refs[i]

    acc = jnp.dot(a_ref[...], w_ref[...], preferred_element_type=jnp.float32)
    acc = acc + b_ref[...]
    if relu:
        acc = jnp.maximum(acc, 0.0)
    if gated:  # per-column ReLU mask (batched branches with mixed epilogues)
        acc = jnp.where(g_ref[...] > 0.5, jnp.maximum(acc, 0.0), acc)
    if affine:
        acc = acc * s_ref[...] + t_ref[...]
    if sigmoid:
        acc = pl.reciprocal(1.0 + jnp.exp(-acc), approx=True)
    o_ref[...] = acc.astype(o_ref.dtype)


# ----------------------------------------------------------------------------- kernel wrapper
def matmul_fused(A, lp, *, relu=False, sigmoid=False, out_dtype=jnp.bfloat16):
    """A:[M,K] -> padded [Mp, Np] with fused epilogue.

    lp holds pre-padded / pre-cast params (done once in prepare_params):
      wm:[K,Np] bf16, b:[1,Np] f32, optional gate/scale/shift:[1,Np] f32."""
    M, K = A.shape
    Np = lp["wm"].shape[1]
    TM, Mp = _tile_m(M)

    A16 = A.astype(jnp.bfloat16)
    if Mp != M:
        A16 = jnp.pad(A16, ((0, Mp - M), (0, 0)))

    gated = "gate" in lp
    affine = "scale" in lp
    args = [A16, lp["wm"], lp["b"]]
    in_specs = [
        pl.BlockSpec((TM, K), lambda i, j: (i, 0)),
        pl.BlockSpec((K, TN), lambda i, j: (0, j)),
        pl.BlockSpec((1, TN), lambda i, j: (0, j)),
    ]
    if gated:
        args.append(lp["gate"])
        in_specs.append(pl.BlockSpec((1, TN), lambda i, j: (0, j)))
    if affine:
        args += [lp["scale"], lp["shift"]]
        in_specs += [pl.BlockSpec((1, TN), lambda i, j: (0, j)),
                     pl.BlockSpec((1, TN), lambda i, j: (0, j))]

    out = pl.pallas_call(
        functools.partial(_mm_kernel, relu=relu, gated=gated,
                          affine=affine, sigmoid=sigmoid),
        out_shape=jax.ShapeDtypeStruct((Mp, Np), out_dtype),
        grid=(Mp // TM, Np // TN),
        in_specs=in_specs,
        out_specs=pl.BlockSpec((TM, TN), lambda i, j: (i, j)),
        compiler_params=pltpu.CompilerParams(
            dimension_semantics=("parallel", "parallel")),
    )(*args)
    return out  # padded [Mp, Np]; callers slice what they need


# ----------------------------------------------------------------------------- conv glue
def _im2col3x3(x, *, stride=1, pad="reflect"):
    if pad == "reflect":
        xp = jnp.pad(x, ((0, 0), (1, 1), (1, 1), (0, 0)), mode="reflect")
    else:  # 'same' -> zero padding
        xp = jnp.pad(x, ((0, 0), (1, 1), (1, 1), (0, 0)))
    B, Hp, Wp, C = xp.shape
    Ho = (Hp - 3) // stride + 1
    Wo = (Wp - 3) // stride + 1
    cols = [xp[:, i:i + stride * (Ho - 1) + 1:stride,
               j:j + stride * (Wo - 1) + 1:stride, :]
            for i in range(3) for j in range(3)]
    A = jnp.concatenate(cols, axis=-1).reshape(B * Ho * Wo, 9 * C)
    return A, (B, Ho, Wo)


def conv3x3(x, lp, n_out, *, stride=1, pad="reflect", relu=False,
            sigmoid=False, out_dtype=jnp.bfloat16):
    A, (B, Ho, Wo) = _im2col3x3(x, stride=stride, pad=pad)
    out = matmul_fused(A, lp, relu=relu, sigmoid=sigmoid, out_dtype=out_dtype)
    return out[:B * Ho * Wo, :n_out].reshape(B, Ho, Wo, n_out)


def conv_group3x3(x, lp, n_splits, *, out_dtype=jnp.bfloat16):
    """Several same-resolution branch layers batched in one matmul (per-column
    ReLU gate + BN affine in the epilogue). Returns one NHWC tensor per member."""
    A, (B, Ho, Wo) = _im2col3x3(x)
    out = matmul_fused(A, lp, out_dtype=out_dtype)
    res, off = [], 0
    for n in n_splits:
        res.append(out[:B * Ho * Wo, off:off + n].reshape(B, Ho, Wo, n))
        off += n
    return res


def maxpool2(x):
    B, H, W, C = x.shape  # even H, W only (true for this network)
    return x.reshape(B, H // 2, 2, W // 2, 2, C).max(axis=(2, 4))


def deconv_batched(x, lp, cout_tot, *, out_dtype=jnp.bfloat16):
    """ConvTranspose2d(3, stride=2, pad=1, out_pad=1) via the sub-pixel 4-phase
    decomposition for all branches at once. lp['wm']: [4*Cin_tot, 4*Cout_tot]."""
    B, H, W, Cin = x.shape
    xp = jnp.pad(x, ((0, 0), (0, 1), (0, 1), (0, 0)))     # zero bottom/right
    taps = [x, xp[:, :H, 1:, :], xp[:, 1:, :W, :], xp[:, 1:, 1:, :]]
    A = jnp.concatenate(taps, axis=-1).reshape(B * H * W, 4 * Cin)
    out = matmul_fused(A, lp, out_dtype=out_dtype)[:B * H * W, :4 * cout_tot]
    out = out.reshape(B, H, W, 2, 2, cout_tot)             # (b, y, x, dy, dx, c)
    out = jnp.transpose(out, (0, 1, 3, 2, 4, 5)).reshape(B, 2 * H, 2 * W, cout_tot)
    return out


# ----------------------------------------------------------------------------- weight preparation
def _conv_wm(w):
    """[Cout, Cin, 3, 3] -> [9*Cin, Cout], rows ordered (tap, cin)."""
    cout = w.shape[0]
    return jnp.transpose(w, (2, 3, 1, 0)).reshape(-1, cout)


def _sep_wm(dw_w, dw_b, pw_w, pw_b):
    """Fold depthwise 3x3 into the pointwise 1x1 -> equivalent 3x3 conv matmul."""
    C = dw_w.shape[0]
    n = pw_w.shape[0]
    dwt = jnp.transpose(dw_w[:, 0], (1, 2, 0)).reshape(9, C)     # [tap, c]
    pwm = pw_w[:, :, 0, 0].T                                      # [C, N]
    wm = (dwt[:, :, None] * pwm[None, :, :]).reshape(9 * C, n)
    b = pw_b + dw_b @ pwm
    return wm, b


def _emb1x1(w):
    """1x1 conv [Cout, Cin, 1, 1] embedded at the center tap of a 3x3 matmul."""
    cout, cin = w.shape[0], w.shape[1]
    wm = jnp.zeros((9, cin, cout), jnp.float32)
    wm = wm.at[4].set(w[:, :, 0, 0].T)
    return wm.reshape(9 * cin, cout)


def _pack(wm, b, *, scale=None, shift=None, gate=None, fold_bn=None):
    """Pad N to a multiple of 128, cast W to bf16, store epilogue rows as [1,Np]."""
    if fold_bn is not None:              # conv -> BN (no ReLU): fold into W/bias
        s, t = fold_bn
        wm = wm * s[None, :]
        b = b * s + t
    n = wm.shape[1]
    Np = _round_up(n, 128)
    d = {"wm": jnp.pad(wm, ((0, 0), (0, Np - n))).astype(jnp.bfloat16),
         "b": jnp.pad(b, (0, Np - n)).reshape(1, Np).astype(jnp.float32)}
    if scale is not None:
        d["scale"] = jnp.pad(scale, (0, Np - n)).reshape(1, Np).astype(jnp.float32)
        d["shift"] = jnp.pad(shift, (0, Np - n)).reshape(1, Np).astype(jnp.float32)
    if gate is not None:
        d["gate"] = jnp.pad(gate, (0, Np - n)).reshape(1, Np).astype(jnp.float32)
    return d


def _pack_group(members, cin_tot):
    """members: list of (wm_local [9*cin, cout], bias, cin_off, relu, scale, shift).
    Builds one [9*cin_tot, N_tot] weight with per-column ReLU gate + BN affine."""
    blocks, biases, gates, scales, shifts = [], [], [], [], []
    for wm_local, b, cin_off, relu, s, t in members:
        cin = wm_local.shape[0] // 9
        cout = wm_local.shape[1]
        w3 = wm_local.reshape(9, cin, cout)
        full = jnp.zeros((9, cin_tot, cout), jnp.float32)
        full = full.at[:, cin_off:cin_off + cin, :].set(w3)
        blocks.append(full.reshape(9 * cin_tot, cout))
        biases.append(b)
        gates.append(jnp.full((cout,), 1.0 if relu else 0.0, jnp.float32))
        scales.append(s)
        shifts.append(t)
    return _pack(jnp.concatenate(blocks, axis=1), jnp.concatenate(biases),
                 scale=jnp.concatenate(scales), shift=jnp.concatenate(shifts),
                 gate=jnp.concatenate(gates))


# (tap, phase) -> (ky, kx) of the ConvTranspose kernel that contributes.
# taps: 0=x[m,n], 1=x[m,n+1], 2=x[m+1,n], 3=x[m+1,n+1];  phase p = dy*2 + dx.
_TAP_PHASE = {(0, 0): (1, 1), (0, 1): (1, 2), (0, 2): (2, 1), (0, 3): (2, 2),
              (1, 1): (1, 0), (1, 3): (2, 0),
              (2, 2): (0, 1), (2, 3): (0, 2),
              (3, 3): (0, 0)}


def _deconv_wm(ws, *, shared):
    """[4*Cin_tot, 4*Cout_tot] sub-pixel deconv matmul weight from per-branch
    ConvTranspose2d weights [Cin, Cout, 3, 3] (tap-major rows, phase-major cols)."""
    nb = len(ws)
    cin, cout = ws[0].shape[0], ws[0].shape[1]
    cin_tot = cin if shared else nb * cin
    cout_tot = nb * cout
    zblk = jnp.zeros((cin_tot, cout_tot), jnp.float32)
    zsmall = jnp.zeros((cin, cout), jnp.float32)

    def block(tap, ph):
        if (tap, ph) not in _TAP_PHASE:
            return zblk
        ky, kx = _TAP_PHASE[(tap, ph)]
        mats = [w[:, :, ky, kx] for w in ws]
        if shared:                                  # all branches read the same input
            return jnp.concatenate(mats, axis=1)
        rows = [jnp.concatenate([mats[i] if j == i else zsmall for j in range(nb)],
                                axis=1) for i in range(nb)]
        return jnp.concatenate(rows, axis=0)        # block-diagonal over branches

    return jnp.concatenate(
        [jnp.concatenate([block(t, ph) for ph in range(4)], axis=1) for t in range(4)],
        axis=0)


def _block_diag_conv(ws):
    """Block-diagonal combine of per-branch conv weights [Cout, Cin, kh, kw]."""
    nb = len(ws)
    z = jnp.zeros_like(ws[0])
    rows = [jnp.concatenate([ws[i] if j == i else z for j in range(nb)], axis=1)
            for i in range(nb)]
    return jnp.concatenate(rows, axis=0)


# ----------------------------------------------------------------------------- model config
IC = [2, 8, 16]       # inpCondKernels (scaled)
E = [16, 32, 64]      # encKernels (scaled)
D = [64, 32, 16, 1]   # [encKernels[-1]] + decKernels (scaled)


def prepare_params(p):
    """One-time (outside jit) re-layout: conv->matmul weights, dw folded into pw,
    BN folded where no ReLU intervenes, same-resolution layers / decoder branches
    batched, N padded to 128 and weights pre-cast to bf16."""
    q = {}
    # input conditioning: conv -> ReLU -> BN (affine stays post-ReLU)
    q["ic0"] = _pack(_conv_wm(p["ic0_w"]), p["ic0_b"],
                     scale=p["ic0_bn"][0], shift=p["ic0_bn"][1])
    q["ic1"] = _pack(_conv_wm(p["ic1_w"]), p["ic1_b"],
                     scale=p["ic1_bn"][0], shift=p["ic1_bn"][1])

    # --- batched encoder stage 1: [b1_sep | b2_c0 | b3_sep0] on h (16ch @8x8)
    b1_wm, b1_b = _sep_wm(p["b1_dw_w"], p["b1_dw_b"], p["b1_pw_w"], p["b1_pw_b"])
    b3_wm0, b3_b0 = _sep_wm(p["b3_dw0_w"], p["b3_dw0_b"], p["b3_pw0_w"], p["b3_pw0_b"])
    q["enc1"] = _pack_group(
        [(b1_wm, b1_b, 0, False, *p["b1_bn0"]),
         (_emb1x1(p["b2_c0_w"]), p["b2_c0_b"], 0, True, *p["b2_bn0"]),
         (b3_wm0, b3_b0, 0, True, *p["b3_bn0"])],
        cin_tot=E[0])

    # b3: SepConv(32->32) -> BN (folded), alone @8x8
    wm, b = _sep_wm(p["b3_dw1_w"], p["b3_dw1_b"], p["b3_pw1_w"], p["b3_pw1_b"])
    q["enc_b3_sep1"] = _pack(wm, b, fold_bn=p["b3_bn1"])

    # --- batched encoder stage 2: [b1_c1 | b2_sep1 | b3_sep2] on concat (96ch @4x4)
    b2_wm1, b2_b1 = _sep_wm(p["b2_dw1_w"], p["b2_dw1_b"], p["b2_pw1_w"], p["b2_pw1_b"])
    b3_wm2, b3_b2 = _sep_wm(p["b3_dw2_w"], p["b3_dw2_b"], p["b3_pw2_w"], p["b3_pw2_b"])
    q["enc2"] = _pack_group(
        [(_emb1x1(p["b1_c1_w"]), p["b1_c1_b"], 0, False, *p["b1_bn1"]),
         (b2_wm1, b2_b1, E[1], True, *p["b2_bn1"]),
         (b3_wm2, b3_b2, 2 * E[1], False, *p["b3_bn2"])],
        cin_tot=3 * E[1])

    # b2: SepConv(32->64) -> BN (folded), alone @4x4
    wm, b = _sep_wm(p["b2_dw2_w"], p["b2_dw2_b"], p["b2_pw2_w"], p["b2_pw2_b"])
    q["enc_b2_sep2"] = _pack(wm, b, fold_bn=p["b2_bn2"])

    # --- batched decoder (3 branches -> one kernel chain) ---
    decs = [p["dec1"], p["dec2"], p["dec3"]]
    q["dec_t0"] = _pack(_deconv_wm([d["t0_w"] for d in decs], shared=True),
                        jnp.tile(jnp.concatenate([d["t0_b"] for d in decs]), 4))
    q["dec_c0"] = _pack(_conv_wm(_block_diag_conv([d["c0_w"] for d in decs])),
                        jnp.concatenate([d["c0_b"] for d in decs]),
                        scale=jnp.concatenate([d["c0_bn"][0] for d in decs]),
                        shift=jnp.concatenate([d["c0_bn"][1] for d in decs]))
    q["dec_t1"] = _pack(_deconv_wm([d["t1_w"] for d in decs], shared=False),
                        jnp.tile(jnp.concatenate([d["t1_b"] for d in decs]), 4))
    q["dec_c1"] = _pack(_conv_wm(_block_diag_conv([d["c1_w"] for d in decs])),
                        jnp.concatenate([d["c1_b"] for d in decs]),
                        scale=jnp.concatenate([d["c1_bn"][0] for d in decs]),
                        shift=jnp.concatenate([d["c1_bn"][1] for d in decs]))
    q["dec_last"] = _pack(_conv_wm(_block_diag_conv([d["last_w"] for d in decs])),
                          jnp.concatenate([d["last_b"] for d in decs]))
    return q


def init_params(key):
    ks = iter(jax.random.split(key, 200))

    def conv(cout, cin, k):
        return (0.1 * jax.random.normal(next(ks), (cout, cin, k, k), jnp.float32),
                0.05 * jax.random.normal(next(ks), (cout,), jnp.float32))

    def dw(c):
        return (0.1 * jax.random.normal(next(ks), (c, 1, 3, 3), jnp.float32),
                0.05 * jax.random.normal(next(ks), (c,), jnp.float32))

    def convT(cin, cout):
        return (0.1 * jax.random.normal(next(ks), (cin, cout, 3, 3), jnp.float32),
                0.05 * jax.random.normal(next(ks), (cout,), jnp.float32))

    def bn(c):
        gamma = 1.0 + 0.1 * jax.random.normal(next(ks), (c,), jnp.float32)
        beta = 0.05 * jax.random.normal(next(ks), (c,), jnp.float32)
        # eval-mode BN with fresh running stats: mean=0, var=1, eps=1e-5
        return (gamma / jnp.sqrt(1.0 + 1e-5), beta)

    p = {}
    p["ic0_w"], p["ic0_b"] = conv(IC[1], IC[0], 3); p["ic0_bn"] = bn(IC[1])
    p["ic1_w"], p["ic1_b"] = conv(IC[2], IC[1], 3); p["ic1_bn"] = bn(IC[2])
    # encoder branch 1
    p["b1_dw_w"], p["b1_dw_b"] = dw(E[0])
    p["b1_pw_w"], p["b1_pw_b"] = conv(E[1], E[0], 1); p["b1_bn0"] = bn(E[1])
    p["b1_c1_w"], p["b1_c1_b"] = conv(E[2], E[1], 1); p["b1_bn1"] = bn(E[2])
    # encoder branch 2
    p["b2_c0_w"], p["b2_c0_b"] = conv(E[1], E[0], 1); p["b2_bn0"] = bn(E[1])
    p["b2_dw1_w"], p["b2_dw1_b"] = dw(E[1])
    p["b2_pw1_w"], p["b2_pw1_b"] = conv(E[1], E[1], 1); p["b2_bn1"] = bn(E[1])
    p["b2_dw2_w"], p["b2_dw2_b"] = dw(E[1])
    p["b2_pw2_w"], p["b2_pw2_b"] = conv(E[2], E[1], 1); p["b2_bn2"] = bn(E[2])
    # encoder branch 3
    p["b3_dw0_w"], p["b3_dw0_b"] = dw(E[0])
    p["b3_pw0_w"], p["b3_pw0_b"] = conv(E[1], E[0], 1); p["b3_bn0"] = bn(E[1])
    p["b3_dw1_w"], p["b3_dw1_b"] = dw(E[1])
    p["b3_pw1_w"], p["b3_pw1_b"] = conv(E[1], E[1], 1); p["b3_bn1"] = bn(E[1])
    p["b3_dw2_w"], p["b3_dw2_b"] = dw(E[1])
    p["b3_pw2_w"], p["b3_pw2_b"] = conv(E[2], E[1], 1); p["b3_bn2"] = bn(E[2])
    # 3 decoder branches (DecSubPixConvTransposeBranch)
    for d in range(3):
        dp = {}
        dp["t0_w"], dp["t0_b"] = convT(D[0], D[1])
        dp["c0_w"], dp["c0_b"] = conv(D[1], D[1], 3); dp["c0_bn"] = bn(D[1])
        dp["t1_w"], dp["t1_b"] = convT(D[1], D[2])
        dp["c1_w"], dp["c1_b"] = conv(D[2], D[2], 3); dp["c1_bn"] = bn(D[2])
        dp["last_w"], dp["last_b"] = conv(D[3] * 4, D[2], 3)
        p[f"dec{d + 1}"] = dp
    return p


# ----------------------------------------------------------------------------- forward
def sardinet_forward(x_nchw, q):
    x = jnp.transpose(x_nchw, (0, 2, 3, 1)).astype(jnp.float32)  # NCHW -> NHWC

    # input conditioning: conv(s=1)+ReLU+BN, conv(s=2)+ReLU+BN
    h = conv3x3(x, q["ic0"], IC[1], stride=1, relu=True)
    h = conv3x3(h, q["ic1"], IC[2], stride=2, relu=True)

    # encoder stage 1 (@8x8): b1 SepConv+BN | b2 1x1+ReLU+BN | b3 SepConv+ReLU+BN
    b1, b2, b3 = conv_group3x3(h, q["enc1"], (E[1], E[1], E[1]))
    r3 = conv3x3(b3, q["enc_b3_sep1"], E[1])               # b3: SepConv+BN (folded)
    r1p, r2p, r3p = maxpool2(b1), maxpool2(b2), maxpool2(r3)

    # encoder stage 2 (@4x4): b1 1x1+BN | b2 SepConv+ReLU+BN | b3 SepConv+BN
    cat = jnp.concatenate([r1p, r2p, r3p], axis=-1)
    c1, c2, c3 = conv_group3x3(cat, q["enc2"], (E[2], E[1], E[2]))
    r2 = conv3x3(c2, q["enc_b2_sep2"], E[2])                # b2: SepConv+BN (folded)
    fus = maxpool2(c1) + maxpool2(r2) + maxpool2(c3)        # [B, 2, 2, 64]

    # batched decoder (all 3 DecSubPixConvTransposeBranch branches at once)
    d = deconv_batched(fus, q["dec_t0"], 3 * D[1])
    d = conv3x3(d, q["dec_c0"], 3 * D[1], relu=True)
    d = deconv_batched(d, q["dec_t1"], 3 * D[2])
    d = conv3x3(d, q["dec_c1"], 3 * D[2], relu=True)
    d = conv3x3(d, q["dec_last"], 3 * 4 * D[3], pad="zero",
                sigmoid=True, out_dtype=jnp.float32)

    # per-branch PixelShuffle(2) then channel concat (branch-major columns)
    B, H, W, _ = d.shape
    d = d.reshape(B, H, W, 3, 2, 2)
    d = jnp.transpose(d, (0, 1, 4, 2, 5, 3)).reshape(B, 2 * H, 2 * W, 3)
    return jnp.transpose(d, (0, 3, 1, 2))                   # -> NCHW [B, 3, H, W]


if __name__ == "__main__":
    key = jax.random.PRNGKey(0)
    pkey, xkey = jax.random.split(key)
    raw_params = init_params(pkey)
    params = prepare_params(raw_params)   # fold/batch/pad/cast once, outside jit
    x = jax.random.normal(xkey, (2, 2, 16, 16), jnp.float32)  # NCHW, C=2 (inpCondKernels[0])
    fwd = jax.jit(sardinet_forward)
    out = fwd(x, params)
    jax.block_until_ready(out)
    assert out.shape == (2, 3, 16, 16), out.shape
    assert bool(jnp.all(jnp.isfinite(out)))
    print("KERNEL_OK")
</pallas_src>

<mosaic_0001>
module attributes {stable_mosaic.version = 11 : i64} {
  func.func @_mm_kernel(%arg0: i32, %arg1: i32, %arg2: memref<256x18xbf16, #tpu.memory_space<vmem>>, %arg3: memref<18x128xbf16, #tpu.memory_space<vmem>>, %arg4: memref<1x128xf32, #tpu.memory_space<vmem>>, %arg5: memref<1x128xf32, #tpu.memory_space<vmem>>, %arg6: memref<1x128xf32, #tpu.memory_space<vmem>>, %arg7: memref<256x128xbf16, #tpu.memory_space<vmem>>) attributes {dimension_semantics = [#tpu.dimension_semantics<parallel>, #tpu.dimension_semantics<parallel>], iteration_bounds = array<i64: 2, 1>, scalar_prefetch = 0 : i64, scratch_operands = 0 : i64, tpu.core_type = #tpu.core_type<tc>, window_params = [{transform_indices = @transform_0, window_bounds = array<i64: 256, 18>}, {transform_indices = @transform_1, window_bounds = array<i64: 18, 128>}, {transform_indices = @transform_2, window_bounds = array<i64: 1, 128>}, {transform_indices = @transform_3, window_bounds = array<i64: 1, 128>}, {transform_indices = @transform_4, window_bounds = array<i64: 1, 128>}, {transform_indices = @transform_5, window_bounds = array<i64: 256, 128>}]} {
    %c0 = arith.constant 0 : index
    %c0_0 = arith.constant 0 : index
    %0 = vector.load %arg2[%c0, %c0_0] : memref<256x18xbf16, #tpu.memory_space<vmem>>, vector<256x18xbf16>
    %c0_1 = arith.constant 0 : index
    %c0_2 = arith.constant 0 : index
    %1 = vector.load %arg3[%c0_1, %c0_2] : memref<18x128xbf16, #tpu.memory_space<vmem>>, vector<18x128xbf16>
    %cst = arith.constant dense<0.000000e+00> : vector<256x128xf32>
    %2 = tpu.matmul %0, %1, %cst {dimension_numbers = #tpu.dot_dimension_numbers<[1], [0], [0], [1], [0, 0, 1, 1], [], []>} : vector<256x18xbf16>, vector<18x128xbf16>, vector<256x128xf32> -> vector<256x128xf32>
    %c0_3 = arith.constant 0 : index
    %c0_4 = arith.constant 0 : index
    %3 = vector.load %arg4[%c0_3, %c0_4] : memref<1x128xf32, #tpu.memory_space<vmem>>, vector<1x128xf32>
    %4 = vector.broadcast %3 : vector<1x128xf32> to vector<256x128xf32>
    %5 = arith.addf %2, %4 : vector<256x128xf32>
    %cst_5 = arith.constant 0.000000e+00 : f32
    %6 = vector.broadcast %cst_5 : f32 to vector<256x128xf32>
    %7 = arith.maximumf %5, %6 : vector<256x128xf32>
    %c0_6 = arith.constant 0 : index
    %c0_7 = arith.constant 0 : index
    %8 = vector.load %arg5[%c0_6, %c0_7] : memref<1x128xf32, #tpu.memory_space<vmem>>, vector<1x128xf32>
    %9 = vector.broadcast %8 : vector<1x128xf32> to vector<256x128xf32>
    %10 = arith.mulf %7, %9 : vector<256x128xf32>
    %c0_8 = arith.constant 0 : index
    %c0_9 = arith.constant 0 : index
    %11 = vector.load %arg6[%c0_8, %c0_9] : memref<1x128xf32, #tpu.memory_space<vmem>>, vector<1x128xf32>
    %12 = vector.broadcast %11 : vector<1x128xf32> to vector<256x128xf32>
    %13 = arith.addf %10, %12 : vector<256x128xf32>
    %14 = arith.truncf %13 : vector<256x128xf32> to vector<256x128xbf16>
    %c0_10 = arith.constant 0 : index
    %c0_11 = arith.constant 0 : index
    %15 = vector.load %arg7[%c0_10, %c0_11] : memref<256x128xbf16, #tpu.memory_space<vmem>>, vector<256x128xbf16>
    tpu.vector_store %arg7[%c0_10, %c0_11], %14 {strides = array<i32>} : memref<256x128xbf16, #tpu.memory_space<vmem>>, vector<256x128xbf16>,
    return
  }
  func.func @transform_0(%arg0: i32, %arg1: i32) -> (i32, i32) {
    %c0_i32 = arith.constant 0 : i32
    %c0_i32_0 = arith.constant 0 : i32
    return %arg0, %c0_i32 : i32, i32
  }
  func.func @transform_1(%arg0: i32, %arg1: i32) -> (i32, i32) {
    %c0_i32 = arith.constant 0 : i32
    %c0_i32_0 = arith.constant 0 : i32
    return %c0_i32, %arg1 : i32, i32
  }
  func.func @transform_2(%arg0: i32, %arg1: i32) -> (i32, i32) {
    %c0_i32 = arith.constant 0 : i32
    %c0_i32_0 = arith.constant 0 : i32
    return %c0_i32, %arg1 : i32, i32
  }
  func.func @transform_3(%arg0: i32, %arg1: i32) -> (i32, i32) {
    %c0_i32 = arith.constant 0 : i32
    %c0_i32_0 = arith.constant 0 : i32
    return %c0_i32, %arg1 : i32, i32
  }
  func.func @transform_4(%arg0: i32, %arg1: i32) -> (i32, i32) {
    %c0_i32 = arith.constant 0 : i32
    %c0_i32_0 = arith.constant 0 : i32
    return %c0_i32, %arg1 : i32, i32
  }
  func.func @transform_5(%arg0: i32, %arg1: i32) -> (i32, i32) {
    %c0_i32 = arith.constant 0 : i32
    return %arg0, %arg1 : i32, i32
  }
}

module attributes {stable_mosaic.version = 11 : i64} {
  func.func @_mm_kernel(%arg0: i32, %arg1: i32, %arg2: memref<128x72xbf16, #tpu.memory_space<vmem>>, %arg3: memref<72x128xbf16, #tpu.memory_space<vmem>>, %arg4: memref<1x128xf32, #tpu.memory_space<vmem>>, %arg5: memref<1x128xf32, #tpu.memory_space<vmem>>, %arg6: memref<1x128xf32, #tpu.memory_space<vmem>>, %arg7: memref<128x128xbf16, #tpu.memory_space<vmem>>) attributes {dimension_semantics = [#tpu.dimension_semantics<parallel>, #tpu.dimension_semantics<parallel>], iteration_bounds = array<i64: 1, 1>, scalar_prefetch = 0 : i64, scratch_operands = 0 : i64, tpu.core_type = #tpu.core_type<tc>, window_params = [{transform_indices = @transform_0, window_bounds = array<i64: 128, 72>}, {transform_indices = @transform_1, window_bounds = array<i64: 72, 128>}, {transform_indices = @transform_2, window_bounds = array<i64: 1, 128>}, {transform_indices = @transform_3, window_bounds = array<i64: 1, 128>}, {transform_indices = @transform_4, window_bounds = array<i64: 1, 128>}, {transform_indices = @transform_5, window_bounds = array<i64: 128, 128>}]} {
    %c0 = arith.constant 0 : index
    %c0_0 = arith.constant 0 : index
    %0 = vector.load %arg2[%c0, %c0_0] : memref<128x72xbf16, #tpu.memory_space<vmem>>, vector<128x72xbf16>
    %c0_1 = arith.constant 0 : index
    %c0_2 = arith.constant 0 : index
    %1 = vector.load %arg3[%c0_1, %c0_2] : memref<72x128xbf16, #tpu.memory_space<vmem>>, vector<72x128xbf16>
    %cst = arith.constant dense<0.000000e+00> : vector<128x128xf32>
    %2 = tpu.matmul %0, %1, %cst {dimension_numbers = #tpu.dot_dimension_numbers<[1], [0], [0], [1], [0, 0, 1, 1], [], []>} : vector<128x72xbf16>, vector<72x128xbf16>, vector<128x128xf32> -> vector<128x128xf32>
    %c0_3 = arith.constant 0 : index
    %c0_4 = arith.constant 0 : index
    %3 = vector.load %arg4[%c0_3, %c0_4] : memref<1x128xf32, #tpu.memory_space<vmem>>, vector<1x128xf32>
    %4 = vector.broadcast %3 : vector<1x128xf32> to vector<128x128xf32>
    %5 = arith.addf %2, %4 : vector<128x128xf32>
    %cst_5 = arith.constant 0.000000e+00 : f32
    %6 = vector.broadcast %cst_5 : f32 to vector<128x128xf32>
    %7 = arith.maximumf %5, %6 : vector<128x128xf32>
    %c0_6 = arith.constant 0 : index
    %c0_7 = arith.constant 0 : index
    %8 = vector.load %arg5[%c0_6, %c0_7] : memref<1x128xf32, #tpu.memory_space<vmem>>, vector<1x128xf32>
    %9 = vector.broadcast %8 : vector<1x128xf32> to vector<128x128xf32>
    %10 = arith.mulf %7, %9 : vector<128x128xf32>
    %c0_8 = arith.constant 0 : index
    %c0_9 = arith.constant 0 : index
    %11 = vector.load %arg6[%c0_8, %c0_9] : memref<1x128xf32, #tpu.memory_space<vmem>>, vector<1x128xf32>
    %12 = vector.broadcast %11 : vector<1x128xf32> to vector<128x128xf32>
    %13 = arith.addf %10, %12 : vector<128x128xf32>
    %14 = arith.truncf %13 : vector<128x128xf32> to vector<128x128xbf16>
    %c0_10 = arith.constant 0 : index
    %c0_11 = arith.constant 0 : index
    %15 = vector.load %arg7[%c0_10, %c0_11] : memref<128x128xbf16, #tpu.memory_space<vmem>>, vector<128x128xbf16>
    tpu.vector_store %arg7[%c0_10, %c0_11], %14 {strides = array<i32>} : memref<128x128xbf16, #tpu.memory_space<vmem>>, vector<128x128xbf16>,
    return
  }
  func.func @transform_0(%arg0: i32, %arg1: i32) -> (i32, i32) {
    %c0_i32 = arith.constant 0 : i32
    %c0_i32_0 = arith.constant 0 : i32
    return %arg0, %c0_i32 : i32, i32
  }
  func.func @transform_1(%arg0: i32, %arg1: i32) -> (i32, i32) {
    %c0_i32 = arith.constant 0 : i32
    %c0_i32_0 = arith.constant 0 : i32
    return %c0_i32, %arg1 : i32, i32
  }
  func.func @transform_2(%arg0: i32, %arg1: i32) -> (i32, i32) {
    %c0_i32 = arith.constant 0 : i32
    %c0_i32_0 = arith.constant 0 : i32
    return %c0_i32, %arg1 : i32, i32
  }
  func.func @transform_3(%arg0: i32, %arg1: i32) -> (i32, i32) {
    %c0_i32 = arith.constant 0 : i32
    %c0_i32_0 = arith.constant 0 : i32
    return %c0_i32, %arg1 : i32, i32
  }
  func.func @transform_4(%arg0: i32, %arg1: i32) -> (i32, i32) {
    %c0_i32 = arith.constant 0 : i32
    %c0_i32_0 = arith.constant 0 : i32
    return %c0_i32, %arg1 : i32, i32
  }
  func.func @transform_5(%arg0: i32, %arg1: i32) -> (i32, i32) {
    %c0_i32 = arith.constant 0 : i32
    return %arg0, %arg1 : i32, i32
  }
}

module attributes {stable_mosaic.version = 11 : i64} {
  func.func @_mm_kernel(%arg0: i32, %arg1: i32, %arg2: memref<128x144xbf16, #tpu.memory_space<vmem>>, %arg3: memref<144x128xbf16, #tpu.memory_space<vmem>>, %arg4: memref<1x128xf32, #tpu.memory_space<vmem>>, %arg5: memref<1x128xf32, #tpu.memory_space<vmem>>, %arg6: memref<1x128xf32, #tpu.memory_space<vmem>>, %arg7: memref<1x128xf32, #tpu.memory_space<vmem>>, %arg8: memref<128x128xbf16, #tpu.memory_space<vmem>>) attributes {dimension_semantics = [#tpu.dimension_semantics<parallel>, #tpu.dimension_semantics<parallel>], iteration_bounds = array<i64: 1, 1>, scalar_prefetch = 0 : i64, scratch_operands = 0 : i64, tpu.core_type = #tpu.core_type<tc>, window_params = [{transform_indices = @transform_0, window_bounds = array<i64: 128, 144>}, {transform_indices = @transform_1, window_bounds = array<i64: 144, 128>}, {transform_indices = @transform_2, window_bounds = array<i64: 1, 128>}, {transform_indices = @transform_3, window_bounds = array<i64: 1, 128>}, {transform_indices = @transform_4, window_bounds = array<i64: 1, 128>}, {transform_indices = @transform_5, window_bounds = array<i64: 1, 128>}, {transform_indices = @transform_6, window_bounds = array<i64: 128, 128>}]} {
    %c0 = arith.constant 0 : index
    %c0_0 = arith.constant 0 : index
    %0 = vector.load %arg2[%c0, %c0_0] : memref<128x144xbf16, #tpu.memory_space<vmem>>, vector<128x144xbf16>
    %c0_1 = arith.constant 0 : index
    %c0_2 = arith.constant 0 : index
    %1 = vector.load %arg3[%c0_1, %c0_2] : memref<144x128xbf16, #tpu.memory_space<vmem>>, vector<144x128xbf16>
    %cst = arith.constant dense<0.000000e+00> : vector<128x128xf32>
    %2 = tpu.matmul %0, %1, %cst {dimension_numbers = #tpu.dot_dimension_numbers<[1], [0], [0], [1], [0, 0, 1, 1], [], []>} : vector<128x144xbf16>, vector<144x128xbf16>, vector<128x128xf32> -> vector<128x128xf32>
    %c0_3 = arith.constant 0 : index
    %c0_4 = arith.constant 0 : index
    %3 = vector.load %arg4[%c0_3, %c0_4] : memref<1x128xf32, #tpu.memory_space<vmem>>, vector<1x128xf32>
    %4 = vector.broadcast %3 : vector<1x128xf32> to vector<128x128xf32>
    %5 = arith.addf %2, %4 : vector<128x128xf32>
    %c0_5 = arith.constant 0 : index
    %c0_6 = arith.constant 0 : index
    %6 = vector.load %arg5[%c0_5, %c0_6] : memref<1x128xf32, #tpu.memory_space<vmem>>, vector<1x128xf32>
    %cst_7 = arith.constant 5.000000e-01 : f32
    %7 = vector.broadcast %cst_7 : f32 to vector<1x128xf32>
    %8 = arith.cmpf ogt, %6, %7 : vector<1x128xf32>
    %cst_8 = arith.constant 0.000000e+00 : f32
    %9 = vector.broadcast %cst_8 : f32 to vector<128x128xf32>
    %10 = arith.maximumf %5, %9 : vector<128x128xf32>
    %11 = vector.shape_cast %8 : vector<1x128xi1> to vector<1x128xi1>
    %12 = vector.broadcast %11 : vector<1x128xi1> to vector<128x128xi1>
    %13 = arith.select %12, %10, %5 : vector<128x128xi1>, vector<128x128xf32>
    %c0_9 = arith.constant 0 : index
    %c0_10 = arith.constant 0 : index
    %14 = vector.load %arg6[%c0_9, %c0_10] : memref<1x128xf32, #tpu.memory_space<vmem>>, vector<1x128xf32>
    %15 = vector.broadcast %14 : vector<1x128xf32> to vector<128x128xf32>
    %16 = arith.mulf %13, %15 : vector<128x128xf32>
    %c0_11 = arith.constant 0 : index
    %c0_12 = arith.constant 0 : index
    %17 = vector.load %arg7[%c0_11, %c0_12] : memref<1x128xf32, #tpu.memory_space<vmem>>, vector<1x128xf32>
    %18 = vector.broadcast %17 : vector<1x128xf32> to vector<128x128xf32>
    %19 = arith.addf %16, %18 : vector<128x128xf32>
    %20 = arith.truncf %19 : vector<128x128xf32> to vector<128x128xbf16>
    %c0_13 = arith.constant 0 : index
    %c0_14 = arith.constant 0 : index
    %21 = vector.load %arg8[%c0_13, %c0_14] : memref<128x128xbf16, #tpu.memory_space<vmem>>, vector<128x128xbf16>
    tpu.vector_store %arg8[%c0_13, %c0_14], %20 {strides = array<i32>} : memref<128x128xbf16, #tpu.memory_space<vmem>>, vector<128x128xbf16>,
    return
  }
  func.func @transform_0(%arg0: i32, %arg1: i32) -> (i32, i32) {
    %c0_i32 = arith.constant 0 : i32
    %c0_i32_0 = arith.constant 0 : i32
    return %arg0, %c0_i32 : i32, i32
  }
  func.func @transform_1(%arg0: i32, %arg1: i32) -> (i32, i32) {
    %c0_i32 = arith.constant 0 : i32
    %c0_i32_0 = arith.constant 0 : i32
    return %c0_i32, %arg1 : i32, i32
  }
  func.func @transform_2(%arg0: i32, %arg1: i32) -> (i32, i32) {
    %c0_i32 = arith.constant 0 : i32
    %c0_i32_0 = arith.constant 0 : i32
    return %c0_i32, %arg1 : i32, i32
  }
  func.func @transform_3(%arg0: i32, %arg1: i32) -> (i32, i32) {
    %c0_i32 = arith.constant 0 : i32
    %c0_i32_0 = arith.constant 0 : i32
    return %c0_i32, %arg1 : i32, i32
  }
  func.func @transform_4(%arg0: i32, %arg1: i32) -> (i32, i32) {
    %c0_i32 = arith.constant 0 : i32
    %c0_i32_0 = arith.constant 0 : i32
    return %c0_i32, %arg1 : i32, i32
  }
  func.func @transform_5(%arg0: i32, %arg1: i32) -> (i32, i32) {
    %c0_i32 = arith.constant 0 : i32
    %c0_i32_0 = arith.constant 0 : i32
    return %c0_i32, %arg1 : i32, i32
  }
  func.func @transform_6(%arg0: i32, %arg1: i32) -> (i32, i32) {
    %c0_i32 = arith.constant 0 : i32
    return %arg0, %arg1 : i32, i32
  }
}

module attributes {stable_mosaic.version = 11 : i64} {
  func.func @_mm_kernel(%arg0: i32, %arg1: i32, %arg2: memref<128x288xbf16, #tpu.memory_space<vmem>>, %arg3: memref<288x128xbf16, #tpu.memory_space<vmem>>, %arg4: memref<1x128xf32, #tpu.memory_space<vmem>>, %arg5: memref<128x128xbf16, #tpu.memory_space<vmem>>) attributes {dimension_semantics = [#tpu.dimension_semantics<parallel>, #tpu.dimension_semantics<parallel>], iteration_bounds = array<i64: 1, 1>, scalar_prefetch = 0 : i64, scratch_operands = 0 : i64, tpu.core_type = #tpu.core_type<tc>, window_params = [{transform_indices = @transform_0, window_bounds = array<i64: 128, 288>}, {transform_indices = @transform_1, window_bounds = array<i64: 288, 128>}, {transform_indices = @transform_2, window_bounds = array<i64: 1, 128>}, {transform_indices = @transform_3, window_bounds = array<i64: 128, 128>}]} {
    %c0 = arith.constant 0 : index
    %c0_0 = arith.constant 0 : index
    %0 = vector.load %arg2[%c0, %c0_0] : memref<128x288xbf16, #tpu.memory_space<vmem>>, vector<128x288xbf16>
    %c0_1 = arith.constant 0 : index
    %c0_2 = arith.constant 0 : index
    %1 = vector.load %arg3[%c0_1, %c0_2] : memref<288x128xbf16, #tpu.memory_space<vmem>>, vector<288x128xbf16>
    %cst = arith.constant dense<0.000000e+00> : vector<128x128xf32>
    %2 = tpu.matmul %0, %1, %cst {dimension_numbers = #tpu.dot_dimension_numbers<[1], [0], [0], [1], [0, 0, 1, 1], [], []>} : vector<128x288xbf16>, vector<288x128xbf16>, vector<128x128xf32> -> vector<128x128xf32>
    %c0_3 = arith.constant 0 : index
    %c0_4 = arith.constant 0 : index
    %3 = vector.load %arg4[%c0_3, %c0_4] : memref<1x128xf32, #tpu.memory_space<vmem>>, vector<1x128xf32>
    %4 = vector.broadcast %3 : vector<1x128xf32> to vector<128x128xf32>
    %5 = arith.addf %2, %4 : vector<128x128xf32>
    %6 = arith.truncf %5 : vector<128x128xf32> to vector<128x128xbf16>
    %c0_5 = arith.constant 0 : index
    %c0_6 = arith.constant 0 : index
    %7 = vector.load %arg5[%c0_5, %c0_6] : memref<128x128xbf16, #tpu.memory_space<vmem>>, vector<128x128xbf16>
    tpu.vector_store %arg5[%c0_5, %c0_6], %6 {strides = array<i32>} : memref<128x128xbf16, #tpu.memory_space<vmem>>, vector<128x128xbf16>,
    return
  }
  func.func @transform_0(%arg0: i32, %arg1: i32) -> (i32, i32) {
    %c0_i32 = arith.constant 0 : i32
    %c0_i32_0 = arith.constant 0 : i32
    return %arg0, %c0_i32 : i32, i32
  }
  func.func @transform_1(%arg0: i32, %arg1: i32) -> (i32, i32) {
    %c0_i32 = arith.constant 0 : i32
    %c0_i32_0 = arith.constant 0 : i32
    return %c0_i32, %arg1 : i32, i32
  }
  func.func @transform_2(%arg0: i32, %arg1: i32) -> (i32, i32) {
    %c0_i32 = arith.constant 0 : i32
    %c0_i32_0 = arith.constant 0 : i32
    return %c0_i32, %arg1 : i32, i32
  }
  func.func @transform_3(%arg0: i32, %arg1: i32) -> (i32, i32) {
    %c0_i32 = arith.constant 0 : i32
    return %arg0, %arg1 : i32, i32
  }
}

module attributes {stable_mosaic.version = 11 : i64} {
  func.func @_mm_kernel(%arg0: i32, %arg1: i32, %arg2: memref<32x864xbf16, #tpu.memory_space<vmem>>, %arg3: memref<864x128xbf16, #tpu.memory_space<vmem>>, %arg4: memref<1x128xf32, #tpu.memory_space<vmem>>, %arg5: memref<1x128xf32, #tpu.memory_space<vmem>>, %arg6: memref<1x128xf32, #tpu.memory_space<vmem>>, %arg7: memref<1x128xf32, #tpu.memory_space<vmem>>, %arg8: memref<32x128xbf16, #tpu.memory_space<vmem>>) attributes {dimension_semantics = [#tpu.dimension_semantics<parallel>, #tpu.dimension_semantics<parallel>], iteration_bounds = array<i64: 1, 2>, scalar_prefetch = 0 : i64, scratch_operands = 0 : i64, tpu.core_type = #tpu.core_type<tc>, window_params = [{transform_indices = @transform_0, window_bounds = array<i64: 32, 864>}, {transform_indices = @transform_1, window_bounds = array<i64: 864, 128>}, {transform_indices = @transform_2, window_bounds = array<i64: 1, 128>}, {transform_indices = @transform_3, window_bounds = array<i64: 1, 128>}, {transform_indices = @transform_4, window_bounds = array<i64: 1, 128>}, {transform_indices = @transform_5, window_bounds = array<i64: 1, 128>}, {transform_indices = @transform_6, window_bounds = array<i64: 32, 128>}]} {
    %c0 = arith.constant 0 : index
    %c0_0 = arith.constant 0 : index
    %0 = vector.load %arg2[%c0, %c0_0] : memref<32x864xbf16, #tpu.memory_space<vmem>>, vector<32x864xbf16>
    %c0_1 = arith.constant 0 : index
    %c0_2 = arith.constant 0 : index
    %1 = vector.load %arg3[%c0_1, %c0_2] : memref<864x128xbf16, #tpu.memory_space<vmem>>, vector<864x128xbf16>
    %cst = arith.constant dense<0.000000e+00> : vector<32x128xf32>
    %2 = tpu.matmul %0, %1, %cst {dimension_numbers = #tpu.dot_dimension_numbers<[1], [0], [0], [1], [0, 0, 1, 1], [], []>} : vector<32x864xbf16>, vector<864x128xbf16>, vector<32x128xf32> -> vector<32x128xf32>
    %c0_3 = arith.constant 0 : index
    %c0_4 = arith.constant 0 : index
    %3 = vector.load %arg4[%c0_3, %c0_4] : memref<1x128xf32, #tpu.memory_space<vmem>>, vector<1x128xf32>
    %4 = vector.broadcast %3 : vector<1x128xf32> to vector<32x128xf32>
    %5 = arith.addf %2, %4 : vector<32x128xf32>
    %c0_5 = arith.constant 0 : index
    %c0_6 = arith.constant 0 : index
    %6 = vector.load %arg5[%c0_5, %c0_6] : memref<1x128xf32, #tpu.memory_space<vmem>>, vector<1x128xf32>
    %cst_7 = arith.constant 5.000000e-01 : f32
    %7 = vector.broadcast %cst_7 : f32 to vector<1x128xf32>
    %8 = arith.cmpf ogt, %6, %7 : vector<1x128xf32>
    %cst_8 = arith.constant 0.000000e+00 : f32
    %9 = vector.broadcast %cst_8 : f32 to vector<32x128xf32>
    %10 = arith.maximumf %5, %9 : vector<32x128xf32>
    %11 = vector.shape_cast %8 : vector<1x128xi1> to vector<1x128xi1>
    %12 = vector.broadcast %11 : vector<1x128xi1> to vector<32x128xi1>
    %13 = arith.select %12, %10, %5 : vector<32x128xi1>, vector<32x128xf32>
    %c0_9 = arith.constant 0 : index
    %c0_10 = arith.constant 0 : index
    %14 = vector.load %arg6[%c0_9, %c0_10] : memref<1x128xf32, #tpu.memory_space<vmem>>, vector<1x128xf32>
    %15 = vector.broadcast %14 : vector<1x128xf32> to vector<32x128xf32>
    %16 = arith.mulf %13, %15 : vector<32x128xf32>
    %c0_11 = arith.constant 0 : index
    %c0_12 = arith.constant 0 : index
    %17 = vector.load %arg7[%c0_11, %c0_12] : memref<1x128xf32, #tpu.memory_space<vmem>>, vector<1x128xf32>
    %18 = vector.broadcast %17 : vector<1x128xf32> to vector<32x128xf32>
    %19 = arith.addf %16, %18 : vector<32x128xf32>
    %20 = arith.truncf %19 : vector<32x128xf32> to vector<32x128xbf16>
    %c0_13 = arith.constant 0 : index
    %c0_14 = arith.constant 0 : index
    %21 = vector.load %arg8[%c0_13, %c0_14] : memref<32x128xbf16, #tpu.memory_space<vmem>>, vector<32x128xbf16>
    tpu.vector_store %arg8[%c0_13, %c0_14], %20 {strides = array<i32>} : memref<32x128xbf16, #tpu.memory_space<vmem>>, vector<32x128xbf16>,
    return
  }
  func.func @transform_0(%arg0: i32, %arg1: i32) -> (i32, i32) {
    %c0_i32 = arith.constant 0 : i32
    %c0_i32_0 = arith.constant 0 : i32
    return %arg0, %c0_i32 : i32, i32
  }
  func.func @transform_1(%arg0: i32, %arg1: i32) -> (i32, i32) {
    %c0_i32 = arith.constant 0 : i32
    %c0_i32_0 = arith.constant 0 : i32
    return %c0_i32, %arg1 : i32, i32
  }
  func.func @transform_2(%arg0: i32, %arg1: i32) -> (i32, i32) {
    %c0_i32 = arith.constant 0 : i32
    %c0_i32_0 = arith.constant 0 : i32
    return %c0_i32, %arg1 : i32, i32
  }
  func.func @transform_3(%arg0: i32, %arg1: i32) -> (i32, i32) {
    %c0_i32 = arith.constant 0 : i32
    %c0_i32_0 = arith.constant 0 : i32
    return %c0_i32, %arg1 : i32, i32
  }
  func.func @transform_4(%arg0: i32, %arg1: i32) -> (i32, i32) {
    %c0_i32 = arith.constant 0 : i32
    %c0_i32_0 = arith.constant 0 : i32
    return %c0_i32, %arg1 : i32, i32
  }
  func.func @transform_5(%arg0: i32, %arg1: i32) -> (i32, i32) {
    %c0_i32 = arith.constant 0 : i32
    %c0_i32_0 = arith.constant 0 : i32
    return %c0_i32, %arg1 : i32, i32
  }
  func.func @transform_6(%arg0: i32, %arg1: i32) -> (i32, i32) {
    %c0_i32 = arith.constant 0 : i32
    return %arg0, %arg1 : i32, i32
  }
}

module attributes {stable_mosaic.version = 11 : i64} {
  func.func @_mm_kernel(%arg0: i32, %arg1: i32, %arg2: memref<32x288xbf16, #tpu.memory_space<vmem>>, %arg3: memref<288x128xbf16, #tpu.memory_space<vmem>>, %arg4: memref<1x128xf32, #tpu.memory_space<vmem>>, %arg5: memref<32x128xbf16, #tpu.memory_space<vmem>>) attributes {dimension_semantics = [#tpu.dimension_semantics<parallel>, #tpu.dimension_semantics<parallel>], iteration_bounds = array<i64: 1, 1>, scalar_prefetch = 0 : i64, scratch_operands = 0 : i64, tpu.core_type = #tpu.core_type<tc>, window_params = [{transform_indices = @transform_0, window_bounds = array<i64: 32, 288>}, {transform_indices = @transform_1, window_bounds = array<i64: 288, 128>}, {transform_indices = @transform_2, window_bounds = array<i64: 1, 128>}, {transform_indices = @transform_3, window_bounds = array<i64: 32, 128>}]} {
    %c0 = arith.constant 0 : index
    %c0_0 = arith.constant 0 : index
    %0 = vector.load %arg2[%c0, %c0_0] : memref<32x288xbf16, #tpu.memory_space<vmem>>, vector<32x288xbf16>
    %c0_1 = arith.constant 0 : index
    %c0_2 = arith.constant 0 : index
    %1 = vector.load %arg3[%c0_1, %c0_2] : memref<288x128xbf16, #tpu.memory_space<vmem>>, vector<288x128xbf16>
    %cst = arith.constant dense<0.000000e+00> : vector<32x128xf32>
    %2 = tpu.matmul %0, %1, %cst {dimension_numbers = #tpu.dot_dimension_numbers<[1], [0], [0], [1], [0, 0, 1, 1], [], []>} : vector<32x288xbf16>, vector<288x128xbf16>, vector<32x128xf32> -> vector<32x128xf32>
    %c0_3 = arith.constant 0 : index
    %c0_4 = arith.constant 0 : index
    %3 = vector.load %arg4[%c0_3, %c0_4] : memref<1x128xf32, #tpu.memory_space<vmem>>, vector<1x128xf32>
    %4 = vector.broadcast %3 : vector<1x128xf32> to vector<32x128xf32>
    %5 = arith.addf %2, %4 : vector<32x128xf32>
    %6 = arith.truncf %5 : vector<32x128xf32> to vector<32x128xbf16>
    %c0_5 = arith.constant 0 : index
    %c0_6 = arith.constant 0 : index
    %7 = vector.load %arg5[%c0_5, %c0_6] : memref<32x128xbf16, #tpu.memory_space<vmem>>, vector<32x128xbf16>
    tpu.vector_store %arg5[%c0_5, %c0_6], %6 {strides = array<i32>} : memref<32x128xbf16, #tpu.memory_space<vmem>>, vector<32x128xbf16>,
    return
  }
  func.func @transform_0(%arg0: i32, %arg1: i32) -> (i32, i32) {
    %c0_i32 = arith.constant 0 : i32
    %c0_i32_0 = arith.constant 0 : i32
    return %arg0, %c0_i32 : i32, i32
  }
  func.func @transform_1(%arg0: i32, %arg1: i32) -> (i32, i32) {
    %c0_i32 = arith.constant 0 : i32
    %c0_i32_0 = arith.constant 0 : i32
    return %c0_i32, %arg1 : i32, i32
  }
  func.func @transform_2(%arg0: i32, %arg1: i32) -> (i32, i32) {
    %c0_i32 = arith.constant 0 : i32
    %c0_i32_0 = arith.constant 0 : i32
    return %c0_i32, %arg1 : i32, i32
  }
  func.func @transform_3(%arg0: i32, %arg1: i32) -> (i32, i32) {
    %c0_i32 = arith.constant 0 : i32
    return %arg0, %arg1 : i32, i32
  }
}

module attributes {stable_mosaic.version = 11 : i64} {
  func.func @_mm_kernel(%arg0: i32, %arg1: i32, %arg2: memref<8x256xbf16, #tpu.memory_space<vmem>>, %arg3: memref<256x128xbf16, #tpu.memory_space<vmem>>, %arg4: memref<1x128xf32, #tpu.memory_space<vmem>>, %arg5: memref<8x128xbf16, #tpu.memory_space<vmem>>) attributes {dimension_semantics = [#tpu.dimension_semantics<parallel>, #tpu.dimension_semantics<parallel>], iteration_bounds = array<i64: 1, 3>, scalar_prefetch = 0 : i64, scratch_operands = 0 : i64, tpu.core_type = #tpu.core_type<tc>, window_params = [{transform_indices = @transform_0, window_bounds = array<i64: 8, 256>}, {transform_indices = @transform_1, window_bounds = array<i64: 256, 128>}, {transform_indices = @transform_2, window_bounds = array<i64: 1, 128>}, {transform_indices = @transform_3, window_bounds = array<i64: 8, 128>}]} {
    %c0 = arith.constant 0 : index
    %c0_0 = arith.constant 0 : index
    %0 = vector.load %arg2[%c0, %c0_0] : memref<8x256xbf16, #tpu.memory_space<vmem>>, vector<8x256xbf16>
    %c0_1 = arith.constant 0 : index
    %c0_2 = arith.constant 0 : index
    %1 = vector.load %arg3[%c0_1, %c0_2] : memref<256x128xbf16, #tpu.memory_space<vmem>>, vector<256x128xbf16>
    %cst = arith.constant dense<0.000000e+00> : vector<8x128xf32>
    %2 = tpu.matmul %0, %1, %cst {dimension_numbers = #tpu.dot_dimension_numbers<[1], [0], [0], [1], [0, 0, 1, 1], [], []>} : vector<8x256xbf16>, vector<256x128xbf16>, vector<8x128xf32> -> vector<8x128xf32>
    %c0_3 = arith.constant 0 : index
    %c0_4 = arith.constant 0 : index
    %3 = vector.load %arg4[%c0_3, %c0_4] : memref<1x128xf32, #tpu.memory_space<vmem>>, vector<1x128xf32>
    %4 = vector.broadcast %3 : vector<1x128xf32> to vector<8x128xf32>
    %5 = arith.addf %2, %4 : vector<8x128xf32>
    %6 = arith.truncf %5 : vector<8x128xf32> to vector<8x128xbf16>
    %c0_5 = arith.constant 0 : index
    %c0_6 = arith.constant 0 : index
    %7 = vector.load %arg5[%c0_5, %c0_6] : memref<8x128xbf16, #tpu.memory_space<vmem>>, vector<8x128xbf16>
    tpu.vector_store %arg5[%c0_5, %c0_6], %6 {strides = array<i32>} : memref<8x128xbf16, #tpu.memory_space<vmem>>, vector<8x128xbf16>,
    return
  }
  func.func @transform_0(%arg0: i32, %arg1: i32) -> (i32, i32) {
    %c0_i32 = arith.constant 0 : i32
    %c0_i32_0 = arith.constant 0 : i32
    return %arg0, %c0_i32 : i32, i32
  }
  func.func @transform_1(%arg0: i32, %arg1: i32) -> (i32, i32) {
    %c0_i32 = arith.constant 0 : i32
    %c0_i32_0 = arith.constant 0 : i32
    return %c0_i32, %arg1 : i32, i32
  }
  func.func @transform_2(%arg0: i32, %arg1: i32) -> (i32, i32) {
    %c0_i32 = arith.constant 0 : i32
    %c0_i32_0 = arith.constant 0 : i32
    return %c0_i32, %arg1 : i32, i32
  }
  func.func @transform_3(%arg0: i32, %arg1: i32) -> (i32, i32) {
    %c0_i32 = arith.constant 0 : i32
    return %arg0, %arg1 : i32, i32
  }
}

module attributes {stable_mosaic.version = 11 : i64} {
  func.func @_mm_kernel(%arg0: i32, %arg1: i32, %arg2: memref<32x864xbf16, #tpu.memory_space<vmem>>, %arg3: memref<864x128xbf16, #tpu.memory_space<vmem>>, %arg4: memref<1x128xf32, #tpu.memory_space<vmem>>, %arg5: memref<1x128xf32, #tpu.memory_space<vmem>>, %arg6: memref<1x128xf32, #tpu.memory_space<vmem>>, %arg7: memref<32x128xbf16, #tpu.memory_space<vmem>>) attributes {dimension_semantics = [#tpu.dimension_semantics<parallel>, #tpu.dimension_semantics<parallel>], iteration_bounds = array<i64: 1, 1>, scalar_prefetch = 0 : i64, scratch_operands = 0 : i64, tpu.core_type = #tpu.core_type<tc>, window_params = [{transform_indices = @transform_0, window_bounds = array<i64: 32, 864>}, {transform_indices = @transform_1, window_bounds = array<i64: 864, 128>}, {transform_indices = @transform_2, window_bounds = array<i64: 1, 128>}, {transform_indices = @transform_3, window_bounds = array<i64: 1, 128>}, {transform_indices = @transform_4, window_bounds = array<i64: 1, 128>}, {transform_indices = @transform_5, window_bounds = array<i64: 32, 128>}]} {
    %c0 = arith.constant 0 : index
    %c0_0 = arith.constant 0 : index
    %0 = vector.load %arg2[%c0, %c0_0] : memref<32x864xbf16, #tpu.memory_space<vmem>>, vector<32x864xbf16>
    %c0_1 = arith.constant 0 : index
    %c0_2 = arith.constant 0 : index
    %1 = vector.load %arg3[%c0_1, %c0_2] : memref<864x128xbf16, #tpu.memory_space<vmem>>, vector<864x128xbf16>
    %cst = arith.constant dense<0.000000e+00> : vector<32x128xf32>
    %2 = tpu.matmul %0, %1, %cst {dimension_numbers = #tpu.dot_dimension_numbers<[1], [0], [0], [1], [0, 0, 1, 1], [], []>} : vector<32x864xbf16>, vector<864x128xbf16>, vector<32x128xf32> -> vector<32x128xf32>
    %c0_3 = arith.constant 0 : index
    %c0_4 = arith.constant 0 : index
    %3 = vector.load %arg4[%c0_3, %c0_4] : memref<1x128xf32, #tpu.memory_space<vmem>>, vector<1x128xf32>
    %4 = vector.broadcast %3 : vector<1x128xf32> to vector<32x128xf32>
    %5 = arith.addf %2, %4 : vector<32x128xf32>
    %cst_5 = arith.constant 0.000000e+00 : f32
    %6 = vector.broadcast %cst_5 : f32 to vector<32x128xf32>
    %7 = arith.maximumf %5, %6 : vector<32x128xf32>
    %c0_6 = arith.constant 0 : index
    %c0_7 = arith.constant 0 : index
    %8 = vector.load %arg5[%c0_6, %c0_7] : memref<1x128xf32, #tpu.memory_space<vmem>>, vector<1x128xf32>
    %9 = vector.broadcast %8 : vector<1x128xf32> to vector<32x128xf32>
    %10 = arith.mulf %7, %9 : vector<32x128xf32>
    %c0_8 = arith.constant 0 : index
    %c0_9 = arith.constant 0 : index
    %11 = vector.load %arg6[%c0_8, %c0_9] : memref<1x128xf32, #tpu.memory_space<vmem>>, vector<1x128xf32>
    %12 = vector.broadcast %11 : vector<1x128xf32> to vector<32x128xf32>
    %13 = arith.addf %10, %12 : vector<32x128xf32>
    %14 = arith.truncf %13 : vector<32x128xf32> to vector<32x128xbf16>
    %c0_10 = arith.constant 0 : index
    %c0_11 = arith.constant 0 : index
    %15 = vector.load %arg7[%c0_10, %c0_11] : memref<32x128xbf16, #tpu.memory_space<vmem>>, vector<32x128xbf16>
    tpu.vector_store %arg7[%c0_10, %c0_11], %14 {strides = array<i32>} : memref<32x128xbf16, #tpu.memory_space<vmem>>, vector<32x128xbf16>,
    return
  }
  func.func @transform_0(%arg0: i32, %arg1: i32) -> (i32, i32) {
    %c0_i32 = arith.constant 0 : i32
    %c0_i32_0 = arith.constant 0 : i32
    return %arg0, %c0_i32 : i32, i32
  }
  func.func @transform_1(%arg0: i32, %arg1: i32) -> (i32, i32) {
    %c0_i32 = arith.constant 0 : i32
    %c0_i32_0 = arith.constant 0 : i32
    return %c0_i32, %arg1 : i32, i32
  }
  func.func @transform_2(%arg0: i32, %arg1: i32) -> (i32, i32) {
    %c0_i32 = arith.constant 0 : i32
    %c0_i32_0 = arith.constant 0 : i32
    return %c0_i32, %arg1 : i32, i32
  }
  func.func @transform_3(%arg0: i32, %arg1: i32) -> (i32, i32) {
    %c0_i32 = arith.constant 0 : i32
    %c0_i32_0 = arith.constant 0 : i32
    return %c0_i32, %arg1 : i32, i32
  }
  func.func @transform_4(%arg0: i32, %arg1: i32) -> (i32, i32) {
    %c0_i32 = arith.constant 0 : i32
    %c0_i32_0 = arith.constant 0 : i32
    return %c0_i32, %arg1 : i32, i32
  }
  func.func @transform_5(%arg0: i32, %arg1: i32) -> (i32, i32) {
    %c0_i32 = arith.constant 0 : i32
    return %arg0, %arg1 : i32, i32
  }
}

module attributes {stable_mosaic.version = 11 : i64} {
  func.func @_mm_kernel(%arg0: i32, %arg1: i32, %arg2: memref<32x384xbf16, #tpu.memory_space<vmem>>, %arg3: memref<384x128xbf16, #tpu.memory_space<vmem>>, %arg4: memref<1x128xf32, #tpu.memory_space<vmem>>, %arg5: memref<32x128xbf16, #tpu.memory_space<vmem>>) attributes {dimension_semantics = [#tpu.dimension_semantics<parallel>, #tpu.dimension_semantics<parallel>], iteration_bounds = array<i64: 1, 2>, scalar_prefetch = 0 : i64, scratch_operands = 0 : i64, tpu.core_type = #tpu.core_type<tc>, window_params = [{transform_indices = @transform_0, window_bounds = array<i64: 32, 384>}, {transform_indices = @transform_1, window_bounds = array<i64: 384, 128>}, {transform_indices = @transform_2, window_bounds = array<i64: 1, 128>}, {transform_indices = @transform_3, window_bounds = array<i64: 32, 128>}]} {
    %c0 = arith.constant 0 : index
    %c0_0 = arith.constant 0 : index
    %0 = vector.load %arg2[%c0, %c0_0] : memref<32x384xbf16, #tpu.memory_space<vmem>>, vector<32x384xbf16>
    %c0_1 = arith.constant 0 : index
    %c0_2 = arith.constant 0 : index
    %1 = vector.load %arg3[%c0_1, %c0_2] : memref<384x128xbf16, #tpu.memory_space<vmem>>, vector<384x128xbf16>
    %cst = arith.constant dense<0.000000e+00> : vector<32x128xf32>
    %2 = tpu.matmul %0, %1, %cst {dimension_numbers = #tpu.dot_dimension_numbers<[1], [0], [0], [1], [0, 0, 1, 1], [], []>} : vector<32x384xbf16>, vector<384x128xbf16>, vector<32x128xf32> -> vector<32x128xf32>
    %c0_3 = arith.constant 0 : index
    %c0_4 = arith.constant 0 : index
    %3 = vector.load %arg4[%c0_3, %c0_4] : memref<1x128xf32, #tpu.memory_space<vmem>>, vector<1x128xf32>
    %4 = vector.broadcast %3 : vector<1x128xf32> to vector<32x128xf32>
    %5 = arith.addf %2, %4 : vector<32x128xf32>
    %6 = arith.truncf %5 : vector<32x128xf32> to vector<32x128xbf16>
    %c0_5 = arith.constant 0 : index
    %c0_6 = arith.constant 0 : index
    %7 = vector.load %arg5[%c0_5, %c0_6] : memref<32x128xbf16, #tpu.memory_space<vmem>>, vector<32x128xbf16>
    tpu.vector_store %arg5[%c0_5, %c0_6], %6 {strides = array<i32>} : memref<32x128xbf16, #tpu.memory_space<vmem>>, vector<32x128xbf16>,
    return
  }
  func.func @transform_0(%arg0: i32, %arg1: i32) -> (i32, i32) {
    %c0_i32 = arith.constant 0 : i32
    %c0_i32_0 = arith.constant 0 : i32
    return %arg0, %c0_i32 : i32, i32
  }
  func.func @transform_1(%arg0: i32, %arg1: i32) -> (i32, i32) {
    %c0_i32 = arith.constant 0 : i32
    %c0_i32_0 = arith.constant 0 : i32
    return %c0_i32, %arg1 : i32, i32
  }
  func.func @transform_2(%arg0: i32, %arg1: i32) -> (i32, i32) {
    %c0_i32 = arith.constant 0 : i32
    %c0_i32_0 = arith.constant 0 : i32
    return %c0_i32, %arg1 : i32, i32
  }
  func.func @transform_3(%arg0: i32, %arg1: i32) -> (i32, i32) {
    %c0_i32 = arith.constant 0 : i32
    return %arg0, %arg1 : i32, i32
  }
}

module attributes {stable_mosaic.version = 11 : i64} {
  func.func @_mm_kernel(%arg0: i32, %arg1: i32, %arg2: memref<128x432xbf16, #tpu.memory_space<vmem>>, %arg3: memref<432x128xbf16, #tpu.memory_space<vmem>>, %arg4: memref<1x128xf32, #tpu.memory_space<vmem>>, %arg5: memref<1x128xf32, #tpu.memory_space<vmem>>, %arg6: memref<1x128xf32, #tpu.memory_space<vmem>>, %arg7: memref<128x128xbf16, #tpu.memory_space<vmem>>) attributes {dimension_semantics = [#tpu.dimension_semantics<parallel>, #tpu.dimension_semantics<parallel>], iteration_bounds = array<i64: 1, 1>, scalar_prefetch = 0 : i64, scratch_operands = 0 : i64, tpu.core_type = #tpu.core_type<tc>, window_params = [{transform_indices = @transform_0, window_bounds = array<i64: 128, 432>}, {transform_indices = @transform_1, window_bounds = array<i64: 432, 128>}, {transform_indices = @transform_2, window_bounds = array<i64: 1, 128>}, {transform_indices = @transform_3, window_bounds = array<i64: 1, 128>}, {transform_indices = @transform_4, window_bounds = array<i64: 1, 128>}, {transform_indices = @transform_5, window_bounds = array<i64: 128, 128>}]} {
    %c0 = arith.constant 0 : index
    %c0_0 = arith.constant 0 : index
    %0 = vector.load %arg2[%c0, %c0_0] : memref<128x432xbf16, #tpu.memory_space<vmem>>, vector<128x432xbf16>
    %c0_1 = arith.constant 0 : index
    %c0_2 = arith.constant 0 : index
    %1 = vector.load %arg3[%c0_1, %c0_2] : memref<432x128xbf16, #tpu.memory_space<vmem>>, vector<432x128xbf16>
    %cst = arith.constant dense<0.000000e+00> : vector<128x128xf32>
    %2 = tpu.matmul %0, %1, %cst {dimension_numbers = #tpu.dot_dimension_numbers<[1], [0], [0], [1], [0, 0, 1, 1], [], []>} : vector<128x432xbf16>, vector<432x128xbf16>, vector<128x128xf32> -> vector<128x128xf32>
    %c0_3 = arith.constant 0 : index
    %c0_4 = arith.constant 0 : index
    %3 = vector.load %arg4[%c0_3, %c0_4] : memref<1x128xf32, #tpu.memory_space<vmem>>, vector<1x128xf32>
    %4 = vector.broadcast %3 : vector<1x128xf32> to vector<128x128xf32>
    %5 = arith.addf %2, %4 : vector<128x128xf32>
    %cst_5 = arith.constant 0.000000e+00 : f32
    %6 = vector.broadcast %cst_5 : f32 to vector<128x128xf32>
    %7 = arith.maximumf %5, %6 : vector<128x128xf32>
    %c0_6 = arith.constant 0 : index
    %c0_7 = arith.constant 0 : index
    %8 = vector.load %arg5[%c0_6, %c0_7] : memref<1x128xf32, #tpu.memory_space<vmem>>, vector<1x128xf32>
    %9 = vector.broadcast %8 : vector<1x128xf32> to vector<128x128xf32>
    %10 = arith.mulf %7, %9 : vector<128x128xf32>
    %c0_8 = arith.constant 0 : index
    %c0_9 = arith.constant 0 : index
    %11 = vector.load %arg6[%c0_8, %c0_9] : memref<1x128xf32, #tpu.memory_space<vmem>>, vector<1x128xf32>
    %12 = vector.broadcast %11 : vector<1x128xf32> to vector<128x128xf32>
    %13 = arith.addf %10, %12 : vector<128x128xf32>
    %14 = arith.truncf %13 : vector<128x128xf32> to vector<128x128xbf16>
    %c0_10 = arith.constant 0 : index
    %c0_11 = arith.constant 0 : index
    %15 = vector.load %arg7[%c0_10, %c0_11] : memref<128x128xbf16, #tpu.memory_space<vmem>>, vector<128x128xbf16>
    tpu.vector_store %arg7[%c0_10, %c0_11], %14 {strides = array<i32>} : memref<128x128xbf16, #tpu.memory_space<vmem>>, vector<128x128xbf16>,
    return
  }
  func.func @transform_0(%arg0: i32, %arg1: i32) -> (i32, i32) {
    %c0_i32 = arith.constant 0 : i32
    %c0_i32_0 = arith.constant 0 : i32
    return %arg0, %c0_i32 : i32, i32
  }
  func.func @transform_1(%arg0: i32, %arg1: i32) -> (i32, i32) {
    %c0_i32 = arith.constant 0 : i32
    %c0_i32_0 = arith.constant 0 : i32
    return %c0_i32, %arg1 : i32, i32
  }
  func.func @transform_2(%arg0: i32, %arg1: i32) -> (i32, i32) {
    %c0_i32 = arith.constant 0 : i32
    %c0_i32_0 = arith.constant 0 : i32
    return %c0_i32, %arg1 : i32, i32
  }
  func.func @transform_3(%arg0: i32, %arg1: i32) -> (i32, i32) {
    %c0_i32 = arith.constant 0 : i32
    %c0_i32_0 = arith.constant 0 : i32
    return %c0_i32, %arg1 : i32, i32
  }
  func.func @transform_4(%arg0: i32, %arg1: i32) -> (i32, i32) {
    %c0_i32 = arith.constant 0 : i32
    %c0_i32_0 = arith.constant 0 : i32
    return %c0_i32, %arg1 : i32, i32
  }
  func.func @transform_5(%arg0: i32, %arg1: i32) -> (i32, i32) {
    %c0_i32 = arith.constant 0 : i32
    return %arg0, %arg1 : i32, i32
  }
}

module attributes {stable_mosaic.version = 11 : i64} {
  func.func @_mm_kernel(%arg0: i32, %arg1: i32, %arg2: memref<128x432xbf16, #tpu.memory_space<vmem>>, %arg3: memref<432x128xbf16, #tpu.memory_space<vmem>>, %arg4: memref<1x128xf32, #tpu.memory_space<vmem>>, %arg5: memref<128x128xf32, #tpu.memory_space<vmem>>) attributes {dimension_semantics = [#tpu.dimension_semantics<parallel>, #tpu.dimension_semantics<parallel>], iteration_bounds = array<i64: 1, 1>, scalar_prefetch = 0 : i64, scratch_operands = 0 : i64, tpu.core_type = #tpu.core_type<tc>, window_params = [{transform_indices = @transform_0, window_bounds = array<i64: 128, 432>}, {transform_indices = @transform_1, window_bounds = array<i64: 432, 128>}, {transform_indices = @transform_2, window_bounds = array<i64: 1, 128>}, {transform_indices = @transform_3, window_bounds = array<i64: 128, 128>}]} {
    %c0 = arith.constant 0 : index
    %c0_0 = arith.constant 0 : index
    %0 = vector.load %arg2[%c0, %c0_0] : memref<128x432xbf16, #tpu.memory_space<vmem>>, vector<128x432xbf16>
    %c0_1 = arith.constant 0 : index
    %c0_2 = arith.constant 0 : index
    %1 = vector.load %arg3[%c0_1, %c0_2] : memref<432x128xbf16, #tpu.memory_space<vmem>>, vector<432x128xbf16>
    %cst = arith.constant dense<0.000000e+00> : vector<128x128xf32>
    %2 = tpu.matmul %0, %1, %cst {dimension_numbers = #tpu.dot_dimension_numbers<[1], [0], [0], [1], [0, 0, 1, 1], [], []>} : vector<128x432xbf16>, vector<432x128xbf16>, vector<128x128xf32> -> vector<128x128xf32>
    %c0_3 = arith.constant 0 : index
    %c0_4 = arith.constant 0 : index
    %3 = vector.load %arg4[%c0_3, %c0_4] : memref<1x128xf32, #tpu.memory_space<vmem>>, vector<1x128xf32>
    %4 = vector.broadcast %3 : vector<1x128xf32> to vector<128x128xf32>
    %5 = arith.addf %2, %4 : vector<128x128xf32>
    %cst_5 = arith.constant 0.000000e+00 : f32
    %6 = vector.broadcast %cst_5 : f32 to vector<128x128xf32>
    %7 = arith.subf %6, %5 : vector<128x128xf32>
    %8 = math.exp %7 : vector<128x128xf32>
    %cst_6 = arith.constant 1.000000e+00 : f32
    %9 = vector.broadcast %cst_6 : f32 to vector<128x128xf32>
    %10 = arith.addf %9, %8 : vector<128x128xf32>
    %11 = tpu.reciprocal %10 {approx = true} : vector<128x128xf32> -> vector<128x128xf32>
    %c0_7 = arith.constant 0 : index
    %c0_8 = arith.constant 0 : index
    %12 = vector.load %arg5[%c0_7, %c0_8] : memref<128x128xf32, #tpu.memory_space<vmem>>, vector<128x128xf32>
    tpu.vector_store %arg5[%c0_7, %c0_8], %11 {strides = array<i32>} : memref<128x128xf32, #tpu.memory_space<vmem>>, vector<128x128xf32>,
    return
  }
  func.func @transform_0(%arg0: i32, %arg1: i32) -> (i32, i32) {
    %c0_i32 = arith.constant 0 : i32
    %c0_i32_0 = arith.constant 0 : i32
    return %arg0, %c0_i32 : i32, i32
  }
  func.func @transform_1(%arg0: i32, %arg1: i32) -> (i32, i32) {
    %c0_i32 = arith.constant 0 : i32
    %c0_i32_0 = arith.constant 0 : i32
    return %c0_i32, %arg1 : i32, i32
  }
  func.func @transform_2(%arg0: i32, %arg1: i32) -> (i32, i32) {
    %c0_i32 = arith.constant 0 : i32
    %c0_i32_0 = arith.constant 0 : i32
    return %c0_i32, %arg1 : i32, i32
  }
  func.func @transform_3(%arg0: i32, %arg1: i32) -> (i32, i32) {
    %c0_i32 = arith.constant 0 : i32
    return %arg0, %arg1 : i32, i32
  }
}

</mosaic_0001>

<llo_original>
// kernel: sardinet_forward.11
$region0: #{sardinet_forward.11}
  #allocation0 [shape = 'u32[]', space=smem, size = 0x4, offset = 0x4, fixed_abs, tag = 'smem constant byte address 0x4 - core index']
  #allocation1 [shape = 'u32[72,128]{1,0:T(1,128)}', space=vmem, size = 0x9000, scoped, tag = 'internal scratch']
  %s0 = inlined_call_operand.vmem [shape: bf16[512,18], index: 0, kind: input, shape index: {}]
  %s1 = inlined_call_operand.vmem [shape: bf16[18,128], index: 1, kind: input, shape index: {}]
  %s2 = inlined_call_operand.vmem [shape: f32[1,128], index: 2, kind: input, shape index: {}]
  %s3 = inlined_call_operand.vmem [shape: f32[1,128], index: 3, kind: input, shape index: {}]
  %s4 = inlined_call_operand.vmem [shape: f32[1,128], index: 4, kind: input, shape index: {}]
  %s5 = inlined_call_operand.vmem [shape: bf16[512,128], index: 5, kind: output, shape index: {}]
  %s6 = sld [smem:[#allocation0]]
  $region53: #{sardinet_forward.11} parent=0
    _
  %s8 = ssub.s32 1, %s6
  %s9 = scalar_select 0, %s8, %s6
  loop: start=0, step=1, limit=4
  $region2: #{sardinet_forward.11} parent=0 // loop_pre_header
    _
  $region3: #{sardinet_forward.11} parent=0 // loop_header
    %s11 = sphi 0, %s15
    %p12 = scmp.ge.s32.totalorder %s11, 4
    %s18 = sphi 0, %s30
    %s19 = sphi 0, %s26
    %s20 = sphi 0, %s18
    %s21 = sphi 0, %s19
    %s22 = sphi 0, %s20
    %s23 = sphi 0, %s21
    %s33 = sphi 0, %s35
    %s36 = sphi 0, %s33
    %s37 = sphi 0, %s36
    %s53 = sphi 0, %s37
    %s59 = sphi 0, %s61
    %s62 = sphi 0, %s59
    %s63 = sphi 0, %s62
    %s79 = sphi 0, %s63
    %s85 = sphi 0, %s87
    %s88 = sphi 0, %s85
    %s89 = sphi 0, %s88
    %s105 = sphi 0, %s89
    %s111 = sphi 0, %s113
    %s114 = sphi 0, %s111
    %s115 = sphi 0, %s114
    %s131 = sphi 0, %s115
    %s137 = sphi 0, %s139
    %s140 = sphi 0, %s137
    %s141 = sphi 0, %s140
    %s157 = sphi 0, %s141
    %s165 = sphi 0, %s167
    %s168 = sphi 0, %s165
    %s169 = sphi 0, %s168
    %s185 = sphi 0, %s169
  $region4: #{sardinet_forward.11} parent=0 // loop_header_branch
    %14 = sbr.rel (%p12) target = $region8
  $region5: #{sardinet_forward.11} parent=0 // loop_body
    %s16 = ssub.s32 %s11, 1
    %s17 = ssub.s32 %s11, 2
    %s24 = sadd.s32 1, %s19
    %p25 = scmp.ge.s32.totalorder %s24, 1
    %s26 = scalar_select %p25, 0, %s24
    %s27 = sadd.s32 1, %s18
    %s28 = scalar_select %p25, %s27, %s18
    %p29 = scmp.ge.s32.totalorder %s28, 2
    %s30 = scalar_select %p29, 0, %s28
    %s31 = ssub.s32 %s18, %s30
    %p32 = scmp.eq.s32.totalorder %s31, 0
    %s34 = sadd.s32 %s33, 1
    %s35 = scalar_select %p32, %s33, %s34
    %p38 = pneg %p32
    %p39 = scmp.eq.s32.totalorder %s11, 1
    %p40 = por %p38, %p39
    %p41 = scmp.ne.s32.totalorder %s33, %s36
    %p42 = scmp.eq.s32.totalorder %s11, 0
    %p43 = por %p41, %p42
    %p44 = scmp.ne.s32.totalorder %s33, %s36
    %p45 = scmp.eq.s32.totalorder %s16, 1
    %p46 = por %p44, %p45
    %p47 = scmp.ne.s32.totalorder %s36, %s37
    %p48 = scmp.eq.s32.totalorder %s16, 0
    %p49 = por %p47, %p48
    %p50 = scmp.ne.s32.totalorder %s36, %s37
    %p51 = scmp.eq.s32.totalorder %s17, 1
    %p52 = por %p50, %p51
    %p54 = scmp.ne.s32.totalorder %s37, %s53
    %p55 = scmp.eq.s32.totalorder %s17, 0
    %p56 = por %p54, %p55
    %s57 = ssub.s32 %s19, %s26
    %p58 = scmp.eq.s32.totalorder %s57, 0
    %s60 = sadd.s32 %s59, 1
    %s61 = scalar_select %p58, %s59, %s60
    %p64 = pneg %p58
    %p65 = scmp.eq.s32.totalorder %s11, 1
    %p66 = por %p64, %p65
    %p67 = scmp.ne.s32.totalorder %s59, %s62
    %p68 = scmp.eq.s32.totalorder %s11, 0
    %p69 = por %p67, %p68
    %p70 = scmp.ne.s32.totalorder %s59, %s62
    %p71 = scmp.eq.s32.totalorder %s16, 1
    %p72 = por %p70, %p71
    %p73 = scmp.ne.s32.totalorder %s62, %s63
    %p74 = scmp.eq.s32.totalorder %s16, 0
    %p75 = por %p73, %p74
    %p76 = scmp.ne.s32.totalorder %s62, %s63
    %p77 = scmp.eq.s32.totalorder %s17, 1
    %p78 = por %p76, %p77
    %p80 = scmp.ne.s32.totalorder %s63, %s79
    %p81 = scmp.eq.s32.totalorder %s17, 0
    %p82 = por %p80, %p81
    %s83 = ssub.s32 %s19, %s26
    %p84 = scmp.eq.s32.totalorder %s83, 0
    %s86 = sadd.s32 %s85, 1
    %s87 = scalar_select %p84, %s85, %s86
    %p90 = pneg %p84
    %p91 = scmp.eq.s32.totalorder %s11, 1
    %p92 = por %p90, %p91
    %p93 = scmp.ne.s32.totalorder %s85, %s88
    %p94 = scmp.eq.s32.totalorder %s11, 0
    %p95 = por %p93, %p94
    %p96 = scmp.ne.s32.totalorder %s85, %s88
    %p97 = scmp.eq.s32.totalorder %s16, 1
    %p98 = por %p96, %p97
    %p99 = scmp.ne.s32.totalorder %s88, %s89
    %p100 = scmp.eq.s32.totalorder %s16, 0
    %p101 = por %p99, %p100
    %p102 = scmp.ne.s32.totalorder %s88, %s89
    %p103 = scmp.eq.s32.totalorder %s17, 1
    %p104 = por %p102, %p103
    %p106 = scmp.ne.s32.totalorder %s89, %s105
    %p107 = scmp.eq.s32.totalorder %s17, 0
    %p108 = por %p106, %p107
    %s109 = ssub.s32 %s19, %s26
    %p110 = scmp.eq.s32.totalorder %s109, 0
    %s112 = sadd.s32 %s111, 1
    %s113 = scalar_select %p110, %s111, %s112
    %p116 = pneg %p110
    %p117 = scmp.eq.s32.totalorder %s11, 1
    %p118 = por %p116, %p117
    %p119 = scmp.ne.s32.totalorder %s111, %s114
    %p120 = scmp.eq.s32.totalorder %s11, 0
    %p121 = por %p119, %p120
    %p122 = scmp.ne.s32.totalorder %s111, %s114
    %p123 = scmp.eq.s32.totalorder %s16, 1
    %p124 = por %p122, %p123
    %p125 = scmp.ne.s32.totalorder %s114, %s115
    %p126 = scmp.eq.s32.totalorder %s16, 0
    %p127 = por %p125, %p126
    %p128 = scmp.ne.s32.totalorder %s114, %s115
    %p129 = scmp.eq.s32.totalorder %s17, 1
    %p130 = por %p128, %p129
    %p132 = scmp.ne.s32.totalorder %s115, %s131
    %p133 = scmp.eq.s32.totalorder %s17, 0
    %p134 = por %p132, %p133
    %s135 = ssub.s32 %s19, %s26
    %p136 = scmp.eq.s32.totalorder %s135, 0
    %s138 = sadd.s32 %s137, 1
    %s139 = scalar_select %p136, %s137, %s138
    %p142 = pneg %p136
    %p143 = scmp.eq.s32.totalorder %s11, 1
    %p144 = por %p142, %p143
    %p145 = scmp.ne.s32.totalorder %s137, %s140
    %p146 = scmp.eq.s32.totalorder %s11, 0
    %p147 = por %p145, %p146
    %p148 = scmp.ne.s32.totalorder %s137, %s140
    %p149 = scmp.eq.s32.totalorder %s16, 1
    %p150 = por %p148, %p149
    %p151 = scmp.ne.s32.totalorder %s140, %s141
    %p152 = scmp.eq.s32.totalorder %s16, 0
    %p153 = por %p151, %p152
    %p154 = scmp.ne.s32.totalorder %s140, %s141
    %p155 = scmp.eq.s32.totalorder %s17, 1
    %p156 = por %p154, %p155
    %p158 = scmp.ne.s32.totalorder %s141, %s157
    %p159 = scmp.eq.s32.totalorder %s17, 0
    %p160 = por %p158, %p159
    %s161 = ssub.s32 %s18, %s30
    %s162 = ssub.s32 %s19, %s26
    %s163 = sor.u32 %s161, %s162
    %p164 = scmp.eq.s32.totalorder %s163, 0
    %s166 = sadd.s32 %s165, 1
    %s167 = scalar_select %p164, %s165, %s166
    %p170 = pneg %p164
    %p171 = scmp.eq.s32.totalorder %s11, 1
    %p172 = por %p170, %p171
    %p173 = scmp.ne.s32.totalorder %s165, %s168
    %p174 = scmp.eq.s32.totalorder %s11, 0
    %p175 = por %p173, %p174
    %p176 = scmp.ne.s32.totalorder %s165, %s168
    %p177 = scmp.eq.s32.totalorder %s16, 1
    %p178 = por %p176, %p177
    %p179 = scmp.ne.s32.totalorder %s168, %s169
    %p180 = scmp.eq.s32.totalorder %s16, 0
    %p181 = por %p179, %p180
    %p182 = scmp.ne.s32.totalorder %s168, %s169
    %p183 = scmp.eq.s32.totalorder %s17, 1
    %p184 = por %p182, %p183
    %p186 = scmp.ne.s32.totalorder %s169, %s185
    %p187 = scmp.eq.s32.totalorder %s17, 0
    %p188 = por %p186, %p187
    %p189 = scmp.le.s32.totalorder 1, %s11
    %p190 = scmp.lt.s32.totalorder %s11, 3
    %p191 = pnand %p189, %p190
    %p192 = pneg %p191
    // Predicated region
    $region9: #{sardinet_forward.11} parent=5 // pred_check
      _
    $region10: #{sardinet_forward.11} parent=5 // pred_check_branch
      %194 = sbr.rel (%p191) target = $region12
    $region11: #{sardinet_forward.11} parent=5 // pred_region
      %s195 = ssub.s32 %s11, 1
      // Predicated region
      $region13: #{sardinet_forward.11} parent=11 // pred_check
        %p196 = pneg %p75
      $region14: #{sardinet_forward.11} parent=11 // pred_check_branch
        %198 = sbr.rel (%p196) target = $region16
      $region15: #{sardinet_forward.11} parent=11 // pred_region
        %p199 = scmp.lt.s32.totalorder %s21, 0
        %s200 = scalar_select %p199, %s21, 0
        %s201 = smul.addr %s200, 4
        %s202 = scalar_lea.vmem %s1, %s201
      $region16: #{sardinet_forward.11} parent=11 // pred_fallthru
        _
      // Predicated region
      $region17: #{sardinet_forward.11} parent=11 // pred_check
        %p203 = pneg %p101
      $region18: #{sardinet_forward.11} parent=11 // pred_check_branch
        %205 = sbr.rel (%p203) target = $region20
      $region19: #{sardinet_forward.11} parent=11 // pred_region
        %p206 = scmp.lt.s32.totalorder %s21, 0
        %s207 = scalar_select %p206, %s21, 0
        %s208 = scalar_lea.vmem %s2, %s207
      $region20: #{sardinet_forward.11} parent=11 // pred_fallthru
        _
      // Predicated region
      $region21: #{sardinet_forward.11} parent=11 // pred_check
        %p209 = pneg %p127
      $region22: #{sardinet_forward.11} parent=11 // pred_check_branch
        %211 = sbr.rel (%p209) target = $region24
      $region23: #{sardinet_forward.11} parent=11 // pred_region
        %p212 = scmp.lt.s32.totalorder %s21, 0
        %s213 = scalar_select %p212, %s21, 0
        %s214 = scalar_lea.vmem %s3, %s213
      $region24: #{sardinet_forward.11} parent=11 // pred_fallthru
        _
      // Predicated region
      $region25: #{sardinet_forward.11} parent=11 // pred_check
        %p215 = pneg %p153
      $region26: #{sardinet_forward.11} parent=11 // pred_check_branch
        %217 = sbr.rel (%p215) target = $region28
      $region27: #{sardinet_forward.11} parent=11 // pred_region
        %p218 = scmp.lt.s32.totalorder %s21, 0
        %s219 = scalar_select %p218, %s21, 0
        %s220 = scalar_lea.vmem %s4, %s219
      $region28: #{sardinet_forward.11} parent=11 // pred_fallthru
        _
    $region12: #{sardinet_forward.11} parent=5 // pred_fallthru
      _
    %p221 = scmp.lt.s32.totalorder %s11, 2
    // Predicated region
    $region29: #{sardinet_forward.11} parent=5 // pred_check
      %p222 = pneg %p221
    $region30: #{sardinet_forward.11} parent=5 // pred_check_branch
      %224 = sbr.rel (%p222) target = $region32
    $region31: #{sardinet_forward.11} parent=5 // pred_region
      // Predicated region
      $region33: #{sardinet_forward.11} parent=31 // pred_check
        %p225 = pneg %p43
      $region34: #{sardinet_forward.11} parent=31 // pred_check_branch
        %227 = sbr.rel (%p225) target = $region36
      $region35: #{sardinet_forward.11} parent=31 // pred_region
        %s228 = smul.u32 32, %s18
        %p229 = scmp.lt.s32.totalorder %s228, 63
        %s230 = scalar_select %p229, %s228, 63
        %s231 = smul.addr %s230, 4
        %s232 = scalar_lea.vmem %s0, %s231
        %s233 = smul.u32 32, %s18
      $region36: #{sardinet_forward.11} parent=31 // pred_fallthru
        _
    $region32: #{sardinet_forward.11} parent=5 // pred_fallthru
      _
    %p234 = scmp.le.s32.totalorder 1, %s11
    %p235 = scmp.lt.s32.totalorder %s11, 3
    %p236 = pnand %p234, %p235
    %p237 = pneg %p236
    // Predicated region
    $region37: #{sardinet_forward.11} parent=5 // pred_check
      _
    $region38: #{sardinet_forward.11} parent=5 // pred_check_branch
      %239 = sbr.rel (%p236) target = $region40
    $region39: #{sardinet_forward.11} parent=5 // pred_region
      %s240 = ssub.s32 %s11, 1
      %s241 = smul.u32 32, %s20
      %p242 = scmp.lt.s32.totalorder %s241, 63
      %s243 = scalar_select %p242, %s241, 63
      %s244 = smul.addr %s243, 4
      %s245 = scalar_lea.vmem %s0, %s244
      %p246 = pneg %p49
      %p247 = pneg %p46
      %p248 = scmp.lt.s32.totalorder %s21, 0
      %s249 = scalar_select %p248, %s21, 0
      %s250 = smul.addr %s249, 4
      %s251 = scalar_lea.vmem %s1, %s250
      %p252 = pneg %p75
      %p253 = pneg %p72
      %p254 = scmp.lt.s32.totalorder %s21, 0
      %s255 = scalar_select %p254, %s21, 0
      %s256 = scalar_lea.vmem %s2, %s255
      %p257 = pneg %p101
      %p258 = pneg %p98
      %p259 = scmp.lt.s32.totalorder %s21, 0
      %s260 = scalar_select %p259, %s21, 0
      %s261 = scalar_lea.vmem %s3, %s260
      %p262 = pneg %p127
      %p263 = pneg %p124
      %p264 = scmp.lt.s32.totalorder %s21, 0
      %s265 = scalar_select %p264, %s21, 0
      %s266 = scalar_lea.vmem %s4, %s265
      %p267 = pneg %p153
      %p268 = pneg %p150
      %p269 = pneg %p181
      %p270 = pneg %p178
      %s271 = smul.u32 32, %s20
      %p272 = scmp.lt.s32.totalorder %s271, 63
      %s273 = scalar_select %p272, %s271, 63
      %p274 = scmp.lt.s32.totalorder %s21, 0
      %s275 = scalar_select %p274, %s21, 0
      %s276 = sadd.s32 %s275, %s273
      %s277 = smul.addr %s276, 4
      %s278 = scalar_lea.vmem %s5, %s277
      %s279 = smul.u32 32, %s20
      %p280 = scmp.lt.s32.totalorder %s279, 63
      %s281 = scalar_select %p280, %s279, 63
      %s282 = smul.addr %s281, 4
      %s283 = scalar_lea.vmem %s0, %s282
      %s284 = smul.u32 32, %s20
      %p285 = scmp.lt.s32.totalorder %s21, 0
      %s286 = scalar_select %p285, %s21, 0
      %s287 = smul.addr %s286, 4
      %s288 = scalar_lea.vmem %s1, %s287
      %p289 = scmp.lt.s32.totalorder %s21, 0
      %s290 = scalar_select %p289, %s21, 0
      %s291 = scalar_lea.vmem %s2, %s290
      %p292 = scmp.lt.s32.totalorder %s21, 0
      %s293 = scalar_select %p292, %s21, 0
      %s294 = scalar_lea.vmem %s3, %s293
      %p295 = scmp.lt.s32.totalorder %s21, 0
      %s296 = scalar_select %p295, %s21, 0
      %s297 = scalar_lea.vmem %s4, %s296
      %s298 = smul.u32 32, %s20
      %p299 = scmp.lt.s32.totalorder %s298, 63
      %s300 = scalar_select %p299, %s298, 63
      %p301 = scmp.lt.s32.totalorder %s21, 0
      %s302 = scalar_select %p301, %s21, 0
      %s303 = sadd.s32 %s302, %s300
      %s304 = smul.addr %s303, 4
      %s305 = scalar_lea.vmem %s5, %s304
      %s306 = smul.u32 32, %s20
      %v308 = vld [vmem:[%s283] sm:$0xf]
      %v309 = vld [vmem:[%s283 + $0x4] sm:$0xf]
      %v310 = vld [vmem:[%s283 + $0x8] sm:$0xf]
      %v311 = vld [vmem:[%s283 + $0xc] sm:$0xf]
      %v312 = vld [vmem:[%s283 + $0x10] sm:$0xf]
      %v313 = vld [vmem:[%s283 + $0x14] sm:$0xf]
      %v314 = vld [vmem:[%s283 + $0x18] sm:$0xf]
      %v315 = vld [vmem:[%s283 + $0x1c] sm:$0xf]
      %v316 = vld [vmem:[%s283 + $0x20] sm:$0xf]
      %v317 = vld [vmem:[%s283 + $0x24] sm:$0xf]
      %v318 = vld [vmem:[%s283 + $0x28] sm:$0xf]
      %v319 = vld [vmem:[%s283 + $0x2c] sm:$0xf]
      %v320 = vld [vmem:[%s283 + $0x30] sm:$0xf]
      %v321 = vld [vmem:[%s283 + $0x34] sm:$0xf]
      %v322 = vld [vmem:[%s283 + $0x38] sm:$0xf]
      %v323 = vld [vmem:[%s283 + $0x3c] sm:$0xf]
      %v324 = vld [vmem:[%s283 + $0x40] sm:$0xf]
      %v325 = vld [vmem:[%s283 + $0x44] sm:$0xf]
      %v326 = vld [vmem:[%s283 + $0x48] sm:$0xf]
      %v327 = vld [vmem:[%s283 + $0x4c] sm:$0xf]
      %v328 = vld [vmem:[%s283 + $0x50] sm:$0xf]
      %v329 = vld [vmem:[%s283 + $0x54] sm:$0xf]
      %v330 = vld [vmem:[%s283 + $0x58] sm:$0xf]
      %v331 = vld [vmem:[%s283 + $0x5c] sm:$0xf]
      %v332 = vld [vmem:[%s283 + $0x60] sm:$0xf]
      %v333 = vld [vmem:[%s283 + $0x64] sm:$0xf]
      %v334 = vld [vmem:[%s283 + $0x68] sm:$0xf]
      %v335 = vld [vmem:[%s283 + $0x6c] sm:$0xf]
      %v336 = vld [vmem:[%s283 + $0x70] sm:$0xf]
      %v337 = vld [vmem:[%s283 + $0x74] sm:$0xf]
      %v338 = vld [vmem:[%s283 + $0x78] sm:$0xf]
      %v339 = vld [vmem:[%s283 + $0x7c] sm:$0xf]
      %v340 = vld [vmem:[%s288] sm:$0xf]
      %v341 = vld [vmem:[%s288 + $0x4] sm:$0xf]
      %v342 = vld [vmem:[%s288 + $0x8] sm:$0x1]
      %v343 = vld [vmem:[%s291] sm:$0x1]
      %v345 = vperm.slane %v343, 0
      %v379 = vunpack.c.l.b16 %v308
      %v380 = vunpack.c.l.b16 %v309
      %v381 = vunpack.c.l.b16 %v310
      %v382 = vunpack.c.l.b16 %v311
      %v383 = vunpack.c.l.b16 %v312
      %v384 = vunpack.c.l.b16 %v313
      %v385 = vunpack.c.l.b16 %v314
      %v386 = vunpack.c.l.b16 %v315
      %v387 = vunpack.c.l.b16 %v316
      %v388 = vunpack.c.l.b16 %v317
      %v389 = vunpack.c.l.b16 %v318
      %v390 = vunpack.c.l.b16 %v319
      %v391 = vunpack.c.l.b16 %v320
      %v392 = vunpack.c.l.b16 %v321
      %v393 = vunpack.c.l.b16 %v322
      %v394 = vunpack.c.l.b16 %v323
      %v395 = vunpack.c.l.b16 %v324
      %v396 = vunpack.c.l.b16 %v325
      %v397 = vunpack.c.l.b16 %v326
      %v398 = vunpack.c.l.b16 %v327
      %v399 = vunpack.c.l.b16 %v328
      %v400 = vunpack.c.l.b16 %v329
      %v401 = vunpack.c.l.b16 %v330
      %v402 = vunpack.c.l.b16 %v331
      %v403 = vunpack.c.l.b16 %v332
      %v404 = vunpack.c.l.b16 %v333
      %v405 = vunpack.c.l.b16 %v334
      %v406 = vunpack.c.l.b16 %v335
      %v407 = vunpack.c.l.b16 %v336
      %v408 = vunpack.c.l.b16 %v337
      %v409 = vunpack.c.l.b16 %v338
      %v410 = vunpack.c.l.b16 %v339
      %v411 = vpack.c.b16 %v380, %v379
      %v412 = vpack.c.b16 %v382, %v381
      %v413 = vpack.c.b16 %v384, %v383
      %v414 = vpack.c.b16 %v386, %v385
      %v415 = vpack.c.b16 %v388, %v387
      %v416 = vpack.c.b16 %v390, %v389
      %v417 = vpack.c.b16 %v392, %v391
      %v418 = vpack.c.b16 %v394, %v393
      %v419 = vpack.c.b16 %v396, %v395
      %v420 = vpack.c.b16 %v398, %v397
      %v421 = vpack.c.b16 %v400, %v399
      %v422 = vpack.c.b16 %v402, %v401
      %v423 = vpack.c.b16 %v404, %v403
      %v424 = vpack.c.b16 %v406, %v405
      %v425 = vpack.c.b16 %v408, %v407
      %v426 = vpack.c.b16 %v410, %v409
      %v430 = vunpack.c.l.b16 %v340
      %v431 = vunpack.c.l.b16 %v341
      %v432 = vunpack.c.l.b16 %v342
      %v433 = vpack.c.b16 %v431, %v430
      %v434 = vpack.c.b16 %v432, %v432
      %vm436 = vcmask 146432
      %v438 = vsel %vm436, %v411, 0
      %v441 = vsel %vm436, %v412, 0
      %v444 = vsel %vm436, %v413, 0
      %v447 = vsel %vm436, %v414, 0
      %v450 = vsel %vm436, %v415, 0
      %v453 = vsel %vm436, %v416, 0
      %v456 = vsel %vm436, %v417, 0
      %v459 = vsel %vm436, %v418, 0
      %v462 = vsel %vm436, %v419, 0
      %v465 = vsel %vm436, %v420, 0
      %v468 = vsel %vm436, %v421, 0
      %v471 = vsel %vm436, %v422, 0
      %v474 = vsel %vm436, %v423, 0
      %v477 = vsel %vm436, %v424, 0
      %v480 = vsel %vm436, %v425, 0
      %v483 = vsel %vm436, %v426, 0
      %vm485 = vcmask 1040384
      %v487 = vsel %vm485, %v434, 0
      %489 = vmatpush.bf16.msra.mxu0 0
      %490 = vmatpush.bf16.msra.mxu0 0
      %491 = vmatpush.bf16.msra.mxu0 0
      %492 = vmatpush.bf16.msra.mxu0 0
      %493 = vmatpush.bf16.msra.mxu0 0
      %494 = vmatpush.bf16.msra.mxu0 0
      %495 = vmatpush.bf16.msra.mxu0 %v487
      %496 = vmatpush.bf16.msra.mxu0 %v433
      %497 = vmatmul.bf16.gmra.mxu0 %v438
      %v498 = vpop.f32.mrf.mxu0
      %v499 = vadd.f32 %v345, %v498
      %v500 = vpop.f32.mrf.mxu0
      %v501 = vadd.f32 %v345, %v500
      %502 = vmatmul.bf16.gmra.mxu0 %v441
      %v503 = vpop.f32.mrf.mxu0
      %v504 = vadd.f32 %v345, %v503
      %v505 = vpop.f32.mrf.mxu0
      %v506 = vadd.f32 %v345, %v505
      %507 = vmatmul.bf16.gmra.mxu0 %v444
      %v508 = vpop.f32.mrf.mxu0
      %v509 = vadd.f32 %v345, %v508
      %v510 = vpop.f32.mrf.mxu0
      %v511 = vadd.f32 %v345, %v510
      %512 = vmatmul.bf16.gmra.mxu0 %v447
      %v513 = vpop.f32.mrf.mxu0
      %v514 = vadd.f32 %v345, %v513
      %v515 = vpop.f32.mrf.mxu0
      %v516 = vadd.f32 %v345, %v515
      %517 = vmatmul.bf16.gmra.mxu0 %v450
      %v518 = vpop.f32.mrf.mxu0
      %v519 = vadd.f32 %v345, %v518
      %v520 = vpop.f32.mrf.mxu0
      %v521 = vadd.f32 %v345, %v520
      %522 = vmatmul.bf16.gmra.mxu0 %v453
      %v523 = vpop.f32.mrf.mxu0
      %v524 = vadd.f32 %v345, %v523
      %v525 = vpop.f32.mrf.mxu0
      %v526 = vadd.f32 %v345, %v525
      %527 = vmatmul.bf16.gmra.mxu0 %v456
      %v528 = vpop.f32.mrf.mxu0
      %v529 = vadd.f32 %v345, %v528
      %v530 = vpop.f32.mrf.mxu0
      %v531 = vadd.f32 %v345, %v530
      %532 = vmatmul.bf16.gmra.mxu0 %v459
      %v533 = vpop.f32.mrf.mxu0
      %v534 = vadd.f32 %v345, %v533
      %v535 = vpop.f32.mrf.mxu0
      %v536 = vadd.f32 %v345, %v535
      %537 = vmatmul.bf16.gmra.mxu0 %v462
      %v538 = vpop.f32.mrf.mxu0
      %v539 = vadd.f32 %v345, %v538
      %v540 = vpop.f32.mrf.mxu0
      %v541 = vadd.f32 %v345, %v540
      %542 = vmatmul.bf16.gmra.mxu0 %v465
      %v543 = vpop.f32.mrf.mxu0
      %v544 = vadd.f32 %v345, %v543
      %v545 = vpop.f32.mrf.mxu0
      %v546 = vadd.f32 %v345, %v545
      %547 = vmatmul.bf16.gmra.mxu0 %v468
      %v548 = vpop.f32.mrf.mxu0
      %v549 = vadd.f32 %v345, %v548
      %v550 = vpop.f32.mrf.mxu0
      %v551 = vadd.f32 %v345, %v550
      %552 = vmatmul.bf16.gmra.mxu0 %v471
      %v553 = vpop.f32.mrf.mxu0
      %v554 = vadd.f32 %v345, %v553
      %v555 = vpop.f32.mrf.mxu0
      %v556 = vadd.f32 %v345, %v555
      %557 = vmatmul.bf16.gmra.mxu0 %v474
      %v558 = vpop.f32.mrf.mxu0
      %v559 = vadd.f32 %v345, %v558
      %v560 = vpop.f32.mrf.mxu0
      %v561 = vadd.f32 %v345, %v560
      %562 = vmatmul.bf16.gmra.mxu0 %v477
      %v563 = vpop.f32.mrf.mxu0
      %v564 = vadd.f32 %v345, %v563
      %v565 = vpop.f32.mrf.mxu0
      %v566 = vadd.f32 %v345, %v565
      %567 = vmatmul.bf16.gmra.mxu0 %v480
      %v568 = vpop.f32.mrf.mxu0
      %v569 = vadd.f32 %v345, %v568
      %v570 = vpop.f32.mrf.mxu0
      %v571 = vadd.f32 %v345, %v570
      %572 = vmatmul.bf16.gmra.mxu0 %v483
      %v573 = vpop.f32.mrf.mxu0
      %v574 = vadd.f32 %v345, %v573
      %v575 = vpop.f32.mrf.mxu0
      %v576 = vadd.f32 %v345, %v575
      %577 = vdwg.mxu0
      %v578 = vmax.f32 %v499, 0.0
      %v579 = vmax.f32 %v501, 0.0
      %v580 = vmax.f32 %v504, 0.0
      %v581 = vmax.f32 %v506, 0.0
      %v582 = vmax.f32 %v509, 0.0
      %v583 = vmax.f32 %v511, 0.0
      %v584 = vmax.f32 %v514, 0.0
      %v585 = vmax.f32 %v516, 0.0
      %v586 = vmax.f32 %v519, 0.0
      %v587 = vmax.f32 %v521, 0.0
      %v588 = vmax.f32 %v524, 0.0
      %v589 = vmax.f32 %v526, 0.0
      %v590 = vmax.f32 %v529, 0.0
      %v591 = vmax.f32 %v531, 0.0
      %v592 = vmax.f32 %v534, 0.0
      %v593 = vmax.f32 %v536, 0.0
      %v594 = vmax.f32 %v539, 0.0
      %v595 = vmax.f32 %v541, 0.0
      %v596 = vmax.f32 %v544, 0.0
      %v597 = vmax.f32 %v546, 0.0
      %v598 = vmax.f32 %v549, 0.0
      %v599 = vmax.f32 %v551, 0.0
      %v600 = vmax.f32 %v554, 0.0
      %v601 = vmax.f32 %v556, 0.0
      %v602 = vmax.f32 %v559, 0.0
      %v603 = vmax.f32 %v561, 0.0
      %v604 = vmax.f32 %v564, 0.0
      %v605 = vmax.f32 %v566, 0.0
      %v606 = vmax.f32 %v569, 0.0
      %v607 = vmax.f32 %v571, 0.0
      %v608 = vmax.f32 %v574, 0.0
      %v609 = vmax.f32 %v576, 0.0
      %v610 = vld [vmem:[%s294] sm:$0x1]
      %v612 = vperm.slane %v610, 0
      %v614 = vmul.f32 %v578, %v612
      %v615 = vmul.f32 %v579, %v612
      %v616 = vmul.f32 %v580, %v612
      %v617 = vmul.f32 %v581, %v612
      %v618 = vmul.f32 %v582, %v612
      %v619 = vmul.f32 %v583, %v612
      %v620 = vmul.f32 %v584, %v612
      %v621 = vmul.f32 %v585, %v612
      %v622 = vmul.f32 %v586, %v612
      %v623 = vmul.f32 %v587, %v612
      %v624 = vmul.f32 %v588, %v612
      %v625 = vmul.f32 %v589, %v612
      %v626 = vmul.f32 %v590, %v612
      %v627 = vmul.f32 %v591, %v612
      %v628 = vmul.f32 %v592, %v612
      %v629 = vmul.f32 %v593, %v612
      %v630 = vmul.f32 %v594, %v612
      %v631 = vmul.f32 %v595, %v612
      %v632 = vmul.f32 %v596, %v612
      %v633 = vmul.f32 %v597, %v612
      %v634 = vmul.f32 %v598, %v612
      %v635 = vmul.f32 %v599, %v612
      %v636 = vmul.f32 %v600, %v612
      %v637 = vmul.f32 %v601, %v612
      %v638 = vmul.f32 %v602, %v612
      %v639 = vmul.f32 %v603, %v612
      %v640 = vmul.f32 %v604, %v612
      %v641 = vmul.f32 %v605, %v612
      %v642 = vmul.f32 %v606, %v612
      %v643 = vmul.f32 %v607, %v612
      %v644 = vmul.f32 %v608, %v612
      %v645 = vmul.f32 %v609, %v612
      %v646 = vld [vmem:[%s297] sm:$0x1]
      %v648 = vperm.slane %v646, 0
      %v650 = vadd.f32 %v614, %v648
      %v651 = vadd.f32 %v615, %v648
      %v652 = vadd.f32 %v616, %v648
      %v653 = vadd.f32 %v617, %v648
      %v654 = vadd.f32 %v618, %v648
      %v655 = vadd.f32 %v619, %v648
      %v656 = vadd.f32 %v620, %v648
      %v657 = vadd.f32 %v621, %v648
      %v658 = vadd.f32 %v622, %v648
      %v659 = vadd.f32 %v623, %v648
      %v660 = vadd.f32 %v624, %v648
      %v661 = vadd.f32 %v625, %v648
      %v662 = vadd.f32 %v626, %v648
      %v663 = vadd.f32 %v627, %v648
      %v664 = vadd.f32 %v628, %v648
      %v665 = vadd.f32 %v629, %v648
      %v666 = vadd.f32 %v630, %v648
      %v667 = vadd.f32 %v631, %v648
      %v668 = vadd.f32 %v632, %v648
      %v669 = vadd.f32 %v633, %v648
      %v670 = vadd.f32 %v634, %v648
      %v671 = vadd.f32 %v635, %v648
      %v672 = vadd.f32 %v636, %v648
      %v673 = vadd.f32 %v637, %v648
      %v674 = vadd.f32 %v638, %v648
      %v675 = vadd.f32 %v639, %v648
      %v676 = vadd.f32 %v640, %v648
      %v677 = vadd.f32 %v641, %v648
      %v678 = vadd.f32 %v642, %v648
      %v679 = vadd.f32 %v643, %v648
      %v680 = vadd.f32 %v644, %v648
      %v681 = vadd.f32 %v645, %v648
      %v682 = vpack.c.bf16 %v650, %v650
      %v683 = vpack.c.bf16 %v651, %v651
      %v684 = vpack.c.bf16 %v652, %v652
      %v685 = vpack.c.bf16 %v653, %v653
      %v686 = vpack.c.bf16 %v654, %v654
      %v687 = vpack.c.bf16 %v655, %v655
      %v688 = vpack.c.bf16 %v656, %v656
      %v689 = vpack.c.bf16 %v657, %v657
      %v690 = vpack.c.bf16 %v658, %v658
      %v691 = vpack.c.bf16 %v659, %v659
      %v692 = vpack.c.bf16 %v660, %v660
      %v693 = vpack.c.bf16 %v661, %v661
      %v694 = vpack.c.bf16 %v662, %v662
      %v695 = vpack.c.bf16 %v663, %v663
      %v696 = vpack.c.bf16 %v664, %v664
      %v697 = vpack.c.bf16 %v665, %v665
      %v698 = vpack.c.bf16 %v666, %v666
      %v699 = vpack.c.bf16 %v667, %v667
      %v700 = vpack.c.bf16 %v668, %v668
      %v701 = vpack.c.bf16 %v669, %v669
      %v702 = vpack.c.bf16 %v670, %v670
      %v703 = vpack.c.bf16 %v671, %v671
      %v704 = vpack.c.bf16 %v672, %v672
      %v705 = vpack.c.bf16 %v673, %v673
      %v706 = vpack.c.bf16 %v674, %v674
      %v707 = vpack.c.bf16 %v675, %v675
      %v708 = vpack.c.bf16 %v676, %v676
      %v709 = vpack.c.bf16 %v677, %v677
      %v710 = vpack.c.bf16 %v678, %v678
      %v711 = vpack.c.bf16 %v679, %v679
      %v712 = vpack.c.bf16 %v680, %v680
      %v713 = vpack.c.bf16 %v681, %v681
      %714 = vst [vmem:[%s305] sm:$0xf] %v682
      %715 = vst [vmem:[%s305 + $0x4] sm:$0xf] %v683
      %716 = vst [vmem:[%s305 + $0x8] sm:$0xf] %v684
      %717 = vst [vmem:[%s305 + $0xc] sm:$0xf] %v685
      %718 = vst [vmem:[%s305 + $0x10] sm:$0xf] %v686
      %719 = vst [vmem:[%s305 + $0x14] sm:$0xf] %v687
      %720 = vst [vmem:[%s305 + $0x18] sm:$0xf] %v688
      %721 = vst [vmem:[%s305 + $0x1c] sm:$0xf] %v689
      %722 = vst [vmem:[%s305 + $0x20] sm:$0xf] %v690
      %723 = vst [vmem:[%s305 + $0x24] sm:$0xf] %v691
      %724 = vst [vmem:[%s305 + $0x28] sm:$0xf] %v692
      %725 = vst [vmem:[%s305 + $0x2c] sm:$0xf] %v693
      %726 = vst [vmem:[%s305 + $0x30] sm:$0xf] %v694
      %727 = vst [vmem:[%s305 + $0x34] sm:$0xf] %v695
      %728 = vst [vmem:[%s305 + $0x38] sm:$0xf] %v696
      %729 = vst [vmem:[%s305 + $0x3c] sm:$0xf] %v697
      %730 = vst [vmem:[%s305 + $0x40] sm:$0xf] %v698
      %731 = vst [vmem:[%s305 + $0x44] sm:$0xf] %v699
      %732 = vst [vmem:[%s305 + $0x48] sm:$0xf] %v700
      %733 = vst [vmem:[%s305 + $0x4c] sm:$0xf] %v701
      %734 = vst [vmem:[%s305 + $0x50] sm:$0xf] %v702
      %735 = vst [vmem:[%s305 + $0x54] sm:$0xf] %v703
      %736 = vst [vmem:[%s305 + $0x58] sm:$0xf] %v704
      %737 = vst [vmem:[%s305 + $0x5c] sm:$0xf] %v705
      %738 = vst [vmem:[%s305 + $0x60] sm:$0xf] %v706
      %739 = vst [vmem:[%s305 + $0x64] sm:$0xf] %v707
      %740 = vst [vmem:[%s305 + $0x68] sm:$0xf] %v708
      %741 = vst [vmem:[%s305 + $0x6c] sm:$0xf] %v709
      %742 = vst [vmem:[%s305 + $0x70] sm:$0xf] %v710
      %743 = vst [vmem:[%s305 + $0x74] sm:$0xf] %v711
      %744 = vst [vmem:[%s305 + $0x78] sm:$0xf] %v712
      %745 = vst [vmem:[%s305 + $0x7c] sm:$0xf] %v713
      %s746 = smul.u32 32, %s20
      %p747 = scmp.lt.s32.totalorder %s746, 63
      %s748 = scalar_select %p747, %s746, 63
      %p749 = scmp.lt.s32.totalorder %s21, 0
      %s750 = scalar_select %p749, %s21, 0
      %s751 = sadd.s32 %s750, %s748
      %s752 = smul.addr %s751, 4
      %s753 = scalar_lea.vmem %s5, %s752
      // Predicated region
      $region41: #{sardinet_forward.11} parent=39 // pred_check
        %p754 = pneg %p178
      $region42: #{sardinet_forward.11} parent=39 // pred_check_branch
        %756 = sbr.rel (%p754) target = $region44
      $region43: #{sardinet_forward.11} parent=39 // pred_region
        %s757 = smul.u32 32, %s20
      $region44: #{sardinet_forward.11} parent=39 // pred_fallthru
        _
    $region40: #{sardinet_forward.11} parent=5 // pred_fallthru
      _
    %p758 = scmp.le.s32.totalorder 2, %s11
    // Predicated region
    $region45: #{sardinet_forward.11} parent=5 // pred_check
      %p759 = pneg %p758
    $region46: #{sardinet_forward.11} parent=5 // pred_check_branch
      %761 = sbr.rel (%p759) target = $region48
    $region47: #{sardinet_forward.11} parent=5 // pred_region
      %s762 = ssub.s32 %s11, 2
      // Predicated region
      $region49: #{sardinet_forward.11} parent=47 // pred_check
        %p763 = pneg %p184
      $region50: #{sardinet_forward.11} parent=47 // pred_check_branch
        %765 = sbr.rel (%p763) target = $region52
      $region51: #{sardinet_forward.11} parent=47 // pred_region
        %s766 = smul.u32 32, %s22
        %p767 = scmp.lt.s32.totalorder %s766, 63
        %s768 = scalar_select %p767, %s766, 63
        %p769 = scmp.lt.s32.totalorder %s23, 0
        %s770 = scalar_select %p769, %s23, 0
        %s771 = sadd.s32 %s770, %s768
        %s772 = smul.addr %s771, 4
        %s773 = scalar_lea.vmem %s5, %s772
      $region52: #{sardinet_forward.11} parent=47 // pred_fallthru
        _
    $region48: #{sardinet_forward.11} parent=5 // pred_fallthru
      _
  $region6: #{sardinet_forward.11} parent=0 // loop_footer
    %s15 = sadd.s32 1, %s11
  $region7: #{sardinet_forward.11} parent=0 // loop_footer_branch
    %10 = sbr.rel target = $region3
  $region8: #{sardinet_forward.11} parent=0 // loop_exit
    _

// kernel: sardinet_forward.12
$region0: #{sardinet_forward.12}
  #allocation0 [shape = 'u32[]', space=smem, size = 0x4, offset = 0x4, fixed_abs, tag = 'smem constant byte address 0x4 - core index']
  #allocation1 [shape = 'u32[72,128]{1,0:T(1,128)}', space=vmem, size = 0x9000, scoped, tag = 'internal scratch']
  %s0 = inlined_call_operand.vmem [shape: bf16[128,72], index: 0, kind: input, shape index: {}]
  %s1 = inlined_call_operand.vmem [shape: bf16[72,128], index: 1, kind: input, shape index: {}]
  %s2 = inlined_call_operand.vmem [shape: f32[1,128], index: 2, kind: input, shape index: {}]
  %s3 = inlined_call_operand.vmem [shape: f32[1,128], index: 3, kind: input, shape index: {}]
  %s4 = inlined_call_operand.vmem [shape: f32[1,128], index: 4, kind: input, shape index: {}]
  %s5 = inlined_call_operand.vmem [shape: bf16[128,128], index: 5, kind: output, shape index: {}]
  %s6 = sld [smem:[#allocation0]]
  $region30: #{sardinet_forward.12} parent=0
    _
  %s8 = ssub.s32 1, %s6
  %s9 = scalar_select 0, %s8, %s6
  // Predicated region
  $region2: #{sardinet_forward.12} parent=0 // pred_check
    _
  $region3: #{sardinet_forward.12} parent=0 // pred_check_branch
    %11 = sbr.rel (0) target = $region5
  $region4: #{sardinet_forward.12} parent=0 // pred_region
    _
  $region5: #{sardinet_forward.12} parent=0 // pred_fallthru
    _
  // Predicated region
  $region6: #{sardinet_forward.12} parent=0 // pred_check
    _
  $region7: #{sardinet_forward.12} parent=0 // pred_check_branch
    %13 = sbr.rel (0) target = $region9
  $region8: #{sardinet_forward.12} parent=0 // pred_region
    _
  $region9: #{sardinet_forward.12} parent=0 // pred_fallthru
    _
  // Predicated region
  $region10: #{sardinet_forward.12} parent=0 // pred_check
    _
  $region11: #{sardinet_forward.12} parent=0 // pred_check_branch
    %15 = sbr.rel (0) target = $region13
  $region12: #{sardinet_forward.12} parent=0 // pred_region
    _
  $region13: #{sardinet_forward.12} parent=0 // pred_fallthru
    _
  // Predicated region
  $region14: #{sardinet_forward.12} parent=0 // pred_check
    _
  $region15: #{sardinet_forward.12} parent=0 // pred_check_branch
    %17 = sbr.rel (0) target = $region17
  $region16: #{sardinet_forward.12} parent=0 // pred_region
    _
  $region17: #{sardinet_forward.12} parent=0 // pred_fallthru
    _
  // Predicated region
  $region18: #{sardinet_forward.12} parent=0 // pred_check
    _
  $region19: #{sardinet_forward.12} parent=0 // pred_check_branch
    %19 = sbr.rel (0) target = $region21
  $region20: #{sardinet_forward.12} parent=0 // pred_region
    _
  $region21: #{sardinet_forward.12} parent=0 // pred_fallthru
    _
  %v21 = vld [vmem:[%s0] sm:$0xf]
  %v22 = vld [vmem:[%s0 + $0x4] sm:$0xf]
  %v23 = vld [vmem:[%s0 + $0x8] sm:$0xf]
  %v24 = vld [vmem:[%s0 + $0xc] sm:$0xf]
  %v25 = vld [vmem:[%s0 + $0x10] sm:$0xf]
  %v26 = vld [vmem:[%s0 + $0x14] sm:$0xf]
  %v27 = vld [vmem:[%s0 + $0x18] sm:$0xf]
  %v28 = vld [vmem:[%s0 + $0x1c] sm:$0xf]
  %v29 = vld [vmem:[%s0 + $0x20] sm:$0xf]
  %v30 = vld [vmem:[%s0 + $0x24] sm:$0xf]
  %v31 = vld [vmem:[%s0 + $0x28] sm:$0xf]
  %v32 = vld [vmem:[%s0 + $0x2c] sm:$0xf]
  %v33 = vld [vmem:[%s0 + $0x30] sm:$0xf]
  %v34 = vld [vmem:[%s0 + $0x34] sm:$0xf]
  %v35 = vld [vmem:[%s0 + $0x38] sm:$0xf]
  %v36 = vld [vmem:[%s0 + $0x3c] sm:$0xf]
  %v37 = vld [vmem:[%s1] sm:$0xf]
  %v38 = vld [vmem:[%s1 + $0x4] sm:$0xf]
  %v39 = vld [vmem:[%s1 + $0x8] sm:$0xf]
  %v40 = vld [vmem:[%s1 + $0xc] sm:$0xf]
  %v41 = vld [vmem:[%s1 + $0x10] sm:$0xf]
  %v42 = vld [vmem:[%s1 + $0x14] sm:$0xf]
  %v43 = vld [vmem:[%s1 + $0x18] sm:$0xf]
  %v44 = vld [vmem:[%s1 + $0x1c] sm:$0xf]
  %v45 = vld [vmem:[%s1 + $0x20] sm:$0xf]
  %v46 = vld [vmem:[%s2] sm:$0x1]
  %v48 = vperm.slane %v46, 0
  %v66 = vunpack.c.l.b16 %v21
  %v67 = vunpack.c.l.b16 %v22
  %v68 = vunpack.c.l.b16 %v23
  %v69 = vunpack.c.l.b16 %v24
  %v70 = vunpack.c.l.b16 %v25
  %v71 = vunpack.c.l.b16 %v26
  %v72 = vunpack.c.l.b16 %v27
  %v73 = vunpack.c.l.b16 %v28
  %v74 = vunpack.c.l.b16 %v29
  %v75 = vunpack.c.l.b16 %v30
  %v76 = vunpack.c.l.b16 %v31
  %v77 = vunpack.c.l.b16 %v32
  %v78 = vunpack.c.l.b16 %v33
  %v79 = vunpack.c.l.b16 %v34
  %v80 = vunpack.c.l.b16 %v35
  %v81 = vunpack.c.l.b16 %v36
  %v82 = vpack.c.b16 %v67, %v66
  %v83 = vpack.c.b16 %v69, %v68
  %v84 = vpack.c.b16 %v71, %v70
  %v85 = vpack.c.b16 %v73, %v72
  %v86 = vpack.c.b16 %v75, %v74
  %v87 = vpack.c.b16 %v77, %v76
  %v88 = vpack.c.b16 %v79, %v78
  %v89 = vpack.c.b16 %v81, %v80
  %v99 = vunpack.c.l.b16 %v37
  %v100 = vunpack.c.l.b16 %v38
  %v101 = vunpack.c.l.b16 %v39
  %v102 = vunpack.c.l.b16 %v40
  %v103 = vunpack.c.l.b16 %v41
  %v104 = vunpack.c.l.b16 %v42
  %v105 = vunpack.c.l.b16 %v43
  %v106 = vunpack.c.l.b16 %v44
  %v107 = vunpack.c.l.b16 %v45
  %v108 = vpack.c.b16 %v100, %v99
  %v109 = vpack.c.b16 %v102, %v101
  %v110 = vpack.c.b16 %v104, %v103
  %v111 = vpack.c.b16 %v106, %v105
  %v112 = vpack.c.b16 %v107, %v107
  %vm117 = vcmask 588800
  %v119 = vsel %vm117, %v82, 0
  %v122 = vsel %vm117, %v83, 0
  %v125 = vsel %vm117, %v84, 0
  %v128 = vsel %vm117, %v85, 0
  %v131 = vsel %vm117, %v86, 0
  %v134 = vsel %vm117, %v87, 0
  %v137 = vsel %vm117, %v88, 0
  %v140 = vsel %vm117, %v89, 0
  %vm142 = vcmask 1043456
  %v144 = vsel %vm142, %v112, 0
  %146 = vmatpush.bf16.msra.mxu0 0
  %147 = vmatpush.bf16.msra.mxu0 0
  %148 = vmatpush.bf16.msra.mxu0 0
  %149 = vmatpush.bf16.msra.mxu0 %v144
  %150 = vmatpush.bf16.msra.mxu0 %v111
  %151 = vmatpush.bf16.msra.mxu0 %v110
  %152 = vmatpush.bf16.msra.mxu0 %v109
  %153 = vmatpush.bf16.msra.mxu0 %v108
  %154 = vmatmul.bf16.gmra.mxu0 %v119
  %v155 = vpop.f32.mrf.mxu0
  %v156 = vadd.f32 %v48, %v155
  %v157 = vpop.f32.mrf.mxu0
  %v158 = vadd.f32 %v48, %v157
  %159 = vmatmul.bf16.gmra.mxu0 %v122
  %v160 = vpop.f32.mrf.mxu0
  %v161 = vadd.f32 %v48, %v160
  %v162 = vpop.f32.mrf.mxu0
  %v163 = vadd.f32 %v48, %v162
  %164 = vmatmul.bf16.gmra.mxu0 %v125
  %v165 = vpop.f32.mrf.mxu0
  %v166 = vadd.f32 %v48, %v165
  %v167 = vpop.f32.mrf.mxu0
  %v168 = vadd.f32 %v48, %v167
  %169 = vmatmul.bf16.gmra.mxu0 %v128
  %v170 = vpop.f32.mrf.mxu0
  %v171 = vadd.f32 %v48, %v170
  %v172 = vpop.f32.mrf.mxu0
  %v173 = vadd.f32 %v48, %v172
  %174 = vmatmul.bf16.gmra.mxu0 %v131
  %v175 = vpop.f32.mrf.mxu0
  %v176 = vadd.f32 %v48, %v175
  %v177 = vpop.f32.mrf.mxu0
  %v178 = vadd.f32 %v48, %v177
  %179 = vmatmul.bf16.gmra.mxu0 %v134
  %v180 = vpop.f32.mrf.mxu0
  %v181 = vadd.f32 %v48, %v180
  %v182 = vpop.f32.mrf.mxu0
  %v183 = vadd.f32 %v48, %v182
  %184 = vmatmul.bf16.gmra.mxu0 %v137
  %v185 = vpop.f32.mrf.mxu0
  %v186 = vadd.f32 %v48, %v185
  %v187 = vpop.f32.mrf.mxu0
  %v188 = vadd.f32 %v48, %v187
  %189 = vmatmul.bf16.gmra.mxu0 %v140
  %v190 = vpop.f32.mrf.mxu0
  %v191 = vadd.f32 %v48, %v190
  %v192 = vpop.f32.mrf.mxu0
  %v193 = vadd.f32 %v48, %v192
  %194 = vdwg.mxu0
  %v195 = vmax.f32 %v156, 0.0
  %v196 = vmax.f32 %v158, 0.0
  %v197 = vmax.f32 %v161, 0.0
  %v198 = vmax.f32 %v163, 0.0
  %v199 = vmax.f32 %v166, 0.0
  %v200 = vmax.f32 %v168, 0.0
  %v201 = vmax.f32 %v171, 0.0
  %v202 = vmax.f32 %v173, 0.0
  %v203 = vmax.f32 %v176, 0.0
  %v204 = vmax.f32 %v178, 0.0
  %v205 = vmax.f32 %v181, 0.0
  %v206 = vmax.f32 %v183, 0.0
  %v207 = vmax.f32 %v186, 0.0
  %v208 = vmax.f32 %v188, 0.0
  %v209 = vmax.f32 %v191, 0.0
  %v210 = vmax.f32 %v193, 0.0
  %v211 = vld [vmem:[%s3] sm:$0x1]
  %v213 = vperm.slane %v211, 0
  %v215 = vmul.f32 %v195, %v213
  %v216 = vmul.f32 %v196, %v213
  %v217 = vmul.f32 %v197, %v213
  %v218 = vmul.f32 %v198, %v213
  %v219 = vmul.f32 %v199, %v213
  %v220 = vmul.f32 %v200, %v213
  %v221 = vmul.f32 %v201, %v213
  %v222 = vmul.f32 %v202, %v213
  %v223 = vmul.f32 %v203, %v213
  %v224 = vmul.f32 %v204, %v213
  %v225 = vmul.f32 %v205, %v213
  %v226 = vmul.f32 %v206, %v213
  %v227 = vmul.f32 %v207, %v213
  %v228 = vmul.f32 %v208, %v213
  %v229 = vmul.f32 %v209, %v213
  %v230 = vmul.f32 %v210, %v213
  %v231 = vld [vmem:[%s4] sm:$0x1]
  %v233 = vperm.slane %v231, 0
  %v235 = vadd.f32 %v215, %v233
  %v236 = vadd.f32 %v216, %v233
  %v237 = vadd.f32 %v217, %v233
  %v238 = vadd.f32 %v218, %v233
  %v239 = vadd.f32 %v219, %v233
  %v240 = vadd.f32 %v220, %v233
  %v241 = vadd.f32 %v221, %v233
  %v242 = vadd.f32 %v222, %v233
  %v243 = vadd.f32 %v223, %v233
  %v244 = vadd.f32 %v224, %v233
  %v245 = vadd.f32 %v225, %v233
  %v246 = vadd.f32 %v226, %v233
  %v247 = vadd.f32 %v227, %v233
  %v248 = vadd.f32 %v228, %v233
  %v249 = vadd.f32 %v229, %v233
  %v250 = vadd.f32 %v230, %v233
  %v251 = vpack.c.bf16 %v235, %v235
  %v252 = vpack.c.bf16 %v236, %v236
  %v253 = vpack.c.bf16 %v237, %v237
  %v254 = vpack.c.bf16 %v238, %v238
  %v255 = vpack.c.bf16 %v239, %v239
  %v256 = vpack.c.bf16 %v240, %v240
  %v257 = vpack.c.bf16 %v241, %v241
  %v258 = vpack.c.bf16 %v242, %v242
  %v259 = vpack.c.bf16 %v243, %v243
  %v260 = vpack.c.bf16 %v244, %v244
  %v261 = vpack.c.bf16 %v245, %v245
  %v262 = vpack.c.bf16 %v246, %v246
  %v263 = vpack.c.bf16 %v247, %v247
  %v264 = vpack.c.bf16 %v248, %v248
  %v265 = vpack.c.bf16 %v249, %v249
  %v266 = vpack.c.bf16 %v250, %v250
  %267 = vst [vmem:[%s5] sm:$0xf] %v251
  %268 = vst [vmem:[%s5 + $0x4] sm:$0xf] %v252
  %269 = vst [vmem:[%s5 + $0x8] sm:$0xf] %v253
  %270 = vst [vmem:[%s5 + $0xc] sm:$0xf] %v254
  %271 = vst [vmem:[%s5 + $0x10] sm:$0xf] %v255
  %272 = vst [vmem:[%s5 + $0x14] sm:$0xf] %v256
  %273 = vst [vmem:[%s5 + $0x18] sm:$0xf] %v257
  %274 = vst [vmem:[%s5 + $0x1c] sm:$0xf] %v258
  %275 = vst [vmem:[%s5 + $0x20] sm:$0xf] %v259
  %276 = vst [vmem:[%s5 + $0x24] sm:$0xf] %v260
  %277 = vst [vmem:[%s5 + $0x28] sm:$0xf] %v261
  %278 = vst [vmem:[%s5 + $0x2c] sm:$0xf] %v262
  %279 = vst [vmem:[%s5 + $0x30] sm:$0xf] %v263
  %280 = vst [vmem:[%s5 + $0x34] sm:$0xf] %v264
  %281 = vst [vmem:[%s5 + $0x38] sm:$0xf] %v265
  %282 = vst [vmem:[%s5 + $0x3c] sm:$0xf] %v266
  // Predicated region
  $region22: #{sardinet_forward.12} parent=0 // pred_check
    _
  $region23: #{sardinet_forward.12} parent=0 // pred_check_branch
    %284 = sbr.rel (0) target = $region25
  $region24: #{sardinet_forward.12} parent=0 // pred_region
    _
  $region25: #{sardinet_forward.12} parent=0 // pred_fallthru
    _
  // Predicated region
  $region26: #{sardinet_forward.12} parent=0 // pred_check
    _
  $region27: #{sardinet_forward.12} parent=0 // pred_check_branch
    %286 = sbr.rel (0) target = $region29
  $region28: #{sardinet_forward.12} parent=0 // pred_region
    _
  $region29: #{sardinet_forward.12} parent=0 // pred_fallthru
    _

// kernel: sardinet_forward.13
$region0: #{sardinet_forward.13}
  #allocation0 [shape = 'u32[]', space=smem, size = 0x4, offset = 0x4, fixed_abs, tag = 'smem constant byte address 0x4 - core index']
  #allocation1 [shape = 'u32[72,128]{1,0:T(1,128)}', space=vmem, size = 0x9000, scoped, tag = 'internal scratch']
  %s0 = inlined_call_operand.vmem [shape: bf16[128,144], index: 0, kind: input, shape index: {}]
  %s1 = inlined_call_operand.vmem [shape: bf16[144,128], index: 1, kind: input, shape index: {}]
  %s2 = inlined_call_operand.vmem [shape: f32[1,128], index: 2, kind: input, shape index: {}]
  %s3 = inlined_call_operand.vmem [shape: f32[1,128], index: 3, kind: input, shape index: {}]
  %s4 = inlined_call_operand.vmem [shape: f32[1,128], index: 4, kind: input, shape index: {}]
  %s5 = inlined_call_operand.vmem [shape: f32[1,128], index: 5, kind: input, shape index: {}]
  %s6 = inlined_call_operand.vmem [shape: bf16[128,128], index: 6, kind: output, shape index: {}]
  %s7 = sld [smem:[#allocation0]]
  $region34: #{sardinet_forward.13} parent=0
    _
  %s9 = ssub.s32 1, %s7
  %s10 = scalar_select 0, %s9, %s7
  // Predicated region
  $region2: #{sardinet_forward.13} parent=0 // pred_check
    _
  $region3: #{sardinet_forward.13} parent=0 // pred_check_branch
    %12 = sbr.rel (0) target = $region5
  $region4: #{sardinet_forward.13} parent=0 // pred_region
    _
  $region5: #{sardinet_forward.13} parent=0 // pred_fallthru
    _
  // Predicated region
  $region6: #{sardinet_forward.13} parent=0 // pred_check
    _
  $region7: #{sardinet_forward.13} parent=0 // pred_check_branch
    %14 = sbr.rel (0) target = $region9
  $region8: #{sardinet_forward.13} parent=0 // pred_region
    _
  $region9: #{sardinet_forward.13} parent=0 // pred_fallthru
    _
  // Predicated region
  $region10: #{sardinet_forward.13} parent=0 // pred_check
    _
  $region11: #{sardinet_forward.13} parent=0 // pred_check_branch
    %16 = sbr.rel (0) target = $region13
  $region12: #{sardinet_forward.13} parent=0 // pred_region
    _
  $region13: #{sardinet_forward.13} parent=0 // pred_fallthru
    _
  // Predicated region
  $region14: #{sardinet_forward.13} parent=0 // pred_check
    _
  $region15: #{sardinet_forward.13} parent=0 // pred_check_branch
    %18 = sbr.rel (0) target = $region17
  $region16: #{sardinet_forward.13} parent=0 // pred_region
    _
  $region17: #{sardinet_forward.13} parent=0 // pred_fallthru
    _
  // Predicated region
  $region18: #{sardinet_forward.13} parent=0 // pred_check
    _
  $region19: #{sardinet_forward.13} parent=0 // pred_check_branch
    %20 = sbr.rel (0) target = $region21
  $region20: #{sardinet_forward.13} parent=0 // pred_region
    _
  $region21: #{sardinet_forward.13} parent=0 // pred_fallthru
    _
  // Predicated region
  $region22: #{sardinet_forward.13} parent=0 // pred_check
    _
  $region23: #{sardinet_forward.13} parent=0 // pred_check_branch
    %22 = sbr.rel (0) target = $region25
  $region24: #{sardinet_forward.13} parent=0 // pred_region
    _
  $region25: #{sardinet_forward.13} parent=0 // pred_fallthru
    _
  %v24 = vld [vmem:[%s0] sm:$0xff]
  %v25 = vld [vmem:[%s0 + $0x8] sm:$0xff]
  %v26 = vld [vmem:[%s0 + $0x10] sm:$0xff]
  %v27 = vld [vmem:[%s0 + $0x18] sm:$0xff]
  %v28 = vld [vmem:[%s0 + $0x20] sm:$0xff]
  %v29 = vld [vmem:[%s0 + $0x28] sm:$0xff]
  %v30 = vld [vmem:[%s0 + $0x30] sm:$0xff]
  %v31 = vld [vmem:[%s0 + $0x38] sm:$0xff]
  %v32 = vld [vmem:[%s0 + $0x40] sm:$0xff]
  %v33 = vld [vmem:[%s0 + $0x48] sm:$0xff]
  %v34 = vld [vmem:[%s0 + $0x50] sm:$0xff]
  %v35 = vld [vmem:[%s0 + $0x58] sm:$0xff]
  %v36 = vld [vmem:[%s0 + $0x60] sm:$0xff]
  %v37 = vld [vmem:[%s0 + $0x68] sm:$0xff]
  %v38 = vld [vmem:[%s0 + $0x70] sm:$0xff]
  %v39 = vld [vmem:[%s0 + $0x78] sm:$0xff]
  %v40 = vld [vmem:[%s1] sm:$0xf]
  %v41 = vld [vmem:[%s1 + $0x4] sm:$0xf]
  %v42 = vld [vmem:[%s1 + $0x8] sm:$0xf]
  %v43 = vld [vmem:[%s1 + $0xc] sm:$0xf]
  %v44 = vld [vmem:[%s1 + $0x10] sm:$0xf]
  %v45 = vld [vmem:[%s1 + $0x14] sm:$0xf]
  %v46 = vld [vmem:[%s1 + $0x18] sm:$0xf]
  %v47 = vld [vmem:[%s1 + $0x1c] sm:$0xf]
  %v48 = vld [vmem:[%s1 + $0x20] sm:$0xf]
  %v49 = vld [vmem:[%s1 + $0x24] sm:$0xf]
  %v50 = vld [vmem:[%s1 + $0x28] sm:$0xf]
  %v51 = vld [vmem:[%s1 + $0x2c] sm:$0xf]
  %v52 = vld [vmem:[%s1 + $0x30] sm:$0xf]
  %v53 = vld [vmem:[%s1 + $0x34] sm:$0xf]
  %v54 = vld [vmem:[%s1 + $0x38] sm:$0xf]
  %v55 = vld [vmem:[%s1 + $0x3c] sm:$0xf]
  %v56 = vld [vmem:[%s1 + $0x40] sm:$0xf]
  %v57 = vld [vmem:[%s1 + $0x44] sm:$0xf]
  %v58 = vld [vmem:[%s2] sm:$0x1]
  %v60 = vperm.slane %v58, 0
  %v78 = vunpack.c.l.b16 %v24
  %v79 = vunpack.c.h.b16 %v24
  %v80 = vunpack.c.l.b16 %v25
  %v81 = vunpack.c.h.b16 %v25
  %v82 = vunpack.c.l.b16 %v26
  %v83 = vunpack.c.h.b16 %v26
  %v84 = vunpack.c.l.b16 %v27
  %v85 = vunpack.c.h.b16 %v27
  %v86 = vunpack.c.l.b16 %v28
  %v87 = vunpack.c.h.b16 %v28
  %v88 = vunpack.c.l.b16 %v29
  %v89 = vunpack.c.h.b16 %v29
  %v90 = vunpack.c.l.b16 %v30
  %v91 = vunpack.c.h.b16 %v30
  %v92 = vunpack.c.l.b16 %v31
  %v93 = vunpack.c.h.b16 %v31
  %v94 = vunpack.c.l.b16 %v32
  %v95 = vunpack.c.h.b16 %v32
  %v96 = vunpack.c.l.b16 %v33
  %v97 = vunpack.c.h.b16 %v33
  %v98 = vunpack.c.l.b16 %v34
  %v99 = vunpack.c.h.b16 %v34
  %v100 = vunpack.c.l.b16 %v35
  %v101 = vunpack.c.h.b16 %v35
  %v102 = vunpack.c.l.b16 %v36
  %v103 = vunpack.c.h.b16 %v36
  %v104 = vunpack.c.l.b16 %v37
  %v105 = vunpack.c.h.b16 %v37
  %v106 = vunpack.c.l.b16 %v38
  %v107 = vunpack.c.h.b16 %v38
  %v108 = vunpack.c.l.b16 %v39
  %v109 = vunpack.c.h.b16 %v39
  %v110 = vpack.c.b16 %v80, %v78
  %v111 = vpack.c.b16 %v81, %v79
  %v112 = vpack.c.b16 %v84, %v82
  %v113 = vpack.c.b16 %v85, %v83
  %v114 = vpack.c.b16 %v88, %v86
  %v115 = vpack.c.b16 %v89, %v87
  %v116 = vpack.c.b16 %v92, %v90
  %v117 = vpack.c.b16 %v93, %v91
  %v118 = vpack.c.b16 %v96, %v94
  %v119 = vpack.c.b16 %v97, %v95
  %v120 = vpack.c.b16 %v100, %v98
  %v121 = vpack.c.b16 %v101, %v99
  %v122 = vpack.c.b16 %v104, %v102
  %v123 = vpack.c.b16 %v105, %v103
  %v124 = vpack.c.b16 %v108, %v106
  %v125 = vpack.c.b16 %v109, %v107
  %v152 = vunpack.c.l.b16 %v40
  %v153 = vunpack.c.l.b16 %v41
  %v154 = vunpack.c.l.b16 %v42
  %v155 = vunpack.c.l.b16 %v43
  %v156 = vunpack.c.l.b16 %v44
  %v157 = vunpack.c.l.b16 %v45
  %v158 = vunpack.c.l.b16 %v46
  %v159 = vunpack.c.l.b16 %v47
  %v160 = vunpack.c.l.b16 %v48
  %v161 = vunpack.c.l.b16 %v49
  %v162 = vunpack.c.l.b16 %v50
  %v163 = vunpack.c.l.b16 %v51
  %v164 = vunpack.c.l.b16 %v52
  %v165 = vunpack.c.l.b16 %v53
  %v166 = vunpack.c.l.b16 %v54
  %v167 = vunpack.c.l.b16 %v55
  %v168 = vunpack.c.l.b16 %v56
  %v169 = vunpack.c.l.b16 %v57
  %v170 = vpack.c.b16 %v153, %v152
  %v171 = vpack.c.b16 %v155, %v154
  %v172 = vpack.c.b16 %v157, %v156
  %v173 = vpack.c.b16 %v159, %v158
  %v174 = vpack.c.b16 %v161, %v160
  %v175 = vpack.c.b16 %v163, %v162
  %v176 = vpack.c.b16 %v165, %v164
  %v177 = vpack.c.b16 %v167, %v166
  %v178 = vpack.c.b16 %v169, %v168
  %vm188 = vcmask 130048
  %v190 = vsel %vm188, %v111, 0
  %v193 = vsel %vm188, %v113, 0
  %v196 = vsel %vm188, %v115, 0
  %v199 = vsel %vm188, %v117, 0
  %v202 = vsel %vm188, %v119, 0
  %v205 = vsel %vm188, %v121, 0
  %v208 = vsel %vm188, %v123, 0
  %v211 = vsel %vm188, %v125, 0
  %213 = vmatpush.bf16.msra.mxu0 %v177
  %214 = vmatpush.bf16.msra.mxu0 %v176
  %215 = vmatpush.bf16.msra.mxu0 %v175
  %216 = vmatpush.bf16.msra.mxu0 %v174
  %217 = vmatpush.bf16.msra.mxu0 %v173
  %218 = vmatpush.bf16.msra.mxu0 %v172
  %219 = vmatpush.bf16.msra.mxu0 %v171
  %220 = vmatpush.bf16.msra.mxu0 %v170
  %221 = vmatmul.bf16.gmra.mxu0 %v110
  %v222 = vpop.f32.mrf.mxu0
  %v223 = vadd.f32 %v60, %v222
  %v224 = vpop.f32.mrf.mxu0
  %v225 = vadd.f32 %v60, %v224
  %226 = vmatmul.bf16.gmra.mxu0 %v112
  %v227 = vpop.f32.mrf.mxu0
  %v228 = vadd.f32 %v60, %v227
  %v229 = vpop.f32.mrf.mxu0
  %v230 = vadd.f32 %v60, %v229
  %231 = vmatmul.bf16.gmra.mxu0 %v114
  %v232 = vpop.f32.mrf.mxu0
  %v233 = vadd.f32 %v60, %v232
  %v234 = vpop.f32.mrf.mxu0
  %v235 = vadd.f32 %v60, %v234
  %236 = vmatmul.bf16.gmra.mxu0 %v116
  %v237 = vpop.f32.mrf.mxu0
  %v238 = vadd.f32 %v60, %v237
  %v239 = vpop.f32.mrf.mxu0
  %v240 = vadd.f32 %v60, %v239
  %241 = vmatmul.bf16.gmra.mxu0 %v118
  %v242 = vpop.f32.mrf.mxu0
  %v243 = vadd.f32 %v60, %v242
  %v244 = vpop.f32.mrf.mxu0
  %v245 = vadd.f32 %v60, %v244
  %246 = vmatmul.bf16.gmra.mxu0 %v120
  %v247 = vpop.f32.mrf.mxu0
  %v248 = vadd.f32 %v60, %v247
  %v249 = vpop.f32.mrf.mxu0
  %v250 = vadd.f32 %v60, %v249
  %251 = vmatmul.bf16.gmra.mxu0 %v122
  %v252 = vpop.f32.mrf.mxu0
  %v253 = vadd.f32 %v60, %v252
  %v254 = vpop.f32.mrf.mxu0
  %v255 = vadd.f32 %v60, %v254
  %256 = vmatmul.bf16.gmra.mxu0 %v124
  %v257 = vpop.f32.mrf.mxu0
  %v258 = vadd.f32 %v60, %v257
  %v259 = vpop.f32.mrf.mxu0
  %v260 = vadd.f32 %v60, %v259
  %261 = vdwg.mxu0
  %262 = vmatpush.bf16.msra.mxu0 0
  %263 = vmatpush.bf16.msra.mxu0 0
  %264 = vmatpush.bf16.msra.mxu0 0
  %265 = vmatpush.bf16.msra.mxu0 0
  %266 = vmatpush.bf16.msra.mxu0 0
  %267 = vmatpush.bf16.msra.mxu0 0
  %268 = vmatpush.bf16.msra.mxu0 0
  %269 = vmatpush.bf16.msra.mxu0 %v178
  %270 = vmatmul.bf16.gmra.mxu0 %v190
  %v271 = vpop.f32.mrf.mxu0
  %v272 = vadd.f32 %v223, %v271
  %v273 = vpop.f32.mrf.mxu0
  %v274 = vadd.f32 %v225, %v273
  %275 = vmatmul.bf16.gmra.mxu0 %v193
  %v276 = vpop.f32.mrf.mxu0
  %v277 = vadd.f32 %v228, %v276
  %v278 = vpop.f32.mrf.mxu0
  %v279 = vadd.f32 %v230, %v278
  %280 = vmatmul.bf16.gmra.mxu0 %v196
  %v281 = vpop.f32.mrf.mxu0
  %v282 = vadd.f32 %v233, %v281
  %v283 = vpop.f32.mrf.mxu0
  %v284 = vadd.f32 %v235, %v283
  %285 = vmatmul.bf16.gmra.mxu0 %v199
  %v286 = vpop.f32.mrf.mxu0
  %v287 = vadd.f32 %v238, %v286
  %v288 = vpop.f32.mrf.mxu0
  %v289 = vadd.f32 %v240, %v288
  %290 = vmatmul.bf16.gmra.mxu0 %v202
  %v291 = vpop.f32.mrf.mxu0
  %v292 = vadd.f32 %v243, %v291
  %v293 = vpop.f32.mrf.mxu0
  %v294 = vadd.f32 %v245, %v293
  %295 = vmatmul.bf16.gmra.mxu0 %v205
  %v296 = vpop.f32.mrf.mxu0
  %v297 = vadd.f32 %v248, %v296
  %v298 = vpop.f32.mrf.mxu0
  %v299 = vadd.f32 %v250, %v298
  %300 = vmatmul.bf16.gmra.mxu0 %v208
  %v301 = vpop.f32.mrf.mxu0
  %v302 = vadd.f32 %v253, %v301
  %v303 = vpop.f32.mrf.mxu0
  %v304 = vadd.f32 %v255, %v303
  %305 = vmatmul.bf16.gmra.mxu0 %v211
  %v306 = vpop.f32.mrf.mxu0
  %v307 = vadd.f32 %v258, %v306
  %v308 = vpop.f32.mrf.mxu0
  %v309 = vadd.f32 %v260, %v308
  %310 = vdwg.mxu0
  %v311 = vld [vmem:[%s3] sm:$0x1]
  %vm312 = vcmp.gt.f32.partialorder %v311, 0.5
  %v313 = vmax.f32 %v272, 0.0
  %v314 = vmax.f32 %v274, 0.0
  %v315 = vmax.f32 %v277, 0.0
  %v316 = vmax.f32 %v279, 0.0
  %v317 = vmax.f32 %v282, 0.0
  %v318 = vmax.f32 %v284, 0.0
  %v319 = vmax.f32 %v287, 0.0
  %v320 = vmax.f32 %v289, 0.0
  %v321 = vmax.f32 %v292, 0.0
  %v322 = vmax.f32 %v294, 0.0
  %v323 = vmax.f32 %v297, 0.0
  %v324 = vmax.f32 %v299, 0.0
  %v325 = vmax.f32 %v302, 0.0
  %v326 = vmax.f32 %v304, 0.0
  %v327 = vmax.f32 %v307, 0.0
  %v328 = vmax.f32 %v309, 0.0
  %v329 = vsel %vm312, 1, 0
  %v330 = vperm.slane %v329, 0
  %vm331 = vcmp.eq.s32.totalorder %v330, 1
  %v332 = vsel %vm331, %v313, %v272
  %v333 = vsel %vm331, %v314, %v274
  %v334 = vsel %vm331, %v315, %v277
  %v335 = vsel %vm331, %v316, %v279
  %v336 = vsel %vm331, %v317, %v282
  %v337 = vsel %vm331, %v318, %v284
  %v338 = vsel %vm331, %v319, %v287
  %v339 = vsel %vm331, %v320, %v289
  %v340 = vsel %vm331, %v321, %v292
  %v341 = vsel %vm331, %v322, %v294
  %v342 = vsel %vm331, %v323, %v297
  %v343 = vsel %vm331, %v324, %v299
  %v344 = vsel %vm331, %v325, %v302
  %v345 = vsel %vm331, %v326, %v304
  %v346 = vsel %vm331, %v327, %v307
  %v347 = vsel %vm331, %v328, %v309
  %v348 = vld [vmem:[%s4] sm:$0x1]
  %v350 = vperm.slane %v348, 0
  %v352 = vmul.f32 %v332, %v350
  %v353 = vmul.f32 %v333, %v350
  %v354 = vmul.f32 %v334, %v350
  %v355 = vmul.f32 %v335, %v350
  %v356 = vmul.f32 %v336, %v350
  %v357 = vmul.f32 %v337, %v350
  %v358 = vmul.f32 %v338, %v350
  %v359 = vmul.f32 %v339, %v350
  %v360 = vmul.f32 %v340, %v350
  %v361 = vmul.f32 %v341, %v350
  %v362 = vmul.f32 %v342, %v350
  %v363 = vmul.f32 %v343, %v350
  %v364 = vmul.f32 %v344, %v350
  %v365 = vmul.f32 %v345, %v350
  %v366 = vmul.f32 %v346, %v350
  %v367 = vmul.f32 %v347, %v350
  %v368 = vld [vmem:[%s5] sm:$0x1]
  %v370 = vperm.slane %v368, 0
  %v372 = vadd.f32 %v352, %v370
  %v373 = vadd.f32 %v353, %v370
  %v374 = vadd.f32 %v354, %v370
  %v375 = vadd.f32 %v355, %v370
  %v376 = vadd.f32 %v356, %v370
  %v377 = vadd.f32 %v357, %v370
  %v378 = vadd.f32 %v358, %v370
  %v379 = vadd.f32 %v359, %v370
  %v380 = vadd.f32 %v360, %v370
  %v381 = vadd.f32 %v361, %v370
  %v382 = vadd.f32 %v362, %v370
  %v383 = vadd.f32 %v363, %v370
  %v384 = vadd.f32 %v364, %v370
  %v385 = vadd.f32 %v365, %v370
  %v386 = vadd.f32 %v366, %v370
  %v387 = vadd.f32 %v367, %v370
  %v388 = vpack.c.bf16 %v372, %v372
  %v389 = vpack.c.bf16 %v373, %v373
  %v390 = vpack.c.bf16 %v374, %v374
  %v391 = vpack.c.bf16 %v375, %v375
  %v392 = vpack.c.bf16 %v376, %v376
  %v393 = vpack.c.bf16 %v377, %v377
  %v394 = vpack.c.bf16 %v378, %v378
  %v395 = vpack.c.bf16 %v379, %v379
  %v396 = vpack.c.bf16 %v380, %v380
  %v397 = vpack.c.bf16 %v381, %v381
  %v398 = vpack.c.bf16 %v382, %v382
  %v399 = vpack.c.bf16 %v383, %v383
  %v400 = vpack.c.bf16 %v384, %v384
  %v401 = vpack.c.bf16 %v385, %v385
  %v402 = vpack.c.bf16 %v386, %v386
  %v403 = vpack.c.bf16 %v387, %v387
  %404 = vst [vmem:[%s6] sm:$0xf] %v388
  %405 = vst [vmem:[%s6 + $0x4] sm:$0xf] %v389
  %406 = vst [vmem:[%s6 + $0x8] sm:$0xf] %v390
  %407 = vst [vmem:[%s6 + $0xc] sm:$0xf] %v391
  %408 = vst [vmem:[%s6 + $0x10] sm:$0xf] %v392
  %409 = vst [vmem:[%s6 + $0x14] sm:$0xf] %v393
  %410 = vst [vmem:[%s6 + $0x18] sm:$0xf] %v394
  %411 = vst [vmem:[%s6 + $0x1c] sm:$0xf] %v395
  %412 = vst [vmem:[%s6 + $0x20] sm:$0xf] %v396
  %413 = vst [vmem:[%s6 + $0x24] sm:$0xf] %v397
  %414 = vst [vmem:[%s6 + $0x28] sm:$0xf] %v398
  %415 = vst [vmem:[%s6 + $0x2c] sm:$0xf] %v399
  %416 = vst [vmem:[%s6 + $0x30] sm:$0xf] %v400
  %417 = vst [vmem:[%s6 + $0x34] sm:$0xf] %v401
  %418 = vst [vmem:[%s6 + $0x38] sm:$0xf] %v402
  %419 = vst [vmem:[%s6 + $0x3c] sm:$0xf] %v403
  // Predicated region
  $region26: #{sardinet_forward.13} parent=0 // pred_check
    _
  $region27: #{sardinet_forward.13} parent=0 // pred_check_branch
    %421 = sbr.rel (0) target = $region29
  $region28: #{sardinet_forward.13} parent=0 // pred_region
    _
  $region29: #{sardinet_forward.13} parent=0 // pred_fallthru
    _
  // Predicated region
  $region30: #{sardinet_forward.13} parent=0 // pred_check
    _
  $region31: #{sardinet_forward.13} parent=0 // pred_check_branch
    %423 = sbr.rel (0) target = $region33
  $region32: #{sardinet_forward.13} parent=0 // pred_region
    _
  $region33: #{sardinet_forward.13} parent=0 // pred_fallthru
    _

// kernel: sardinet_forward.14
$region0: #{sardinet_forward.14}
  #allocation0 [shape = 'u32[]', space=smem, size = 0x4, offset = 0x4, fixed_abs, tag = 'smem constant byte address 0x4 - core index']
  #allocation1 [shape = 'u32[72,128]{1,0:T(1,128)}', space=vmem, size = 0x9000, scoped, tag = 'internal scratch']
  %s0 = inlined_call_operand.vmem [shape: bf16[128,288], index: 0, kind: input, shape index: {}]
  %s1 = inlined_call_operand.vmem [shape: bf16[288,128], index: 1, kind: input, shape index: {}]
  %s2 = inlined_call_operand.vmem [shape: f32[1,128], index: 2, kind: input, shape index: {}]
  %s3 = inlined_call_operand.vmem [shape: bf16[128,128], index: 3, kind: output, shape index: {}]
  %s4 = sld [smem:[#allocation0]]
  $region22: #{sardinet_forward.14} parent=0
    _
  %s6 = ssub.s32 1, %s4
  %s7 = scalar_select 0, %s6, %s4
  // Predicated region
  $region2: #{sardinet_forward.14} parent=0 // pred_check
    _
  $region3: #{sardinet_forward.14} parent=0 // pred_check_branch
    %9 = sbr.rel (0) target = $region5
  $region4: #{sardinet_forward.14} parent=0 // pred_region
    _
  $region5: #{sardinet_forward.14} parent=0 // pred_fallthru
    _
  // Predicated region
  $region6: #{sardinet_forward.14} parent=0 // pred_check
    _
  $region7: #{sardinet_forward.14} parent=0 // pred_check_branch
    %11 = sbr.rel (0) target = $region9
  $region8: #{sardinet_forward.14} parent=0 // pred_region
    _
  $region9: #{sardinet_forward.14} parent=0 // pred_fallthru
    _
  // Predicated region
  $region10: #{sardinet_forward.14} parent=0 // pred_check
    _
  $region11: #{sardinet_forward.14} parent=0 // pred_check_branch
    %13 = sbr.rel (0) target = $region13
  $region12: #{sardinet_forward.14} parent=0 // pred_region
    _
  $region13: #{sardinet_forward.14} parent=0 // pred_fallthru
    _
  %v15 = vld [vmem:[%s0] sm:$0xff]
  %v16 = vld [vmem:[%s0 + $0x8] sm:$0xf]
  %v17 = vld [vmem:[%s0 + $0xc] sm:$0xff]
  %v18 = vld [vmem:[%s0 + $0x14] sm:$0xf]
  %v19 = vld [vmem:[%s0 + $0x18] sm:$0xff]
  %v20 = vld [vmem:[%s0 + $0x20] sm:$0xf]
  %v21 = vld [vmem:[%s0 + $0x24] sm:$0xff]
  %v22 = vld [vmem:[%s0 + $0x2c] sm:$0xf]
  %v23 = vld [vmem:[%s0 + $0x30] sm:$0xff]
  %v24 = vld [vmem:[%s0 + $0x38] sm:$0xf]
  %v25 = vld [vmem:[%s0 + $0x3c] sm:$0xff]
  %v26 = vld [vmem:[%s0 + $0x44] sm:$0xf]
  %v27 = vld [vmem:[%s0 + $0x48] sm:$0xff]
  %v28 = vld [vmem:[%s0 + $0x50] sm:$0xf]
  %v29 = vld [vmem:[%s0 + $0x54] sm:$0xff]
  %v30 = vld [vmem:[%s0 + $0x5c] sm:$0xf]
  %v31 = vld [vmem:[%s0 + $0x60] sm:$0xff]
  %v32 = vld [vmem:[%s0 + $0x68] sm:$0xf]
  %v33 = vld [vmem:[%s0 + $0x6c] sm:$0xff]
  %v34 = vld [vmem:[%s0 + $0x74] sm:$0xf]
  %v35 = vld [vmem:[%s0 + $0x78] sm:$0xff]
  %v36 = vld [vmem:[%s0 + $0x80] sm:$0xf]
  %v37 = vld [vmem:[%s0 + $0x84] sm:$0xff]
  %v38 = vld [vmem:[%s0 + $0x8c] sm:$0xf]
  %v39 = vld [vmem:[%s0 + $0x90] sm:$0xff]
  %v40 = vld [vmem:[%s0 + $0x98] sm:$0xf]
  %v41 = vld [vmem:[%s0 + $0x9c] sm:$0xff]
  %v42 = vld [vmem:[%s0 + $0xa4] sm:$0xf]
  %v43 = vld [vmem:[%s0 + $0xa8] sm:$0xff]
  %v44 = vld [vmem:[%s0 + $0xb0] sm:$0xf]
  %v45 = vld [vmem:[%s0 + $0xb4] sm:$0xff]
  %v46 = vld [vmem:[%s0 + $0xbc] sm:$0xf]
  %v47 = vld [vmem:[%s1] sm:$0xf]
  %v48 = vld [vmem:[%s1 + $0x4] sm:$0xf]
  %v49 = vld [vmem:[%s1 + $0x8] sm:$0xf]
  %v50 = vld [vmem:[%s1 + $0xc] sm:$0xf]
  %v51 = vld [vmem:[%s1 + $0x10] sm:$0xf]
  %v52 = vld [vmem:[%s1 + $0x14] sm:$0xf]
  %v53 = vld [vmem:[%s1 + $0x18] sm:$0xf]
  %v54 = vld [vmem:[%s1 + $0x1c] sm:$0xf]
  %v55 = vld [vmem:[%s1 + $0x20] sm:$0xf]
  %v56 = vld [vmem:[%s1 + $0x24] sm:$0xf]
  %v57 = vld [vmem:[%s1 + $0x28] sm:$0xf]
  %v58 = vld [vmem:[%s1 + $0x2c] sm:$0xf]
  %v59 = vld [vmem:[%s1 + $0x30] sm:$0xf]
  %v60 = vld [vmem:[%s1 + $0x34] sm:$0xf]
  %v61 = vld [vmem:[%s1 + $0x38] sm:$0xf]
  %v62 = vld [vmem:[%s1 + $0x3c] sm:$0xf]
  %v63 = vld [vmem:[%s1 + $0x40] sm:$0xf]
  %v64 = vld [vmem:[%s1 + $0x44] sm:$0xf]
  %v65 = vld [vmem:[%s1 + $0x48] sm:$0xf]
  %v66 = vld [vmem:[%s1 + $0x4c] sm:$0xf]
  %v67 = vld [vmem:[%s1 + $0x50] sm:$0xf]
  %v68 = vld [vmem:[%s1 + $0x54] sm:$0xf]
  %v69 = vld [vmem:[%s1 + $0x58] sm:$0xf]
  %v70 = vld [vmem:[%s1 + $0x5c] sm:$0xf]
  %v71 = vld [vmem:[%s1 + $0x60] sm:$0xf]
  %v72 = vld [vmem:[%s1 + $0x64] sm:$0xf]
  %v73 = vld [vmem:[%s1 + $0x68] sm:$0xf]
  %v74 = vld [vmem:[%s1 + $0x6c] sm:$0xf]
  %v75 = vld [vmem:[%s1 + $0x70] sm:$0xf]
  %v76 = vld [vmem:[%s1 + $0x74] sm:$0xf]
  %v77 = vld [vmem:[%s1 + $0x78] sm:$0xf]
  %v78 = vld [vmem:[%s1 + $0x7c] sm:$0xf]
  %v79 = vld [vmem:[%s1 + $0x80] sm:$0xf]
  %v80 = vld [vmem:[%s1 + $0x84] sm:$0xf]
  %v81 = vld [vmem:[%s1 + $0x88] sm:$0xf]
  %v82 = vld [vmem:[%s1 + $0x8c] sm:$0xf]
  %v83 = vld [vmem:[%s2] sm:$0x1]
  %v85 = vperm.slane %v83, 0
  %v119 = vunpack.c.l.b16 %v15
  %v120 = vunpack.c.h.b16 %v15
  %v121 = vunpack.c.l.b16 %v16
  %v122 = vunpack.c.l.b16 %v17
  %v123 = vunpack.c.h.b16 %v17
  %v124 = vunpack.c.l.b16 %v18
  %v125 = vunpack.c.l.b16 %v19
  %v126 = vunpack.c.h.b16 %v19
  %v127 = vunpack.c.l.b16 %v20
  %v128 = vunpack.c.l.b16 %v21
  %v129 = vunpack.c.h.b16 %v21
  %v130 = vunpack.c.l.b16 %v22
  %v131 = vunpack.c.l.b16 %v23
  %v132 = vunpack.c.h.b16 %v23
  %v133 = vunpack.c.l.b16 %v24
  %v134 = vunpack.c.l.b16 %v25
  %v135 = vunpack.c.h.b16 %v25
  %v136 = vunpack.c.l.b16 %v26
  %v137 = vunpack.c.l.b16 %v27
  %v138 = vunpack.c.h.b16 %v27
  %v139 = vunpack.c.l.b16 %v28
  %v140 = vunpack.c.l.b16 %v29
  %v141 = vunpack.c.h.b16 %v29
  %v142 = vunpack.c.l.b16 %v30
  %v143 = vunpack.c.l.b16 %v31
  %v144 = vunpack.c.h.b16 %v31
  %v145 = vunpack.c.l.b16 %v32
  %v146 = vunpack.c.l.b16 %v33
  %v147 = vunpack.c.h.b16 %v33
  %v148 = vunpack.c.l.b16 %v34
  %v149 = vunpack.c.l.b16 %v35
  %v150 = vunpack.c.h.b16 %v35
  %v151 = vunpack.c.l.b16 %v36
  %v152 = vunpack.c.l.b16 %v37
  %v153 = vunpack.c.h.b16 %v37
  %v154 = vunpack.c.l.b16 %v38
  %v155 = vunpack.c.l.b16 %v39
  %v156 = vunpack.c.h.b16 %v39
  %v157 = vunpack.c.l.b16 %v40
  %v158 = vunpack.c.l.b16 %v41
  %v159 = vunpack.c.h.b16 %v41
  %v160 = vunpack.c.l.b16 %v42
  %v161 = vunpack.c.l.b16 %v43
  %v162 = vunpack.c.h.b16 %v43
  %v163 = vunpack.c.l.b16 %v44
  %v164 = vunpack.c.l.b16 %v45
  %v165 = vunpack.c.h.b16 %v45
  %v166 = vunpack.c.l.b16 %v46
  %v167 = vpack.c.b16 %v122, %v119
  %v168 = vpack.c.b16 %v123, %v120
  %v169 = vpack.c.b16 %v124, %v121
  %v170 = vpack.c.b16 %v128, %v125
  %v171 = vpack.c.b16 %v129, %v126
  %v172 = vpack.c.b16 %v130, %v127
  %v173 = vpack.c.b16 %v134, %v131
  %v174 = vpack.c.b16 %v135, %v132
  %v175 = vpack.c.b16 %v136, %v133
  %v176 = vpack.c.b16 %v140, %v137
  %v177 = vpack.c.b16 %v141, %v138
  %v178 = vpack.c.b16 %v142, %v139
  %v179 = vpack.c.b16 %v146, %v143
  %v180 = vpack.c.b16 %v147, %v144
  %v181 = vpack.c.b16 %v148, %v145
  %v182 = vpack.c.b16 %v152, %v149
  %v183 = vpack.c.b16 %v153, %v150
  %v184 = vpack.c.b16 %v154, %v151
  %v185 = vpack.c.b16 %v158, %v155
  %v186 = vpack.c.b16 %v159, %v156
  %v187 = vpack.c.b16 %v160, %v157
  %v188 = vpack.c.b16 %v164, %v161
  %v189 = vpack.c.b16 %v165, %v162
  %v190 = vpack.c.b16 %v166, %v163
  %v243 = vunpack.c.l.b16 %v47
  %v244 = vunpack.c.l.b16 %v48
  %v245 = vunpack.c.l.b16 %v49
  %v246 = vunpack.c.l.b16 %v50
  %v247 = vunpack.c.l.b16 %v51
  %v248 = vunpack.c.l.b16 %v52
  %v249 = vunpack.c.l.b16 %v53
  %v250 = vunpack.c.l.b16 %v54
  %v251 = vunpack.c.l.b16 %v55
  %v252 = vunpack.c.l.b16 %v56
  %v253 = vunpack.c.l.b16 %v57
  %v254 = vunpack.c.l.b16 %v58
  %v255 = vunpack.c.l.b16 %v59
  %v256 = vunpack.c.l.b16 %v60
  %v257 = vunpack.c.l.b16 %v61
  %v258 = vunpack.c.l.b16 %v62
  %v259 = vunpack.c.l.b16 %v63
  %v260 = vunpack.c.l.b16 %v64
  %v261 = vunpack.c.l.b16 %v65
  %v262 = vunpack.c.l.b16 %v66
  %v263 = vunpack.c.l.b16 %v67
  %v264 = vunpack.c.l.b16 %v68
  %v265 = vunpack.c.l.b16 %v69
  %v266 = vunpack.c.l.b16 %v70
  %v267 = vunpack.c.l.b16 %v71
  %v268 = vunpack.c.l.b16 %v72
  %v269 = vunpack.c.l.b16 %v73
  %v270 = vunpack.c.l.b16 %v74
  %v271 = vunpack.c.l.b16 %v75
  %v272 = vunpack.c.l.b16 %v76
  %v273 = vunpack.c.l.b16 %v77
  %v274 = vunpack.c.l.b16 %v78
  %v275 = vunpack.c.l.b16 %v79
  %v276 = vunpack.c.l.b16 %v80
  %v277 = vunpack.c.l.b16 %v81
  %v278 = vunpack.c.l.b16 %v82
  %v279 = vpack.c.b16 %v244, %v243
  %v280 = vpack.c.b16 %v246, %v245
  %v281 = vpack.c.b16 %v248, %v247
  %v282 = vpack.c.b16 %v250, %v249
  %v283 = vpack.c.b16 %v252, %v251
  %v284 = vpack.c.b16 %v254, %v253
  %v285 = vpack.c.b16 %v256, %v255
  %v286 = vpack.c.b16 %v258, %v257
  %v287 = vpack.c.b16 %v260, %v259
  %v288 = vpack.c.b16 %v262, %v261
  %v289 = vpack.c.b16 %v264, %v263
  %v290 = vpack.c.b16 %v266, %v265
  %v291 = vpack.c.b16 %v268, %v267
  %v292 = vpack.c.b16 %v270, %v269
  %v293 = vpack.c.b16 %v272, %v271
  %v294 = vpack.c.b16 %v274, %v273
  %v295 = vpack.c.b16 %v276, %v275
  %v296 = vpack.c.b16 %v278, %v277
  %vm315 = vcmask 261120
  %v317 = vsel %vm315, %v169, 0
  %v320 = vsel %vm315, %v172, 0
  %v323 = vsel %vm315, %v175, 0
  %v326 = vsel %vm315, %v178, 0
  %v329 = vsel %vm315, %v181, 0
  %v332 = vsel %vm315, %v184, 0
  %v335 = vsel %vm315, %v187, 0
  %v338 = vsel %vm315, %v190, 0
  %340 = vmatpush.bf16.msra.mxu0 %v286
  %341 = vmatpush.bf16.msra.mxu0 %v285
  %342 = vmatpush.bf16.msra.mxu0 %v284
  %343 = vmatpush.bf16.msra.mxu0 %v283
  %344 = vmatpush.bf16.msra.mxu0 %v282
  %345 = vmatpush.bf16.msra.mxu0 %v281
  %346 = vmatpush.bf16.msra.mxu0 %v280
  %347 = vmatpush.bf16.msra.mxu0 %v279
  %348 = vmatmul.bf16.gmra.mxu0 %v167
  %v349 = vpop.f32.mrf.mxu0
  %v350 = vadd.f32 %v85, %v349
  %v351 = vpop.f32.mrf.mxu0
  %v352 = vadd.f32 %v85, %v351
  %353 = vmatmul.bf16.gmra.mxu0 %v170
  %v354 = vpop.f32.mrf.mxu0
  %v355 = vadd.f32 %v85, %v354
  %v356 = vpop.f32.mrf.mxu0
  %v357 = vadd.f32 %v85, %v356
  %358 = vmatmul.bf16.gmra.mxu0 %v173
  %v359 = vpop.f32.mrf.mxu0
  %v360 = vadd.f32 %v85, %v359
  %v361 = vpop.f32.mrf.mxu0
  %v362 = vadd.f32 %v85, %v361
  %363 = vmatmul.bf16.gmra.mxu0 %v176
  %v364 = vpop.f32.mrf.mxu0
  %v365 = vadd.f32 %v85, %v364
  %v366 = vpop.f32.mrf.mxu0
  %v367 = vadd.f32 %v85, %v366
  %368 = vmatmul.bf16.gmra.mxu0 %v179
  %v369 = vpop.f32.mrf.mxu0
  %v370 = vadd.f32 %v85, %v369
  %v371 = vpop.f32.mrf.mxu0
  %v372 = vadd.f32 %v85, %v371
  %373 = vmatmul.bf16.gmra.mxu0 %v182
  %v374 = vpop.f32.mrf.mxu0
  %v375 = vadd.f32 %v85, %v374
  %v376 = vpop.f32.mrf.mxu0
  %v377 = vadd.f32 %v85, %v376
  %378 = vmatmul.bf16.gmra.mxu0 %v185
  %v379 = vpop.f32.mrf.mxu0
  %v380 = vadd.f32 %v85, %v379
  %v381 = vpop.f32.mrf.mxu0
  %v382 = vadd.f32 %v85, %v381
  %383 = vmatmul.bf16.gmra.mxu0 %v188
  %v384 = vpop.f32.mrf.mxu0
  %v385 = vadd.f32 %v85, %v384
  %v386 = vpop.f32.mrf.mxu0
  %v387 = vadd.f32 %v85, %v386
  %388 = vdwg.mxu0
  %389 = vmatpush.bf16.msra.mxu0 %v294
  %390 = vmatpush.bf16.msra.mxu0 %v293
  %391 = vmatpush.bf16.msra.mxu0 %v292
  %392 = vmatpush.bf16.msra.mxu0 %v291
  %393 = vmatpush.bf16.msra.mxu0 %v290
  %394 = vmatpush.bf16.msra.mxu0 %v289
  %395 = vmatpush.bf16.msra.mxu0 %v288
  %396 = vmatpush.bf16.msra.mxu0 %v287
  %397 = vmatmul.bf16.gmra.mxu0 %v168
  %v398 = vpop.f32.mrf.mxu0
  %v399 = vadd.f32 %v350, %v398
  %v400 = vpop.f32.mrf.mxu0
  %v401 = vadd.f32 %v352, %v400
  %402 = vmatmul.bf16.gmra.mxu0 %v171
  %v403 = vpop.f32.mrf.mxu0
  %v404 = vadd.f32 %v355, %v403
  %v405 = vpop.f32.mrf.mxu0
  %v406 = vadd.f32 %v357, %v405
  %407 = vmatmul.bf16.gmra.mxu0 %v174
  %v408 = vpop.f32.mrf.mxu0
  %v409 = vadd.f32 %v360, %v408
  %v410 = vpop.f32.mrf.mxu0
  %v411 = vadd.f32 %v362, %v410
  %412 = vmatmul.bf16.gmra.mxu0 %v177
  %v413 = vpop.f32.mrf.mxu0
  %v414 = vadd.f32 %v365, %v413
  %v415 = vpop.f32.mrf.mxu0
  %v416 = vadd.f32 %v367, %v415
  %417 = vmatmul.bf16.gmra.mxu0 %v180
  %v418 = vpop.f32.mrf.mxu0
  %v419 = vadd.f32 %v370, %v418
  %v420 = vpop.f32.mrf.mxu0
  %v421 = vadd.f32 %v372, %v420
  %422 = vmatmul.bf16.gmra.mxu0 %v183
  %v423 = vpop.f32.mrf.mxu0
  %v424 = vadd.f32 %v375, %v423
  %v425 = vpop.f32.mrf.mxu0
  %v426 = vadd.f32 %v377, %v425
  %427 = vmatmul.bf16.gmra.mxu0 %v186
  %v428 = vpop.f32.mrf.mxu0
  %v429 = vadd.f32 %v380, %v428
  %v430 = vpop.f32.mrf.mxu0
  %v431 = vadd.f32 %v382, %v430
  %432 = vmatmul.bf16.gmra.mxu0 %v189
  %v433 = vpop.f32.mrf.mxu0
  %v434 = vadd.f32 %v385, %v433
  %v435 = vpop.f32.mrf.mxu0
  %v436 = vadd.f32 %v387, %v435
  %437 = vdwg.mxu0
  %438 = vmatpush.bf16.msra.mxu0 0
  %439 = vmatpush.bf16.msra.mxu0 0
  %440 = vmatpush.bf16.msra.mxu0 0
  %441 = vmatpush.bf16.msra.mxu0 0
  %442 = vmatpush.bf16.msra.mxu0 0
  %443 = vmatpush.bf16.msra.mxu0 0
  %444 = vmatpush.bf16.msra.mxu0 %v296
  %445 = vmatpush.bf16.msra.mxu0 %v295
  %446 = vmatmul.bf16.gmra.mxu0 %v317
  %v447 = vpop.f32.mrf.mxu0
  %v448 = vadd.f32 %v399, %v447
  %v449 = vpop.f32.mrf.mxu0
  %v450 = vadd.f32 %v401, %v449
  %451 = vmatmul.bf16.gmra.mxu0 %v320
  %v452 = vpop.f32.mrf.mxu0
  %v453 = vadd.f32 %v404, %v452
  %v454 = vpop.f32.mrf.mxu0
  %v455 = vadd.f32 %v406, %v454
  %456 = vmatmul.bf16.gmra.mxu0 %v323
  %v457 = vpop.f32.mrf.mxu0
  %v458 = vadd.f32 %v409, %v457
  %v459 = vpop.f32.mrf.mxu0
  %v460 = vadd.f32 %v411, %v459
  %461 = vmatmul.bf16.gmra.mxu0 %v326
  %v462 = vpop.f32.mrf.mxu0
  %v463 = vadd.f32 %v414, %v462
  %v464 = vpop.f32.mrf.mxu0
  %v465 = vadd.f32 %v416, %v464
  %466 = vmatmul.bf16.gmra.mxu0 %v329
  %v467 = vpop.f32.mrf.mxu0
  %v468 = vadd.f32 %v419, %v467
  %v469 = vpop.f32.mrf.mxu0
  %v470 = vadd.f32 %v421, %v469
  %471 = vmatmul.bf16.gmra.mxu0 %v332
  %v472 = vpop.f32.mrf.mxu0
  %v473 = vadd.f32 %v424, %v472
  %v474 = vpop.f32.mrf.mxu0
  %v475 = vadd.f32 %v426, %v474
  %476 = vmatmul.bf16.gmra.mxu0 %v335
  %v477 = vpop.f32.mrf.mxu0
  %v478 = vadd.f32 %v429, %v477
  %v479 = vpop.f32.mrf.mxu0
  %v480 = vadd.f32 %v431, %v479
  %481 = vmatmul.bf16.gmra.mxu0 %v338
  %v482 = vpop.f32.mrf.mxu0
  %v483 = vadd.f32 %v434, %v482
  %v484 = vpop.f32.mrf.mxu0
  %v485 = vadd.f32 %v436, %v484
  %486 = vdwg.mxu0
  %v487 = vpack.c.bf16 %v448, %v448
  %v488 = vpack.c.bf16 %v450, %v450
  %v489 = vpack.c.bf16 %v453, %v453
  %v490 = vpack.c.bf16 %v455, %v455
  %v491 = vpack.c.bf16 %v458, %v458
  %v492 = vpack.c.bf16 %v460, %v460
  %v493 = vpack.c.bf16 %v463, %v463
  %v494 = vpack.c.bf16 %v465, %v465
  %v495 = vpack.c.bf16 %v468, %v468
  %v496 = vpack.c.bf16 %v470, %v470
  %v497 = vpack.c.bf16 %v473, %v473
  %v498 = vpack.c.bf16 %v475, %v475
  %v499 = vpack.c.bf16 %v478, %v478
  %v500 = vpack.c.bf16 %v480, %v480
  %v501 = vpack.c.bf16 %v483, %v483
  %v502 = vpack.c.bf16 %v485, %v485
  %503 = vst [vmem:[%s3] sm:$0xf] %v487
  %504 = vst [vmem:[%s3 + $0x4] sm:$0xf] %v488
  %505 = vst [vmem:[%s3 + $0x8] sm:$0xf] %v489
  %506 = vst [vmem:[%s3 + $0xc] sm:$0xf] %v490
  %507 = vst [vmem:[%s3 + $0x10] sm:$0xf] %v491
  %508 = vst [vmem:[%s3 + $0x14] sm:$0xf] %v492
  %509 = vst [vmem:[%s3 + $0x18] sm:$0xf] %v493
  %510 = vst [vmem:[%s3 + $0x1c] sm:$0xf] %v494
  %511 = vst [vmem:[%s3 + $0x20] sm:$0xf] %v495
  %512 = vst [vmem:[%s3 + $0x24] sm:$0xf] %v496
  %513 = vst [vmem:[%s3 + $0x28] sm:$0xf] %v497
  %514 = vst [vmem:[%s3 + $0x2c] sm:$0xf] %v498
  %515 = vst [vmem:[%s3 + $0x30] sm:$0xf] %v499
  %516 = vst [vmem:[%s3 + $0x34] sm:$0xf] %v500
  %517 = vst [vmem:[%s3 + $0x38] sm:$0xf] %v501
  %518 = vst [vmem:[%s3 + $0x3c] sm:$0xf] %v502
  // Predicated region
  $region14: #{sardinet_forward.14} parent=0 // pred_check
    _
  $region15: #{sardinet_forward.14} parent=0 // pred_check_branch
    %520 = sbr.rel (0) target = $region17
  $region16: #{sardinet_forward.14} parent=0 // pred_region
    _
  $region17: #{sardinet_forward.14} parent=0 // pred_fallthru
    _
  // Predicated region
  $region18: #{sardinet_forward.14} parent=0 // pred_check
    _
  $region19: #{sardinet_forward.14} parent=0 // pred_check_branch
    %522 = sbr.rel (0) target = $region21
  $region20: #{sardinet_forward.14} parent=0 // pred_region
    _
  $region21: #{sardinet_forward.14} parent=0 // pred_fallthru
    _

// kernel: sardinet_forward.15
$region0: #{sardinet_forward.15}
  #allocation0 [shape = 'u32[]', space=smem, size = 0x4, offset = 0x4, fixed_abs, tag = 'smem constant byte address 0x4 - core index']
  #allocation1 [shape = 'u32[72,128]{1,0:T(1,128)}', space=vmem, size = 0x9000, scoped, tag = 'internal scratch']
  %s0 = inlined_call_operand.vmem [shape: bf16[32,864], index: 0, kind: input, shape index: {}]
  %s1 = inlined_call_operand.vmem [shape: bf16[864,256], index: 1, kind: input, shape index: {}]
  %s2 = inlined_call_operand.vmem [shape: f32[1,256], index: 2, kind: input, shape index: {}]
  %s3 = inlined_call_operand.vmem [shape: f32[1,256], index: 3, kind: input, shape index: {}]
  %s4 = inlined_call_operand.vmem [shape: f32[1,256], index: 4, kind: input, shape index: {}]
  %s5 = inlined_call_operand.vmem [shape: f32[1,256], index: 5, kind: input, shape index: {}]
  %s6 = inlined_call_operand.vmem [shape: bf16[32,256], index: 6, kind: output, shape index: {}]
  %s7 = sld [smem:[#allocation0]]
  $region135: #{sardinet_forward.15} parent=0
    _
  %s9 = ssub.s32 1, %s7
  %s10 = scalar_select 0, %s9, %s7
  $region1: #{sardinet_forward.15} parent=0
    #allocation2 [shape = 'u8[442368]{0}', space=vmem, size = 0x6c000, scoped, tag = 'input window, operand 1']
    #allocation3 [shape = 'u8[16384]{0}', space=vmem, size = 0x4000, scoped, tag = 'output window, operand 0']
    loop: start=0, step=1, limit=4
    $region2: #{sardinet_forward.15} parent=1 // loop_pre_header
      _
    $region3: #{sardinet_forward.15} parent=1 // loop_header
      %s12 = sphi 0, %s16
      %p13 = scmp.ge.s32.totalorder %s12, 4
      %s19 = sphi 0, %s31
      %s20 = sphi 0, %s27
      %s21 = sphi 0, %s19
      %s22 = sphi 0, %s20
      %s23 = sphi 0, %s21
      %s24 = sphi 0, %s22
      %s34 = sphi 0, %s36
      %s37 = sphi 0, %s34
      %s38 = sphi 0, %s37
      %s54 = sphi 0, %s38
      %s60 = sphi 0, %s62
      %s63 = sphi 0, %s60
      %s64 = sphi 0, %s63
      %s80 = sphi 0, %s64
      %s86 = sphi 0, %s88
      %s89 = sphi 0, %s86
      %s90 = sphi 0, %s89
      %s106 = sphi 0, %s90
      %s112 = sphi 0, %s114
      %s115 = sphi 0, %s112
      %s116 = sphi 0, %s115
      %s132 = sphi 0, %s116
      %s138 = sphi 0, %s140
      %s141 = sphi 0, %s138
      %s142 = sphi 0, %s141
      %s158 = sphi 0, %s142
      %s164 = sphi 0, %s166
      %s167 = sphi 0, %s164
      %s168 = sphi 0, %s167
      %s184 = sphi 0, %s168
      %s192 = sphi 0, %s194
      %s195 = sphi 0, %s192
      %s196 = sphi 0, %s195
      %s212 = sphi 0, %s196
    $region4: #{sardinet_forward.15} parent=1 // loop_header_branch
      %15 = sbr.rel (%p13) target = $region8
    $region5: #{sardinet_forward.15} parent=1 // loop_body
      %s17 = ssub.s32 %s12, 1
      %s18 = ssub.s32 %s12, 2
      %s25 = sadd.s32 1, %s20
      %p26 = scmp.ge.s32.totalorder %s25, 2
      %s27 = scalar_select %p26, 0, %s25
      %s28 = sadd.s32 1, %s19
      %s29 = scalar_select %p26, %s28, %s19
      %p30 = scmp.ge.s32.totalorder %s29, 1
      %s31 = scalar_select %p30, 0, %s29
      %s32 = ssub.s32 %s19, %s31
      %p33 = scmp.eq.s32.totalorder %s32, 0
      %s35 = sadd.s32 %s34, 1
      %s36 = scalar_select %p33, %s34, %s35
      %p39 = pneg %p33
      %p40 = scmp.eq.s32.totalorder %s12, 1
      %p41 = por %p39, %p40
      %p42 = scmp.ne.s32.totalorder %s34, %s37
      %p43 = scmp.eq.s32.totalorder %s12, 0
      %p44 = por %p42, %p43
      %p45 = scmp.ne.s32.totalorder %s34, %s37
      %p46 = scmp.eq.s32.totalorder %s17, 1
      %p47 = por %p45, %p46
      %p48 = scmp.ne.s32.totalorder %s37, %s38
      %p49 = scmp.eq.s32.totalorder %s17, 0
      %p50 = por %p48, %p49
      %p51 = scmp.ne.s32.totalorder %s37, %s38
      %p52 = scmp.eq.s32.totalorder %s18, 1
      %p53 = por %p51, %p52
      %p55 = scmp.ne.s32.totalorder %s38, %s54
      %p56 = scmp.eq.s32.totalorder %s18, 0
      %p57 = por %p55, %p56
      %s58 = ssub.s32 %s20, %s27
      %p59 = scmp.eq.s32.totalorder %s58, 0
      %s61 = sadd.s32 %s60, 1
      %s62 = scalar_select %p59, %s60, %s61
      %p65 = pneg %p59
      %p66 = scmp.eq.s32.totalorder %s12, 1
      %p67 = por %p65, %p66
      %p68 = scmp.ne.s32.totalorder %s60, %s63
      %p69 = scmp.eq.s32.totalorder %s12, 0
      %p70 = por %p68, %p69
      %p71 = scmp.ne.s32.totalorder %s60, %s63
      %p72 = scmp.eq.s32.totalorder %s17, 1
      %p73 = por %p71, %p72
      %p74 = scmp.ne.s32.totalorder %s63, %s64
      %p75 = scmp.eq.s32.totalorder %s17, 0
      %p76 = por %p74, %p75
      %p77 = scmp.ne.s32.totalorder %s63, %s64
      %p78 = scmp.eq.s32.totalorder %s18, 1
      %p79 = por %p77, %p78
      %p81 = scmp.ne.s32.totalorder %s64, %s80
      %p82 = scmp.eq.s32.totalorder %s18, 0
      %p83 = por %p81, %p82
      %s84 = ssub.s32 %s20, %s27
      %p85 = scmp.eq.s32.totalorder %s84, 0
      %s87 = sadd.s32 %s86, 1
      %s88 = scalar_select %p85, %s86, %s87
      %p91 = pneg %p85
      %p92 = scmp.eq.s32.totalorder %s12, 1
      %p93 = por %p91, %p92
      %p94 = scmp.ne.s32.totalorder %s86, %s89
      %p95 = scmp.eq.s32.totalorder %s12, 0
      %p96 = por %p94, %p95
      %p97 = scmp.ne.s32.totalorder %s86, %s89
      %p98 = scmp.eq.s32.totalorder %s17, 1
      %p99 = por %p97, %p98
      %p100 = scmp.ne.s32.totalorder %s89, %s90
      %p101 = scmp.eq.s32.totalorder %s17, 0
      %p102 = por %p100, %p101
      %p103 = scmp.ne.s32.totalorder %s89, %s90
      %p104 = scmp.eq.s32.totalorder %s18, 1
      %p105 = por %p103, %p104
      %p107 = scmp.ne.s32.totalorder %s90, %s106
      %p108 = scmp.eq.s32.totalorder %s18, 0
      %p109 = por %p107, %p108
      %s110 = ssub.s32 %s20, %s27
      %p111 = scmp.eq.s32.totalorder %s110, 0
      %s113 = sadd.s32 %s112, 1
      %s114 = scalar_select %p111, %s112, %s113
      %p117 = pneg %p111
      %p118 = scmp.eq.s32.totalorder %s12, 1
      %p119 = por %p117, %p118
      %p120 = scmp.ne.s32.totalorder %s112, %s115
      %p121 = scmp.eq.s32.totalorder %s12, 0
      %p122 = por %p120, %p121
      %p123 = scmp.ne.s32.totalorder %s112, %s115
      %p124 = scmp.eq.s32.totalorder %s17, 1
      %p125 = por %p123, %p124
      %p126 = scmp.ne.s32.totalorder %s115, %s116
      %p127 = scmp.eq.s32.totalorder %s17, 0
      %p128 = por %p126, %p127
      %p129 = scmp.ne.s32.totalorder %s115, %s116
      %p130 = scmp.eq.s32.totalorder %s18, 1
      %p131 = por %p129, %p130
      %p133 = scmp.ne.s32.totalorder %s116, %s132
      %p134 = scmp.eq.s32.totalorder %s18, 0
      %p135 = por %p133, %p134
      %s136 = ssub.s32 %s20, %s27
      %p137 = scmp.eq.s32.totalorder %s136, 0
      %s139 = sadd.s32 %s138, 1
      %s140 = scalar_select %p137, %s138, %s139
      %p143 = pneg %p137
      %p144 = scmp.eq.s32.totalorder %s12, 1
      %p145 = por %p143, %p144
      %p146 = scmp.ne.s32.totalorder %s138, %s141
      %p147 = scmp.eq.s32.totalorder %s12, 0
      %p148 = por %p146, %p147
      %p149 = scmp.ne.s32.totalorder %s138, %s141
      %p150 = scmp.eq.s32.totalorder %s17, 1
      %p151 = por %p149, %p150
      %p152 = scmp.ne.s32.totalorder %s141, %s142
      %p153 = scmp.eq.s32.totalorder %s17, 0
      %p154 = por %p152, %p153
      %p155 = scmp.ne.s32.totalorder %s141, %s142
      %p156 = scmp.eq.s32.totalorder %s18, 1
      %p157 = por %p155, %p156
      %p159 = scmp.ne.s32.totalorder %s142, %s158
      %p160 = scmp.eq.s32.totalorder %s18, 0
      %p161 = por %p159, %p160
      %s162 = ssub.s32 %s20, %s27
      %p163 = scmp.eq.s32.totalorder %s162, 0
      %s165 = sadd.s32 %s164, 1
      %s166 = scalar_select %p163, %s164, %s165
      %p169 = pneg %p163
      %p170 = scmp.eq.s32.totalorder %s12, 1
      %p171 = por %p169, %p170
      %p172 = scmp.ne.s32.totalorder %s164, %s167
      %p173 = scmp.eq.s32.totalorder %s12, 0
      %p174 = por %p172, %p173
      %p175 = scmp.ne.s32.totalorder %s164, %s167
      %p176 = scmp.eq.s32.totalorder %s17, 1
      %p177 = por %p175, %p176
      %p178 = scmp.ne.s32.totalorder %s167, %s168
      %p179 = scmp.eq.s32.totalorder %s17, 0
      %p180 = por %p178, %p179
      %p181 = scmp.ne.s32.totalorder %s167, %s168
      %p182 = scmp.eq.s32.totalorder %s18, 1
      %p183 = por %p181, %p182
      %p185 = scmp.ne.s32.totalorder %s168, %s184
      %p186 = scmp.eq.s32.totalorder %s18, 0
      %p187 = por %p185, %p186
      %s188 = ssub.s32 %s19, %s31
      %s189 = ssub.s32 %s20, %s27
      %s190 = sor.u32 %s188, %s189
      %p191 = scmp.eq.s32.totalorder %s190, 0
      %s193 = sadd.s32 %s192, 1
      %s194 = scalar_select %p191, %s192, %s193
      %p197 = pneg %p191
      %p198 = scmp.eq.s32.totalorder %s12, 1
      %p199 = por %p197, %p198
      %p200 = scmp.ne.s32.totalorder %s192, %s195
      %p201 = scmp.eq.s32.totalorder %s12, 0
      %p202 = por %p200, %p201
      %p203 = scmp.ne.s32.totalorder %s192, %s195
      %p204 = scmp.eq.s32.totalorder %s17, 1
      %p205 = por %p203, %p204
      %p206 = scmp.ne.s32.totalorder %s195, %s196
      %p207 = scmp.eq.s32.totalorder %s17, 0
      %p208 = por %p206, %p207
      %p209 = scmp.ne.s32.totalorder %s195, %s196
      %p210 = scmp.eq.s32.totalorder %s18, 1
      %p211 = por %p209, %p210
      %p213 = scmp.ne.s32.totalorder %s196, %s212
      %p214 = scmp.eq.s32.totalorder %s18, 0
      %p215 = por %p213, %p214
      %p216 = scmp.le.s32.totalorder 1, %s12
      %p217 = scmp.lt.s32.totalorder %s12, 3
      %p218 = pnand %p216, %p217
      %p219 = pneg %p218
      // Predicated region
      $region9: #{sardinet_forward.15} parent=5 // pred_check
        _
      $region10: #{sardinet_forward.15} parent=5 // pred_check_branch
        %221 = sbr.rel (%p218) target = $region12
      $region11: #{sardinet_forward.15} parent=5 // pred_region
        %s222 = ssub.s32 %s12, 1
        // Predicated region
        $region13: #{sardinet_forward.15} parent=11 // pred_check
          %p223 = pneg %p50
        $region14: #{sardinet_forward.15} parent=11 // pred_check_branch
          %225 = sbr.rel (%p223) target = $region16
        $region15: #{sardinet_forward.15} parent=11 // pred_region
          %s226 = smul.u32 4, %s21
          %p227 = scmp.lt.s32.totalorder %s226, 3
          %s228 = scalar_select %p227, %s226, 3
          %s229 = smul.addr %s228, 7
          %s230 = smul.addr %s229, 4
          %s231 = scalar_lea.vmem %s0, %s230
          %s232 = smul.u32 4, %s21
        $region16: #{sardinet_forward.15} parent=11 // pred_fallthru
          _
      $region12: #{sardinet_forward.15} parent=5 // pred_fallthru
        _
      %p233 = scmp.lt.s32.totalorder %s12, 2
      // Predicated region
      $region17: #{sardinet_forward.15} parent=5 // pred_check
        %p234 = pneg %p233
      $region18: #{sardinet_forward.15} parent=5 // pred_check_branch
        %236 = sbr.rel (%p234) target = $region20
      $region19: #{sardinet_forward.15} parent=5 // pred_region
        // Predicated region
        $region21: #{sardinet_forward.15} parent=19 // pred_check
          %p237 = pneg %p70
        $region22: #{sardinet_forward.15} parent=19 // pred_check_branch
          %239 = sbr.rel (%p237) target = $region24
        $region23: #{sardinet_forward.15} parent=19 // pred_region
          %s240 = sand.u32 %s60, 1
          %s241 = sand.u32 %s60, 1
          %s242 = smul.addr %s241, 432
          %s243 = scalar_lea.vmem [#allocation2], %s242
          %s244 = smul.addr %s20, 4
          %s245 = scalar_lea.vmem %s1, %s244
          // Predicated region
          $region25: #{sardinet_forward.15} parent=23 // pred_check
            _
          $region26: #{sardinet_forward.15} parent=23 // pred_check_branch
            %247 = sbr.rel (0) target = $region28
          $region27: #{sardinet_forward.15} parent=23 // pred_region
            // Predicated region
            $region29: #{sardinet_forward.15} parent=27 // pred_check
              _
            $region30: #{sardinet_forward.15} parent=27 // pred_check_branch
              %249 = sbr.rel target = $region32
            $region31: #{sardinet_forward.15} parent=27 // pred_region
              // Predicated region
              $region44: #{sardinet_forward.15} parent=31 // pred_check
                _
              $region45: #{sardinet_forward.15} parent=31 // pred_check_branch
                %479 = sbr.rel (0) target = $region47
              $region46: #{sardinet_forward.15} parent=31 // pred_region
                loop: start=0, step=1, limit=1
                $region48: #{sardinet_forward.15} parent=46 // loop_pre_header
                  _
                $region49: #{sardinet_forward.15} parent=46 // loop_header
                  %s481 = sphi 0, %s485
                  %p482 = scmp.ge.s32.totalorder %s481, 1
                  %s486 = sphi %s245, %s245
                  %s487 = sphi %s243, %s243
                $region50: #{sardinet_forward.15} parent=46 // loop_header_branch
                  %484 = sbr.rel (%p482) target = $region54
                $region51: #{sardinet_forward.15} parent=46 // loop_body
                  _
                $region52: #{sardinet_forward.15} parent=46 // loop_footer
                  %s485 = sadd.s32 1, %s481
                $region53: #{sardinet_forward.15} parent=46 // loop_footer_branch
                  %480 = sbr.rel target = $region49
                $region54: #{sardinet_forward.15} parent=46 // loop_exit
                  _
                %s489 = ssub.s32 16, 1
                loop: start=0, step=1, limit=1
                $region55: #{sardinet_forward.15} parent=46 // loop_pre_header
                  _
                $region56: #{sardinet_forward.15} parent=46 // loop_header
                  %s491 = sphi 0, %s495
                  %p492 = scmp.ge.s32.totalorder %s491, 1
                  %s496 = sphi %s245, %s245
                  %s497 = sphi %s243, %s243
                $region57: #{sardinet_forward.15} parent=46 // loop_header_branch
                  %494 = sbr.rel (%p492) target = $region61
                $region58: #{sardinet_forward.15} parent=46 // loop_body
                  %v498 = vld [vmem:[%s496] sm:%s489]
                  %499 = vst [vmem:[%s497] sm:%s489] %v498
                  %v500 = vld [vmem:[%s496 + $0x8] sm:%s489]
                  %501 = vst [vmem:[%s497 + $0x4] sm:%s489] %v500
                  %v502 = vld [vmem:[%s496 + $0x10] sm:%s489]
                  %503 = vst [vmem:[%s497 + $0x8] sm:%s489] %v502
                  %v504 = vld [vmem:[%s496 + $0x18] sm:%s489]
                  %505 = vst [vmem:[%s497 + $0xc] sm:%s489] %v504
                  %v506 = vld [vmem:[%s496 + $0x20] sm:%s489]
                  %507 = vst [vmem:[%s497 + $0x10] sm:%s489] %v506
                  %v508 = vld [vmem:[%s496 + $0x28] sm:%s489]
                  %509 = vst [vmem:[%s497 + $0x14] sm:%s489] %v508
                  %v510 = vld [vmem:[%s496 + $0x30] sm:%s489]
                  %511 = vst [vmem:[%s497 + $0x18] sm:%s489] %v510
                  %v512 = vld [vmem:[%s496 + $0x38] sm:%s489]
                  %513 = vst [vmem:[%s497 + $0x1c] sm:%s489] %v512
                  %v514 = vld [vmem:[%s496 + $0x40] sm:%s489]
                  %515 = vst [vmem:[%s497 + $0x20] sm:%s489] %v514
                  %v516 = vld [vmem:[%s496 + $0x48] sm:%s489]
                  %517 = vst [vmem:[%s497 + $0x24] sm:%s489] %v516
                  %v518 = vld [vmem:[%s496 + $0x50] sm:%s489]
                  %519 = vst [vmem:[%s497 + $0x28] sm:%s489] %v518
                  %v520 = vld [vmem:[%s496 + $0x58] sm:%s489]
                  %521 = vst [vmem:[%s497 + $0x2c] sm:%s489] %v520
                  %v522 = vld [vmem:[%s496 + $0x60] sm:%s489]
                  %523 = vst [vmem:[%s497 + $0x30] sm:%s489] %v522
                  %v524 = vld [vmem:[%s496 + $0x68] sm:%s489]
                  %525 = vst [vmem:[%s497 + $0x34] sm:%s489] %v524
                  %v526 = vld [vmem:[%s496 + $0x70] sm:%s489]
                  %527 = vst [vmem:[%s497 + $0x38] sm:%s489] %v526
                  %v528 = vld [vmem:[%s496 + $0x78] sm:%s489]
                  %529 = vst [vmem:[%s497 + $0x3c] sm:%s489] %v528
                  %v530 = vld [vmem:[%s496 + $0x80] sm:%s489]
                  %531 = vst [vmem:[%s497 + $0x40] sm:%s489] %v530
                  %v532 = vld [vmem:[%s496 + $0x88] sm:%s489]
                  %533 = vst [vmem:[%s497 + $0x44] sm:%s489] %v532
                  %v534 = vld [vmem:[%s496 + $0x90] sm:%s489]
                  %535 = vst [vmem:[%s497 + $0x48] sm:%s489] %v534
                  %v536 = vld [vmem:[%s496 + $0x98] sm:%s489]
                  %537 = vst [vmem:[%s497 + $0x4c] sm:%s489] %v536
                  %v538 = vld [vmem:[%s496 + $0xa0] sm:%s489]
                  %539 = vst [vmem:[%s497 + $0x50] sm:%s489] %v538
                  %v540 = vld [vmem:[%s496 + $0xa8] sm:%s489]
                  %541 = vst [vmem:[%s497 + $0x54] sm:%s489] %v540
                  %v542 = vld [vmem:[%s496 + $0xb0] sm:%s489]
                  %543 = vst [vmem:[%s497 + $0x58] sm:%s489] %v542
                  %v544 = vld [vmem:[%s496 + $0xb8] sm:%s489]
                  %545 = vst [vmem:[%s497 + $0x5c] sm:%s489] %v544
                  %v546 = vld [vmem:[%s496 + $0xc0] sm:%s489]
                  %547 = vst [vmem:[%s497 + $0x60] sm:%s489] %v546
                  %v548 = vld [vmem:[%s496 + $0xc8] sm:%s489]
                  %549 = vst [vmem:[%s497 + $0x64] sm:%s489] %v548
                  %v550 = vld [vmem:[%s496 + $0xd0] sm:%s489]
                  %551 = vst [vmem:[%s497 + $0x68] sm:%s489] %v550
                  %v552 = vld [vmem:[%s496 + $0xd8] sm:%s489]
                  %553 = vst [vmem:[%s497 + $0x6c] sm:%s489] %v552
                  %v554 = vld [vmem:[%s496 + $0xe0] sm:%s489]
                  %555 = vst [vmem:[%s497 + $0x70] sm:%s489] %v554
                  %v556 = vld [vmem:[%s496 + $0xe8] sm:%s489]
                  %557 = vst [vmem:[%s497 + $0x74] sm:%s489] %v556
                  %v558 = vld [vmem:[%s496 + $0xf0] sm:%s489]
                  %559 = vst [vmem:[%s497 + $0x78] sm:%s489] %v558
                  %v560 = vld [vmem:[%s496 + $0xf8] sm:%s489]
                  %561 = vst [vmem:[%s497 + $0x7c] sm:%s489] %v560
                  %v562 = vld [vmem:[%s496 + $0x100] sm:%s489]
                  %563 = vst [vmem:[%s497 + $0x80] sm:%s489] %v562
                  %v564 = vld [vmem:[%s496 + $0x108] sm:%s489]
                  %565 = vst [vmem:[%s497 + $0x84] sm:%s489] %v564
                  %v566 = vld [vmem:[%s496 + $0x110] sm:%s489]
                  %567 = vst [vmem:[%s497 + $0x88] sm:%s489] %v566
                  %v568 = vld [vmem:[%s496 + $0x118] sm:%s489]
                  %569 = vst [vmem:[%s497 + $0x8c] sm:%s489] %v568
                  %v570 = vld [vmem:[%s496 + $0x120] sm:%s489]
                  %571 = vst [vmem:[%s497 + $0x90] sm:%s489] %v570
                  %v572 = vld [vmem:[%s496 + $0x128] sm:%s489]
                  %573 = vst [vmem:[%s497 + $0x94] sm:%s489] %v572
                  %v574 = vld [vmem:[%s496 + $0x130] sm:%s489]
                  %575 = vst [vmem:[%s497 + $0x98] sm:%s489] %v574
                  %v576 = vld [vmem:[%s496 + $0x138] sm:%s489]
                  %577 = vst [vmem:[%s497 + $0x9c] sm:%s489] %v576
                  %v578 = vld [vmem:[%s496 + $0x140] sm:%s489]
                  %579 = vst [vmem:[%s497 + $0xa0] sm:%s489] %v578
                  %v580 = vld [vmem:[%s496 + $0x148] sm:%s489]
                  %581 = vst [vmem:[%s497 + $0xa4] sm:%s489] %v580
                  %v582 = vld [vmem:[%s496 + $0x150] sm:%s489]
                  %583 = vst [vmem:[%s497 + $0xa8] sm:%s489] %v582
                  %v584 = vld [vmem:[%s496 + $0x158] sm:%s489]
                  %585 = vst [vmem:[%s497 + $0xac] sm:%s489] %v584
                  %v586 = vld [vmem:[%s496 + $0x160] sm:%s489]
                  %587 = vst [vmem:[%s497 + $0xb0] sm:%s489] %v586
                  %v588 = vld [vmem:[%s496 + $0x168] sm:%s489]
                  %589 = vst [vmem:[%s497 + $0xb4] sm:%s489] %v588
                  %v590 = vld [vmem:[%s496 + $0x170] sm:%s489]
                  %591 = vst [vmem:[%s497 + $0xb8] sm:%s489] %v590
                  %v592 = vld [vmem:[%s496 + $0x178] sm:%s489]
                  %593 = vst [vmem:[%s497 + $0xbc] sm:%s489] %v592
                  %v594 = vld [vmem:[%s496 + $0x180] sm:%s489]
                  %595 = vst [vmem:[%s497 + $0xc0] sm:%s489] %v594
                  %v596 = vld [vmem:[%s496 + $0x188] sm:%s489]
                  %597 = vst [vmem:[%s497 + $0xc4] sm:%s489] %v596
                  %v598 = vld [vmem:[%s496 + $0x190] sm:%s489]
                  %599 = vst [vmem:[%s497 + $0xc8] sm:%s489] %v598
                  %v600 = vld [vmem:[%s496 + $0x198] sm:%s489]
                  %601 = vst [vmem:[%s497 + $0xcc] sm:%s489] %v600
                  %v602 = vld [vmem:[%s496 + $0x1a0] sm:%s489]
                  %603 = vst [vmem:[%s497 + $0xd0] sm:%s489] %v602
                  %v604 = vld [vmem:[%s496 + $0x1a8] sm:%s489]
                  %605 = vst [vmem:[%s497 + $0xd4] sm:%s489] %v604
                  %v606 = vld [vmem:[%s496 + $0x1b0] sm:%s489]
                  %607 = vst [vmem:[%s497 + $0xd8] sm:%s489] %v606
                  %v608 = vld [vmem:[%s496 + $0x1b8] sm:%s489]
                  %609 = vst [vmem:[%s497 + $0xdc] sm:%s489] %v608
                  %v610 = vld [vmem:[%s496 + $0x1c0] sm:%s489]
                  %611 = vst [vmem:[%s497 + $0xe0] sm:%s489] %v610
                  %v612 = vld [vmem:[%s496 + $0x1c8] sm:%s489]
                  %613 = vst [vmem:[%s497 + $0xe4] sm:%s489] %v612
                  %v614 = vld [vmem:[%s496 + $0x1d0] sm:%s489]
                  %615 = vst [vmem:[%s497 + $0xe8] sm:%s489] %v614
                  %v616 = vld [vmem:[%s496 + $0x1d8] sm:%s489]
                  %617 = vst [vmem:[%s497 + $0xec] sm:%s489] %v616
                  %v618 = vld [vmem:[%s496 + $0x1e0] sm:%s489]
                  %619 = vst [vmem:[%s497 + $0xf0] sm:%s489] %v618
                  %v620 = vld [vmem:[%s496 + $0x1e8] sm:%s489]
                  %621 = vst [vmem:[%s497 + $0xf4] sm:%s489] %v620
                  %v622 = vld [vmem:[%s496 + $0x1f0] sm:%s489]
                  %623 = vst [vmem:[%s497 + $0xf8] sm:%s489] %v622
                  %v624 = vld [vmem:[%s496 + $0x1f8] sm:%s489]
                  %625 = vst [vmem:[%s497 + $0xfc] sm:%s489] %v624
                  %v626 = vld [vmem:[%s496 + $0x200] sm:%s489]
                  %627 = vst [vmem:[%s497 + $0x100] sm:%s489] %v626
                  %v628 = vld [vmem:[%s496 + $0x208] sm:%s489]
                  %629 = vst [vmem:[%s497 + $0x104] sm:%s489] %v628
                  %v630 = vld [vmem:[%s496 + $0x210] sm:%s489]
                  %631 = vst [vmem:[%s497 + $0x108] sm:%s489] %v630
                  %v632 = vld [vmem:[%s496 + $0x218] sm:%s489]
                  %633 = vst [vmem:[%s497 + $0x10c] sm:%s489] %v632
                  %v634 = vld [vmem:[%s496 + $0x220] sm:%s489]
                  %635 = vst [vmem:[%s497 + $0x110] sm:%s489] %v634
                  %v636 = vld [vmem:[%s496 + $0x228] sm:%s489]
                  %637 = vst [vmem:[%s497 + $0x114] sm:%s489] %v636
                  %v638 = vld [vmem:[%s496 + $0x230] sm:%s489]
                  %639 = vst [vmem:[%s497 + $0x118] sm:%s489] %v638
                  %v640 = vld [vmem:[%s496 + $0x238] sm:%s489]
                  %641 = vst [vmem:[%s497 + $0x11c] sm:%s489] %v640
                  %v642 = vld [vmem:[%s496 + $0x240] sm:%s489]
                  %643 = vst [vmem:[%s497 + $0x120] sm:%s489] %v642
                  %v644 = vld [vmem:[%s496 + $0x248] sm:%s489]
                  %645 = vst [vmem:[%s497 + $0x124] sm:%s489] %v644
                  %v646 = vld [vmem:[%s496 + $0x250] sm:%s489]
                  %647 = vst [vmem:[%s497 + $0x128] sm:%s489] %v646
                  %v648 = vld [vmem:[%s496 + $0x258] sm:%s489]
                  %649 = vst [vmem:[%s497 + $0x12c] sm:%s489] %v648
                  %v650 = vld [vmem:[%s496 + $0x260] sm:%s489]
                  %651 = vst [vmem:[%s497 + $0x130] sm:%s489] %v650
                  %v652 = vld [vmem:[%s496 + $0x268] sm:%s489]
                  %653 = vst [vmem:[%s497 + $0x134] sm:%s489] %v652
                  %v654 = vld [vmem:[%s496 + $0x270] sm:%s489]
                  %655 = vst [vmem:[%s497 + $0x138] sm:%s489] %v654
                  %v656 = vld [vmem:[%s496 + $0x278] sm:%s489]
                  %657 = vst [vmem:[%s497 + $0x13c] sm:%s489] %v656
                  %v658 = vld [vmem:[%s496 + $0x280] sm:%s489]
                  %659 = vst [vmem:[%s497 + $0x140] sm:%s489] %v658
                  %v660 = vld [vmem:[%s496 + $0x288] sm:%s489]
                  %661 = vst [vmem:[%s497 + $0x144] sm:%s489] %v660
                  %v662 = vld [vmem:[%s496 + $0x290] sm:%s489]
                  %663 = vst [vmem:[%s497 + $0x148] sm:%s489] %v662
                  %v664 = vld [vmem:[%s496 + $0x298] sm:%s489]
                  %665 = vst [vmem:[%s497 + $0x14c] sm:%s489] %v664
                  %v666 = vld [vmem:[%s496 + $0x2a0] sm:%s489]
                  %667 = vst [vmem:[%s497 + $0x150] sm:%s489] %v666
                  %v668 = vld [vmem:[%s496 + $0x2a8] sm:%s489]
                  %669 = vst [vmem:[%s497 + $0x154] sm:%s489] %v668
                  %v670 = vld [vmem:[%s496 + $0x2b0] sm:%s489]
                  %671 = vst [vmem:[%s497 + $0x158] sm:%s489] %v670
                  %v672 = vld [vmem:[%s496 + $0x2b8] sm:%s489]
                  %673 = vst [vmem:[%s497 + $0x15c] sm:%s489] %v672
                  %v674 = vld [vmem:[%s496 + $0x2c0] sm:%s489]
                  %675 = vst [vmem:[%s497 + $0x160] sm:%s489] %v674
                  %v676 = vld [vmem:[%s496 + $0x2c8] sm:%s489]
                  %677 = vst [vmem:[%s497 + $0x164] sm:%s489] %v676
                  %v678 = vld [vmem:[%s496 + $0x2d0] sm:%s489]
                  %679 = vst [vmem:[%s497 + $0x168] sm:%s489] %v678
                  %v680 = vld [vmem:[%s496 + $0x2d8] sm:%s489]
                  %681 = vst [vmem:[%s497 + $0x16c] sm:%s489] %v680
                  %v682 = vld [vmem:[%s496 + $0x2e0] sm:%s489]
                  %683 = vst [vmem:[%s497 + $0x170] sm:%s489] %v682
                  %v684 = vld [vmem:[%s496 + $0x2e8] sm:%s489]
                  %685 = vst [vmem:[%s497 + $0x174] sm:%s489] %v684
                  %v686 = vld [vmem:[%s496 + $0x2f0] sm:%s489]
                  %687 = vst [vmem:[%s497 + $0x178] sm:%s489] %v686
                  %v688 = vld [vmem:[%s496 + $0x2f8] sm:%s489]
                  %689 = vst [vmem:[%s497 + $0x17c] sm:%s489] %v688
                  %v690 = vld [vmem:[%s496 + $0x300] sm:%s489]
                  %691 = vst [vmem:[%s497 + $0x180] sm:%s489] %v690
                  %v692 = vld [vmem:[%s496 + $0x308] sm:%s489]
                  %693 = vst [vmem:[%s497 + $0x184] sm:%s489] %v692
                  %v694 = vld [vmem:[%s496 + $0x310] sm:%s489]
                  %695 = vst [vmem:[%s497 + $0x188] sm:%s489] %v694
                  %v696 = vld [vmem:[%s496 + $0x318] sm:%s489]
                  %697 = vst [vmem:[%s497 + $0x18c] sm:%s489] %v696
                  %v698 = vld [vmem:[%s496 + $0x320] sm:%s489]
                  %699 = vst [vmem:[%s497 + $0x190] sm:%s489] %v698
                  %v700 = vld [vmem:[%s496 + $0x328] sm:%s489]
                  %701 = vst [vmem:[%s497 + $0x194] sm:%s489] %v700
                  %v702 = vld [vmem:[%s496 + $0x330] sm:%s489]
                  %703 = vst [vmem:[%s497 + $0x198] sm:%s489] %v702
                  %v704 = vld [vmem:[%s496 + $0x338] sm:%s489]
                  %705 = vst [vmem:[%s497 + $0x19c] sm:%s489] %v704
                  %v706 = vld [vmem:[%s496 + $0x340] sm:%s489]
                  %707 = vst [vmem:[%s497 + $0x1a0] sm:%s489] %v706
                  %v708 = vld [vmem:[%s496 + $0x348] sm:%s489]
                  %709 = vst [vmem:[%s497 + $0x1a4] sm:%s489] %v708
                  %v710 = vld [vmem:[%s496 + $0x350] sm:%s489]
                  %711 = vst [vmem:[%s497 + $0x1a8] sm:%s489] %v710
                  %v712 = vld [vmem:[%s496 + $0x358] sm:%s489]
                  %713 = vst [vmem:[%s497 + $0x1ac] sm:%s489] %v712
                $region59: #{sardinet_forward.15} parent=46 // loop_footer
                  %s495 = sadd.s32 1, %s491
                $region60: #{sardinet_forward.15} parent=46 // loop_footer_branch
                  %490 = sbr.rel target = $region56
                $region61: #{sardinet_forward.15} parent=46 // loop_exit
                  _
              $region47: #{sardinet_forward.15} parent=31 // pred_fallthru
                _
            $region32: #{sardinet_forward.15} parent=27 // pred_fallthru
              _
            // Predicated region
            $region33: #{sardinet_forward.15} parent=27 // pred_check
              _
            $region34: #{sardinet_forward.15} parent=27 // pred_check_branch
              %251 = sbr.rel (0) target = $region36
            $region35: #{sardinet_forward.15} parent=27 // pred_region
              %s253 = ssub.s32 16, 1
              loop: start=0, step=1, limit=1
              $region37: #{sardinet_forward.15} parent=35 // loop_pre_header
                _
              $region38: #{sardinet_forward.15} parent=35 // loop_header
                %s255 = sphi 0, %s259
                %p256 = scmp.ge.s32.totalorder %s255, 1
                %s260 = sphi %s245, %s245
                %s261 = sphi %s243, %s243
              $region39: #{sardinet_forward.15} parent=35 // loop_header_branch
                %258 = sbr.rel (%p256) target = $region43
              $region40: #{sardinet_forward.15} parent=35 // loop_body
                %v262 = vld [vmem:[%s260] sm:%s253]
                %263 = vst [vmem:[%s261] sm:%s253] %v262
                %v264 = vld [vmem:[%s260 + $0x8] sm:%s253]
                %265 = vst [vmem:[%s261 + $0x4] sm:%s253] %v264
                %v266 = vld [vmem:[%s260 + $0x10] sm:%s253]
                %267 = vst [vmem:[%s261 + $0x8] sm:%s253] %v266
                %v268 = vld [vmem:[%s260 + $0x18] sm:%s253]
                %269 = vst [vmem:[%s261 + $0xc] sm:%s253] %v268
                %v270 = vld [vmem:[%s260 + $0x20] sm:%s253]
                %271 = vst [vmem:[%s261 + $0x10] sm:%s253] %v270
                %v272 = vld [vmem:[%s260 + $0x28] sm:%s253]
                %273 = vst [vmem:[%s261 + $0x14] sm:%s253] %v272
                %v274 = vld [vmem:[%s260 + $0x30] sm:%s253]
                %275 = vst [vmem:[%s261 + $0x18] sm:%s253] %v274
                %v276 = vld [vmem:[%s260 + $0x38] sm:%s253]
                %277 = vst [vmem:[%s261 + $0x1c] sm:%s253] %v276
                %v278 = vld [vmem:[%s260 + $0x40] sm:%s253]
                %279 = vst [vmem:[%s261 + $0x20] sm:%s253] %v278
                %v280 = vld [vmem:[%s260 + $0x48] sm:%s253]
                %281 = vst [vmem:[%s261 + $0x24] sm:%s253] %v280
                %v282 = vld [vmem:[%s260 + $0x50] sm:%s253]
                %283 = vst [vmem:[%s261 + $0x28] sm:%s253] %v282
                %v284 = vld [vmem:[%s260 + $0x58] sm:%s253]
                %285 = vst [vmem:[%s261 + $0x2c] sm:%s253] %v284
                %v286 = vld [vmem:[%s260 + $0x60] sm:%s253]
                %287 = vst [vmem:[%s261 + $0x30] sm:%s253] %v286
                %v288 = vld [vmem:[%s260 + $0x68] sm:%s253]
                %289 = vst [vmem:[%s261 + $0x34] sm:%s253] %v288
                %v290 = vld [vmem:[%s260 + $0x70] sm:%s253]
                %291 = vst [vmem:[%s261 + $0x38] sm:%s253] %v290
                %v292 = vld [vmem:[%s260 + $0x78] sm:%s253]
                %293 = vst [vmem:[%s261 + $0x3c] sm:%s253] %v292
                %v294 = vld [vmem:[%s260 + $0x80] sm:%s253]
                %295 = vst [vmem:[%s261 + $0x40] sm:%s253] %v294
                %v296 = vld [vmem:[%s260 + $0x88] sm:%s253]
                %297 = vst [vmem:[%s261 + $0x44] sm:%s253] %v296
                %v298 = vld [vmem:[%s260 + $0x90] sm:%s253]
                %299 = vst [vmem:[%s261 + $0x48] sm:%s253] %v298
                %v300 = vld [vmem:[%s260 + $0x98] sm:%s253]
                %301 = vst [vmem:[%s261 + $0x4c] sm:%s253] %v300
                %v302 = vld [vmem:[%s260 + $0xa0] sm:%s253]
                %303 = vst [vmem:[%s261 + $0x50] sm:%s253] %v302
                %v304 = vld [vmem:[%s260 + $0xa8] sm:%s253]
                %305 = vst [vmem:[%s261 + $0x54] sm:%s253] %v304
                %v306 = vld [vmem:[%s260 + $0xb0] sm:%s253]
                %307 = vst [vmem:[%s261 + $0x58] sm:%s253] %v306
                %v308 = vld [vmem:[%s260 + $0xb8] sm:%s253]
                %309 = vst [vmem:[%s261 + $0x5c] sm:%s253] %v308
                %v310 = vld [vmem:[%s260 + $0xc0] sm:%s253]
                %311 = vst [vmem:[%s261 + $0x60] sm:%s253] %v310
                %v312 = vld [vmem:[%s260 + $0xc8] sm:%s253]
                %313 = vst [vmem:[%s261 + $0x64] sm:%s253] %v312
                %v314 = vld [vmem:[%s260 + $0xd0] sm:%s253]
                %315 = vst [vmem:[%s261 + $0x68] sm:%s253] %v314
                %v316 = vld [vmem:[%s260 + $0xd8] sm:%s253]
                %317 = vst [vmem:[%s261 + $0x6c] sm:%s253] %v316
                %v318 = vld [vmem:[%s260 + $0xe0] sm:%s253]
                %319 = vst [vmem:[%s261 + $0x70] sm:%s253] %v318
                %v320 = vld [vmem:[%s260 + $0xe8] sm:%s253]
                %321 = vst [vmem:[%s261 + $0x74] sm:%s253] %v320
                %v322 = vld [vmem:[%s260 + $0xf0] sm:%s253]
                %323 = vst [vmem:[%s261 + $0x78] sm:%s253] %v322
                %v324 = vld [vmem:[%s260 + $0xf8] sm:%s253]
                %325 = vst [vmem:[%s261 + $0x7c] sm:%s253] %v324
                %v326 = vld [vmem:[%s260 + $0x100] sm:%s253]
                %327 = vst [vmem:[%s261 + $0x80] sm:%s253] %v326
                %v328 = vld [vmem:[%s260 + $0x108] sm:%s253]
                %329 = vst [vmem:[%s261 + $0x84] sm:%s253] %v328
                %v330 = vld [vmem:[%s260 + $0x110] sm:%s253]
                %331 = vst [vmem:[%s261 + $0x88] sm:%s253] %v330
                %v332 = vld [vmem:[%s260 + $0x118] sm:%s253]
                %333 = vst [vmem:[%s261 + $0x8c] sm:%s253] %v332
                %v334 = vld [vmem:[%s260 + $0x120] sm:%s253]
                %335 = vst [vmem:[%s261 + $0x90] sm:%s253] %v334
                %v336 = vld [vmem:[%s260 + $0x128] sm:%s253]
                %337 = vst [vmem:[%s261 + $0x94] sm:%s253] %v336
                %v338 = vld [vmem:[%s260 + $0x130] sm:%s253]
                %339 = vst [vmem:[%s261 + $0x98] sm:%s253] %v338
                %v340 = vld [vmem:[%s260 + $0x138] sm:%s253]
                %341 = vst [vmem:[%s261 + $0x9c] sm:%s253] %v340
                %v342 = vld [vmem:[%s260 + $0x140] sm:%s253]
                %343 = vst [vmem:[%s261 + $0xa0] sm:%s253] %v342
                %v344 = vld [vmem:[%s260 + $0x148] sm:%s253]
                %345 = vst [vmem:[%s261 + $0xa4] sm:%s253] %v344
                %v346 = vld [vmem:[%s260 + $0x150] sm:%s253]
                %347 = vst [vmem:[%s261 + $0xa8] sm:%s253] %v346
                %v348 = vld [vmem:[%s260 + $0x158] sm:%s253]
                %349 = vst [vmem:[%s261 + $0xac] sm:%s253] %v348
                %v350 = vld [vmem:[%s260 + $0x160] sm:%s253]
                %351 = vst [vmem:[%s261 + $0xb0] sm:%s253] %v350
                %v352 = vld [vmem:[%s260 + $0x168] sm:%s253]
                %353 = vst [vmem:[%s261 + $0xb4] sm:%s253] %v352
                %v354 = vld [vmem:[%s260 + $0x170] sm:%s253]
                %355 = vst [vmem:[%s261 + $0xb8] sm:%s253] %v354
                %v356 = vld [vmem:[%s260 + $0x178] sm:%s253]
                %357 = vst [vmem:[%s261 + $0xbc] sm:%s253] %v356
                %v358 = vld [vmem:[%s260 + $0x180] sm:%s253]
                %359 = vst [vmem:[%s261 + $0xc0] sm:%s253] %v358
                %v360 = vld [vmem:[%s260 + $0x188] sm:%s253]
                %361 = vst [vmem:[%s261 + $0xc4] sm:%s253] %v360
                %v362 = vld [vmem:[%s260 + $0x190] sm:%s253]
                %363 = vst [vmem:[%s261 + $0xc8] sm:%s253] %v362
                %v364 = vld [vmem:[%s260 + $0x198] sm:%s253]
                %365 = vst [vmem:[%s261 + $0xcc] sm:%s253] %v364
                %v366 = vld [vmem:[%s260 + $0x1a0] sm:%s253]
                %367 = vst [vmem:[%s261 + $0xd0] sm:%s253] %v366
                %v368 = vld [vmem:[%s260 + $0x1a8] sm:%s253]
                %369 = vst [vmem:[%s261 + $0xd4] sm:%s253] %v368
                %v370 = vld [vmem:[%s260 + $0x1b0] sm:%s253]
                %371 = vst [vmem:[%s261 + $0xd8] sm:%s253] %v370
                %v372 = vld [vmem:[%s260 + $0x1b8] sm:%s253]
                %373 = vst [vmem:[%s261 + $0xdc] sm:%s253] %v372
                %v374 = vld [vmem:[%s260 + $0x1c0] sm:%s253]
                %375 = vst [vmem:[%s261 + $0xe0] sm:%s253] %v374
                %v376 = vld [vmem:[%s260 + $0x1c8] sm:%s253]
                %377 = vst [vmem:[%s261 + $0xe4] sm:%s253] %v376
                %v378 = vld [vmem:[%s260 + $0x1d0] sm:%s253]
                %379 = vst [vmem:[%s261 + $0xe8] sm:%s253] %v378
                %v380 = vld [vmem:[%s260 + $0x1d8] sm:%s253]
                %381 = vst [vmem:[%s261 + $0xec] sm:%s253] %v380
                %v382 = vld [vmem:[%s260 + $0x1e0] sm:%s253]
                %383 = vst [vmem:[%s261 + $0xf0] sm:%s253] %v382
                %v384 = vld [vmem:[%s260 + $0x1e8] sm:%s253]
                %385 = vst [vmem:[%s261 + $0xf4] sm:%s253] %v384
                %v386 = vld [vmem:[%s260 + $0x1f0] sm:%s253]
                %387 = vst [vmem:[%s261 + $0xf8] sm:%s253] %v386
                %v388 = vld [vmem:[%s260 + $0x1f8] sm:%s253]
                %389 = vst [vmem:[%s261 + $0xfc] sm:%s253] %v388
                %v390 = vld [vmem:[%s260 + $0x200] sm:%s253]
                %391 = vst [vmem:[%s261 + $0x100] sm:%s253] %v390
                %v392 = vld [vmem:[%s260 + $0x208] sm:%s253]
                %393 = vst [vmem:[%s261 + $0x104] sm:%s253] %v392
                %v394 = vld [vmem:[%s260 + $0x210] sm:%s253]
                %395 = vst [vmem:[%s261 + $0x108] sm:%s253] %v394
                %v396 = vld [vmem:[%s260 + $0x218] sm:%s253]
                %397 = vst [vmem:[%s261 + $0x10c] sm:%s253] %v396
                %v398 = vld [vmem:[%s260 + $0x220] sm:%s253]
                %399 = vst [vmem:[%s261 + $0x110] sm:%s253] %v398
                %v400 = vld [vmem:[%s260 + $0x228] sm:%s253]
                %401 = vst [vmem:[%s261 + $0x114] sm:%s253] %v400
                %v402 = vld [vmem:[%s260 + $0x230] sm:%s253]
                %403 = vst [vmem:[%s261 + $0x118] sm:%s253] %v402
                %v404 = vld [vmem:[%s260 + $0x238] sm:%s253]
                %405 = vst [vmem:[%s261 + $0x11c] sm:%s253] %v404
                %v406 = vld [vmem:[%s260 + $0x240] sm:%s253]
                %407 = vst [vmem:[%s261 + $0x120] sm:%s253] %v406
                %v408 = vld [vmem:[%s260 + $0x248] sm:%s253]
                %409 = vst [vmem:[%s261 + $0x124] sm:%s253] %v408
                %v410 = vld [vmem:[%s260 + $0x250] sm:%s253]
                %411 = vst [vmem:[%s261 + $0x128] sm:%s253] %v410
                %v412 = vld [vmem:[%s260 + $0x258] sm:%s253]
                %413 = vst [vmem:[%s261 + $0x12c] sm:%s253] %v412
                %v414 = vld [vmem:[%s260 + $0x260] sm:%s253]
                %415 = vst [vmem:[%s261 + $0x130] sm:%s253] %v414
                %v416 = vld [vmem:[%s260 + $0x268] sm:%s253]
                %417 = vst [vmem:[%s261 + $0x134] sm:%s253] %v416
                %v418 = vld [vmem:[%s260 + $0x270] sm:%s253]
                %419 = vst [vmem:[%s261 + $0x138] sm:%s253] %v418
                %v420 = vld [vmem:[%s260 + $0x278] sm:%s253]
                %421 = vst [vmem:[%s261 + $0x13c] sm:%s253] %v420
                %v422 = vld [vmem:[%s260 + $0x280] sm:%s253]
                %423 = vst [vmem:[%s261 + $0x140] sm:%s253] %v422
                %v424 = vld [vmem:[%s260 + $0x288] sm:%s253]
                %425 = vst [vmem:[%s261 + $0x144] sm:%s253] %v424
                %v426 = vld [vmem:[%s260 + $0x290] sm:%s253]
                %427 = vst [vmem:[%s261 + $0x148] sm:%s253] %v426
                %v428 = vld [vmem:[%s260 + $0x298] sm:%s253]
                %429 = vst [vmem:[%s261 + $0x14c] sm:%s253] %v428
                %v430 = vld [vmem:[%s260 + $0x2a0] sm:%s253]
                %431 = vst [vmem:[%s261 + $0x150] sm:%s253] %v430
                %v432 = vld [vmem:[%s260 + $0x2a8] sm:%s253]
                %433 = vst [vmem:[%s261 + $0x154] sm:%s253] %v432
                %v434 = vld [vmem:[%s260 + $0x2b0] sm:%s253]
                %435 = vst [vmem:[%s261 + $0x158] sm:%s253] %v434
                %v436 = vld [vmem:[%s260 + $0x2b8] sm:%s253]
                %437 = vst [vmem:[%s261 + $0x15c] sm:%s253] %v436
                %v438 = vld [vmem:[%s260 + $0x2c0] sm:%s253]
                %439 = vst [vmem:[%s261 + $0x160] sm:%s253] %v438
                %v440 = vld [vmem:[%s260 + $0x2c8] sm:%s253]
                %441 = vst [vmem:[%s261 + $0x164] sm:%s253] %v440
                %v442 = vld [vmem:[%s260 + $0x2d0] sm:%s253]
                %443 = vst [vmem:[%s261 + $0x168] sm:%s253] %v442
                %v444 = vld [vmem:[%s260 + $0x2d8] sm:%s253]
                %445 = vst [vmem:[%s261 + $0x16c] sm:%s253] %v444
                %v446 = vld [vmem:[%s260 + $0x2e0] sm:%s253]
                %447 = vst [vmem:[%s261 + $0x170] sm:%s253] %v446
                %v448 = vld [vmem:[%s260 + $0x2e8] sm:%s253]
                %449 = vst [vmem:[%s261 + $0x174] sm:%s253] %v448
                %v450 = vld [vmem:[%s260 + $0x2f0] sm:%s253]
                %451 = vst [vmem:[%s261 + $0x178] sm:%s253] %v450
                %v452 = vld [vmem:[%s260 + $0x2f8] sm:%s253]
                %453 = vst [vmem:[%s261 + $0x17c] sm:%s253] %v452
                %v454 = vld [vmem:[%s260 + $0x300] sm:%s253]
                %455 = vst [vmem:[%s261 + $0x180] sm:%s253] %v454
                %v456 = vld [vmem:[%s260 + $0x308] sm:%s253]
                %457 = vst [vmem:[%s261 + $0x184] sm:%s253] %v456
                %v458 = vld [vmem:[%s260 + $0x310] sm:%s253]
                %459 = vst [vmem:[%s261 + $0x188] sm:%s253] %v458
                %v460 = vld [vmem:[%s260 + $0x318] sm:%s253]
                %461 = vst [vmem:[%s261 + $0x18c] sm:%s253] %v460
                %v462 = vld [vmem:[%s260 + $0x320] sm:%s253]
                %463 = vst [vmem:[%s261 + $0x190] sm:%s253] %v462
                %v464 = vld [vmem:[%s260 + $0x328] sm:%s253]
                %465 = vst [vmem:[%s261 + $0x194] sm:%s253] %v464
                %v466 = vld [vmem:[%s260 + $0x330] sm:%s253]
                %467 = vst [vmem:[%s261 + $0x198] sm:%s253] %v466
                %v468 = vld [vmem:[%s260 + $0x338] sm:%s253]
                %469 = vst [vmem:[%s261 + $0x19c] sm:%s253] %v468
                %v470 = vld [vmem:[%s260 + $0x340] sm:%s253]
                %471 = vst [vmem:[%s261 + $0x1a0] sm:%s253] %v470
                %v472 = vld [vmem:[%s260 + $0x348] sm:%s253]
                %473 = vst [vmem:[%s261 + $0x1a4] sm:%s253] %v472
                %v474 = vld [vmem:[%s260 + $0x350] sm:%s253]
                %475 = vst [vmem:[%s261 + $0x1a8] sm:%s253] %v474
                %v476 = vld [vmem:[%s260 + $0x358] sm:%s253]
                %477 = vst [vmem:[%s261 + $0x1ac] sm:%s253] %v476
              $region41: #{sardinet_forward.15} parent=35 // loop_footer
                %s259 = sadd.s32 1, %s255
              $region42: #{sardinet_forward.15} parent=35 // loop_footer_branch
                %254 = sbr.rel target = $region38
              $region43: #{sardinet_forward.15} parent=35 // loop_exit
                _
            $region36: #{sardinet_forward.15} parent=27 // pred_fallthru
              _
          $region28: #{sardinet_forward.15} parent=23 // pred_fallthru
            _
          %714 = vnop
        $region24: #{sardinet_forward.15} parent=19 // pred_fallthru
          _
        // Predicated region
        $region62: #{sardinet_forward.15} parent=19 // pred_check
          %p715 = pneg %p96
        $region63: #{sardinet_forward.15} parent=19 // pred_check_branch
          %717 = sbr.rel (%p715) target = $region65
        $region64: #{sardinet_forward.15} parent=19 // pred_region
          %p718 = scmp.lt.s32.totalorder %s20, 1
          %s719 = scalar_select %p718, %s20, 1
          %s720 = scalar_lea.vmem %s2, %s719
        $region65: #{sardinet_forward.15} parent=19 // pred_fallthru
          _
        // Predicated region
        $region66: #{sardinet_forward.15} parent=19 // pred_check
          %p721 = pneg %p122
        $region67: #{sardinet_forward.15} parent=19 // pred_check_branch
          %723 = sbr.rel (%p721) target = $region69
        $region68: #{sardinet_forward.15} parent=19 // pred_region
          %p724 = scmp.lt.s32.totalorder %s20, 1
          %s725 = scalar_select %p724, %s20, 1
          %s726 = scalar_lea.vmem %s3, %s725
        $region69: #{sardinet_forward.15} parent=19 // pred_fallthru
          _
        // Predicated region
        $region70: #{sardinet_forward.15} parent=19 // pred_check
          %p727 = pneg %p148
        $region71: #{sardinet_forward.15} parent=19 // pred_check_branch
          %729 = sbr.rel (%p727) target = $region73
        $region72: #{sardinet_forward.15} parent=19 // pred_region
          %p730 = scmp.lt.s32.totalorder %s20, 1
          %s731 = scalar_select %p730, %s20, 1
          %s732 = scalar_lea.vmem %s4, %s731
        $region73: #{sardinet_forward.15} parent=19 // pred_fallthru
          _
        // Predicated region
        $region74: #{sardinet_forward.15} parent=19 // pred_check
          %p733 = pneg %p174
        $region75: #{sardinet_forward.15} parent=19 // pred_check_branch
          %735 = sbr.rel (%p733) target = $region77
        $region76: #{sardinet_forward.15} parent=19 // pred_region
          %p736 = scmp.lt.s32.totalorder %s20, 1
          %s737 = scalar_select %p736, %s20, 1
          %s738 = scalar_lea.vmem %s5, %s737
        $region77: #{sardinet_forward.15} parent=19 // pred_fallthru
          _
      $region20: #{sardinet_forward.15} parent=5 // pred_fallthru
        _
      %p739 = scmp.le.s32.totalorder 1, %s12
      %p740 = scmp.lt.s32.totalorder %s12, 3
      %p741 = pnand %p739, %p740
      %p742 = pneg %p741
      // Predicated region
      $region78: #{sardinet_forward.15} parent=5 // pred_check
        _
      $region79: #{sardinet_forward.15} parent=5 // pred_check_branch
        %744 = sbr.rel (%p741) target = $region81
      $region80: #{sardinet_forward.15} parent=5 // pred_region
        %s745 = ssub.s32 %s12, 1
        %s746 = sand.u32 %s63, 1
        %s747 = sand.u32 %s63, 1
        %s748 = smul.addr %s747, 432
        %s749 = scalar_lea.vmem [#allocation2], %s748
        // Predicated region
        $region82: #{sardinet_forward.15} parent=80 // pred_check
          %p750 = pneg %p76
        $region83: #{sardinet_forward.15} parent=80 // pred_check_branch
          %752 = sbr.rel (%p750) target = $region85
        $region84: #{sardinet_forward.15} parent=80 // pred_region
          _
        $region85: #{sardinet_forward.15} parent=80 // pred_fallthru
          _
        %s753 = smul.u32 4, %s21
        %p754 = scmp.lt.s32.totalorder %s753, 3
        %s755 = scalar_select %p754, %s753, 3
        %s756 = smul.addr %s755, 7
        %s757 = smul.addr %s756, 4
        %s758 = scalar_lea.vmem %s0, %s757
        %p759 = pneg %p50
        %p760 = pneg %p47
        %s761 = sand.u32 %s63, 1
        %s762 = sand.u32 %s63, 1
        %s763 = smul.addr %s762, 432
        %s764 = scalar_lea.vmem [#allocation2], %s763
        %p765 = pneg %p76
        %p766 = pneg %p73
        %p767 = scmp.lt.s32.totalorder %s22, 1
        %s768 = scalar_select %p767, %s22, 1
        %s769 = scalar_lea.vmem %s2, %s768
        %p770 = pneg %p102
        %p771 = pneg %p99
        %p772 = scmp.lt.s32.totalorder %s22, 1
        %s773 = scalar_select %p772, %s22, 1
        %s774 = scalar_lea.vmem %s3, %s773
        %p775 = pneg %p128
        %p776 = pneg %p125
        %p777 = scmp.lt.s32.totalorder %s22, 1
        %s778 = scalar_select %p777, %s22, 1
        %s779 = scalar_lea.vmem %s4, %s778
        %p780 = pneg %p154
        %p781 = pneg %p151
        %p782 = scmp.lt.s32.totalorder %s22, 1
        %s783 = scalar_select %p782, %s22, 1
        %s784 = scalar_lea.vmem %s5, %s783
        %p785 = pneg %p180
        %p786 = pneg %p177
        %p787 = pneg %p208
        %p788 = pneg %p205
        %s789 = sand.u32 %s195, 1
        %s790 = sand.u32 %s195, 1
        %s791 = smul.addr %s790, 16
        %s792 = scalar_lea.vmem [#allocation3], %s791
        %s793 = smul.u32 4, %s21
        %p794 = scmp.lt.s32.totalorder %s793, 3
        %s795 = scalar_select %p794, %s793, 3
        %s796 = smul.addr %s795, 7
        %s797 = smul.addr %s796, 4
        %s798 = scalar_lea.vmem %s0, %s797
        %s799 = smul.u32 4, %s21
        %p800 = scmp.lt.s32.totalorder %s22, 1
        %s801 = scalar_select %p800, %s22, 1
        %s802 = scalar_lea.vmem %s2, %s801
        %p803 = scmp.lt.s32.totalorder %s22, 1
        %s804 = scalar_select %p803, %s22, 1
        %s805 = scalar_lea.vmem %s3, %s804
        %p806 = scmp.lt.s32.totalorder %s22, 1
        %s807 = scalar_select %p806, %s22, 1
        %s808 = scalar_lea.vmem %s4, %s807
        %p809 = scmp.lt.s32.totalorder %s22, 1
        %s810 = scalar_select %p809, %s22, 1
        %s811 = scalar_lea.vmem %s5, %s810
        %s812 = smul.u32 4, %s21
        %v814 = vld [vmem:[%s798] sm:$0xff]
        %v815 = vld [vmem:[%s798 + $0x8] sm:$0xff]
        %v816 = vld [vmem:[%s798 + $0x10] sm:$0xff]
        %v817 = vld [vmem:[%s798 + $0x18] sm:$0xf]
        %v818 = vld [vmem:[%s798 + $0x1c] sm:$0xff]
        %v819 = vld [vmem:[%s798 + $0x24] sm:$0xff]
        %v820 = vld [vmem:[%s798 + $0x2c] sm:$0xff]
        %v821 = vld [vmem:[%s798 + $0x34] sm:$0xf]
        %v822 = vld [vmem:[%s798 + $0x38] sm:$0xff]
        %v823 = vld [vmem:[%s798 + $0x40] sm:$0xff]
        %v824 = vld [vmem:[%s798 + $0x48] sm:$0xff]
        %v825 = vld [vmem:[%s798 + $0x50] sm:$0xf]
        %v826 = vld [vmem:[%s798 + $0x54] sm:$0xff]
        %v827 = vld [vmem:[%s798 + $0x5c] sm:$0xff]
        %v828 = vld [vmem:[%s798 + $0x64] sm:$0xff]
        %v829 = vld [vmem:[%s798 + $0x6c] sm:$0xf]
        %v830 = vld [vmem:[%s749] sm:$0xf]
        %v831 = vld [vmem:[%s749 + $0x4] sm:$0xf]
        %v832 = vld [vmem:[%s749 + $0x8] sm:$0xf]
        %v833 = vld [vmem:[%s749 + $0xc] sm:$0xf]
        %v834 = vld [vmem:[%s749 + $0x10] sm:$0xf]
        %v835 = vld [vmem:[%s749 + $0x14] sm:$0xf]
        %v836 = vld [vmem:[%s749 + $0x18] sm:$0xf]
        %v837 = vld [vmem:[%s749 + $0x1c] sm:$0xf]
        %v838 = vld [vmem:[%s749 + $0x20] sm:$0xf]
        %v839 = vld [vmem:[%s749 + $0x24] sm:$0xf]
        %v840 = vld [vmem:[%s749 + $0x28] sm:$0xf]
        %v841 = vld [vmem:[%s749 + $0x2c] sm:$0xf]
        %v842 = vld [vmem:[%s749 + $0x30] sm:$0xf]
        %v843 = vld [vmem:[%s749 + $0x34] sm:$0xf]
        %v844 = vld [vmem:[%s749 + $0x38] sm:$0xf]
        %v845 = vld [vmem:[%s749 + $0x3c] sm:$0xf]
        %v846 = vld [vmem:[%s749 + $0x40] sm:$0xf]
        %v847 = vld [vmem:[%s749 + $0x44] sm:$0xf]
        %v848 = vld [vmem:[%s749 + $0x48] sm:$0xf]
        %v849 = vld [vmem:[%s749 + $0x4c] sm:$0xf]
        %v850 = vld [vmem:[%s749 + $0x50] sm:$0xf]
        %v851 = vld [vmem:[%s749 + $0x54] sm:$0xf]
        %v852 = vld [vmem:[%s749 + $0x58] sm:$0xf]
        %v853 = vld [vmem:[%s749 + $0x5c] sm:$0xf]
        %v854 = vld [vmem:[%s749 + $0x60] sm:$0xf]
        %v855 = vld [vmem:[%s749 + $0x64] sm:$0xf]
        %v856 = vld [vmem:[%s749 + $0x68] sm:$0xf]
        %v857 = vld [vmem:[%s749 + $0x6c] sm:$0xf]
        %v858 = vld [vmem:[%s749 + $0x70] sm:$0xf]
        %v859 = vld [vmem:[%s749 + $0x74] sm:$0xf]
        %v860 = vld [vmem:[%s749 + $0x78] sm:$0xf]
        %v861 = vld [vmem:[%s749 + $0x7c] sm:$0xf]
        %v862 = vld [vmem:[%s749 + $0x80] sm:$0xf]
        %v863 = vld [vmem:[%s749 + $0x84] sm:$0xf]
        %v864 = vld [vmem:[%s749 + $0x88] sm:$0xf]
        %v865 = vld [vmem:[%s749 + $0x8c] sm:$0xf]
        %v866 = vld [vmem:[%s749 + $0x90] sm:$0xf]
        %v867 = vld [vmem:[%s749 + $0x94] sm:$0xf]
        %v868 = vld [vmem:[%s749 + $0x98] sm:$0xf]
        %v869 = vld [vmem:[%s749 + $0x9c] sm:$0xf]
        %v870 = vld [vmem:[%s749 + $0xa0] sm:$0xf]
        %v871 = vld [vmem:[%s749 + $0xa4] sm:$0xf]
        %v872 = vld [vmem:[%s749 + $0xa8] sm:$0xf]
        %v873 = vld [vmem:[%s749 + $0xac] sm:$0xf]
        %v874 = vld [vmem:[%s749 + $0xb0] sm:$0xf]
        %v875 = vld [vmem:[%s749 + $0xb4] sm:$0xf]
        %v876 = vld [vmem:[%s749 + $0xb8] sm:$0xf]
        %v877 = vld [vmem:[%s749 + $0xbc] sm:$0xf]
        %v878 = vld [vmem:[%s749 + $0xc0] sm:$0xf]
        %v879 = vld [vmem:[%s749 + $0xc4] sm:$0xf]
        %v880 = vld [vmem:[%s749 + $0xc8] sm:$0xf]
        %v881 = vld [vmem:[%s749 + $0xcc] sm:$0xf]
        %v882 = vld [vmem:[%s749 + $0xd0] sm:$0xf]
        %v883 = vld [vmem:[%s749 + $0xd4] sm:$0xf]
        %v884 = vld [vmem:[%s749 + $0xd8] sm:$0xf]
        %v885 = vld [vmem:[%s749 + $0xdc] sm:$0xf]
        %v886 = vld [vmem:[%s749 + $0xe0] sm:$0xf]
        %v887 = vld [vmem:[%s749 + $0xe4] sm:$0xf]
        %v888 = vld [vmem:[%s749 + $0xe8] sm:$0xf]
        %v889 = vld [vmem:[%s749 + $0xec] sm:$0xf]
        %v890 = vld [vmem:[%s749 + $0xf0] sm:$0xf]
        %v891 = vld [vmem:[%s749 + $0xf4] sm:$0xf]
        %v892 = vld [vmem:[%s749 + $0xf8] sm:$0xf]
        %v893 = vld [vmem:[%s749 + $0xfc] sm:$0xf]
        %v894 = vld [vmem:[%s749 + $0x100] sm:$0xf]
        %v895 = vld [vmem:[%s749 + $0x104] sm:$0xf]
        %v896 = vld [vmem:[%s749 + $0x108] sm:$0xf]
        %v897 = vld [vmem:[%s749 + $0x10c] sm:$0xf]
        %v898 = vld [vmem:[%s749 + $0x110] sm:$0xf]
        %v899 = vld [vmem:[%s749 + $0x114] sm:$0xf]
        %v900 = vld [vmem:[%s749 + $0x118] sm:$0xf]
        %v901 = vld [vmem:[%s749 + $0x11c] sm:$0xf]
        %v902 = vld [vmem:[%s749 + $0x120] sm:$0xf]
        %v903 = vld [vmem:[%s749 + $0x124] sm:$0xf]
        %v904 = vld [vmem:[%s749 + $0x128] sm:$0xf]
        %v905 = vld [vmem:[%s749 + $0x12c] sm:$0xf]
        %v906 = vld [vmem:[%s749 + $0x130] sm:$0xf]
        %v907 = vld [vmem:[%s749 + $0x134] sm:$0xf]
        %v908 = vld [vmem:[%s749 + $0x138] sm:$0xf]
        %v909 = vld [vmem:[%s749 + $0x13c] sm:$0xf]
        %v910 = vld [vmem:[%s749 + $0x140] sm:$0xf]
        %v911 = vld [vmem:[%s749 + $0x144] sm:$0xf]
        %v912 = vld [vmem:[%s749 + $0x148] sm:$0xf]
        %v913 = vld [vmem:[%s749 + $0x14c] sm:$0xf]
        %v914 = vld [vmem:[%s749 + $0x150] sm:$0xf]
        %v915 = vld [vmem:[%s749 + $0x154] sm:$0xf]
        %v916 = vld [vmem:[%s749 + $0x158] sm:$0xf]
        %v917 = vld [vmem:[%s749 + $0x15c] sm:$0xf]
        %v918 = vld [vmem:[%s749 + $0x160] sm:$0xf]
        %v919 = vld [vmem:[%s749 + $0x164] sm:$0xf]
        %v920 = vld [vmem:[%s749 + $0x168] sm:$0xf]
        %v921 = vld [vmem:[%s749 + $0x16c] sm:$0xf]
        %v922 = vld [vmem:[%s749 + $0x170] sm:$0xf]
        %v923 = vld [vmem:[%s749 + $0x174] sm:$0xf]
        %v924 = vld [vmem:[%s749 + $0x178] sm:$0xf]
        %v925 = vld [vmem:[%s749 + $0x17c] sm:$0xf]
        %v926 = vld [vmem:[%s749 + $0x180] sm:$0xf]
        %v927 = vld [vmem:[%s749 + $0x184] sm:$0xf]
        %v928 = vld [vmem:[%s749 + $0x188] sm:$0xf]
        %v929 = vld [vmem:[%s749 + $0x18c] sm:$0xf]
        %v930 = vld [vmem:[%s749 + $0x190] sm:$0xf]
        %v931 = vld [vmem:[%s749 + $0x194] sm:$0xf]
        %v932 = vld [vmem:[%s749 + $0x198] sm:$0xf]
        %v933 = vld [vmem:[%s749 + $0x19c] sm:$0xf]
        %v934 = vld [vmem:[%s749 + $0x1a0] sm:$0xf]
        %v935 = vld [vmem:[%s749 + $0x1a4] sm:$0xf]
        %v936 = vld [vmem:[%s749 + $0x1a8] sm:$0xf]
        %v937 = vld [vmem:[%s749 + $0x1ac] sm:$0xf]
        %v938 = vld [vmem:[%s802] sm:$0x1]
        %v940 = vperm.slane %v938, 0
        %v958 = vunpack.c.l.b16 %v814
        %v959 = vunpack.c.h.b16 %v814
        %v960 = vunpack.c.l.b16 %v815
        %v961 = vunpack.c.h.b16 %v815
        %v962 = vunpack.c.l.b16 %v816
        %v963 = vunpack.c.h.b16 %v816
        %v964 = vunpack.c.l.b16 %v817
        %v965 = vunpack.c.l.b16 %v818
        %v966 = vunpack.c.h.b16 %v818
        %v967 = vunpack.c.l.b16 %v819
        %v968 = vunpack.c.h.b16 %v819
        %v969 = vunpack.c.l.b16 %v820
        %v970 = vunpack.c.h.b16 %v820
        %v971 = vunpack.c.l.b16 %v821
        %v972 = vunpack.c.l.b16 %v822
        %v973 = vunpack.c.h.b16 %v822
        %v974 = vunpack.c.l.b16 %v823
        %v975 = vunpack.c.h.b16 %v823
        %v976 = vunpack.c.l.b16 %v824
        %v977 = vunpack.c.h.b16 %v824
        %v978 = vunpack.c.l.b16 %v825
        %v979 = vunpack.c.l.b16 %v826
        %v980 = vunpack.c.h.b16 %v826
        %v981 = vunpack.c.l.b16 %v827
        %v982 = vunpack.c.h.b16 %v827
        %v983 = vunpack.c.l.b16 %v828
        %v984 = vunpack.c.h.b16 %v828
        %v985 = vunpack.c.l.b16 %v829
        %v986 = vpack.c.b16 %v965, %v958
        %v987 = vpack.c.b16 %v966, %v959
        %v988 = vpack.c.b16 %v967, %v960
        %v989 = vpack.c.b16 %v968, %v961
        %v990 = vpack.c.b16 %v969, %v962
        %v991 = vpack.c.b16 %v970, %v963
        %v992 = vpack.c.b16 %v971, %v964
        %v993 = vpack.c.b16 %v979, %v972
        %v994 = vpack.c.b16 %v980, %v973
        %v995 = vpack.c.b16 %v981, %v974
        %v996 = vpack.c.b16 %v982, %v975
        %v997 = vpack.c.b16 %v983, %v976
        %v998 = vpack.c.b16 %v984, %v977
        %v999 = vpack.c.b16 %v985, %v978
        %v1120 = vunpack.c.l.b16 %v830
        %v1121 = vunpack.c.l.b16 %v831
        %v1122 = vunpack.c.l.b16 %v832
        %v1123 = vunpack.c.l.b16 %v833
        %v1124 = vunpack.c.l.b16 %v834
        %v1125 = vunpack.c.l.b16 %v835
        %v1126 = vunpack.c.l.b16 %v836
        %v1127 = vunpack.c.l.b16 %v837
        %v1128 = vunpack.c.l.b16 %v838
        %v1129 = vunpack.c.l.b16 %v839
        %v1130 = vunpack.c.l.b16 %v840
        %v1131 = vunpack.c.l.b16 %v841
        %v1132 = vunpack.c.l.b16 %v842
        %v1133 = vunpack.c.l.b16 %v843
        %v1134 = vunpack.c.l.b16 %v844
        %v1135 = vunpack.c.l.b16 %v845
        %v1136 = vunpack.c.l.b16 %v846
        %v1137 = vunpack.c.l.b16 %v847
        %v1138 = vunpack.c.l.b16 %v848
        %v1139 = vunpack.c.l.b16 %v849
        %v1140 = vunpack.c.l.b16 %v850
        %v1141 = vunpack.c.l.b16 %v851
        %v1142 = vunpack.c.l.b16 %v852
        %v1143 = vunpack.c.l.b16 %v853
        %v1144 = vunpack.c.l.b16 %v854
        %v1145 = vunpack.c.l.b16 %v855
        %v1146 = vunpack.c.l.b16 %v856
        %v1147 = vunpack.c.l.b16 %v857
        %v1148 = vunpack.c.l.b16 %v858
        %v1149 = vunpack.c.l.b16 %v859
        %v1150 = vunpack.c.l.b16 %v860
        %v1151 = vunpack.c.l.b16 %v861
        %v1152 = vunpack.c.l.b16 %v862
        %v1153 = vunpack.c.l.b16 %v863
        %v1154 = vunpack.c.l.b16 %v864
        %v1155 = vunpack.c.l.b16 %v865
        %v1156 = vunpack.c.l.b16 %v866
        %v1157 = vunpack.c.l.b16 %v867
        %v1158 = vunpack.c.l.b16 %v868
        %v1159 = vunpack.c.l.b16 %v869
        %v1160 = vunpack.c.l.b16 %v870
        %v1161 = vunpack.c.l.b16 %v871
        %v1162 = vunpack.c.l.b16 %v872
        %v1163 = vunpack.c.l.b16 %v873
        %v1164 = vunpack.c.l.b16 %v874
        %v1165 = vunpack.c.l.b16 %v875
        %v1166 = vunpack.c.l.b16 %v876
        %v1167 = vunpack.c.l.b16 %v877
        %v1168 = vunpack.c.l.b16 %v878
        %v1169 = vunpack.c.l.b16 %v879
        %v1170 = vunpack.c.l.b16 %v880
        %v1171 = vunpack.c.l.b16 %v881
        %v1172 = vunpack.c.l.b16 %v882
        %v1173 = vunpack.c.l.b16 %v883
        %v1174 = vunpack.c.l.b16 %v884
        %v1175 = vunpack.c.l.b16 %v885
        %v1176 = vunpack.c.l.b16 %v886
        %v1177 = vunpack.c.l.b16 %v887
        %v1178 = vunpack.c.l.b16 %v888
        %v1179 = vunpack.c.l.b16 %v889
        %v1180 = vunpack.c.l.b16 %v890
        %v1181 = vunpack.c.l.b16 %v891
        %v1182 = vunpack.c.l.b16 %v892
        %v1183 = vunpack.c.l.b16 %v893
        %v1184 = vunpack.c.l.b16 %v894
        %v1185 = vunpack.c.l.b16 %v895
        %v1186 = vunpack.c.l.b16 %v896
        %v1187 = vunpack.c.l.b16 %v897
        %v1188 = vunpack.c.l.b16 %v898
        %v1189 = vunpack.c.l.b16 %v899
        %v1190 = vunpack.c.l.b16 %v900
        %v1191 = vunpack.c.l.b16 %v901
        %v1192 = vunpack.c.l.b16 %v902
        %v1193 = vunpack.c.l.b16 %v903
        %v1194 = vunpack.c.l.b16 %v904
        %v1195 = vunpack.c.l.b16 %v905
        %v1196 = vunpack.c.l.b16 %v906
        %v1197 = vunpack.c.l.b16 %v907
        %v1198 = vunpack.c.l.b16 %v908
        %v1199 = vunpack.c.l.b16 %v909
        %v1200 = vunpack.c.l.b16 %v910
        %v1201 = vunpack.c.l.b16 %v911
        %v1202 = vunpack.c.l.b16 %v912
        %v1203 = vunpack.c.l.b16 %v913
        %v1204 = vunpack.c.l.b16 %v914
        %v1205 = vunpack.c.l.b16 %v915
        %v1206 = vunpack.c.l.b16 %v916
        %v1207 = vunpack.c.l.b16 %v917
        %v1208 = vunpack.c.l.b16 %v918
        %v1209 = vunpack.c.l.b16 %v919
        %v1210 = vunpack.c.l.b16 %v920
        %v1211 = vunpack.c.l.b16 %v921
        %v1212 = vunpack.c.l.b16 %v922
        %v1213 = vunpack.c.l.b16 %v923
        %v1214 = vunpack.c.l.b16 %v924
        %v1215 = vunpack.c.l.b16 %v925
        %v1216 = vunpack.c.l.b16 %v926
        %v1217 = vunpack.c.l.b16 %v927
        %v1218 = vunpack.c.l.b16 %v928
        %v1219 = vunpack.c.l.b16 %v929
        %v1220 = vunpack.c.l.b16 %v930
        %v1221 = vunpack.c.l.b16 %v931
        %v1222 = vunpack.c.l.b16 %v932
        %v1223 = vunpack.c.l.b16 %v933
        %v1224 = vunpack.c.l.b16 %v934
        %v1225 = vunpack.c.l.b16 %v935
        %v1226 = vunpack.c.l.b16 %v936
        %v1227 = vunpack.c.l.b16 %v937
        %v1228 = vpack.c.b16 %v1121, %v1120
        %v1229 = vpack.c.b16 %v1123, %v1122
        %v1230 = vpack.c.b16 %v1125, %v1124
        %v1231 = vpack.c.b16 %v1127, %v1126
        %v1232 = vpack.c.b16 %v1129, %v1128
        %v1233 = vpack.c.b16 %v1131, %v1130
        %v1234 = vpack.c.b16 %v1133, %v1132
        %v1235 = vpack.c.b16 %v1135, %v1134
        %v1236 = vpack.c.b16 %v1137, %v1136
        %v1237 = vpack.c.b16 %v1139, %v1138
        %v1238 = vpack.c.b16 %v1141, %v1140
        %v1239 = vpack.c.b16 %v1143, %v1142
        %v1240 = vpack.c.b16 %v1145, %v1144
        %v1241 = vpack.c.b16 %v1147, %v1146
        %v1242 = vpack.c.b16 %v1149, %v1148
        %v1243 = vpack.c.b16 %v1151, %v1150
        %v1244 = vpack.c.b16 %v1153, %v1152
        %v1245 = vpack.c.b16 %v1155, %v1154
        %v1246 = vpack.c.b16 %v1157, %v1156
        %v1247 = vpack.c.b16 %v1159, %v1158
        %v1248 = vpack.c.b16 %v1161, %v1160
        %v1249 = vpack.c.b16 %v1163, %v1162
        %v1250 = vpack.c.b16 %v1165, %v1164
        %v1251 = vpack.c.b16 %v1167, %v1166
        %v1252 = vpack.c.b16 %v1169, %v1168
        %v1253 = vpack.c.b16 %v1171, %v1170
        %v1254 = vpack.c.b16 %v1173, %v1172
        %v1255 = vpack.c.b16 %v1175, %v1174
        %v1256 = vpack.c.b16 %v1177, %v1176
        %v1257 = vpack.c.b16 %v1179, %v1178
        %v1258 = vpack.c.b16 %v1181, %v1180
        %v1259 = vpack.c.b16 %v1183, %v1182
        %v1260 = vpack.c.b16 %v1185, %v1184
        %v1261 = vpack.c.b16 %v1187, %v1186
        %v1262 = vpack.c.b16 %v1189, %v1188
        %v1263 = vpack.c.b16 %v1191, %v1190
        %v1264 = vpack.c.b16 %v1193, %v1192
        %v1265 = vpack.c.b16 %v1195, %v1194
        %v1266 = vpack.c.b16 %v1197, %v1196
        %v1267 = vpack.c.b16 %v1199, %v1198
        %v1268 = vpack.c.b16 %v1201, %v1200
        %v1269 = vpack.c.b16 %v1203, %v1202
        %v1270 = vpack.c.b16 %v1205, %v1204
        %v1271 = vpack.c.b16 %v1207, %v1206
        %v1272 = vpack.c.b16 %v1209, %v1208
        %v1273 = vpack.c.b16 %v1211, %v1210
        %v1274 = vpack.c.b16 %v1213, %v1212
        %v1275 = vpack.c.b16 %v1215, %v1214
        %v1276 = vpack.c.b16 %v1217, %v1216
        %v1277 = vpack.c.b16 %v1219, %v1218
        %v1278 = vpack.c.b16 %v1221, %v1220
        %v1279 = vpack.c.b16 %v1223, %v1222
        %v1280 = vpack.c.b16 %v1225, %v1224
        %v1281 = vpack.c.b16 %v1227, %v1226
        %vm1336 = vcmask 785408
        %v1338 = vsel %vm1336, %v992, 0
        %v1341 = vsel %vm1336, %v999, 0
        %1343 = vmatpush.bf16.msra.mxu0 %v1235
        %1344 = vmatpush.bf16.msra.mxu0 %v1234
        %1345 = vmatpush.bf16.msra.mxu0 %v1233
        %1346 = vmatpush.bf16.msra.mxu0 %v1232
        %1347 = vmatpush.bf16.msra.mxu0 %v1231
        %1348 = vmatpush.bf16.msra.mxu0 %v1230
        %1349 = vmatpush.bf16.msra.mxu0 %v1229
        %1350 = vmatpush.bf16.msra.mxu0 %v1228
        %1351 = vmatmul.bf16.gmra.mxu0 %v986
        %v1352 = vpop.f32.mrf.mxu0
        %v1353 = vadd.f32 %v940, %v1352
        %v1354 = vpop.f32.mrf.mxu0
        %v1355 = vadd.f32 %v940, %v1354
        %1356 = vmatmul.bf16.gmra.mxu0 %v993
        %v1357 = vpop.f32.mrf.mxu0
        %v1358 = vadd.f32 %v940, %v1357
        %v1359 = vpop.f32.mrf.mxu0
        %v1360 = vadd.f32 %v940, %v1359
        %1361 = vdwg.mxu0
        %1362 = vmatpush.bf16.msra.mxu0 %v1243
        %1363 = vmatpush.bf16.msra.mxu0 %v1242
        %1364 = vmatpush.bf16.msra.mxu0 %v1241
        %1365 = vmatpush.bf16.msra.mxu0 %v1240
        %1366 = vmatpush.bf16.msra.mxu0 %v1239
        %1367 = vmatpush.bf16.msra.mxu0 %v1238
        %1368 = vmatpush.bf16.msra.mxu0 %v1237
        %1369 = vmatpush.bf16.msra.mxu0 %v1236
        %1370 = vmatmul.bf16.gmra.mxu0 %v987
        %v1371 = vpop.f32.mrf.mxu0
        %v1372 = vadd.f32 %v1353, %v1371
        %v1373 = vpop.f32.mrf.mxu0
        %v1374 = vadd.f32 %v1355, %v1373
        %1375 = vmatmul.bf16.gmra.mxu0 %v994
        %v1376 = vpop.f32.mrf.mxu0
        %v1377 = vadd.f32 %v1358, %v1376
        %v1378 = vpop.f32.mrf.mxu0
        %v1379 = vadd.f32 %v1360, %v1378
        %1380 = vdwg.mxu0
        %1381 = vmatpush.bf16.msra.mxu0 %v1251
        %1382 = vmatpush.bf16.msra.mxu0 %v1250
        %1383 = vmatpush.bf16.msra.mxu0 %v1249
        %1384 = vmatpush.bf16.msra.mxu0 %v1248
        %1385 = vmatpush.bf16.msra.mxu0 %v1247
        %1386 = vmatpush.bf16.msra.mxu0 %v1246
        %1387 = vmatpush.bf16.msra.mxu0 %v1245
        %1388 = vmatpush.bf16.msra.mxu0 %v1244
        %1389 = vmatmul.bf16.gmra.mxu0 %v988
        %v1390 = vpop.f32.mrf.mxu0
        %v1391 = vadd.f32 %v1372, %v1390
        %v1392 = vpop.f32.mrf.mxu0
        %v1393 = vadd.f32 %v1374, %v1392
        %1394 = vmatmul.bf16.gmra.mxu0 %v995
        %v1395 = vpop.f32.mrf.mxu0
        %v1396 = vadd.f32 %v1377, %v1395
        %v1397 = vpop.f32.mrf.mxu0
        %v1398 = vadd.f32 %v1379, %v1397
        %1399 = vdwg.mxu0
        %1400 = vmatpush.bf16.msra.mxu0 %v1259
        %1401 = vmatpush.bf16.msra.mxu0 %v1258
        %1402 = vmatpush.bf16.msra.mxu0 %v1257
        %1403 = vmatpush.bf16.msra.mxu0 %v1256
        %1404 = vmatpush.bf16.msra.mxu0 %v1255
        %1405 = vmatpush.bf16.msra.mxu0 %v1254
        %1406 = vmatpush.bf16.msra.mxu0 %v1253
        %1407 = vmatpush.bf16.msra.mxu0 %v1252
        %1408 = vmatmul.bf16.gmra.mxu0 %v989
        %v1409 = vpop.f32.mrf.mxu0
        %v1410 = vadd.f32 %v1391, %v1409
        %v1411 = vpop.f32.mrf.mxu0
        %v1412 = vadd.f32 %v1393, %v1411
        %1413 = vmatmul.bf16.gmra.mxu0 %v996
        %v1414 = vpop.f32.mrf.mxu0
        %v1415 = vadd.f32 %v1396, %v1414
        %v1416 = vpop.f32.mrf.mxu0
        %v1417 = vadd.f32 %v1398, %v1416
        %1418 = vdwg.mxu0
        %1419 = vmatpush.bf16.msra.mxu0 %v1267
        %1420 = vmatpush.bf16.msra.mxu0 %v1266
        %1421 = vmatpush.bf16.msra.mxu0 %v1265
        %1422 = vmatpush.bf16.msra.mxu0 %v1264
        %1423 = vmatpush.bf16.msra.mxu0 %v1263
        %1424 = vmatpush.bf16.msra.mxu0 %v1262
        %1425 = vmatpush.bf16.msra.mxu0 %v1261
        %1426 = vmatpush.bf16.msra.mxu0 %v1260
        %1427 = vmatmul.bf16.gmra.mxu0 %v990
        %v1428 = vpop.f32.mrf.mxu0
        %v1429 = vadd.f32 %v1410, %v1428
        %v1430 = vpop.f32.mrf.mxu0
        %v1431 = vadd.f32 %v1412, %v1430
        %1432 = vmatmul.bf16.gmra.mxu0 %v997
        %v1433 = vpop.f32.mrf.mxu0
        %v1434 = vadd.f32 %v1415, %v1433
        %v1435 = vpop.f32.mrf.mxu0
        %v1436 = vadd.f32 %v1417, %v1435
        %1437 = vdwg.mxu0
        %1438 = vmatpush.bf16.msra.mxu0 %v1275
        %1439 = vmatpush.bf16.msra.mxu0 %v1274
        %1440 = vmatpush.bf16.msra.mxu0 %v1273
        %1441 = vmatpush.bf16.msra.mxu0 %v1272
        %1442 = vmatpush.bf16.msra.mxu0 %v1271
        %1443 = vmatpush.bf16.msra.mxu0 %v1270
        %1444 = vmatpush.bf16.msra.mxu0 %v1269
        %1445 = vmatpush.bf16.msra.mxu0 %v1268
        %1446 = vmatmul.bf16.gmra.mxu0 %v991
        %v1447 = vpop.f32.mrf.mxu0
        %v1448 = vadd.f32 %v1429, %v1447
        %v1449 = vpop.f32.mrf.mxu0
        %v1450 = vadd.f32 %v1431, %v1449
        %1451 = vmatmul.bf16.gmra.mxu0 %v998
        %v1452 = vpop.f32.mrf.mxu0
        %v1453 = vadd.f32 %v1434, %v1452
        %v1454 = vpop.f32.mrf.mxu0
        %v1455 = vadd.f32 %v1436, %v1454
        %1456 = vdwg.mxu0
        %1457 = vmatpush.bf16.msra.mxu0 0
        %1458 = vmatpush.bf16.msra.mxu0 0
        %1459 = vmatpush.bf16.msra.mxu0 %v1281
        %1460 = vmatpush.bf16.msra.mxu0 %v1280
        %1461 = vmatpush.bf16.msra.mxu0 %v1279
        %1462 = vmatpush.bf16.msra.mxu0 %v1278
        %1463 = vmatpush.bf16.msra.mxu0 %v1277
        %1464 = vmatpush.bf16.msra.mxu0 %v1276
        %1465 = vmatmul.bf16.gmra.mxu0 %v1338
        %v1466 = vpop.f32.mrf.mxu0
        %v1467 = vadd.f32 %v1448, %v1466
        %v1468 = vpop.f32.mrf.mxu0
        %v1469 = vadd.f32 %v1450, %v1468
        %1470 = vmatmul.bf16.gmra.mxu0 %v1341
        %v1471 = vpop.f32.mrf.mxu0
        %v1472 = vadd.f32 %v1453, %v1471
        %v1473 = vpop.f32.mrf.mxu0
        %v1474 = vadd.f32 %v1455, %v1473
        %1475 = vdwg.mxu0
        %v1476 = vld [vmem:[%s805] sm:$0x1]
        %vm1477 = vcmp.gt.f32.partialorder %v1476, 0.5
        %v1478 = vmax.f32 %v1467, 0.0
        %v1479 = vmax.f32 %v1469, 0.0
        %v1480 = vmax.f32 %v1472, 0.0
        %v1481 = vmax.f32 %v1474, 0.0
        %v1482 = vsel %vm1477, 1, 0
        %v1483 = vperm.slane %v1482, 0
        %vm1484 = vcmp.eq.s32.totalorder %v1483, 1
        %v1485 = vsel %vm1484, %v1478, %v1467
        %v1486 = vsel %vm1484, %v1479, %v1469
        %v1487 = vsel %vm1484, %v1480, %v1472
        %v1488 = vsel %vm1484, %v1481, %v1474
        %v1489 = vld [vmem:[%s808] sm:$0x1]
        %v1491 = vperm.slane %v1489, 0
        %v1493 = vmul.f32 %v1485, %v1491
        %v1494 = vmul.f32 %v1486, %v1491
        %v1495 = vmul.f32 %v1487, %v1491
        %v1496 = vmul.f32 %v1488, %v1491
        %v1497 = vld [vmem:[%s811] sm:$0x1]
        %v1499 = vperm.slane %v1497, 0
        %v1501 = vadd.f32 %v1493, %v1499
        %v1502 = vadd.f32 %v1494, %v1499
        %v1503 = vadd.f32 %v1495, %v1499
        %v1504 = vadd.f32 %v1496, %v1499
        %v1505 = vpack.c.bf16 %v1501, %v1501
        %v1506 = vpack.c.bf16 %v1502, %v1502
        %v1507 = vpack.c.bf16 %v1503, %v1503
        %v1508 = vpack.c.bf16 %v1504, %v1504
        %1509 = vst [vmem:[%s792] sm:$0xf] %v1505
        %1510 = vst [vmem:[%s792 + $0x4] sm:$0xf] %v1506
        %1511 = vst [vmem:[%s792 + $0x8] sm:$0xf] %v1507
        %1512 = vst [vmem:[%s792 + $0xc] sm:$0xf] %v1508
        %s1513 = sand.u32 %s195, 1
        %s1514 = sand.u32 %s195, 1
        %s1515 = smul.addr %s1514, 16
        %s1516 = scalar_lea.vmem [#allocation3], %s1515
        // Predicated region
        $region86: #{sardinet_forward.15} parent=80 // pred_check
          %p1517 = pneg %p205
        $region87: #{sardinet_forward.15} parent=80 // pred_check_branch
          %1519 = sbr.rel (%p1517) target = $region89
        $region88: #{sardinet_forward.15} parent=80 // pred_region
          %s1520 = smul.u32 4, %s21
          %s1521 = smul.addr %s1520, 2
          %s1522 = sadd.s32 %s22, %s1521
          %s1523 = smul.addr %s1522, 4
          %s1524 = scalar_lea.vmem %s6, %s1523
          // Predicated region
          $region90: #{sardinet_forward.15} parent=88 // pred_check
            _
          $region91: #{sardinet_forward.15} parent=88 // pred_check_branch
            %1526 = sbr.rel (0) target = $region93
          $region92: #{sardinet_forward.15} parent=88 // pred_region
            // Predicated region
            $region94: #{sardinet_forward.15} parent=92 // pred_check
              _
            $region95: #{sardinet_forward.15} parent=92 // pred_check_branch
              %1528 = sbr.rel target = $region97
            $region96: #{sardinet_forward.15} parent=92 // pred_region
              // Predicated region
              $region109: #{sardinet_forward.15} parent=96 // pred_check
                _
              $region110: #{sardinet_forward.15} parent=96 // pred_check_branch
                %1550 = sbr.rel (0) target = $region112
              $region111: #{sardinet_forward.15} parent=96 // pred_region
                loop: start=0, step=1, limit=1
                $region113: #{sardinet_forward.15} parent=111 // loop_pre_header
                  _
                $region114: #{sardinet_forward.15} parent=111 // loop_header
                  %s1552 = sphi 0, %s1556
                  %p1553 = scmp.ge.s32.totalorder %s1552, 1
                  %s1557 = sphi %s1516, %s1516
                  %s1558 = sphi %s1524, %s1524
                $region115: #{sardinet_forward.15} parent=111 // loop_header_branch
                  %1555 = sbr.rel (%p1553) target = $region119
                $region116: #{sardinet_forward.15} parent=111 // loop_body
                  _
                $region117: #{sardinet_forward.15} parent=111 // loop_footer
                  %s1556 = sadd.s32 1, %s1552
                $region118: #{sardinet_forward.15} parent=111 // loop_footer_branch
                  %1551 = sbr.rel target = $region114
                $region119: #{sardinet_forward.15} parent=111 // loop_exit
                  _
                %s1560 = ssub.s32 16, 1
                loop: start=0, step=1, limit=1
                $region120: #{sardinet_forward.15} parent=111 // loop_pre_header
                  _
                $region121: #{sardinet_forward.15} parent=111 // loop_header
                  %s1562 = sphi 0, %s1566
                  %p1563 = scmp.ge.s32.totalorder %s1562, 1
                  %s1567 = sphi %s1516, %s1516
                  %s1568 = sphi %s1524, %s1524
                $region122: #{sardinet_forward.15} parent=111 // loop_header_branch
                  %1565 = sbr.rel (%p1563) target = $region126
                $region123: #{sardinet_forward.15} parent=111 // loop_body
                  %v1569 = vld [vmem:[%s1567] sm:%s1560]
                  %1570 = vst [vmem:[%s1568] sm:%s1560] %v1569
                  %v1571 = vld [vmem:[%s1567 + $0x4] sm:%s1560]
                  %1572 = vst [vmem:[%s1568 + $0x8] sm:%s1560] %v1571
                  %v1573 = vld [vmem:[%s1567 + $0x8] sm:%s1560]
                  %1574 = vst [vmem:[%s1568 + $0x10] sm:%s1560] %v1573
                  %v1575 = vld [vmem:[%s1567 + $0xc] sm:%s1560]
                  %1576 = vst [vmem:[%s1568 + $0x18] sm:%s1560] %v1575
                $region124: #{sardinet_forward.15} parent=111 // loop_footer
                  %s1566 = sadd.s32 1, %s1562
                $region125: #{sardinet_forward.15} parent=111 // loop_footer_branch
                  %1561 = sbr.rel target = $region121
                $region126: #{sardinet_forward.15} parent=111 // loop_exit
                  _
              $region112: #{sardinet_forward.15} parent=96 // pred_fallthru
                _
            $region97: #{sardinet_forward.15} parent=92 // pred_fallthru
              _
            // Predicated region
            $region98: #{sardinet_forward.15} parent=92 // pred_check
              _
            $region99: #{sardinet_forward.15} parent=92 // pred_check_branch
              %1530 = sbr.rel (0) target = $region101
            $region100: #{sardinet_forward.15} parent=92 // pred_region
              %s1532 = ssub.s32 16, 1
              loop: start=0, step=1, limit=1
              $region102: #{sardinet_forward.15} parent=100 // loop_pre_header
                _
              $region103: #{sardinet_forward.15} parent=100 // loop_header
                %s1534 = sphi 0, %s1538
                %p1535 = scmp.ge.s32.totalorder %s1534, 1
                %s1539 = sphi %s1516, %s1516
                %s1540 = sphi %s1524, %s1524
              $region104: #{sardinet_forward.15} parent=100 // loop_header_branch
                %1537 = sbr.rel (%p1535) target = $region108
              $region105: #{sardinet_forward.15} parent=100 // loop_body
                %v1541 = vld [vmem:[%s1539] sm:%s1532]
                %1542 = vst [vmem:[%s1540] sm:%s1532] %v1541
                %v1543 = vld [vmem:[%s1539 + $0x4] sm:%s1532]
                %1544 = vst [vmem:[%s1540 + $0x8] sm:%s1532] %v1543
                %v1545 = vld [vmem:[%s1539 + $0x8] sm:%s1532]
                %1546 = vst [vmem:[%s1540 + $0x10] sm:%s1532] %v1545
                %v1547 = vld [vmem:[%s1539 + $0xc] sm:%s1532]
                %1548 = vst [vmem:[%s1540 + $0x18] sm:%s1532] %v1547
              $region106: #{sardinet_forward.15} parent=100 // loop_footer
                %s1538 = sadd.s32 1, %s1534
              $region107: #{sardinet_forward.15} parent=100 // loop_footer_branch
                %1533 = sbr.rel target = $region103
              $region108: #{sardinet_forward.15} parent=100 // loop_exit
                _
            $region101: #{sardinet_forward.15} parent=92 // pred_fallthru
              _
          $region93: #{sardinet_forward.15} parent=88 // pred_fallthru
            _
          %1577 = vnop
        $region89: #{sardinet_forward.15} parent=80 // pred_fallthru
          _
      $region81: #{sardinet_forward.15} parent=5 // pred_fallthru
        _
      %p1578 = scmp.le.s32.totalorder 2, %s12
      // Predicated region
      $region127: #{sardinet_forward.15} parent=5 // pred_check
        %p1579 = pneg %p1578
      $region128: #{sardinet_forward.15} parent=5 // pred_check_branch
        %1581 = sbr.rel (%p1579) target = $region130
      $region129: #{sardinet_forward.15} parent=5 // pred_region
        %s1582 = ssub.s32 %s12, 2
        // Predicated region
        $region131: #{sardinet_forward.15} parent=129 // pred_check
          %p1583 = pneg %p211
        $region132: #{sardinet_forward.15} parent=129 // pred_check_branch
          %1585 = sbr.rel (%p1583) target = $region134
        $region133: #{sardinet_forward.15} parent=129 // pred_region
          %s1586 = sand.u32 %s196, 1
          %s1587 = sand.u32 %s196, 1
          %s1588 = smul.addr %s1587, 16
          %s1589 = scalar_lea.vmem [#allocation3], %s1588
        $region134: #{sardinet_forward.15} parent=129 // pred_fallthru
          _
      $region130: #{sardinet_forward.15} parent=5 // pred_fallthru
        _
    $region6: #{sardinet_forward.15} parent=1 // loop_footer
      %s16 = sadd.s32 1, %s12
    $region7: #{sardinet_forward.15} parent=1 // loop_footer_branch
      %11 = sbr.rel target = $region3
    $region8: #{sardinet_forward.15} parent=1 // loop_exit
      _

// kernel: sardinet_forward.16
$region0: #{sardinet_forward.16}
  #allocation0 [shape = 'u32[]', space=smem, size = 0x4, offset = 0x4, fixed_abs, tag = 'smem constant byte address 0x4 - core index']
  #allocation1 [shape = 'u32[72,128]{1,0:T(1,128)}', space=vmem, size = 0x9000, scoped, tag = 'internal scratch']
  %s0 = inlined_call_operand.vmem [shape: bf16[32,288], index: 0, kind: input, shape index: {}]
  %s1 = inlined_call_operand.vmem [shape: bf16[288,128], index: 1, kind: input, shape index: {}]
  %s2 = inlined_call_operand.vmem [shape: f32[1,128], index: 2, kind: input, shape index: {}]
  %s3 = inlined_call_operand.vmem [shape: bf16[32,128], index: 3, kind: output, shape index: {}]
  %s4 = sld [smem:[#allocation0]]
  $region22: #{sardinet_forward.16} parent=0
    _
  %s6 = ssub.s32 1, %s4
  %s7 = scalar_select 0, %s6, %s4
  // Predicated region
  $region2: #{sardinet_forward.16} parent=0 // pred_check
    _
  $region3: #{sardinet_forward.16} parent=0 // pred_check_branch
    %9 = sbr.rel (0) target = $region5
  $region4: #{sardinet_forward.16} parent=0 // pred_region
    _
  $region5: #{sardinet_forward.16} parent=0 // pred_fallthru
    _
  // Predicated region
  $region6: #{sardinet_forward.16} parent=0 // pred_check
    _
  $region7: #{sardinet_forward.16} parent=0 // pred_check_branch
    %11 = sbr.rel (0) target = $region9
  $region8: #{sardinet_forward.16} parent=0 // pred_region
    _
  $region9: #{sardinet_forward.16} parent=0 // pred_fallthru
    _
  // Predicated region
  $region10: #{sardinet_forward.16} parent=0 // pred_check
    _
  $region11: #{sardinet_forward.16} parent=0 // pred_check_branch
    %13 = sbr.rel (0) target = $region13
  $region12: #{sardinet_forward.16} parent=0 // pred_region
    _
  $region13: #{sardinet_forward.16} parent=0 // pred_fallthru
    _
  %v15 = vld [vmem:[%s0] sm:$0xff]
  %v16 = vld [vmem:[%s0 + $0x8] sm:$0xf]
  %v17 = vld [vmem:[%s0 + $0xc] sm:$0xff]
  %v18 = vld [vmem:[%s0 + $0x14] sm:$0xf]
  %v19 = vld [vmem:[%s0 + $0x18] sm:$0xff]
  %v20 = vld [vmem:[%s0 + $0x20] sm:$0xf]
  %v21 = vld [vmem:[%s0 + $0x24] sm:$0xff]
  %v22 = vld [vmem:[%s0 + $0x2c] sm:$0xf]
  %v23 = vld [vmem:[%s1] sm:$0xf]
  %v24 = vld [vmem:[%s1 + $0x4] sm:$0xf]
  %v25 = vld [vmem:[%s1 + $0x8] sm:$0xf]
  %v26 = vld [vmem:[%s1 + $0xc] sm:$0xf]
  %v27 = vld [vmem:[%s1 + $0x10] sm:$0xf]
  %v28 = vld [vmem:[%s1 + $0x14] sm:$0xf]
  %v29 = vld [vmem:[%s1 + $0x18] sm:$0xf]
  %v30 = vld [vmem:[%s1 + $0x1c] sm:$0xf]
  %v31 = vld [vmem:[%s1 + $0x20] sm:$0xf]
  %v32 = vld [vmem:[%s1 + $0x24] sm:$0xf]
  %v33 = vld [vmem:[%s1 + $0x28] sm:$0xf]
  %v34 = vld [vmem:[%s1 + $0x2c] sm:$0xf]
  %v35 = vld [vmem:[%s1 + $0x30] sm:$0xf]
  %v36 = vld [vmem:[%s1 + $0x34] sm:$0xf]
  %v37 = vld [vmem:[%s1 + $0x38] sm:$0xf]
  %v38 = vld [vmem:[%s1 + $0x3c] sm:$0xf]
  %v39 = vld [vmem:[%s1 + $0x40] sm:$0xf]
  %v40 = vld [vmem:[%s1 + $0x44] sm:$0xf]
  %v41 = vld [vmem:[%s1 + $0x48] sm:$0xf]
  %v42 = vld [vmem:[%s1 + $0x4c] sm:$0xf]
  %v43 = vld [vmem:[%s1 + $0x50] sm:$0xf]
  %v44 = vld [vmem:[%s1 + $0x54] sm:$0xf]
  %v45 = vld [vmem:[%s1 + $0x58] sm:$0xf]
  %v46 = vld [vmem:[%s1 + $0x5c] sm:$0xf]
  %v47 = vld [vmem:[%s1 + $0x60] sm:$0xf]
  %v48 = vld [vmem:[%s1 + $0x64] sm:$0xf]
  %v49 = vld [vmem:[%s1 + $0x68] sm:$0xf]
  %v50 = vld [vmem:[%s1 + $0x6c] sm:$0xf]
  %v51 = vld [vmem:[%s1 + $0x70] sm:$0xf]
  %v52 = vld [vmem:[%s1 + $0x74] sm:$0xf]
  %v53 = vld [vmem:[%s1 + $0x78] sm:$0xf]
  %v54 = vld [vmem:[%s1 + $0x7c] sm:$0xf]
  %v55 = vld [vmem:[%s1 + $0x80] sm:$0xf]
  %v56 = vld [vmem:[%s1 + $0x84] sm:$0xf]
  %v57 = vld [vmem:[%s1 + $0x88] sm:$0xf]
  %v58 = vld [vmem:[%s1 + $0x8c] sm:$0xf]
  %v59 = vld [vmem:[%s2] sm:$0x1]
  %v61 = vperm.slane %v59, 0
  %v71 = vunpack.c.l.b16 %v15
  %v72 = vunpack.c.h.b16 %v15
  %v73 = vunpack.c.l.b16 %v16
  %v74 = vunpack.c.l.b16 %v17
  %v75 = vunpack.c.h.b16 %v17
  %v76 = vunpack.c.l.b16 %v18
  %v77 = vunpack.c.l.b16 %v19
  %v78 = vunpack.c.h.b16 %v19
  %v79 = vunpack.c.l.b16 %v20
  %v80 = vunpack.c.l.b16 %v21
  %v81 = vunpack.c.h.b16 %v21
  %v82 = vunpack.c.l.b16 %v22
  %v83 = vpack.c.b16 %v74, %v71
  %v84 = vpack.c.b16 %v75, %v72
  %v85 = vpack.c.b16 %v76, %v73
  %v86 = vpack.c.b16 %v80, %v77
  %v87 = vpack.c.b16 %v81, %v78
  %v88 = vpack.c.b16 %v82, %v79
  %v129 = vunpack.c.l.b16 %v23
  %v130 = vunpack.c.l.b16 %v24
  %v131 = vunpack.c.l.b16 %v25
  %v132 = vunpack.c.l.b16 %v26
  %v133 = vunpack.c.l.b16 %v27
  %v134 = vunpack.c.l.b16 %v28
  %v135 = vunpack.c.l.b16 %v29
  %v136 = vunpack.c.l.b16 %v30
  %v137 = vunpack.c.l.b16 %v31
  %v138 = vunpack.c.l.b16 %v32
  %v139 = vunpack.c.l.b16 %v33
  %v140 = vunpack.c.l.b16 %v34
  %v141 = vunpack.c.l.b16 %v35
  %v142 = vunpack.c.l.b16 %v36
  %v143 = vunpack.c.l.b16 %v37
  %v144 = vunpack.c.l.b16 %v38
  %v145 = vunpack.c.l.b16 %v39
  %v146 = vunpack.c.l.b16 %v40
  %v147 = vunpack.c.l.b16 %v41
  %v148 = vunpack.c.l.b16 %v42
  %v149 = vunpack.c.l.b16 %v43
  %v150 = vunpack.c.l.b16 %v44
  %v151 = vunpack.c.l.b16 %v45
  %v152 = vunpack.c.l.b16 %v46
  %v153 = vunpack.c.l.b16 %v47
  %v154 = vunpack.c.l.b16 %v48
  %v155 = vunpack.c.l.b16 %v49
  %v156 = vunpack.c.l.b16 %v50
  %v157 = vunpack.c.l.b16 %v51
  %v158 = vunpack.c.l.b16 %v52
  %v159 = vunpack.c.l.b16 %v53
  %v160 = vunpack.c.l.b16 %v54
  %v161 = vunpack.c.l.b16 %v55
  %v162 = vunpack.c.l.b16 %v56
  %v163 = vunpack.c.l.b16 %v57
  %v164 = vunpack.c.l.b16 %v58
  %v165 = vpack.c.b16 %v130, %v129
  %v166 = vpack.c.b16 %v132, %v131
  %v167 = vpack.c.b16 %v134, %v133
  %v168 = vpack.c.b16 %v136, %v135
  %v169 = vpack.c.b16 %v138, %v137
  %v170 = vpack.c.b16 %v140, %v139
  %v171 = vpack.c.b16 %v142, %v141
  %v172 = vpack.c.b16 %v144, %v143
  %v173 = vpack.c.b16 %v146, %v145
  %v174 = vpack.c.b16 %v148, %v147
  %v175 = vpack.c.b16 %v150, %v149
  %v176 = vpack.c.b16 %v152, %v151
  %v177 = vpack.c.b16 %v154, %v153
  %v178 = vpack.c.b16 %v156, %v155
  %v179 = vpack.c.b16 %v158, %v157
  %v180 = vpack.c.b16 %v160, %v159
  %v181 = vpack.c.b16 %v162, %v161
  %v182 = vpack.c.b16 %v164, %v163
  %vm201 = vcmask 261120
  %v203 = vsel %vm201, %v85, 0
  %v206 = vsel %vm201, %v88, 0
  %208 = vmatpush.bf16.msra.mxu0 %v172
  %209 = vmatpush.bf16.msra.mxu0 %v171
  %210 = vmatpush.bf16.msra.mxu0 %v170
  %211 = vmatpush.bf16.msra.mxu0 %v169
  %212 = vmatpush.bf16.msra.mxu0 %v168
  %213 = vmatpush.bf16.msra.mxu0 %v167
  %214 = vmatpush.bf16.msra.mxu0 %v166
  %215 = vmatpush.bf16.msra.mxu0 %v165
  %216 = vmatmul.bf16.gmra.mxu0 %v83
  %v217 = vpop.f32.mrf.mxu0
  %v218 = vadd.f32 %v61, %v217
  %v219 = vpop.f32.mrf.mxu0
  %v220 = vadd.f32 %v61, %v219
  %221 = vmatmul.bf16.gmra.mxu0 %v86
  %v222 = vpop.f32.mrf.mxu0
  %v223 = vadd.f32 %v61, %v222
  %v224 = vpop.f32.mrf.mxu0
  %v225 = vadd.f32 %v61, %v224
  %226 = vdwg.mxu0
  %227 = vmatpush.bf16.msra.mxu0 %v180
  %228 = vmatpush.bf16.msra.mxu0 %v179
  %229 = vmatpush.bf16.msra.mxu0 %v178
  %230 = vmatpush.bf16.msra.mxu0 %v177
  %231 = vmatpush.bf16.msra.mxu0 %v176
  %232 = vmatpush.bf16.msra.mxu0 %v175
  %233 = vmatpush.bf16.msra.mxu0 %v174
  %234 = vmatpush.bf16.msra.mxu0 %v173
  %235 = vmatmul.bf16.gmra.mxu0 %v84
  %v236 = vpop.f32.mrf.mxu0
  %v237 = vadd.f32 %v218, %v236
  %v238 = vpop.f32.mrf.mxu0
  %v239 = vadd.f32 %v220, %v238
  %240 = vmatmul.bf16.gmra.mxu0 %v87
  %v241 = vpop.f32.mrf.mxu0
  %v242 = vadd.f32 %v223, %v241
  %v243 = vpop.f32.mrf.mxu0
  %v244 = vadd.f32 %v225, %v243
  %245 = vdwg.mxu0
  %246 = vmatpush.bf16.msra.mxu0 0
  %247 = vmatpush.bf16.msra.mxu0 0
  %248 = vmatpush.bf16.msra.mxu0 0
  %249 = vmatpush.bf16.msra.mxu0 0
  %250 = vmatpush.bf16.msra.mxu0 0
  %251 = vmatpush.bf16.msra.mxu0 0
  %252 = vmatpush.bf16.msra.mxu0 %v182
  %253 = vmatpush.bf16.msra.mxu0 %v181
  %254 = vmatmul.bf16.gmra.mxu0 %v203
  %v255 = vpop.f32.mrf.mxu0
  %v256 = vadd.f32 %v237, %v255
  %v257 = vpop.f32.mrf.mxu0
  %v258 = vadd.f32 %v239, %v257
  %259 = vmatmul.bf16.gmra.mxu0 %v206
  %v260 = vpop.f32.mrf.mxu0
  %v261 = vadd.f32 %v242, %v260
  %v262 = vpop.f32.mrf.mxu0
  %v263 = vadd.f32 %v244, %v262
  %264 = vdwg.mxu0
  %v265 = vpack.c.bf16 %v256, %v256
  %v266 = vpack.c.bf16 %v258, %v258
  %v267 = vpack.c.bf16 %v261, %v261
  %v268 = vpack.c.bf16 %v263, %v263
  %269 = vst [vmem:[%s3] sm:$0xf] %v265
  %270 = vst [vmem:[%s3 + $0x4] sm:$0xf] %v266
  %271 = vst [vmem:[%s3 + $0x8] sm:$0xf] %v267
  %272 = vst [vmem:[%s3 + $0xc] sm:$0xf] %v268
  // Predicated region
  $region14: #{sardinet_forward.16} parent=0 // pred_check
    _
  $region15: #{sardinet_forward.16} parent=0 // pred_check_branch
    %274 = sbr.rel (0) target = $region17
  $region16: #{sardinet_forward.16} parent=0 // pred_region
    _
  $region17: #{sardinet_forward.16} parent=0 // pred_fallthru
    _
  // Predicated region
  $region18: #{sardinet_forward.16} parent=0 // pred_check
    _
  $region19: #{sardinet_forward.16} parent=0 // pred_check_branch
    %276 = sbr.rel (0) target = $region21
  $region20: #{sardinet_forward.16} parent=0 // pred_region
    _
  $region21: #{sardinet_forward.16} parent=0 // pred_fallthru
    _

// kernel: sardinet_forward.17
$region0: #{sardinet_forward.17}
  #allocation0 [shape = 'u32[]', space=smem, size = 0x4, offset = 0x4, fixed_abs, tag = 'smem constant byte address 0x4 - core index']
  #allocation1 [shape = 'u32[72,128]{1,0:T(1,128)}', space=vmem, size = 0x9000, scoped, tag = 'internal scratch']
  %s0 = inlined_call_operand.vmem [shape: bf16[8,256], index: 0, kind: input, shape index: {}]
  %s1 = inlined_call_operand.vmem [shape: bf16[256,384], index: 1, kind: input, shape index: {}]
  %s2 = inlined_call_operand.vmem [shape: f32[1,384], index: 2, kind: input, shape index: {}]
  %s3 = inlined_call_operand.vmem [shape: bf16[8,384], index: 3, kind: output, shape index: {}]
  %s4 = sld [smem:[#allocation0]]
  $region86: #{sardinet_forward.17} parent=0
    _
  %s6 = ssub.s32 1, %s4
  %s7 = scalar_select 0, %s6, %s4
  $region1: #{sardinet_forward.17} parent=0
    #allocation2 [shape = 'u8[131072]{0}', space=vmem, size = 0x20000, scoped, tag = 'input window, operand 1']
    loop: start=0, step=1, limit=5
    $region2: #{sardinet_forward.17} parent=1 // loop_pre_header
      _
    $region3: #{sardinet_forward.17} parent=1 // loop_header
      %s9 = sphi 0, %s13
      %p10 = scmp.ge.s32.totalorder %s9, 5
      %s16 = sphi 0, %s28
      %s17 = sphi 0, %s24
      %s18 = sphi 0, %s16
      %s19 = sphi 0, %s17
      %s20 = sphi 0, %s18
      %s21 = sphi 0, %s19
      %s31 = sphi 0, %s33
      %s34 = sphi 0, %s31
      %s35 = sphi 0, %s34
      %s51 = sphi 0, %s35
      %s57 = sphi 0, %s59
      %s60 = sphi 0, %s57
      %s61 = sphi 0, %s60
      %s77 = sphi 0, %s61
      %s83 = sphi 0, %s85
      %s86 = sphi 0, %s83
      %s87 = sphi 0, %s86
      %s103 = sphi 0, %s87
      %s111 = sphi 0, %s113
      %s114 = sphi 0, %s111
      %s115 = sphi 0, %s114
      %s131 = sphi 0, %s115
    $region4: #{sardinet_forward.17} parent=1 // loop_header_branch
      %12 = sbr.rel (%p10) target = $region8
    $region5: #{sardinet_forward.17} parent=1 // loop_body
      %s14 = ssub.s32 %s9, 1
      %s15 = ssub.s32 %s9, 2
      %s22 = sadd.s32 1, %s17
      %p23 = scmp.ge.s32.totalorder %s22, 3
      %s24 = scalar_select %p23, 0, %s22
      %s25 = sadd.s32 1, %s16
      %s26 = scalar_select %p23, %s25, %s16
      %p27 = scmp.ge.s32.totalorder %s26, 1
      %s28 = scalar_select %p27, 0, %s26
      %s29 = ssub.s32 %s16, %s28
      %p30 = scmp.eq.s32.totalorder %s29, 0
      %s32 = sadd.s32 %s31, 1
      %s33 = scalar_select %p30, %s31, %s32
      %p36 = pneg %p30
      %p37 = scmp.eq.s32.totalorder %s9, 2
      %p38 = por %p36, %p37
      %p39 = scmp.ne.s32.totalorder %s31, %s34
      %p40 = scmp.eq.s32.totalorder %s9, 0
      %p41 = por %p39, %p40
      %p42 = scmp.ne.s32.totalorder %s31, %s34
      %p43 = scmp.eq.s32.totalorder %s14, 2
      %p44 = por %p42, %p43
      %p45 = scmp.ne.s32.totalorder %s34, %s35
      %p46 = scmp.eq.s32.totalorder %s14, 0
      %p47 = por %p45, %p46
      %p48 = scmp.ne.s32.totalorder %s34, %s35
      %p49 = scmp.eq.s32.totalorder %s15, 2
      %p50 = por %p48, %p49
      %p52 = scmp.ne.s32.totalorder %s35, %s51
      %p53 = scmp.eq.s32.totalorder %s15, 0
      %p54 = por %p52, %p53
      %s55 = ssub.s32 %s17, %s24
      %p56 = scmp.eq.s32.totalorder %s55, 0
      %s58 = sadd.s32 %s57, 1
      %s59 = scalar_select %p56, %s57, %s58
      %p62 = pneg %p56
      %p63 = scmp.eq.s32.totalorder %s9, 2
      %p64 = por %p62, %p63
      %p65 = scmp.ne.s32.totalorder %s57, %s60
      %p66 = scmp.eq.s32.totalorder %s9, 0
      %p67 = por %p65, %p66
      %p68 = scmp.ne.s32.totalorder %s57, %s60
      %p69 = scmp.eq.s32.totalorder %s14, 2
      %p70 = por %p68, %p69
      %p71 = scmp.ne.s32.totalorder %s60, %s61
      %p72 = scmp.eq.s32.totalorder %s14, 0
      %p73 = por %p71, %p72
      %p74 = scmp.ne.s32.totalorder %s60, %s61
      %p75 = scmp.eq.s32.totalorder %s15, 2
      %p76 = por %p74, %p75
      %p78 = scmp.ne.s32.totalorder %s61, %s77
      %p79 = scmp.eq.s32.totalorder %s15, 0
      %p80 = por %p78, %p79
      %s81 = ssub.s32 %s17, %s24
      %p82 = scmp.eq.s32.totalorder %s81, 0
      %s84 = sadd.s32 %s83, 1
      %s85 = scalar_select %p82, %s83, %s84
      %p88 = pneg %p82
      %p89 = scmp.eq.s32.totalorder %s9, 2
      %p90 = por %p88, %p89
      %p91 = scmp.ne.s32.totalorder %s83, %s86
      %p92 = scmp.eq.s32.totalorder %s9, 0
      %p93 = por %p91, %p92
      %p94 = scmp.ne.s32.totalorder %s83, %s86
      %p95 = scmp.eq.s32.totalorder %s14, 2
      %p96 = por %p94, %p95
      %p97 = scmp.ne.s32.totalorder %s86, %s87
      %p98 = scmp.eq.s32.totalorder %s14, 0
      %p99 = por %p97, %p98
      %p100 = scmp.ne.s32.totalorder %s86, %s87
      %p101 = scmp.eq.s32.totalorder %s15, 2
      %p102 = por %p100, %p101
      %p104 = scmp.ne.s32.totalorder %s87, %s103
      %p105 = scmp.eq.s32.totalorder %s15, 0
      %p106 = por %p104, %p105
      %s107 = ssub.s32 %s16, %s28
      %s108 = ssub.s32 %s17, %s24
      %s109 = sor.u32 %s107, %s108
      %p110 = scmp.eq.s32.totalorder %s109, 0
      %s112 = sadd.s32 %s111, 1
      %s113 = scalar_select %p110, %s111, %s112
      %p116 = pneg %p110
      %p117 = scmp.eq.s32.totalorder %s9, 2
      %p118 = por %p116, %p117
      %p119 = scmp.ne.s32.totalorder %s111, %s114
      %p120 = scmp.eq.s32.totalorder %s9, 0
      %p121 = por %p119, %p120
      %p122 = scmp.ne.s32.totalorder %s111, %s114
      %p123 = scmp.eq.s32.totalorder %s14, 2
      %p124 = por %p122, %p123
      %p125 = scmp.ne.s32.totalorder %s114, %s115
      %p126 = scmp.eq.s32.totalorder %s14, 0
      %p127 = por %p125, %p126
      %p128 = scmp.ne.s32.totalorder %s114, %s115
      %p129 = scmp.eq.s32.totalorder %s15, 2
      %p130 = por %p128, %p129
      %p132 = scmp.ne.s32.totalorder %s115, %s131
      %p133 = scmp.eq.s32.totalorder %s15, 0
      %p134 = por %p132, %p133
      %p135 = scmp.le.s32.totalorder 1, %s9
      %p136 = scmp.lt.s32.totalorder %s9, 4
      %p137 = pnand %p135, %p136
      %p138 = pneg %p137
      // Predicated region
      $region9: #{sardinet_forward.17} parent=5 // pred_check
        _
      $region10: #{sardinet_forward.17} parent=5 // pred_check_branch
        %140 = sbr.rel (%p137) target = $region12
      $region11: #{sardinet_forward.17} parent=5 // pred_region
        %s141 = ssub.s32 %s9, 1
        // Predicated region
        $region13: #{sardinet_forward.17} parent=11 // pred_check
          %p142 = pneg %p47
        $region14: #{sardinet_forward.17} parent=11 // pred_check_branch
          %144 = sbr.rel (%p142) target = $region16
        $region15: #{sardinet_forward.17} parent=11 // pred_region
          %p145 = scmp.lt.s32.totalorder %s18, 0
          %s146 = scalar_select %p145, %s18, 0
          %s147 = smul.addr %s146, 2
          %s148 = smul.addr %s147, 4
          %s149 = scalar_lea.vmem %s0, %s148
        $region16: #{sardinet_forward.17} parent=11 // pred_fallthru
          _
      $region12: #{sardinet_forward.17} parent=5 // pred_fallthru
        _
      %p150 = scmp.lt.s32.totalorder %s9, 3
      // Predicated region
      $region17: #{sardinet_forward.17} parent=5 // pred_check
        %p151 = pneg %p150
      $region18: #{sardinet_forward.17} parent=5 // pred_check_branch
        %153 = sbr.rel (%p151) target = $region20
      $region19: #{sardinet_forward.17} parent=5 // pred_region
        // Predicated region
        $region21: #{sardinet_forward.17} parent=19 // pred_check
          %p154 = pneg %p67
        $region22: #{sardinet_forward.17} parent=19 // pred_check_branch
          %156 = sbr.rel (%p154) target = $region24
        $region23: #{sardinet_forward.17} parent=19 // pred_region
          %s157 = sand.u32 %s57, 1
          %s158 = sand.u32 %s57, 1
          %s159 = smul.addr %s158, 128
          %s160 = scalar_lea.vmem [#allocation2], %s159
          %s161 = smul.addr %s17, 4
          %s162 = scalar_lea.vmem %s1, %s161
          // Predicated region
          $region25: #{sardinet_forward.17} parent=23 // pred_check
            _
          $region26: #{sardinet_forward.17} parent=23 // pred_check_branch
            %164 = sbr.rel (0) target = $region28
          $region27: #{sardinet_forward.17} parent=23 // pred_region
            // Predicated region
            $region29: #{sardinet_forward.17} parent=27 // pred_check
              _
            $region30: #{sardinet_forward.17} parent=27 // pred_check_branch
              %166 = sbr.rel target = $region32
            $region31: #{sardinet_forward.17} parent=27 // pred_region
              // Predicated region
              $region44: #{sardinet_forward.17} parent=31 // pred_check
                _
              $region45: #{sardinet_forward.17} parent=31 // pred_check_branch
                %244 = sbr.rel (0) target = $region47
              $region46: #{sardinet_forward.17} parent=31 // pred_region
                loop: start=0, step=1, limit=1
                $region48: #{sardinet_forward.17} parent=46 // loop_pre_header
                  _
                $region49: #{sardinet_forward.17} parent=46 // loop_header
                  %s246 = sphi 0, %s250
                  %p247 = scmp.ge.s32.totalorder %s246, 1
                  %s251 = sphi %s162, %s162
                  %s252 = sphi %s160, %s160
                $region50: #{sardinet_forward.17} parent=46 // loop_header_branch
                  %249 = sbr.rel (%p247) target = $region54
                $region51: #{sardinet_forward.17} parent=46 // loop_body
                  _
                $region52: #{sardinet_forward.17} parent=46 // loop_footer
                  %s250 = sadd.s32 1, %s246
                $region53: #{sardinet_forward.17} parent=46 // loop_footer_branch
                  %245 = sbr.rel target = $region49
                $region54: #{sardinet_forward.17} parent=46 // loop_exit
                  _
                %s254 = ssub.s32 16, 1
                loop: start=0, step=1, limit=1
                $region55: #{sardinet_forward.17} parent=46 // loop_pre_header
                  _
                $region56: #{sardinet_forward.17} parent=46 // loop_header
                  %s256 = sphi 0, %s260
                  %p257 = scmp.ge.s32.totalorder %s256, 1
                  %s261 = sphi %s162, %s162
                  %s262 = sphi %s160, %s160
                $region57: #{sardinet_forward.17} parent=46 // loop_header_branch
                  %259 = sbr.rel (%p257) target = $region61
                $region58: #{sardinet_forward.17} parent=46 // loop_body
                  %v263 = vld [vmem:[%s261] sm:%s254]
                  %264 = vst [vmem:[%s262] sm:%s254] %v263
                  %v265 = vld [vmem:[%s261 + $0xc] sm:%s254]
                  %266 = vst [vmem:[%s262 + $0x4] sm:%s254] %v265
                  %v267 = vld [vmem:[%s261 + $0x18] sm:%s254]
                  %268 = vst [vmem:[%s262 + $0x8] sm:%s254] %v267
                  %v269 = vld [vmem:[%s261 + $0x24] sm:%s254]
                  %270 = vst [vmem:[%s262 + $0xc] sm:%s254] %v269
                  %v271 = vld [vmem:[%s261 + $0x30] sm:%s254]
                  %272 = vst [vmem:[%s262 + $0x10] sm:%s254] %v271
                  %v273 = vld [vmem:[%s261 + $0x3c] sm:%s254]
                  %274 = vst [vmem:[%s262 + $0x14] sm:%s254] %v273
                  %v275 = vld [vmem:[%s261 + $0x48] sm:%s254]
                  %276 = vst [vmem:[%s262 + $0x18] sm:%s254] %v275
                  %v277 = vld [vmem:[%s261 + $0x54] sm:%s254]
                  %278 = vst [vmem:[%s262 + $0x1c] sm:%s254] %v277
                  %v279 = vld [vmem:[%s261 + $0x60] sm:%s254]
                  %280 = vst [vmem:[%s262 + $0x20] sm:%s254] %v279
                  %v281 = vld [vmem:[%s261 + $0x6c] sm:%s254]
                  %282 = vst [vmem:[%s262 + $0x24] sm:%s254] %v281
                  %v283 = vld [vmem:[%s261 + $0x78] sm:%s254]
                  %284 = vst [vmem:[%s262 + $0x28] sm:%s254] %v283
                  %v285 = vld [vmem:[%s261 + $0x84] sm:%s254]
                  %286 = vst [vmem:[%s262 + $0x2c] sm:%s254] %v285
                  %v287 = vld [vmem:[%s261 + $0x90] sm:%s254]
                  %288 = vst [vmem:[%s262 + $0x30] sm:%s254] %v287
                  %v289 = vld [vmem:[%s261 + $0x9c] sm:%s254]
                  %290 = vst [vmem:[%s262 + $0x34] sm:%s254] %v289
                  %v291 = vld [vmem:[%s261 + $0xa8] sm:%s254]
                  %292 = vst [vmem:[%s262 + $0x38] sm:%s254] %v291
                  %v293 = vld [vmem:[%s261 + $0xb4] sm:%s254]
                  %294 = vst [vmem:[%s262 + $0x3c] sm:%s254] %v293
                  %v295 = vld [vmem:[%s261 + $0xc0] sm:%s254]
                  %296 = vst [vmem:[%s262 + $0x40] sm:%s254] %v295
                  %v297 = vld [vmem:[%s261 + $0xcc] sm:%s254]
                  %298 = vst [vmem:[%s262 + $0x44] sm:%s254] %v297
                  %v299 = vld [vmem:[%s261 + $0xd8] sm:%s254]
                  %300 = vst [vmem:[%s262 + $0x48] sm:%s254] %v299
                  %v301 = vld [vmem:[%s261 + $0xe4] sm:%s254]
                  %302 = vst [vmem:[%s262 + $0x4c] sm:%s254] %v301
                  %v303 = vld [vmem:[%s261 + $0xf0] sm:%s254]
                  %304 = vst [vmem:[%s262 + $0x50] sm:%s254] %v303
                  %v305 = vld [vmem:[%s261 + $0xfc] sm:%s254]
                  %306 = vst [vmem:[%s262 + $0x54] sm:%s254] %v305
                  %v307 = vld [vmem:[%s261 + $0x108] sm:%s254]
                  %308 = vst [vmem:[%s262 + $0x58] sm:%s254] %v307
                  %v309 = vld [vmem:[%s261 + $0x114] sm:%s254]
                  %310 = vst [vmem:[%s262 + $0x5c] sm:%s254] %v309
                  %v311 = vld [vmem:[%s261 + $0x120] sm:%s254]
                  %312 = vst [vmem:[%s262 + $0x60] sm:%s254] %v311
                  %v313 = vld [vmem:[%s261 + $0x12c] sm:%s254]
                  %314 = vst [vmem:[%s262 + $0x64] sm:%s254] %v313
                  %v315 = vld [vmem:[%s261 + $0x138] sm:%s254]
                  %316 = vst [vmem:[%s262 + $0x68] sm:%s254] %v315
                  %v317 = vld [vmem:[%s261 + $0x144] sm:%s254]
                  %318 = vst [vmem:[%s262 + $0x6c] sm:%s254] %v317
                  %v319 = vld [vmem:[%s261 + $0x150] sm:%s254]
                  %320 = vst [vmem:[%s262 + $0x70] sm:%s254] %v319
                  %v321 = vld [vmem:[%s261 + $0x15c] sm:%s254]
                  %322 = vst [vmem:[%s262 + $0x74] sm:%s254] %v321
                  %v323 = vld [vmem:[%s261 + $0x168] sm:%s254]
                  %324 = vst [vmem:[%s262 + $0x78] sm:%s254] %v323
                  %v325 = vld [vmem:[%s261 + $0x174] sm:%s254]
                  %326 = vst [vmem:[%s262 + $0x7c] sm:%s254] %v325
                $region59: #{sardinet_forward.17} parent=46 // loop_footer
                  %s260 = sadd.s32 1, %s256
                $region60: #{sardinet_forward.17} parent=46 // loop_footer_branch
                  %255 = sbr.rel target = $region56
                $region61: #{sardinet_forward.17} parent=46 // loop_exit
                  _
              $region47: #{sardinet_forward.17} parent=31 // pred_fallthru
                _
            $region32: #{sardinet_forward.17} parent=27 // pred_fallthru
              _
            // Predicated region
            $region33: #{sardinet_forward.17} parent=27 // pred_check
              _
            $region34: #{sardinet_forward.17} parent=27 // pred_check_branch
              %168 = sbr.rel (0) target = $region36
            $region35: #{sardinet_forward.17} parent=27 // pred_region
              %s170 = ssub.s32 16, 1
              loop: start=0, step=1, limit=1
              $region37: #{sardinet_forward.17} parent=35 // loop_pre_header
                _
              $region38: #{sardinet_forward.17} parent=35 // loop_header
                %s172 = sphi 0, %s176
                %p173 = scmp.ge.s32.totalorder %s172, 1
                %s177 = sphi %s162, %s162
                %s178 = sphi %s160, %s160
              $region39: #{sardinet_forward.17} parent=35 // loop_header_branch
                %175 = sbr.rel (%p173) target = $region43
              $region40: #{sardinet_forward.17} parent=35 // loop_body
                %v179 = vld [vmem:[%s177] sm:%s170]
                %180 = vst [vmem:[%s178] sm:%s170] %v179
                %v181 = vld [vmem:[%s177 + $0xc] sm:%s170]
                %182 = vst [vmem:[%s178 + $0x4] sm:%s170] %v181
                %v183 = vld [vmem:[%s177 + $0x18] sm:%s170]
                %184 = vst [vmem:[%s178 + $0x8] sm:%s170] %v183
                %v185 = vld [vmem:[%s177 + $0x24] sm:%s170]
                %186 = vst [vmem:[%s178 + $0xc] sm:%s170] %v185
                %v187 = vld [vmem:[%s177 + $0x30] sm:%s170]
                %188 = vst [vmem:[%s178 + $0x10] sm:%s170] %v187
                %v189 = vld [vmem:[%s177 + $0x3c] sm:%s170]
                %190 = vst [vmem:[%s178 + $0x14] sm:%s170] %v189
                %v191 = vld [vmem:[%s177 + $0x48] sm:%s170]
                %192 = vst [vmem:[%s178 + $0x18] sm:%s170] %v191
                %v193 = vld [vmem:[%s177 + $0x54] sm:%s170]
                %194 = vst [vmem:[%s178 + $0x1c] sm:%s170] %v193
                %v195 = vld [vmem:[%s177 + $0x60] sm:%s170]
                %196 = vst [vmem:[%s178 + $0x20] sm:%s170] %v195
                %v197 = vld [vmem:[%s177 + $0x6c] sm:%s170]
                %198 = vst [vmem:[%s178 + $0x24] sm:%s170] %v197
                %v199 = vld [vmem:[%s177 + $0x78] sm:%s170]
                %200 = vst [vmem:[%s178 + $0x28] sm:%s170] %v199
                %v201 = vld [vmem:[%s177 + $0x84] sm:%s170]
                %202 = vst [vmem:[%s178 + $0x2c] sm:%s170] %v201
                %v203 = vld [vmem:[%s177 + $0x90] sm:%s170]
                %204 = vst [vmem:[%s178 + $0x30] sm:%s170] %v203
                %v205 = vld [vmem:[%s177 + $0x9c] sm:%s170]
                %206 = vst [vmem:[%s178 + $0x34] sm:%s170] %v205
                %v207 = vld [vmem:[%s177 + $0xa8] sm:%s170]
                %208 = vst [vmem:[%s178 + $0x38] sm:%s170] %v207
                %v209 = vld [vmem:[%s177 + $0xb4] sm:%s170]
                %210 = vst [vmem:[%s178 + $0x3c] sm:%s170] %v209
                %v211 = vld [vmem:[%s177 + $0xc0] sm:%s170]
                %212 = vst [vmem:[%s178 + $0x40] sm:%s170] %v211
                %v213 = vld [vmem:[%s177 + $0xcc] sm:%s170]
                %214 = vst [vmem:[%s178 + $0x44] sm:%s170] %v213
                %v215 = vld [vmem:[%s177 + $0xd8] sm:%s170]
                %216 = vst [vmem:[%s178 + $0x48] sm:%s170] %v215
                %v217 = vld [vmem:[%s177 + $0xe4] sm:%s170]
                %218 = vst [vmem:[%s178 + $0x4c] sm:%s170] %v217
                %v219 = vld [vmem:[%s177 + $0xf0] sm:%s170]
                %220 = vst [vmem:[%s178 + $0x50] sm:%s170] %v219
                %v221 = vld [vmem:[%s177 + $0xfc] sm:%s170]
                %222 = vst [vmem:[%s178 + $0x54] sm:%s170] %v221
                %v223 = vld [vmem:[%s177 + $0x108] sm:%s170]
                %224 = vst [vmem:[%s178 + $0x58] sm:%s170] %v223
                %v225 = vld [vmem:[%s177 + $0x114] sm:%s170]
                %226 = vst [vmem:[%s178 + $0x5c] sm:%s170] %v225
                %v227 = vld [vmem:[%s177 + $0x120] sm:%s170]
                %228 = vst [vmem:[%s178 + $0x60] sm:%s170] %v227
                %v229 = vld [vmem:[%s177 + $0x12c] sm:%s170]
                %230 = vst [vmem:[%s178 + $0x64] sm:%s170] %v229
                %v231 = vld [vmem:[%s177 + $0x138] sm:%s170]
                %232 = vst [vmem:[%s178 + $0x68] sm:%s170] %v231
                %v233 = vld [vmem:[%s177 + $0x144] sm:%s170]
                %234 = vst [vmem:[%s178 + $0x6c] sm:%s170] %v233
                %v235 = vld [vmem:[%s177 + $0x150] sm:%s170]
                %236 = vst [vmem:[%s178 + $0x70] sm:%s170] %v235
                %v237 = vld [vmem:[%s177 + $0x15c] sm:%s170]
                %238 = vst [vmem:[%s178 + $0x74] sm:%s170] %v237
                %v239 = vld [vmem:[%s177 + $0x168] sm:%s170]
                %240 = vst [vmem:[%s178 + $0x78] sm:%s170] %v239
                %v241 = vld [vmem:[%s177 + $0x174] sm:%s170]
                %242 = vst [vmem:[%s178 + $0x7c] sm:%s170] %v241
              $region41: #{sardinet_forward.17} parent=35 // loop_footer
                %s176 = sadd.s32 1, %s172
              $region42: #{sardinet_forward.17} parent=35 // loop_footer_branch
                %171 = sbr.rel target = $region38
              $region43: #{sardinet_forward.17} parent=35 // loop_exit
                _
            $region36: #{sardinet_forward.17} parent=27 // pred_fallthru
              _
          $region28: #{sardinet_forward.17} parent=23 // pred_fallthru
            _
          %327 = vnop
        $region24: #{sardinet_forward.17} parent=19 // pred_fallthru
          _
        // Predicated region
        $region62: #{sardinet_forward.17} parent=19 // pred_check
          %p328 = pneg %p93
        $region63: #{sardinet_forward.17} parent=19 // pred_check_branch
          %330 = sbr.rel (%p328) target = $region65
        $region64: #{sardinet_forward.17} parent=19 // pred_region
          %p331 = scmp.lt.s32.totalorder %s17, 2
          %s332 = scalar_select %p331, %s17, 2
          %s333 = scalar_lea.vmem %s2, %s332
        $region65: #{sardinet_forward.17} parent=19 // pred_fallthru
          _
      $region20: #{sardinet_forward.17} parent=5 // pred_fallthru
        _
      %p334 = scmp.le.s32.totalorder 1, %s9
      %p335 = scmp.lt.s32.totalorder %s9, 4
      %p336 = pnand %p334, %p335
      %p337 = pneg %p336
      // Predicated region
      $region66: #{sardinet_forward.17} parent=5 // pred_check
        _
      $region67: #{sardinet_forward.17} parent=5 // pred_check_branch
        %339 = sbr.rel (%p336) target = $region69
      $region68: #{sardinet_forward.17} parent=5 // pred_region
        %s340 = ssub.s32 %s9, 1
        %s341 = sand.u32 %s60, 1
        %s342 = sand.u32 %s60, 1
        %s343 = smul.addr %s342, 128
        %s344 = scalar_lea.vmem [#allocation2], %s343
        // Predicated region
        $region70: #{sardinet_forward.17} parent=68 // pred_check
          %p345 = pneg %p73
        $region71: #{sardinet_forward.17} parent=68 // pred_check_branch
          %347 = sbr.rel (%p345) target = $region73
        $region72: #{sardinet_forward.17} parent=68 // pred_region
          _
        $region73: #{sardinet_forward.17} parent=68 // pred_fallthru
          _
        %p348 = scmp.lt.s32.totalorder %s18, 0
        %s349 = scalar_select %p348, %s18, 0
        %s350 = smul.addr %s349, 2
        %s351 = smul.addr %s350, 4
        %s352 = scalar_lea.vmem %s0, %s351
        %p353 = pneg %p47
        %p354 = pneg %p44
        %s355 = sand.u32 %s60, 1
        %s356 = sand.u32 %s60, 1
        %s357 = smul.addr %s356, 128
        %s358 = scalar_lea.vmem [#allocation2], %s357
        %p359 = pneg %p73
        %p360 = pneg %p70
        %p361 = scmp.lt.s32.totalorder %s19, 2
        %s362 = scalar_select %p361, %s19, 2
        %s363 = scalar_lea.vmem %s2, %s362
        %p364 = pneg %p99
        %p365 = pneg %p96
        %p366 = pneg %p127
        %p367 = pneg %p124
        %p368 = scmp.lt.s32.totalorder %s18, 0
        %s369 = scalar_select %p368, %s18, 0
        %p370 = scmp.lt.s32.totalorder %s19, 2
        %s371 = scalar_select %p370, %s19, 2
        %s372 = smul.addr %s369, 3
        %s373 = sadd.s32 %s371, %s372
        %s374 = smul.addr %s373, 4
        %s375 = scalar_lea.vmem %s3, %s374
        %p376 = scmp.lt.s32.totalorder %s18, 0
        %s377 = scalar_select %p376, %s18, 0
        %s378 = smul.addr %s377, 2
        %s379 = smul.addr %s378, 4
        %s380 = scalar_lea.vmem %s0, %s379
        %p381 = scmp.lt.s32.totalorder %s19, 2
        %s382 = scalar_select %p381, %s19, 2
        %s383 = scalar_lea.vmem %s2, %s382
        %p384 = scmp.lt.s32.totalorder %s18, 0
        %s385 = scalar_select %p384, %s18, 0
        %p386 = scmp.lt.s32.totalorder %s19, 2
        %s387 = scalar_select %p386, %s19, 2
        %s388 = smul.addr %s385, 3
        %s389 = sadd.s32 %s387, %s388
        %s390 = smul.addr %s389, 4
        %s391 = scalar_lea.vmem %s3, %s390
        %v392 = vld [vmem:[%s380] sm:$0xff]
        %v393 = vld [vmem:[%s344] sm:$0xf]
        %v394 = vld [vmem:[%s344 + $0x4] sm:$0xf]
        %v395 = vld [vmem:[%s344 + $0x8] sm:$0xf]
        %v396 = vld [vmem:[%s344 + $0xc] sm:$0xf]
        %v397 = vld [vmem:[%s344 + $0x10] sm:$0xf]
        %v398 = vld [vmem:[%s344 + $0x14] sm:$0xf]
        %v399 = vld [vmem:[%s344 + $0x18] sm:$0xf]
        %v400 = vld [vmem:[%s344 + $0x1c] sm:$0xf]
        %v401 = vld [vmem:[%s344 + $0x20] sm:$0xf]
        %v402 = vld [vmem:[%s344 + $0x24] sm:$0xf]
        %v403 = vld [vmem:[%s344 + $0x28] sm:$0xf]
        %v404 = vld [vmem:[%s344 + $0x2c] sm:$0xf]
        %v405 = vld [vmem:[%s344 + $0x30] sm:$0xf]
        %v406 = vld [vmem:[%s344 + $0x34] sm:$0xf]
        %v407 = vld [vmem:[%s344 + $0x38] sm:$0xf]
        %v408 = vld [vmem:[%s344 + $0x3c] sm:$0xf]
        %v409 = vld [vmem:[%s344 + $0x40] sm:$0xf]
        %v410 = vld [vmem:[%s344 + $0x44] sm:$0xf]
        %v411 = vld [vmem:[%s344 + $0x48] sm:$0xf]
        %v412 = vld [vmem:[%s344 + $0x4c] sm:$0xf]
        %v413 = vld [vmem:[%s344 + $0x50] sm:$0xf]
        %v414 = vld [vmem:[%s344 + $0x54] sm:$0xf]
        %v415 = vld [vmem:[%s344 + $0x58] sm:$0xf]
        %v416 = vld [vmem:[%s344 + $0x5c] sm:$0xf]
        %v417 = vld [vmem:[%s344 + $0x60] sm:$0xf]
        %v418 = vld [vmem:[%s344 + $0x64] sm:$0xf]
        %v419 = vld [vmem:[%s344 + $0x68] sm:$0xf]
        %v420 = vld [vmem:[%s344 + $0x6c] sm:$0xf]
        %v421 = vld [vmem:[%s344 + $0x70] sm:$0xf]
        %v422 = vld [vmem:[%s344 + $0x74] sm:$0xf]
        %v423 = vld [vmem:[%s344 + $0x78] sm:$0xf]
        %v424 = vld [vmem:[%s344 + $0x7c] sm:$0xf]
        %v425 = vld [vmem:[%s383] sm:$0x1]
        %v427 = vperm.slane %v425, 0
        %v430 = vunpack.c.l.b16 %v392
        %v431 = vunpack.c.h.b16 %v392
        %v432 = vpack.c.b16 %v430, %v430
        %v433 = vpack.c.b16 %v431, %v431
        %v468 = vunpack.c.l.b16 %v393
        %v469 = vunpack.c.l.b16 %v394
        %v470 = vunpack.c.l.b16 %v395
        %v471 = vunpack.c.l.b16 %v396
        %v472 = vunpack.c.l.b16 %v397
        %v473 = vunpack.c.l.b16 %v398
        %v474 = vunpack.c.l.b16 %v399
        %v475 = vunpack.c.l.b16 %v400
        %v476 = vunpack.c.l.b16 %v401
        %v477 = vunpack.c.l.b16 %v402
        %v478 = vunpack.c.l.b16 %v403
        %v479 = vunpack.c.l.b16 %v404
        %v480 = vunpack.c.l.b16 %v405
        %v481 = vunpack.c.l.b16 %v406
        %v482 = vunpack.c.l.b16 %v407
        %v483 = vunpack.c.l.b16 %v408
        %v484 = vunpack.c.l.b16 %v409
        %v485 = vunpack.c.l.b16 %v410
        %v486 = vunpack.c.l.b16 %v411
        %v487 = vunpack.c.l.b16 %v412
        %v488 = vunpack.c.l.b16 %v413
        %v489 = vunpack.c.l.b16 %v414
        %v490 = vunpack.c.l.b16 %v415
        %v491 = vunpack.c.l.b16 %v416
        %v492 = vunpack.c.l.b16 %v417
        %v493 = vunpack.c.l.b16 %v418
        %v494 = vunpack.c.l.b16 %v419
        %v495 = vunpack.c.l.b16 %v420
        %v496 = vunpack.c.l.b16 %v421
        %v497 = vunpack.c.l.b16 %v422
        %v498 = vunpack.c.l.b16 %v423
        %v499 = vunpack.c.l.b16 %v424
        %v500 = vpack.c.b16 %v469, %v468
        %v501 = vpack.c.b16 %v471, %v470
        %v502 = vpack.c.b16 %v473, %v472
        %v503 = vpack.c.b16 %v475, %v474
        %v504 = vpack.c.b16 %v477, %v476
        %v505 = vpack.c.b16 %v479, %v478
        %v506 = vpack.c.b16 %v481, %v480
        %v507 = vpack.c.b16 %v483, %v482
        %v508 = vpack.c.b16 %v485, %v484
        %v509 = vpack.c.b16 %v487, %v486
        %v510 = vpack.c.b16 %v489, %v488
        %v511 = vpack.c.b16 %v491, %v490
        %v512 = vpack.c.b16 %v493, %v492
        %v513 = vpack.c.b16 %v495, %v494
        %v514 = vpack.c.b16 %v497, %v496
        %v515 = vpack.c.b16 %v499, %v498
        %532 = vmatpush.bf16.msra.mxu0 %v507
        %533 = vmatpush.bf16.msra.mxu0 %v506
        %534 = vmatpush.bf16.msra.mxu0 %v505
        %535 = vmatpush.bf16.msra.mxu0 %v504
        %536 = vmatpush.bf16.msra.mxu0 %v503
        %537 = vmatpush.bf16.msra.mxu0 %v502
        %538 = vmatpush.bf16.msra.mxu0 %v501
        %539 = vmatpush.bf16.msra.mxu0 %v500
        %540 = vmatmul.bf16.gmra.mxu0 %v432
        %v541 = vpop.f32.mrf.mxu0
        %v542 = vadd.f32 %v427, %v541
        %v543 = vpop.f32.mrf.mxu0
        %544 = vdwg.mxu0
        %545 = vmatpush.bf16.msra.mxu0 %v515
        %546 = vmatpush.bf16.msra.mxu0 %v514
        %547 = vmatpush.bf16.msra.mxu0 %v513
        %548 = vmatpush.bf16.msra.mxu0 %v512
        %549 = vmatpush.bf16.msra.mxu0 %v511
        %550 = vmatpush.bf16.msra.mxu0 %v510
        %551 = vmatpush.bf16.msra.mxu0 %v509
        %552 = vmatpush.bf16.msra.mxu0 %v508
        %553 = vmatmul.bf16.gmra.mxu0 %v433
        %v554 = vpop.f32.mrf.mxu0
        %v555 = vadd.f32 %v542, %v554
        %v556 = vpop.f32.mrf.mxu0
        %557 = vdwg.mxu0
        %v558 = vpack.c.bf16 %v555, %v555
        %559 = vst [vmem:[%s391] sm:$0xf] %v558
        %p560 = scmp.lt.s32.totalorder %s18, 0
        %s561 = scalar_select %p560, %s18, 0
        %p562 = scmp.lt.s32.totalorder %s19, 2
        %s563 = scalar_select %p562, %s19, 2
        %s564 = smul.addr %s561, 3
        %s565 = sadd.s32 %s563, %s564
        %s566 = smul.addr %s565, 4
        %s567 = scalar_lea.vmem %s3, %s566
        // Predicated region
        $region74: #{sardinet_forward.17} parent=68 // pred_check
          %p568 = pneg %p124
        $region75: #{sardinet_forward.17} parent=68 // pred_check_branch
          %570 = sbr.rel (%p568) target = $region77
        $region76: #{sardinet_forward.17} parent=68 // pred_region
          _
        $region77: #{sardinet_forward.17} parent=68 // pred_fallthru
          _
      $region69: #{sardinet_forward.17} parent=5 // pred_fallthru
        _
      %p571 = scmp.le.s32.totalorder 2, %s9
      // Predicated region
      $region78: #{sardinet_forward.17} parent=5 // pred_check
        %p572 = pneg %p571
      $region79: #{sardinet_forward.17} parent=5 // pred_check_branch
        %574 = sbr.rel (%p572) target = $region81
      $region80: #{sardinet_forward.17} parent=5 // pred_region
        %s575 = ssub.s32 %s9, 2
        // Predicated region
        $region82: #{sardinet_forward.17} parent=80 // pred_check
          %p576 = pneg %p130
        $region83: #{sardinet_forward.17} parent=80 // pred_check_branch
          %578 = sbr.rel (%p576) target = $region85
        $region84: #{sardinet_forward.17} parent=80 // pred_region
          %p579 = scmp.lt.s32.totalorder %s20, 0
          %s580 = scalar_select %p579, %s20, 0
          %p581 = scmp.lt.s32.totalorder %s21, 2
          %s582 = scalar_select %p581, %s21, 2
          %s583 = smul.addr %s580, 3
          %s584 = sadd.s32 %s582, %s583
          %s585 = smul.addr %s584, 4
          %s586 = scalar_lea.vmem %s3, %s585
        $region85: #{sardinet_forward.17} parent=80 // pred_fallthru
          _
      $region81: #{sardinet_forward.17} parent=5 // pred_fallthru
        _
    $region6: #{sardinet_forward.17} parent=1 // loop_footer
      %s13 = sadd.s32 1, %s9
    $region7: #{sardinet_forward.17} parent=1 // loop_footer_branch
      %8 = sbr.rel target = $region3
    $region8: #{sardinet_forward.17} parent=1 // loop_exit
      _

// kernel: sardinet_forward.19
$region0: #{sardinet_forward.19}
  #allocation0 [shape = 'u32[]', space=smem, size = 0x4, offset = 0x4, fixed_abs, tag = 'smem constant byte address 0x4 - core index']
  #allocation1 [shape = 'u32[72,128]{1,0:T(1,128)}', space=vmem, size = 0x9000, scoped, tag = 'internal scratch']
  %s0 = inlined_call_operand.vmem [shape: bf16[32,384], index: 0, kind: input, shape index: {}]
  %s1 = inlined_call_operand.vmem [shape: bf16[384,256], index: 1, kind: input, shape index: {}]
  %s2 = inlined_call_operand.vmem [shape: f32[1,256], index: 2, kind: input, shape index: {}]
  %s3 = inlined_call_operand.vmem [shape: bf16[32,256], index: 3, kind: output, shape index: {}]
  %s4 = sld [smem:[#allocation0]]
  $region123: #{sardinet_forward.19} parent=0
    _
  %s6 = ssub.s32 1, %s4
  %s7 = scalar_select 0, %s6, %s4
  $region1: #{sardinet_forward.19} parent=0
    #allocation2 [shape = 'u8[196608]{0}', space=vmem, size = 0x30000, scoped, tag = 'input window, operand 1']
    #allocation3 [shape = 'u8[16384]{0}', space=vmem, size = 0x4000, scoped, tag = 'output window, operand 0']
    loop: start=0, step=1, limit=4
    $region2: #{sardinet_forward.19} parent=1 // loop_pre_header
      _
    $region3: #{sardinet_forward.19} parent=1 // loop_header
      %s9 = sphi 0, %s13
      %p10 = scmp.ge.s32.totalorder %s9, 4
      %s16 = sphi 0, %s28
      %s17 = sphi 0, %s24
      %s18 = sphi 0, %s16
      %s19 = sphi 0, %s17
      %s20 = sphi 0, %s18
      %s21 = sphi 0, %s19
      %s31 = sphi 0, %s33
      %s34 = sphi 0, %s31
      %s35 = sphi 0, %s34
      %s51 = sphi 0, %s35
      %s57 = sphi 0, %s59
      %s60 = sphi 0, %s57
      %s61 = sphi 0, %s60
      %s77 = sphi 0, %s61
      %s83 = sphi 0, %s85
      %s86 = sphi 0, %s83
      %s87 = sphi 0, %s86
      %s103 = sphi 0, %s87
      %s111 = sphi 0, %s113
      %s114 = sphi 0, %s111
      %s115 = sphi 0, %s114
      %s131 = sphi 0, %s115
    $region4: #{sardinet_forward.19} parent=1 // loop_header_branch
      %12 = sbr.rel (%p10) target = $region8
    $region5: #{sardinet_forward.19} parent=1 // loop_body
      %s14 = ssub.s32 %s9, 1
      %s15 = ssub.s32 %s9, 2
      %s22 = sadd.s32 1, %s17
      %p23 = scmp.ge.s32.totalorder %s22, 2
      %s24 = scalar_select %p23, 0, %s22
      %s25 = sadd.s32 1, %s16
      %s26 = scalar_select %p23, %s25, %s16
      %p27 = scmp.ge.s32.totalorder %s26, 1
      %s28 = scalar_select %p27, 0, %s26
      %s29 = ssub.s32 %s16, %s28
      %p30 = scmp.eq.s32.totalorder %s29, 0
      %s32 = sadd.s32 %s31, 1
      %s33 = scalar_select %p30, %s31, %s32
      %p36 = pneg %p30
      %p37 = scmp.eq.s32.totalorder %s9, 1
      %p38 = por %p36, %p37
      %p39 = scmp.ne.s32.totalorder %s31, %s34
      %p40 = scmp.eq.s32.totalorder %s9, 0
      %p41 = por %p39, %p40
      %p42 = scmp.ne.s32.totalorder %s31, %s34
      %p43 = scmp.eq.s32.totalorder %s14, 1
      %p44 = por %p42, %p43
      %p45 = scmp.ne.s32.totalorder %s34, %s35
      %p46 = scmp.eq.s32.totalorder %s14, 0
      %p47 = por %p45, %p46
      %p48 = scmp.ne.s32.totalorder %s34, %s35
      %p49 = scmp.eq.s32.totalorder %s15, 1
      %p50 = por %p48, %p49
      %p52 = scmp.ne.s32.totalorder %s35, %s51
      %p53 = scmp.eq.s32.totalorder %s15, 0
      %p54 = por %p52, %p53
      %s55 = ssub.s32 %s17, %s24
      %p56 = scmp.eq.s32.totalorder %s55, 0
      %s58 = sadd.s32 %s57, 1
      %s59 = scalar_select %p56, %s57, %s58
      %p62 = pneg %p56
      %p63 = scmp.eq.s32.totalorder %s9, 1
      %p64 = por %p62, %p63
      %p65 = scmp.ne.s32.totalorder %s57, %s60
      %p66 = scmp.eq.s32.totalorder %s9, 0
      %p67 = por %p65, %p66
      %p68 = scmp.ne.s32.totalorder %s57, %s60
      %p69 = scmp.eq.s32.totalorder %s14, 1
      %p70 = por %p68, %p69
      %p71 = scmp.ne.s32.totalorder %s60, %s61
      %p72 = scmp.eq.s32.totalorder %s14, 0
      %p73 = por %p71, %p72
      %p74 = scmp.ne.s32.totalorder %s60, %s61
      %p75 = scmp.eq.s32.totalorder %s15, 1
      %p76 = por %p74, %p75
      %p78 = scmp.ne.s32.totalorder %s61, %s77
      %p79 = scmp.eq.s32.totalorder %s15, 0
      %p80 = por %p78, %p79
      %s81 = ssub.s32 %s17, %s24
      %p82 = scmp.eq.s32.totalorder %s81, 0
      %s84 = sadd.s32 %s83, 1
      %s85 = scalar_select %p82, %s83, %s84
      %p88 = pneg %p82
      %p89 = scmp.eq.s32.totalorder %s9, 1
      %p90 = por %p88, %p89
      %p91 = scmp.ne.s32.totalorder %s83, %s86
      %p92 = scmp.eq.s32.totalorder %s9, 0
      %p93 = por %p91, %p92
      %p94 = scmp.ne.s32.totalorder %s83, %s86
      %p95 = scmp.eq.s32.totalorder %s14, 1
      %p96 = por %p94, %p95
      %p97 = scmp.ne.s32.totalorder %s86, %s87
      %p98 = scmp.eq.s32.totalorder %s14, 0
      %p99 = por %p97, %p98
      %p100 = scmp.ne.s32.totalorder %s86, %s87
      %p101 = scmp.eq.s32.totalorder %s15, 1
      %p102 = por %p100, %p101
      %p104 = scmp.ne.s32.totalorder %s87, %s103
      %p105 = scmp.eq.s32.totalorder %s15, 0
      %p106 = por %p104, %p105
      %s107 = ssub.s32 %s16, %s28
      %s108 = ssub.s32 %s17, %s24
      %s109 = sor.u32 %s107, %s108
      %p110 = scmp.eq.s32.totalorder %s109, 0
      %s112 = sadd.s32 %s111, 1
      %s113 = scalar_select %p110, %s111, %s112
      %p116 = pneg %p110
      %p117 = scmp.eq.s32.totalorder %s9, 1
      %p118 = por %p116, %p117
      %p119 = scmp.ne.s32.totalorder %s111, %s114
      %p120 = scmp.eq.s32.totalorder %s9, 0
      %p121 = por %p119, %p120
      %p122 = scmp.ne.s32.totalorder %s111, %s114
      %p123 = scmp.eq.s32.totalorder %s14, 1
      %p124 = por %p122, %p123
      %p125 = scmp.ne.s32.totalorder %s114, %s115
      %p126 = scmp.eq.s32.totalorder %s14, 0
      %p127 = por %p125, %p126
      %p128 = scmp.ne.s32.totalorder %s114, %s115
      %p129 = scmp.eq.s32.totalorder %s15, 1
      %p130 = por %p128, %p129
      %p132 = scmp.ne.s32.totalorder %s115, %s131
      %p133 = scmp.eq.s32.totalorder %s15, 0
      %p134 = por %p132, %p133
      %p135 = scmp.le.s32.totalorder 1, %s9
      %p136 = scmp.lt.s32.totalorder %s9, 3
      %p137 = pnand %p135, %p136
      %p138 = pneg %p137
      // Predicated region
      $region9: #{sardinet_forward.19} parent=5 // pred_check
        _
      $region10: #{sardinet_forward.19} parent=5 // pred_check_branch
        %140 = sbr.rel (%p137) target = $region12
      $region11: #{sardinet_forward.19} parent=5 // pred_region
        %s141 = ssub.s32 %s9, 1
        // Predicated region
        $region13: #{sardinet_forward.19} parent=11 // pred_check
          %p142 = pneg %p47
        $region14: #{sardinet_forward.19} parent=11 // pred_check_branch
          %144 = sbr.rel (%p142) target = $region16
        $region15: #{sardinet_forward.19} parent=11 // pred_region
          %s145 = smul.u32 4, %s18
          %p146 = scmp.lt.s32.totalorder %s145, 3
          %s147 = scalar_select %p146, %s145, 3
          %s148 = smul.addr %s147, 3
          %s149 = smul.addr %s148, 4
          %s150 = scalar_lea.vmem %s0, %s149
          %s151 = smul.u32 4, %s18
        $region16: #{sardinet_forward.19} parent=11 // pred_fallthru
          _
      $region12: #{sardinet_forward.19} parent=5 // pred_fallthru
        _
      %p152 = scmp.lt.s32.totalorder %s9, 2
      // Predicated region
      $region17: #{sardinet_forward.19} parent=5 // pred_check
        %p153 = pneg %p152
      $region18: #{sardinet_forward.19} parent=5 // pred_check_branch
        %155 = sbr.rel (%p153) target = $region20
      $region19: #{sardinet_forward.19} parent=5 // pred_region
        // Predicated region
        $region21: #{sardinet_forward.19} parent=19 // pred_check
          %p156 = pneg %p67
        $region22: #{sardinet_forward.19} parent=19 // pred_check_branch
          %158 = sbr.rel (%p156) target = $region24
        $region23: #{sardinet_forward.19} parent=19 // pred_region
          %s159 = sand.u32 %s57, 1
          %s160 = sand.u32 %s57, 1
          %s161 = smul.addr %s160, 192
          %s162 = scalar_lea.vmem [#allocation2], %s161
          %s163 = smul.addr %s17, 4
          %s164 = scalar_lea.vmem %s1, %s163
          // Predicated region
          $region25: #{sardinet_forward.19} parent=23 // pred_check
            _
          $region26: #{sardinet_forward.19} parent=23 // pred_check_branch
            %166 = sbr.rel (0) target = $region28
          $region27: #{sardinet_forward.19} parent=23 // pred_region
            // Predicated region
            $region29: #{sardinet_forward.19} parent=27 // pred_check
              _
            $region30: #{sardinet_forward.19} parent=27 // pred_check_branch
              %168 = sbr.rel target = $region32
            $region31: #{sardinet_forward.19} parent=27 // pred_region
              // Predicated region
              $region44: #{sardinet_forward.19} parent=31 // pred_check
                _
              $region45: #{sardinet_forward.19} parent=31 // pred_check_branch
                %278 = sbr.rel (0) target = $region47
              $region46: #{sardinet_forward.19} parent=31 // pred_region
                loop: start=0, step=1, limit=1
                $region48: #{sardinet_forward.19} parent=46 // loop_pre_header
                  _
                $region49: #{sardinet_forward.19} parent=46 // loop_header
                  %s280 = sphi 0, %s284
                  %p281 = scmp.ge.s32.totalorder %s280, 1
                  %s285 = sphi %s164, %s164
                  %s286 = sphi %s162, %s162
                $region50: #{sardinet_forward.19} parent=46 // loop_header_branch
                  %283 = sbr.rel (%p281) target = $region54
                $region51: #{sardinet_forward.19} parent=46 // loop_body
                  _
                $region52: #{sardinet_forward.19} parent=46 // loop_footer
                  %s284 = sadd.s32 1, %s280
                $region53: #{sardinet_forward.19} parent=46 // loop_footer_branch
                  %279 = sbr.rel target = $region49
                $region54: #{sardinet_forward.19} parent=46 // loop_exit
                  _
                %s288 = ssub.s32 16, 1
                loop: start=0, step=1, limit=1
                $region55: #{sardinet_forward.19} parent=46 // loop_pre_header
                  _
                $region56: #{sardinet_forward.19} parent=46 // loop_header
                  %s290 = sphi 0, %s294
                  %p291 = scmp.ge.s32.totalorder %s290, 1
                  %s295 = sphi %s164, %s164
                  %s296 = sphi %s162, %s162
                $region57: #{sardinet_forward.19} parent=46 // loop_header_branch
                  %293 = sbr.rel (%p291) target = $region61
                $region58: #{sardinet_forward.19} parent=46 // loop_body
                  %v297 = vld [vmem:[%s295] sm:%s288]
                  %298 = vst [vmem:[%s296] sm:%s288] %v297
                  %v299 = vld [vmem:[%s295 + $0x8] sm:%s288]
                  %300 = vst [vmem:[%s296 + $0x4] sm:%s288] %v299
                  %v301 = vld [vmem:[%s295 + $0x10] sm:%s288]
                  %302 = vst [vmem:[%s296 + $0x8] sm:%s288] %v301
                  %v303 = vld [vmem:[%s295 + $0x18] sm:%s288]
                  %304 = vst [vmem:[%s296 + $0xc] sm:%s288] %v303
                  %v305 = vld [vmem:[%s295 + $0x20] sm:%s288]
                  %306 = vst [vmem:[%s296 + $0x10] sm:%s288] %v305
                  %v307 = vld [vmem:[%s295 + $0x28] sm:%s288]
                  %308 = vst [vmem:[%s296 + $0x14] sm:%s288] %v307
                  %v309 = vld [vmem:[%s295 + $0x30] sm:%s288]
                  %310 = vst [vmem:[%s296 + $0x18] sm:%s288] %v309
                  %v311 = vld [vmem:[%s295 + $0x38] sm:%s288]
                  %312 = vst [vmem:[%s296 + $0x1c] sm:%s288] %v311
                  %v313 = vld [vmem:[%s295 + $0x40] sm:%s288]
                  %314 = vst [vmem:[%s296 + $0x20] sm:%s288] %v313
                  %v315 = vld [vmem:[%s295 + $0x48] sm:%s288]
                  %316 = vst [vmem:[%s296 + $0x24] sm:%s288] %v315
                  %v317 = vld [vmem:[%s295 + $0x50] sm:%s288]
                  %318 = vst [vmem:[%s296 + $0x28] sm:%s288] %v317
                  %v319 = vld [vmem:[%s295 + $0x58] sm:%s288]
                  %320 = vst [vmem:[%s296 + $0x2c] sm:%s288] %v319
                  %v321 = vld [vmem:[%s295 + $0x60] sm:%s288]
                  %322 = vst [vmem:[%s296 + $0x30] sm:%s288] %v321
                  %v323 = vld [vmem:[%s295 + $0x68] sm:%s288]
                  %324 = vst [vmem:[%s296 + $0x34] sm:%s288] %v323
                  %v325 = vld [vmem:[%s295 + $0x70] sm:%s288]
                  %326 = vst [vmem:[%s296 + $0x38] sm:%s288] %v325
                  %v327 = vld [vmem:[%s295 + $0x78] sm:%s288]
                  %328 = vst [vmem:[%s296 + $0x3c] sm:%s288] %v327
                  %v329 = vld [vmem:[%s295 + $0x80] sm:%s288]
                  %330 = vst [vmem:[%s296 + $0x40] sm:%s288] %v329
                  %v331 = vld [vmem:[%s295 + $0x88] sm:%s288]
                  %332 = vst [vmem:[%s296 + $0x44] sm:%s288] %v331
                  %v333 = vld [vmem:[%s295 + $0x90] sm:%s288]
                  %334 = vst [vmem:[%s296 + $0x48] sm:%s288] %v333
                  %v335 = vld [vmem:[%s295 + $0x98] sm:%s288]
                  %336 = vst [vmem:[%s296 + $0x4c] sm:%s288] %v335
                  %v337 = vld [vmem:[%s295 + $0xa0] sm:%s288]
                  %338 = vst [vmem:[%s296 + $0x50] sm:%s288] %v337
                  %v339 = vld [vmem:[%s295 + $0xa8] sm:%s288]
                  %340 = vst [vmem:[%s296 + $0x54] sm:%s288] %v339
                  %v341 = vld [vmem:[%s295 + $0xb0] sm:%s288]
                  %342 = vst [vmem:[%s296 + $0x58] sm:%s288] %v341
                  %v343 = vld [vmem:[%s295 + $0xb8] sm:%s288]
                  %344 = vst [vmem:[%s296 + $0x5c] sm:%s288] %v343
                  %v345 = vld [vmem:[%s295 + $0xc0] sm:%s288]
                  %346 = vst [vmem:[%s296 + $0x60] sm:%s288] %v345
                  %v347 = vld [vmem:[%s295 + $0xc8] sm:%s288]
                  %348 = vst [vmem:[%s296 + $0x64] sm:%s288] %v347
                  %v349 = vld [vmem:[%s295 + $0xd0] sm:%s288]
                  %350 = vst [vmem:[%s296 + $0x68] sm:%s288] %v349
                  %v351 = vld [vmem:[%s295 + $0xd8] sm:%s288]
                  %352 = vst [vmem:[%s296 + $0x6c] sm:%s288] %v351
                  %v353 = vld [vmem:[%s295 + $0xe0] sm:%s288]
                  %354 = vst [vmem:[%s296 + $0x70] sm:%s288] %v353
                  %v355 = vld [vmem:[%s295 + $0xe8] sm:%s288]
                  %356 = vst [vmem:[%s296 + $0x74] sm:%s288] %v355
                  %v357 = vld [vmem:[%s295 + $0xf0] sm:%s288]
                  %358 = vst [vmem:[%s296 + $0x78] sm:%s288] %v357
                  %v359 = vld [vmem:[%s295 + $0xf8] sm:%s288]
                  %360 = vst [vmem:[%s296 + $0x7c] sm:%s288] %v359
                  %v361 = vld [vmem:[%s295 + $0x100] sm:%s288]
                  %362 = vst [vmem:[%s296 + $0x80] sm:%s288] %v361
                  %v363 = vld [vmem:[%s295 + $0x108] sm:%s288]
                  %364 = vst [vmem:[%s296 + $0x84] sm:%s288] %v363
                  %v365 = vld [vmem:[%s295 + $0x110] sm:%s288]
                  %366 = vst [vmem:[%s296 + $0x88] sm:%s288] %v365
                  %v367 = vld [vmem:[%s295 + $0x118] sm:%s288]
                  %368 = vst [vmem:[%s296 + $0x8c] sm:%s288] %v367
                  %v369 = vld [vmem:[%s295 + $0x120] sm:%s288]
                  %370 = vst [vmem:[%s296 + $0x90] sm:%s288] %v369
                  %v371 = vld [vmem:[%s295 + $0x128] sm:%s288]
                  %372 = vst [vmem:[%s296 + $0x94] sm:%s288] %v371
                  %v373 = vld [vmem:[%s295 + $0x130] sm:%s288]
                  %374 = vst [vmem:[%s296 + $0x98] sm:%s288] %v373
                  %v375 = vld [vmem:[%s295 + $0x138] sm:%s288]
                  %376 = vst [vmem:[%s296 + $0x9c] sm:%s288] %v375
                  %v377 = vld [vmem:[%s295 + $0x140] sm:%s288]
                  %378 = vst [vmem:[%s296 + $0xa0] sm:%s288] %v377
                  %v379 = vld [vmem:[%s295 + $0x148] sm:%s288]
                  %380 = vst [vmem:[%s296 + $0xa4] sm:%s288] %v379
                  %v381 = vld [vmem:[%s295 + $0x150] sm:%s288]
                  %382 = vst [vmem:[%s296 + $0xa8] sm:%s288] %v381
                  %v383 = vld [vmem:[%s295 + $0x158] sm:%s288]
                  %384 = vst [vmem:[%s296 + $0xac] sm:%s288] %v383
                  %v385 = vld [vmem:[%s295 + $0x160] sm:%s288]
                  %386 = vst [vmem:[%s296 + $0xb0] sm:%s288] %v385
                  %v387 = vld [vmem:[%s295 + $0x168] sm:%s288]
                  %388 = vst [vmem:[%s296 + $0xb4] sm:%s288] %v387
                  %v389 = vld [vmem:[%s295 + $0x170] sm:%s288]
                  %390 = vst [vmem:[%s296 + $0xb8] sm:%s288] %v389
                  %v391 = vld [vmem:[%s295 + $0x178] sm:%s288]
                  %392 = vst [vmem:[%s296 + $0xbc] sm:%s288] %v391
                $region59: #{sardinet_forward.19} parent=46 // loop_footer
                  %s294 = sadd.s32 1, %s290
                $region60: #{sardinet_forward.19} parent=46 // loop_footer_branch
                  %289 = sbr.rel target = $region56
                $region61: #{sardinet_forward.19} parent=46 // loop_exit
                  _
              $region47: #{sardinet_forward.19} parent=31 // pred_fallthru
                _
            $region32: #{sardinet_forward.19} parent=27 // pred_fallthru
              _
            // Predicated region
            $region33: #{sardinet_forward.19} parent=27 // pred_check
              _
            $region34: #{sardinet_forward.19} parent=27 // pred_check_branch
              %170 = sbr.rel (0) target = $region36
            $region35: #{sardinet_forward.19} parent=27 // pred_region
              %s172 = ssub.s32 16, 1
              loop: start=0, step=1, limit=1
              $region37: #{sardinet_forward.19} parent=35 // loop_pre_header
                _
              $region38: #{sardinet_forward.19} parent=35 // loop_header
                %s174 = sphi 0, %s178
                %p175 = scmp.ge.s32.totalorder %s174, 1
                %s179 = sphi %s164, %s164
                %s180 = sphi %s162, %s162
              $region39: #{sardinet_forward.19} parent=35 // loop_header_branch
                %177 = sbr.rel (%p175) target = $region43
              $region40: #{sardinet_forward.19} parent=35 // loop_body
                %v181 = vld [vmem:[%s179] sm:%s172]
                %182 = vst [vmem:[%s180] sm:%s172] %v181
                %v183 = vld [vmem:[%s179 + $0x8] sm:%s172]
                %184 = vst [vmem:[%s180 + $0x4] sm:%s172] %v183
                %v185 = vld [vmem:[%s179 + $0x10] sm:%s172]
                %186 = vst [vmem:[%s180 + $0x8] sm:%s172] %v185
                %v187 = vld [vmem:[%s179 + $0x18] sm:%s172]
                %188 = vst [vmem:[%s180 + $0xc] sm:%s172] %v187
                %v189 = vld [vmem:[%s179 + $0x20] sm:%s172]
                %190 = vst [vmem:[%s180 + $0x10] sm:%s172] %v189
                %v191 = vld [vmem:[%s179 + $0x28] sm:%s172]
                %192 = vst [vmem:[%s180 + $0x14] sm:%s172] %v191
                %v193 = vld [vmem:[%s179 + $0x30] sm:%s172]
                %194 = vst [vmem:[%s180 + $0x18] sm:%s172] %v193
                %v195 = vld [vmem:[%s179 + $0x38] sm:%s172]
                %196 = vst [vmem:[%s180 + $0x1c] sm:%s172] %v195
                %v197 = vld [vmem:[%s179 + $0x40] sm:%s172]
                %198 = vst [vmem:[%s180 + $0x20] sm:%s172] %v197
                %v199 = vld [vmem:[%s179 + $0x48] sm:%s172]
                %200 = vst [vmem:[%s180 + $0x24] sm:%s172] %v199
                %v201 = vld [vmem:[%s179 + $0x50] sm:%s172]
                %202 = vst [vmem:[%s180 + $0x28] sm:%s172] %v201
                %v203 = vld [vmem:[%s179 + $0x58] sm:%s172]
                %204 = vst [vmem:[%s180 + $0x2c] sm:%s172] %v203
                %v205 = vld [vmem:[%s179 + $0x60] sm:%s172]
                %206 = vst [vmem:[%s180 + $0x30] sm:%s172] %v205
                %v207 = vld [vmem:[%s179 + $0x68] sm:%s172]
                %208 = vst [vmem:[%s180 + $0x34] sm:%s172] %v207
                %v209 = vld [vmem:[%s179 + $0x70] sm:%s172]
                %210 = vst [vmem:[%s180 + $0x38] sm:%s172] %v209
                %v211 = vld [vmem:[%s179 + $0x78] sm:%s172]
                %212 = vst [vmem:[%s180 + $0x3c] sm:%s172] %v211
                %v213 = vld [vmem:[%s179 + $0x80] sm:%s172]
                %214 = vst [vmem:[%s180 + $0x40] sm:%s172] %v213
                %v215 = vld [vmem:[%s179 + $0x88] sm:%s172]
                %216 = vst [vmem:[%s180 + $0x44] sm:%s172] %v215
                %v217 = vld [vmem:[%s179 + $0x90] sm:%s172]
                %218 = vst [vmem:[%s180 + $0x48] sm:%s172] %v217
                %v219 = vld [vmem:[%s179 + $0x98] sm:%s172]
                %220 = vst [vmem:[%s180 + $0x4c] sm:%s172] %v219
                %v221 = vld [vmem:[%s179 + $0xa0] sm:%s172]
                %222 = vst [vmem:[%s180 + $0x50] sm:%s172] %v221
                %v223 = vld [vmem:[%s179 + $0xa8] sm:%s172]
                %224 = vst [vmem:[%s180 + $0x54] sm:%s172] %v223
                %v225 = vld [vmem:[%s179 + $0xb0] sm:%s172]
                %226 = vst [vmem:[%s180 + $0x58] sm:%s172] %v225
                %v227 = vld [vmem:[%s179 + $0xb8] sm:%s172]
                %228 = vst [vmem:[%s180 + $0x5c] sm:%s172] %v227
                %v229 = vld [vmem:[%s179 + $0xc0] sm:%s172]
                %230 = vst [vmem:[%s180 + $0x60] sm:%s172] %v229
                %v231 = vld [vmem:[%s179 + $0xc8] sm:%s172]
                %232 = vst [vmem:[%s180 + $0x64] sm:%s172] %v231
                %v233 = vld [vmem:[%s179 + $0xd0] sm:%s172]
                %234 = vst [vmem:[%s180 + $0x68] sm:%s172] %v233
                %v235 = vld [vmem:[%s179 + $0xd8] sm:%s172]
                %236 = vst [vmem:[%s180 + $0x6c] sm:%s172] %v235
                %v237 = vld [vmem:[%s179 + $0xe0] sm:%s172]
                %238 = vst [vmem:[%s180 + $0x70] sm:%s172] %v237
                %v239 = vld [vmem:[%s179 + $0xe8] sm:%s172]
                %240 = vst [vmem:[%s180 + $0x74] sm:%s172] %v239
                %v241 = vld [vmem:[%s179 + $0xf0] sm:%s172]
                %242 = vst [vmem:[%s180 + $0x78] sm:%s172] %v241
                %v243 = vld [vmem:[%s179 + $0xf8] sm:%s172]
                %244 = vst [vmem:[%s180 + $0x7c] sm:%s172] %v243
                %v245 = vld [vmem:[%s179 + $0x100] sm:%s172]
                %246 = vst [vmem:[%s180 + $0x80] sm:%s172] %v245
                %v247 = vld [vmem:[%s179 + $0x108] sm:%s172]
                %248 = vst [vmem:[%s180 + $0x84] sm:%s172] %v247
                %v249 = vld [vmem:[%s179 + $0x110] sm:%s172]
                %250 = vst [vmem:[%s180 + $0x88] sm:%s172] %v249
                %v251 = vld [vmem:[%s179 + $0x118] sm:%s172]
                %252 = vst [vmem:[%s180 + $0x8c] sm:%s172] %v251
                %v253 = vld [vmem:[%s179 + $0x120] sm:%s172]
                %254 = vst [vmem:[%s180 + $0x90] sm:%s172] %v253
                %v255 = vld [vmem:[%s179 + $0x128] sm:%s172]
                %256 = vst [vmem:[%s180 + $0x94] sm:%s172] %v255
                %v257 = vld [vmem:[%s179 + $0x130] sm:%s172]
                %258 = vst [vmem:[%s180 + $0x98] sm:%s172] %v257
                %v259 = vld [vmem:[%s179 + $0x138] sm:%s172]
                %260 = vst [vmem:[%s180 + $0x9c] sm:%s172] %v259
                %v261 = vld [vmem:[%s179 + $0x140] sm:%s172]
                %262 = vst [vmem:[%s180 + $0xa0] sm:%s172] %v261
                %v263 = vld [vmem:[%s179 + $0x148] sm:%s172]
                %264 = vst [vmem:[%s180 + $0xa4] sm:%s172] %v263
                %v265 = vld [vmem:[%s179 + $0x150] sm:%s172]
                %266 = vst [vmem:[%s180 + $0xa8] sm:%s172] %v265
                %v267 = vld [vmem:[%s179 + $0x158] sm:%s172]
                %268 = vst [vmem:[%s180 + $0xac] sm:%s172] %v267
                %v269 = vld [vmem:[%s179 + $0x160] sm:%s172]
                %270 = vst [vmem:[%s180 + $0xb0] sm:%s172] %v269
                %v271 = vld [vmem:[%s179 + $0x168] sm:%s172]
                %272 = vst [vmem:[%s180 + $0xb4] sm:%s172] %v271
                %v273 = vld [vmem:[%s179 + $0x170] sm:%s172]
                %274 = vst [vmem:[%s180 + $0xb8] sm:%s172] %v273
                %v275 = vld [vmem:[%s179 + $0x178] sm:%s172]
                %276 = vst [vmem:[%s180 + $0xbc] sm:%s172] %v275
              $region41: #{sardinet_forward.19} parent=35 // loop_footer
                %s178 = sadd.s32 1, %s174
              $region42: #{sardinet_forward.19} parent=35 // loop_footer_branch
                %173 = sbr.rel target = $region38
              $region43: #{sardinet_forward.19} parent=35 // loop_exit
                _
            $region36: #{sardinet_forward.19} parent=27 // pred_fallthru
              _
          $region28: #{sardinet_forward.19} parent=23 // pred_fallthru
            _
          %393 = vnop
        $region24: #{sardinet_forward.19} parent=19 // pred_fallthru
          _
        // Predicated region
        $region62: #{sardinet_forward.19} parent=19 // pred_check
          %p394 = pneg %p93
        $region63: #{sardinet_forward.19} parent=19 // pred_check_branch
          %396 = sbr.rel (%p394) target = $region65
        $region64: #{sardinet_forward.19} parent=19 // pred_region
          %p397 = scmp.lt.s32.totalorder %s17, 1
          %s398 = scalar_select %p397, %s17, 1
          %s399 = scalar_lea.vmem %s2, %s398
        $region65: #{sardinet_forward.19} parent=19 // pred_fallthru
          _
      $region20: #{sardinet_forward.19} parent=5 // pred_fallthru
        _
      %p400 = scmp.le.s32.totalorder 1, %s9
      %p401 = scmp.lt.s32.totalorder %s9, 3
      %p402 = pnand %p400, %p401
      %p403 = pneg %p402
      // Predicated region
      $region66: #{sardinet_forward.19} parent=5 // pred_check
        _
      $region67: #{sardinet_forward.19} parent=5 // pred_check_branch
        %405 = sbr.rel (%p402) target = $region69
      $region68: #{sardinet_forward.19} parent=5 // pred_region
        %s406 = ssub.s32 %s9, 1
        %s407 = sand.u32 %s60, 1
        %s408 = sand.u32 %s60, 1
        %s409 = smul.addr %s408, 192
        %s410 = scalar_lea.vmem [#allocation2], %s409
        // Predicated region
        $region70: #{sardinet_forward.19} parent=68 // pred_check
          %p411 = pneg %p73
        $region71: #{sardinet_forward.19} parent=68 // pred_check_branch
          %413 = sbr.rel (%p411) target = $region73
        $region72: #{sardinet_forward.19} parent=68 // pred_region
          _
        $region73: #{sardinet_forward.19} parent=68 // pred_fallthru
          _
        %s414 = smul.u32 4, %s18
        %p415 = scmp.lt.s32.totalorder %s414, 3
        %s416 = scalar_select %p415, %s414, 3
        %s417 = smul.addr %s416, 3
        %s418 = smul.addr %s417, 4
        %s419 = scalar_lea.vmem %s0, %s418
        %p420 = pneg %p47
        %p421 = pneg %p44
        %s422 = sand.u32 %s60, 1
        %s423 = sand.u32 %s60, 1
        %s424 = smul.addr %s423, 192
        %s425 = scalar_lea.vmem [#allocation2], %s424
        %p426 = pneg %p73
        %p427 = pneg %p70
        %p428 = scmp.lt.s32.totalorder %s19, 1
        %s429 = scalar_select %p428, %s19, 1
        %s430 = scalar_lea.vmem %s2, %s429
        %p431 = pneg %p99
        %p432 = pneg %p96
        %p433 = pneg %p127
        %p434 = pneg %p124
        %s435 = sand.u32 %s114, 1
        %s436 = sand.u32 %s114, 1
        %s437 = smul.addr %s436, 16
        %s438 = scalar_lea.vmem [#allocation3], %s437
        %s439 = smul.u32 4, %s18
        %p440 = scmp.lt.s32.totalorder %s439, 3
        %s441 = scalar_select %p440, %s439, 3
        %s442 = smul.addr %s441, 3
        %s443 = smul.addr %s442, 4
        %s444 = scalar_lea.vmem %s0, %s443
        %s445 = smul.u32 4, %s18
        %p446 = scmp.lt.s32.totalorder %s19, 1
        %s447 = scalar_select %p446, %s19, 1
        %s448 = scalar_lea.vmem %s2, %s447
        %s449 = smul.u32 4, %s18
        %v450 = vld [vmem:[%s444] sm:$0xff]
        %v451 = vld [vmem:[%s444 + $0x8] sm:$0xf]
        %v452 = vld [vmem:[%s444 + $0xc] sm:$0xff]
        %v453 = vld [vmem:[%s444 + $0x14] sm:$0xf]
        %v454 = vld [vmem:[%s444 + $0x18] sm:$0xff]
        %v455 = vld [vmem:[%s444 + $0x20] sm:$0xf]
        %v456 = vld [vmem:[%s444 + $0x24] sm:$0xff]
        %v457 = vld [vmem:[%s444 + $0x2c] sm:$0xf]
        %v458 = vld [vmem:[%s410] sm:$0xf]
        %v459 = vld [vmem:[%s410 + $0x4] sm:$0xf]
        %v460 = vld [vmem:[%s410 + $0x8] sm:$0xf]
        %v461 = vld [vmem:[%s410 + $0xc] sm:$0xf]
        %v462 = vld [vmem:[%s410 + $0x10] sm:$0xf]
        %v463 = vld [vmem:[%s410 + $0x14] sm:$0xf]
        %v464 = vld [vmem:[%s410 + $0x18] sm:$0xf]
        %v465 = vld [vmem:[%s410 + $0x1c] sm:$0xf]
        %v466 = vld [vmem:[%s410 + $0x20] sm:$0xf]
        %v467 = vld [vmem:[%s410 + $0x24] sm:$0xf]
        %v468 = vld [vmem:[%s410 + $0x28] sm:$0xf]
        %v469 = vld [vmem:[%s410 + $0x2c] sm:$0xf]
        %v470 = vld [vmem:[%s410 + $0x30] sm:$0xf]
        %v471 = vld [vmem:[%s410 + $0x34] sm:$0xf]
        %v472 = vld [vmem:[%s410 + $0x38] sm:$0xf]
        %v473 = vld [vmem:[%s410 + $0x3c] sm:$0xf]
        %v474 = vld [vmem:[%s410 + $0x40] sm:$0xf]
        %v475 = vld [vmem:[%s410 + $0x44] sm:$0xf]
        %v476 = vld [vmem:[%s410 + $0x48] sm:$0xf]
        %v477 = vld [vmem:[%s410 + $0x4c] sm:$0xf]
        %v478 = vld [vmem:[%s410 + $0x50] sm:$0xf]
        %v479 = vld [vmem:[%s410 + $0x54] sm:$0xf]
        %v480 = vld [vmem:[%s410 + $0x58] sm:$0xf]
        %v481 = vld [vmem:[%s410 + $0x5c] sm:$0xf]
        %v482 = vld [vmem:[%s410 + $0x60] sm:$0xf]
        %v483 = vld [vmem:[%s410 + $0x64] sm:$0xf]
        %v484 = vld [vmem:[%s410 + $0x68] sm:$0xf]
        %v485 = vld [vmem:[%s410 + $0x6c] sm:$0xf]
        %v486 = vld [vmem:[%s410 + $0x70] sm:$0xf]
        %v487 = vld [vmem:[%s410 + $0x74] sm:$0xf]
        %v488 = vld [vmem:[%s410 + $0x78] sm:$0xf]
        %v489 = vld [vmem:[%s410 + $0x7c] sm:$0xf]
        %v490 = vld [vmem:[%s410 + $0x80] sm:$0xf]
        %v491 = vld [vmem:[%s410 + $0x84] sm:$0xf]
        %v492 = vld [vmem:[%s410 + $0x88] sm:$0xf]
        %v493 = vld [vmem:[%s410 + $0x8c] sm:$0xf]
        %v494 = vld [vmem:[%s410 + $0x90] sm:$0xf]
        %v495 = vld [vmem:[%s410 + $0x94] sm:$0xf]
        %v496 = vld [vmem:[%s410 + $0x98] sm:$0xf]
        %v497 = vld [vmem:[%s410 + $0x9c] sm:$0xf]
        %v498 = vld [vmem:[%s410 + $0xa0] sm:$0xf]
        %v499 = vld [vmem:[%s410 + $0xa4] sm:$0xf]
        %v500 = vld [vmem:[%s410 + $0xa8] sm:$0xf]
        %v501 = vld [vmem:[%s410 + $0xac] sm:$0xf]
        %v502 = vld [vmem:[%s410 + $0xb0] sm:$0xf]
        %v503 = vld [vmem:[%s410 + $0xb4] sm:$0xf]
        %v504 = vld [vmem:[%s410 + $0xb8] sm:$0xf]
        %v505 = vld [vmem:[%s410 + $0xbc] sm:$0xf]
        %v506 = vld [vmem:[%s448] sm:$0x1]
        %v508 = vperm.slane %v506, 0
        %v518 = vunpack.c.l.b16 %v450
        %v519 = vunpack.c.h.b16 %v450
        %v520 = vunpack.c.l.b16 %v451
        %v521 = vunpack.c.l.b16 %v452
        %v522 = vunpack.c.h.b16 %v452
        %v523 = vunpack.c.l.b16 %v453
        %v524 = vunpack.c.l.b16 %v454
        %v525 = vunpack.c.h.b16 %v454
        %v526 = vunpack.c.l.b16 %v455
        %v527 = vunpack.c.l.b16 %v456
        %v528 = vunpack.c.h.b16 %v456
        %v529 = vunpack.c.l.b16 %v457
        %v530 = vpack.c.b16 %v521, %v518
        %v531 = vpack.c.b16 %v522, %v519
        %v532 = vpack.c.b16 %v523, %v520
        %v533 = vpack.c.b16 %v527, %v524
        %v534 = vpack.c.b16 %v528, %v525
        %v535 = vpack.c.b16 %v529, %v526
        %v590 = vunpack.c.l.b16 %v458
        %v591 = vunpack.c.l.b16 %v459
        %v592 = vunpack.c.l.b16 %v460
        %v593 = vunpack.c.l.b16 %v461
        %v594 = vunpack.c.l.b16 %v462
        %v595 = vunpack.c.l.b16 %v463
        %v596 = vunpack.c.l.b16 %v464
        %v597 = vunpack.c.l.b16 %v465
        %v598 = vunpack.c.l.b16 %v466
        %v599 = vunpack.c.l.b16 %v467
        %v600 = vunpack.c.l.b16 %v468
        %v601 = vunpack.c.l.b16 %v469
        %v602 = vunpack.c.l.b16 %v470
        %v603 = vunpack.c.l.b16 %v471
        %v604 = vunpack.c.l.b16 %v472
        %v605 = vunpack.c.l.b16 %v473
        %v606 = vunpack.c.l.b16 %v474
        %v607 = vunpack.c.l.b16 %v475
        %v608 = vunpack.c.l.b16 %v476
        %v609 = vunpack.c.l.b16 %v477
        %v610 = vunpack.c.l.b16 %v478
        %v611 = vunpack.c.l.b16 %v479
        %v612 = vunpack.c.l.b16 %v480
        %v613 = vunpack.c.l.b16 %v481
        %v614 = vunpack.c.l.b16 %v482
        %v615 = vunpack.c.l.b16 %v483
        %v616 = vunpack.c.l.b16 %v484
        %v617 = vunpack.c.l.b16 %v485
        %v618 = vunpack.c.l.b16 %v486
        %v619 = vunpack.c.l.b16 %v487
        %v620 = vunpack.c.l.b16 %v488
        %v621 = vunpack.c.l.b16 %v489
        %v622 = vunpack.c.l.b16 %v490
        %v623 = vunpack.c.l.b16 %v491
        %v624 = vunpack.c.l.b16 %v492
        %v625 = vunpack.c.l.b16 %v493
        %v626 = vunpack.c.l.b16 %v494
        %v627 = vunpack.c.l.b16 %v495
        %v628 = vunpack.c.l.b16 %v496
        %v629 = vunpack.c.l.b16 %v497
        %v630 = vunpack.c.l.b16 %v498
        %v631 = vunpack.c.l.b16 %v499
        %v632 = vunpack.c.l.b16 %v500
        %v633 = vunpack.c.l.b16 %v501
        %v634 = vunpack.c.l.b16 %v502
        %v635 = vunpack.c.l.b16 %v503
        %v636 = vunpack.c.l.b16 %v504
        %v637 = vunpack.c.l.b16 %v505
        %v638 = vpack.c.b16 %v591, %v590
        %v639 = vpack.c.b16 %v593, %v592
        %v640 = vpack.c.b16 %v595, %v594
        %v641 = vpack.c.b16 %v597, %v596
        %v642 = vpack.c.b16 %v599, %v598
        %v643 = vpack.c.b16 %v601, %v600
        %v644 = vpack.c.b16 %v603, %v602
        %v645 = vpack.c.b16 %v605, %v604
        %v646 = vpack.c.b16 %v607, %v606
        %v647 = vpack.c.b16 %v609, %v608
        %v648 = vpack.c.b16 %v611, %v610
        %v649 = vpack.c.b16 %v613, %v612
        %v650 = vpack.c.b16 %v615, %v614
        %v651 = vpack.c.b16 %v617, %v616
        %v652 = vpack.c.b16 %v619, %v618
        %v653 = vpack.c.b16 %v621, %v620
        %v654 = vpack.c.b16 %v623, %v622
        %v655 = vpack.c.b16 %v625, %v624
        %v656 = vpack.c.b16 %v627, %v626
        %v657 = vpack.c.b16 %v629, %v628
        %v658 = vpack.c.b16 %v631, %v630
        %v659 = vpack.c.b16 %v633, %v632
        %v660 = vpack.c.b16 %v635, %v634
        %v661 = vpack.c.b16 %v637, %v636
        %686 = vmatpush.bf16.msra.mxu0 %v645
        %687 = vmatpush.bf16.msra.mxu0 %v644
        %688 = vmatpush.bf16.msra.mxu0 %v643
        %689 = vmatpush.bf16.msra.mxu0 %v642
        %690 = vmatpush.bf16.msra.mxu0 %v641
        %691 = vmatpush.bf16.msra.mxu0 %v640
        %692 = vmatpush.bf16.msra.mxu0 %v639
        %693 = vmatpush.bf16.msra.mxu0 %v638
        %694 = vmatmul.bf16.gmra.mxu0 %v530
        %v695 = vpop.f32.mrf.mxu0
        %v696 = vadd.f32 %v508, %v695
        %v697 = vpop.f32.mrf.mxu0
        %v698 = vadd.f32 %v508, %v697
        %699 = vmatmul.bf16.gmra.mxu0 %v533
        %v700 = vpop.f32.mrf.mxu0
        %v701 = vadd.f32 %v508, %v700
        %v702 = vpop.f32.mrf.mxu0
        %v703 = vadd.f32 %v508, %v702
        %704 = vdwg.mxu0
        %705 = vmatpush.bf16.msra.mxu0 %v653
        %706 = vmatpush.bf16.msra.mxu0 %v652
        %707 = vmatpush.bf16.msra.mxu0 %v651
        %708 = vmatpush.bf16.msra.mxu0 %v650
        %709 = vmatpush.bf16.msra.mxu0 %v649
        %710 = vmatpush.bf16.msra.mxu0 %v648
        %711 = vmatpush.bf16.msra.mxu0 %v647
        %712 = vmatpush.bf16.msra.mxu0 %v646
        %713 = vmatmul.bf16.gmra.mxu0 %v531
        %v714 = vpop.f32.mrf.mxu0
        %v715 = vadd.f32 %v696, %v714
        %v716 = vpop.f32.mrf.mxu0
        %v717 = vadd.f32 %v698, %v716
        %718 = vmatmul.bf16.gmra.mxu0 %v534
        %v719 = vpop.f32.mrf.mxu0
        %v720 = vadd.f32 %v701, %v719
        %v721 = vpop.f32.mrf.mxu0
        %v722 = vadd.f32 %v703, %v721
        %723 = vdwg.mxu0
        %724 = vmatpush.bf16.msra.mxu0 %v661
        %725 = vmatpush.bf16.msra.mxu0 %v660
        %726 = vmatpush.bf16.msra.mxu0 %v659
        %727 = vmatpush.bf16.msra.mxu0 %v658
        %728 = vmatpush.bf16.msra.mxu0 %v657
        %729 = vmatpush.bf16.msra.mxu0 %v656
        %730 = vmatpush.bf16.msra.mxu0 %v655
        %731 = vmatpush.bf16.msra.mxu0 %v654
        %732 = vmatmul.bf16.gmra.mxu0 %v532
        %v733 = vpop.f32.mrf.mxu0
        %v734 = vadd.f32 %v715, %v733
        %v735 = vpop.f32.mrf.mxu0
        %v736 = vadd.f32 %v717, %v735
        %737 = vmatmul.bf16.gmra.mxu0 %v535
        %v738 = vpop.f32.mrf.mxu0
        %v739 = vadd.f32 %v720, %v738
        %v740 = vpop.f32.mrf.mxu0
        %v741 = vadd.f32 %v722, %v740
        %742 = vdwg.mxu0
        %v743 = vpack.c.bf16 %v734, %v734
        %v744 = vpack.c.bf16 %v736, %v736
        %v745 = vpack.c.bf16 %v739, %v739
        %v746 = vpack.c.bf16 %v741, %v741
        %747 = vst [vmem:[%s438] sm:$0xf] %v743
        %748 = vst [vmem:[%s438 + $0x4] sm:$0xf] %v744
        %749 = vst [vmem:[%s438 + $0x8] sm:$0xf] %v745
        %750 = vst [vmem:[%s438 + $0xc] sm:$0xf] %v746
        %s751 = sand.u32 %s114, 1
        %s752 = sand.u32 %s114, 1
        %s753 = smul.addr %s752, 16
        %s754 = scalar_lea.vmem [#allocation3], %s753
        // Predicated region
        $region74: #{sardinet_forward.19} parent=68 // pred_check
          %p755 = pneg %p124
        $region75: #{sardinet_forward.19} parent=68 // pred_check_branch
          %757 = sbr.rel (%p755) target = $region77
        $region76: #{sardinet_forward.19} parent=68 // pred_region
          %s758 = smul.u32 4, %s18
          %s759 = smul.addr %s758, 2
          %s760 = sadd.s32 %s19, %s759
          %s761 = smul.addr %s760, 4
          %s762 = scalar_lea.vmem %s3, %s761
          // Predicated region
          $region78: #{sardinet_forward.19} parent=76 // pred_check
            _
          $region79: #{sardinet_forward.19} parent=76 // pred_check_branch
            %764 = sbr.rel (0) target = $region81
          $region80: #{sardinet_forward.19} parent=76 // pred_region
            // Predicated region
            $region82: #{sardinet_forward.19} parent=80 // pred_check
              _
            $region83: #{sardinet_forward.19} parent=80 // pred_check_branch
              %766 = sbr.rel target = $region85
            $region84: #{sardinet_forward.19} parent=80 // pred_region
              // Predicated region
              $region97: #{sardinet_forward.19} parent=84 // pred_check
                _
              $region98: #{sardinet_forward.19} parent=84 // pred_check_branch
                %788 = sbr.rel (0) target = $region100
              $region99: #{sardinet_forward.19} parent=84 // pred_region
                loop: start=0, step=1, limit=1
                $region101: #{sardinet_forward.19} parent=99 // loop_pre_header
                  _
                $region102: #{sardinet_forward.19} parent=99 // loop_header
                  %s790 = sphi 0, %s794
                  %p791 = scmp.ge.s32.totalorder %s790, 1
                  %s795 = sphi %s754, %s754
                  %s796 = sphi %s762, %s762
                $region103: #{sardinet_forward.19} parent=99 // loop_header_branch
                  %793 = sbr.rel (%p791) target = $region107
                $region104: #{sardinet_forward.19} parent=99 // loop_body
                  _
                $region105: #{sardinet_forward.19} parent=99 // loop_footer
                  %s794 = sadd.s32 1, %s790
                $region106: #{sardinet_forward.19} parent=99 // loop_footer_branch
                  %789 = sbr.rel target = $region102
                $region107: #{sardinet_forward.19} parent=99 // loop_exit
                  _
                %s798 = ssub.s32 16, 1
                loop: start=0, step=1, limit=1
                $region108: #{sardinet_forward.19} parent=99 // loop_pre_header
                  _
                $region109: #{sardinet_forward.19} parent=99 // loop_header
                  %s800 = sphi 0, %s804
                  %p801 = scmp.ge.s32.totalorder %s800, 1
                  %s805 = sphi %s754, %s754
                  %s806 = sphi %s762, %s762
                $region110: #{sardinet_forward.19} parent=99 // loop_header_branch
                  %803 = sbr.rel (%p801) target = $region114
                $region111: #{sardinet_forward.19} parent=99 // loop_body
                  %v807 = vld [vmem:[%s805] sm:%s798]
                  %808 = vst [vmem:[%s806] sm:%s798] %v807
                  %v809 = vld [vmem:[%s805 + $0x4] sm:%s798]
                  %810 = vst [vmem:[%s806 + $0x8] sm:%s798] %v809
                  %v811 = vld [vmem:[%s805 + $0x8] sm:%s798]
                  %812 = vst [vmem:[%s806 + $0x10] sm:%s798] %v811
                  %v813 = vld [vmem:[%s805 + $0xc] sm:%s798]
                  %814 = vst [vmem:[%s806 + $0x18] sm:%s798] %v813
                $region112: #{sardinet_forward.19} parent=99 // loop_footer
                  %s804 = sadd.s32 1, %s800
                $region113: #{sardinet_forward.19} parent=99 // loop_footer_branch
                  %799 = sbr.rel target = $region109
                $region114: #{sardinet_forward.19} parent=99 // loop_exit
                  _
              $region100: #{sardinet_forward.19} parent=84 // pred_fallthru
                _
            $region85: #{sardinet_forward.19} parent=80 // pred_fallthru
              _
            // Predicated region
            $region86: #{sardinet_forward.19} parent=80 // pred_check
              _
            $region87: #{sardinet_forward.19} parent=80 // pred_check_branch
              %768 = sbr.rel (0) target = $region89
            $region88: #{sardinet_forward.19} parent=80 // pred_region
              %s770 = ssub.s32 16, 1
              loop: start=0, step=1, limit=1
              $region90: #{sardinet_forward.19} parent=88 // loop_pre_header
                _
              $region91: #{sardinet_forward.19} parent=88 // loop_header
                %s772 = sphi 0, %s776
                %p773 = scmp.ge.s32.totalorder %s772, 1
                %s777 = sphi %s754, %s754
                %s778 = sphi %s762, %s762
              $region92: #{sardinet_forward.19} parent=88 // loop_header_branch
                %775 = sbr.rel (%p773) target = $region96
              $region93: #{sardinet_forward.19} parent=88 // loop_body
                %v779 = vld [vmem:[%s777] sm:%s770]
                %780 = vst [vmem:[%s778] sm:%s770] %v779
                %v781 = vld [vmem:[%s777 + $0x4] sm:%s770]
                %782 = vst [vmem:[%s778 + $0x8] sm:%s770] %v781
                %v783 = vld [vmem:[%s777 + $0x8] sm:%s770]
                %784 = vst [vmem:[%s778 + $0x10] sm:%s770] %v783
                %v785 = vld [vmem:[%s777 + $0xc] sm:%s770]
                %786 = vst [vmem:[%s778 + $0x18] sm:%s770] %v785
              $region94: #{sardinet_forward.19} parent=88 // loop_footer
                %s776 = sadd.s32 1, %s772
              $region95: #{sardinet_forward.19} parent=88 // loop_footer_branch
                %771 = sbr.rel target = $region91
              $region96: #{sardinet_forward.19} parent=88 // loop_exit
                _
            $region89: #{sardinet_forward.19} parent=80 // pred_fallthru
              _
          $region81: #{sardinet_forward.19} parent=76 // pred_fallthru
            _
          %815 = vnop
        $region77: #{sardinet_forward.19} parent=68 // pred_fallthru
          _
      $region69: #{sardinet_forward.19} parent=5 // pred_fallthru
        _
      %p816 = scmp.le.s32.totalorder 2, %s9
      // Predicated region
      $region115: #{sardinet_forward.19} parent=5 // pred_check
        %p817 = pneg %p816
      $region116: #{sardinet_forward.19} parent=5 // pred_check_branch
        %819 = sbr.rel (%p817) target = $region118
      $region117: #{sardinet_forward.19} parent=5 // pred_region
        %s820 = ssub.s32 %s9, 2
        // Predicated region
        $region119: #{sardinet_forward.19} parent=117 // pred_check
          %p821 = pneg %p130
        $region120: #{sardinet_forward.19} parent=117 // pred_check_branch
          %823 = sbr.rel (%p821) target = $region122
        $region121: #{sardinet_forward.19} parent=117 // pred_region
          %s824 = sand.u32 %s115, 1
          %s825 = sand.u32 %s115, 1
          %s826 = smul.addr %s825, 16
          %s827 = scalar_lea.vmem [#allocation3], %s826
        $region122: #{sardinet_forward.19} parent=117 // pred_fallthru
          _
      $region118: #{sardinet_forward.19} parent=5 // pred_fallthru
        _
    $region6: #{sardinet_forward.19} parent=1 // loop_footer
      %s13 = sadd.s32 1, %s9
    $region7: #{sardinet_forward.19} parent=1 // loop_footer_branch
      %8 = sbr.rel target = $region3
    $region8: #{sardinet_forward.19} parent=1 // loop_exit
      _

// kernel: sardinet_forward.18
$region0: #{sardinet_forward.18}
  #allocation0 [shape = 'u32[]', space=smem, size = 0x4, offset = 0x4, fixed_abs, tag = 'smem constant byte address 0x4 - core index']
  #allocation1 [shape = 'u32[72,128]{1,0:T(1,128)}', space=vmem, size = 0x9000, scoped, tag = 'internal scratch']
  %s0 = inlined_call_operand.vmem [shape: bf16[32,864], index: 0, kind: input, shape index: {}]
  %s1 = inlined_call_operand.vmem [shape: bf16[864,128], index: 1, kind: input, shape index: {}]
  %s2 = inlined_call_operand.vmem [shape: f32[1,128], index: 2, kind: input, shape index: {}]
  %s3 = inlined_call_operand.vmem [shape: f32[1,128], index: 3, kind: input, shape index: {}]
  %s4 = inlined_call_operand.vmem [shape: f32[1,128], index: 4, kind: input, shape index: {}]
  %s5 = inlined_call_operand.vmem [shape: bf16[32,128], index: 5, kind: output, shape index: {}]
  %s6 = sld [smem:[#allocation0]]
  $region30: #{sardinet_forward.18} parent=0
    _
  %s8 = ssub.s32 1, %s6
  %s9 = scalar_select 0, %s8, %s6
  // Predicated region
  $region2: #{sardinet_forward.18} parent=0 // pred_check
    _
  $region3: #{sardinet_forward.18} parent=0 // pred_check_branch
    %11 = sbr.rel (0) target = $region5
  $region4: #{sardinet_forward.18} parent=0 // pred_region
    _
  $region5: #{sardinet_forward.18} parent=0 // pred_fallthru
    _
  // Predicated region
  $region6: #{sardinet_forward.18} parent=0 // pred_check
    _
  $region7: #{sardinet_forward.18} parent=0 // pred_check_branch
    %13 = sbr.rel (0) target = $region9
  $region8: #{sardinet_forward.18} parent=0 // pred_region
    _
  $region9: #{sardinet_forward.18} parent=0 // pred_fallthru
    _
  // Predicated region
  $region10: #{sardinet_forward.18} parent=0 // pred_check
    _
  $region11: #{sardinet_forward.18} parent=0 // pred_check_branch
    %15 = sbr.rel (0) target = $region13
  $region12: #{sardinet_forward.18} parent=0 // pred_region
    _
  $region13: #{sardinet_forward.18} parent=0 // pred_fallthru
    _
  // Predicated region
  $region14: #{sardinet_forward.18} parent=0 // pred_check
    _
  $region15: #{sardinet_forward.18} parent=0 // pred_check_branch
    %17 = sbr.rel (0) target = $region17
  $region16: #{sardinet_forward.18} parent=0 // pred_region
    _
  $region17: #{sardinet_forward.18} parent=0 // pred_fallthru
    _
  // Predicated region
  $region18: #{sardinet_forward.18} parent=0 // pred_check
    _
  $region19: #{sardinet_forward.18} parent=0 // pred_check_branch
    %19 = sbr.rel (0) target = $region21
  $region20: #{sardinet_forward.18} parent=0 // pred_region
    _
  $region21: #{sardinet_forward.18} parent=0 // pred_fallthru
    _
  %v21 = vld [vmem:[%s0] sm:$0xff]
  %v22 = vld [vmem:[%s0 + $0x8] sm:$0xff]
  %v23 = vld [vmem:[%s0 + $0x10] sm:$0xff]
  %v24 = vld [vmem:[%s0 + $0x18] sm:$0xf]
  %v25 = vld [vmem:[%s0 + $0x1c] sm:$0xff]
  %v26 = vld [vmem:[%s0 + $0x24] sm:$0xff]
  %v27 = vld [vmem:[%s0 + $0x2c] sm:$0xff]
  %v28 = vld [vmem:[%s0 + $0x34] sm:$0xf]
  %v29 = vld [vmem:[%s0 + $0x38] sm:$0xff]
  %v30 = vld [vmem:[%s0 + $0x40] sm:$0xff]
  %v31 = vld [vmem:[%s0 + $0x48] sm:$0xff]
  %v32 = vld [vmem:[%s0 + $0x50] sm:$0xf]
  %v33 = vld [vmem:[%s0 + $0x54] sm:$0xff]
  %v34 = vld [vmem:[%s0 + $0x5c] sm:$0xff]
  %v35 = vld [vmem:[%s0 + $0x64] sm:$0xff]
  %v36 = vld [vmem:[%s0 + $0x6c] sm:$0xf]
  %v37 = vld [vmem:[%s1] sm:$0xf]
  %v38 = vld [vmem:[%s1 + $0x4] sm:$0xf]
  %v39 = vld [vmem:[%s1 + $0x8] sm:$0xf]
  %v40 = vld [vmem:[%s1 + $0xc] sm:$0xf]
  %v41 = vld [vmem:[%s1 + $0x10] sm:$0xf]
  %v42 = vld [vmem:[%s1 + $0x14] sm:$0xf]
  %v43 = vld [vmem:[%s1 + $0x18] sm:$0xf]
  %v44 = vld [vmem:[%s1 + $0x1c] sm:$0xf]
  %v45 = vld [vmem:[%s1 + $0x20] sm:$0xf]
  %v46 = vld [vmem:[%s1 + $0x24] sm:$0xf]
  %v47 = vld [vmem:[%s1 + $0x28] sm:$0xf]
  %v48 = vld [vmem:[%s1 + $0x2c] sm:$0xf]
  %v49 = vld [vmem:[%s1 + $0x30] sm:$0xf]
  %v50 = vld [vmem:[%s1 + $0x34] sm:$0xf]
  %v51 = vld [vmem:[%s1 + $0x38] sm:$0xf]
  %v52 = vld [vmem:[%s1 + $0x3c] sm:$0xf]
  %v53 = vld [vmem:[%s1 + $0x40] sm:$0xf]
  %v54 = vld [vmem:[%s1 + $0x44] sm:$0xf]
  %v55 = vld [vmem:[%s1 + $0x48] sm:$0xf]
  %v56 = vld [vmem:[%s1 + $0x4c] sm:$0xf]
  %v57 = vld [vmem:[%s1 + $0x50] sm:$0xf]
  %v58 = vld [vmem:[%s1 + $0x54] sm:$0xf]
  %v59 = vld [vmem:[%s1 + $0x58] sm:$0xf]
  %v60 = vld [vmem:[%s1 + $0x5c] sm:$0xf]
  %v61 = vld [vmem:[%s1 + $0x60] sm:$0xf]
  %v62 = vld [vmem:[%s1 + $0x64] sm:$0xf]
  %v63 = vld [vmem:[%s1 + $0x68] sm:$0xf]
  %v64 = vld [vmem:[%s1 + $0x6c] sm:$0xf]
  %v65 = vld [vmem:[%s1 + $0x70] sm:$0xf]
  %v66 = vld [vmem:[%s1 + $0x74] sm:$0xf]
  %v67 = vld [vmem:[%s1 + $0x78] sm:$0xf]
  %v68 = vld [vmem:[%s1 + $0x7c] sm:$0xf]
  %v69 = vld [vmem:[%s1 + $0x80] sm:$0xf]
  %v70 = vld [vmem:[%s1 + $0x84] sm:$0xf]
  %v71 = vld [vmem:[%s1 + $0x88] sm:$0xf]
  %v72 = vld [vmem:[%s1 + $0x8c] sm:$0xf]
  %v73 = vld [vmem:[%s1 + $0x90] sm:$0xf]
  %v74 = vld [vmem:[%s1 + $0x94] sm:$0xf]
  %v75 = vld [vmem:[%s1 + $0x98] sm:$0xf]
  %v76 = vld [vmem:[%s1 + $0x9c] sm:$0xf]
  %v77 = vld [vmem:[%s1 + $0xa0] sm:$0xf]
  %v78 = vld [vmem:[%s1 + $0xa4] sm:$0xf]
  %v79 = vld [vmem:[%s1 + $0xa8] sm:$0xf]
  %v80 = vld [vmem:[%s1 + $0xac] sm:$0xf]
  %v81 = vld [vmem:[%s1 + $0xb0] sm:$0xf]
  %v82 = vld [vmem:[%s1 + $0xb4] sm:$0xf]
  %v83 = vld [vmem:[%s1 + $0xb8] sm:$0xf]
  %v84 = vld [vmem:[%s1 + $0xbc] sm:$0xf]
  %v85 = vld [vmem:[%s1 + $0xc0] sm:$0xf]
  %v86 = vld [vmem:[%s1 + $0xc4] sm:$0xf]
  %v87 = vld [vmem:[%s1 + $0xc8] sm:$0xf]
  %v88 = vld [vmem:[%s1 + $0xcc] sm:$0xf]
  %v89 = vld [vmem:[%s1 + $0xd0] sm:$0xf]
  %v90 = vld [vmem:[%s1 + $0xd4] sm:$0xf]
  %v91 = vld [vmem:[%s1 + $0xd8] sm:$0xf]
  %v92 = vld [vmem:[%s1 + $0xdc] sm:$0xf]
  %v93 = vld [vmem:[%s1 + $0xe0] sm:$0xf]
  %v94 = vld [vmem:[%s1 + $0xe4] sm:$0xf]
  %v95 = vld [vmem:[%s1 + $0xe8] sm:$0xf]
  %v96 = vld [vmem:[%s1 + $0xec] sm:$0xf]
  %v97 = vld [vmem:[%s1 + $0xf0] sm:$0xf]
  %v98 = vld [vmem:[%s1 + $0xf4] sm:$0xf]
  %v99 = vld [vmem:[%s1 + $0xf8] sm:$0xf]
  %v100 = vld [vmem:[%s1 + $0xfc] sm:$0xf]
  %v101 = vld [vmem:[%s1 + $0x100] sm:$0xf]
  %v102 = vld [vmem:[%s1 + $0x104] sm:$0xf]
  %v103 = vld [vmem:[%s1 + $0x108] sm:$0xf]
  %v104 = vld [vmem:[%s1 + $0x10c] sm:$0xf]
  %v105 = vld [vmem:[%s1 + $0x110] sm:$0xf]
  %v106 = vld [vmem:[%s1 + $0x114] sm:$0xf]
  %v107 = vld [vmem:[%s1 + $0x118] sm:$0xf]
  %v108 = vld [vmem:[%s1 + $0x11c] sm:$0xf]
  %v109 = vld [vmem:[%s1 + $0x120] sm:$0xf]
  %v110 = vld [vmem:[%s1 + $0x124] sm:$0xf]
  %v111 = vld [vmem:[%s1 + $0x128] sm:$0xf]
  %v112 = vld [vmem:[%s1 + $0x12c] sm:$0xf]
  %v113 = vld [vmem:[%s1 + $0x130] sm:$0xf]
  %v114 = vld [vmem:[%s1 + $0x134] sm:$0xf]
  %v115 = vld [vmem:[%s1 + $0x138] sm:$0xf]
  %v116 = vld [vmem:[%s1 + $0x13c] sm:$0xf]
  %v117 = vld [vmem:[%s1 + $0x140] sm:$0xf]
  %v118 = vld [vmem:[%s1 + $0x144] sm:$0xf]
  %v119 = vld [vmem:[%s1 + $0x148] sm:$0xf]
  %v120 = vld [vmem:[%s1 + $0x14c] sm:$0xf]
  %v121 = vld [vmem:[%s1 + $0x150] sm:$0xf]
  %v122 = vld [vmem:[%s1 + $0x154] sm:$0xf]
  %v123 = vld [vmem:[%s1 + $0x158] sm:$0xf]
  %v124 = vld [vmem:[%s1 + $0x15c] sm:$0xf]
  %v125 = vld [vmem:[%s1 + $0x160] sm:$0xf]
  %v126 = vld [vmem:[%s1 + $0x164] sm:$0xf]
  %v127 = vld [vmem:[%s1 + $0x168] sm:$0xf]
  %v128 = vld [vmem:[%s1 + $0x16c] sm:$0xf]
  %v129 = vld [vmem:[%s1 + $0x170] sm:$0xf]
  %v130 = vld [vmem:[%s1 + $0x174] sm:$0xf]
  %v131 = vld [vmem:[%s1 + $0x178] sm:$0xf]
  %v132 = vld [vmem:[%s1 + $0x17c] sm:$0xf]
  %v133 = vld [vmem:[%s1 + $0x180] sm:$0xf]
  %v134 = vld [vmem:[%s1 + $0x184] sm:$0xf]
  %v135 = vld [vmem:[%s1 + $0x188] sm:$0xf]
  %v136 = vld [vmem:[%s1 + $0x18c] sm:$0xf]
  %v137 = vld [vmem:[%s1 + $0x190] sm:$0xf]
  %v138 = vld [vmem:[%s1 + $0x194] sm:$0xf]
  %v139 = vld [vmem:[%s1 + $0x198] sm:$0xf]
  %v140 = vld [vmem:[%s1 + $0x19c] sm:$0xf]
  %v141 = vld [vmem:[%s1 + $0x1a0] sm:$0xf]
  %v142 = vld [vmem:[%s1 + $0x1a4] sm:$0xf]
  %v143 = vld [vmem:[%s1 + $0x1a8] sm:$0xf]
  %v144 = vld [vmem:[%s1 + $0x1ac] sm:$0xf]
  %v145 = vld [vmem:[%s2] sm:$0x1]
  %v147 = vperm.slane %v145, 0
  %v165 = vunpack.c.l.b16 %v21
  %v166 = vunpack.c.h.b16 %v21
  %v167 = vunpack.c.l.b16 %v22
  %v168 = vunpack.c.h.b16 %v22
  %v169 = vunpack.c.l.b16 %v23
  %v170 = vunpack.c.h.b16 %v23
  %v171 = vunpack.c.l.b16 %v24
  %v172 = vunpack.c.l.b16 %v25
  %v173 = vunpack.c.h.b16 %v25
  %v174 = vunpack.c.l.b16 %v26
  %v175 = vunpack.c.h.b16 %v26
  %v176 = vunpack.c.l.b16 %v27
  %v177 = vunpack.c.h.b16 %v27
  %v178 = vunpack.c.l.b16 %v28
  %v179 = vunpack.c.l.b16 %v29
  %v180 = vunpack.c.h.b16 %v29
  %v181 = vunpack.c.l.b16 %v30
  %v182 = vunpack.c.h.b16 %v30
  %v183 = vunpack.c.l.b16 %v31
  %v184 = vunpack.c.h.b16 %v31
  %v185 = vunpack.c.l.b16 %v32
  %v186 = vunpack.c.l.b16 %v33
  %v187 = vunpack.c.h.b16 %v33
  %v188 = vunpack.c.l.b16 %v34
  %v189 = vunpack.c.h.b16 %v34
  %v190 = vunpack.c.l.b16 %v35
  %v191 = vunpack.c.h.b16 %v35
  %v192 = vunpack.c.l.b16 %v36
  %v193 = vpack.c.b16 %v172, %v165
  %v194 = vpack.c.b16 %v173, %v166
  %v195 = vpack.c.b16 %v174, %v167
  %v196 = vpack.c.b16 %v175, %v168
  %v197 = vpack.c.b16 %v176, %v169
  %v198 = vpack.c.b16 %v177, %v170
  %v199 = vpack.c.b16 %v178, %v171
  %v200 = vpack.c.b16 %v186, %v179
  %v201 = vpack.c.b16 %v187, %v180
  %v202 = vpack.c.b16 %v188, %v181
  %v203 = vpack.c.b16 %v189, %v182
  %v204 = vpack.c.b16 %v190, %v183
  %v205 = vpack.c.b16 %v191, %v184
  %v206 = vpack.c.b16 %v192, %v185
  %v327 = vunpack.c.l.b16 %v37
  %v328 = vunpack.c.l.b16 %v38
  %v329 = vunpack.c.l.b16 %v39
  %v330 = vunpack.c.l.b16 %v40
  %v331 = vunpack.c.l.b16 %v41
  %v332 = vunpack.c.l.b16 %v42
  %v333 = vunpack.c.l.b16 %v43
  %v334 = vunpack.c.l.b16 %v44
  %v335 = vunpack.c.l.b16 %v45
  %v336 = vunpack.c.l.b16 %v46
  %v337 = vunpack.c.l.b16 %v47
  %v338 = vunpack.c.l.b16 %v48
  %v339 = vunpack.c.l.b16 %v49
  %v340 = vunpack.c.l.b16 %v50
  %v341 = vunpack.c.l.b16 %v51
  %v342 = vunpack.c.l.b16 %v52
  %v343 = vunpack.c.l.b16 %v53
  %v344 = vunpack.c.l.b16 %v54
  %v345 = vunpack.c.l.b16 %v55
  %v346 = vunpack.c.l.b16 %v56
  %v347 = vunpack.c.l.b16 %v57
  %v348 = vunpack.c.l.b16 %v58
  %v349 = vunpack.c.l.b16 %v59
  %v350 = vunpack.c.l.b16 %v60
  %v351 = vunpack.c.l.b16 %v61
  %v352 = vunpack.c.l.b16 %v62
  %v353 = vunpack.c.l.b16 %v63
  %v354 = vunpack.c.l.b16 %v64
  %v355 = vunpack.c.l.b16 %v65
  %v356 = vunpack.c.l.b16 %v66
  %v357 = vunpack.c.l.b16 %v67
  %v358 = vunpack.c.l.b16 %v68
  %v359 = vunpack.c.l.b16 %v69
  %v360 = vunpack.c.l.b16 %v70
  %v361 = vunpack.c.l.b16 %v71
  %v362 = vunpack.c.l.b16 %v72
  %v363 = vunpack.c.l.b16 %v73
  %v364 = vunpack.c.l.b16 %v74
  %v365 = vunpack.c.l.b16 %v75
  %v366 = vunpack.c.l.b16 %v76
  %v367 = vunpack.c.l.b16 %v77
  %v368 = vunpack.c.l.b16 %v78
  %v369 = vunpack.c.l.b16 %v79
  %v370 = vunpack.c.l.b16 %v80
  %v371 = vunpack.c.l.b16 %v81
  %v372 = vunpack.c.l.b16 %v82
  %v373 = vunpack.c.l.b16 %v83
  %v374 = vunpack.c.l.b16 %v84
  %v375 = vunpack.c.l.b16 %v85
  %v376 = vunpack.c.l.b16 %v86
  %v377 = vunpack.c.l.b16 %v87
  %v378 = vunpack.c.l.b16 %v88
  %v379 = vunpack.c.l.b16 %v89
  %v380 = vunpack.c.l.b16 %v90
  %v381 = vunpack.c.l.b16 %v91
  %v382 = vunpack.c.l.b16 %v92
  %v383 = vunpack.c.l.b16 %v93
  %v384 = vunpack.c.l.b16 %v94
  %v385 = vunpack.c.l.b16 %v95
  %v386 = vunpack.c.l.b16 %v96
  %v387 = vunpack.c.l.b16 %v97
  %v388 = vunpack.c.l.b16 %v98
  %v389 = vunpack.c.l.b16 %v99
  %v390 = vunpack.c.l.b16 %v100
  %v391 = vunpack.c.l.b16 %v101
  %v392 = vunpack.c.l.b16 %v102
  %v393 = vunpack.c.l.b16 %v103
  %v394 = vunpack.c.l.b16 %v104
  %v395 = vunpack.c.l.b16 %v105
  %v396 = vunpack.c.l.b16 %v106
  %v397 = vunpack.c.l.b16 %v107
  %v398 = vunpack.c.l.b16 %v108
  %v399 = vunpack.c.l.b16 %v109
  %v400 = vunpack.c.l.b16 %v110
  %v401 = vunpack.c.l.b16 %v111
  %v402 = vunpack.c.l.b16 %v112
  %v403 = vunpack.c.l.b16 %v113
  %v404 = vunpack.c.l.b16 %v114
  %v405 = vunpack.c.l.b16 %v115
  %v406 = vunpack.c.l.b16 %v116
  %v407 = vunpack.c.l.b16 %v117
  %v408 = vunpack.c.l.b16 %v118
  %v409 = vunpack.c.l.b16 %v119
  %v410 = vunpack.c.l.b16 %v120
  %v411 = vunpack.c.l.b16 %v121
  %v412 = vunpack.c.l.b16 %v122
  %v413 = vunpack.c.l.b16 %v123
  %v414 = vunpack.c.l.b16 %v124
  %v415 = vunpack.c.l.b16 %v125
  %v416 = vunpack.c.l.b16 %v126
  %v417 = vunpack.c.l.b16 %v127
  %v418 = vunpack.c.l.b16 %v128
  %v419 = vunpack.c.l.b16 %v129
  %v420 = vunpack.c.l.b16 %v130
  %v421 = vunpack.c.l.b16 %v131
  %v422 = vunpack.c.l.b16 %v132
  %v423 = vunpack.c.l.b16 %v133
  %v424 = vunpack.c.l.b16 %v134
  %v425 = vunpack.c.l.b16 %v135
  %v426 = vunpack.c.l.b16 %v136
  %v427 = vunpack.c.l.b16 %v137
  %v428 = vunpack.c.l.b16 %v138
  %v429 = vunpack.c.l.b16 %v139
  %v430 = vunpack.c.l.b16 %v140
  %v431 = vunpack.c.l.b16 %v141
  %v432 = vunpack.c.l.b16 %v142
  %v433 = vunpack.c.l.b16 %v143
  %v434 = vunpack.c.l.b16 %v144
  %v435 = vpack.c.b16 %v328, %v327
  %v436 = vpack.c.b16 %v330, %v329
  %v437 = vpack.c.b16 %v332, %v331
  %v438 = vpack.c.b16 %v334, %v333
  %v439 = vpack.c.b16 %v336, %v335
  %v440 = vpack.c.b16 %v338, %v337
  %v441 = vpack.c.b16 %v340, %v339
  %v442 = vpack.c.b16 %v342, %v341
  %v443 = vpack.c.b16 %v344, %v343
  %v444 = vpack.c.b16 %v346, %v345
  %v445 = vpack.c.b16 %v348, %v347
  %v446 = vpack.c.b16 %v350, %v349
  %v447 = vpack.c.b16 %v352, %v351
  %v448 = vpack.c.b16 %v354, %v353
  %v449 = vpack.c.b16 %v356, %v355
  %v450 = vpack.c.b16 %v358, %v357
  %v451 = vpack.c.b16 %v360, %v359
  %v452 = vpack.c.b16 %v362, %v361
  %v453 = vpack.c.b16 %v364, %v363
  %v454 = vpack.c.b16 %v366, %v365
  %v455 = vpack.c.b16 %v368, %v367
  %v456 = vpack.c.b16 %v370, %v369
  %v457 = vpack.c.b16 %v372, %v371
  %v458 = vpack.c.b16 %v374, %v373
  %v459 = vpack.c.b16 %v376, %v375
  %v460 = vpack.c.b16 %v378, %v377
  %v461 = vpack.c.b16 %v380, %v379
  %v462 = vpack.c.b16 %v382, %v381
  %v463 = vpack.c.b16 %v384, %v383
  %v464 = vpack.c.b16 %v386, %v385
  %v465 = vpack.c.b16 %v388, %v387
  %v466 = vpack.c.b16 %v390, %v389
  %v467 = vpack.c.b16 %v392, %v391
  %v468 = vpack.c.b16 %v394, %v393
  %v469 = vpack.c.b16 %v396, %v395
  %v470 = vpack.c.b16 %v398, %v397
  %v471 = vpack.c.b16 %v400, %v399
  %v472 = vpack.c.b16 %v402, %v401
  %v473 = vpack.c.b16 %v404, %v403
  %v474 = vpack.c.b16 %v406, %v405
  %v475 = vpack.c.b16 %v408, %v407
  %v476 = vpack.c.b16 %v410, %v409
  %v477 = vpack.c.b16 %v412, %v411
  %v478 = vpack.c.b16 %v414, %v413
  %v479 = vpack.c.b16 %v416, %v415
  %v480 = vpack.c.b16 %v418, %v417
  %v481 = vpack.c.b16 %v420, %v419
  %v482 = vpack.c.b16 %v422, %v421
  %v483 = vpack.c.b16 %v424, %v423
  %v484 = vpack.c.b16 %v426, %v425
  %v485 = vpack.c.b16 %v428, %v427
  %v486 = vpack.c.b16 %v430, %v429
  %v487 = vpack.c.b16 %v432, %v431
  %v488 = vpack.c.b16 %v434, %v433
  %vm543 = vcmask 785408
  %v545 = vsel %vm543, %v199, 0
  %v548 = vsel %vm543, %v206, 0
  %550 = vmatpush.bf16.msra.mxu0 %v442
  %551 = vmatpush.bf16.msra.mxu0 %v441
  %552 = vmatpush.bf16.msra.mxu0 %v440
  %553 = vmatpush.bf16.msra.mxu0 %v439
  %554 = vmatpush.bf16.msra.mxu0 %v438
  %555 = vmatpush.bf16.msra.mxu0 %v437
  %556 = vmatpush.bf16.msra.mxu0 %v436
  %557 = vmatpush.bf16.msra.mxu0 %v435
  %558 = vmatmul.bf16.gmra.mxu0 %v193
  %v559 = vpop.f32.mrf.mxu0
  %v560 = vadd.f32 %v147, %v559
  %v561 = vpop.f32.mrf.mxu0
  %v562 = vadd.f32 %v147, %v561
  %563 = vmatmul.bf16.gmra.mxu0 %v200
  %v564 = vpop.f32.mrf.mxu0
  %v565 = vadd.f32 %v147, %v564
  %v566 = vpop.f32.mrf.mxu0
  %v567 = vadd.f32 %v147, %v566
  %568 = vdwg.mxu0
  %569 = vmatpush.bf16.msra.mxu0 %v450
  %570 = vmatpush.bf16.msra.mxu0 %v449
  %571 = vmatpush.bf16.msra.mxu0 %v448
  %572 = vmatpush.bf16.msra.mxu0 %v447
  %573 = vmatpush.bf16.msra.mxu0 %v446
  %574 = vmatpush.bf16.msra.mxu0 %v445
  %575 = vmatpush.bf16.msra.mxu0 %v444
  %576 = vmatpush.bf16.msra.mxu0 %v443
  %577 = vmatmul.bf16.gmra.mxu0 %v194
  %v578 = vpop.f32.mrf.mxu0
  %v579 = vadd.f32 %v560, %v578
  %v580 = vpop.f32.mrf.mxu0
  %v581 = vadd.f32 %v562, %v580
  %582 = vmatmul.bf16.gmra.mxu0 %v201
  %v583 = vpop.f32.mrf.mxu0
  %v584 = vadd.f32 %v565, %v583
  %v585 = vpop.f32.mrf.mxu0
  %v586 = vadd.f32 %v567, %v585
  %587 = vdwg.mxu0
  %588 = vmatpush.bf16.msra.mxu0 %v458
  %589 = vmatpush.bf16.msra.mxu0 %v457
  %590 = vmatpush.bf16.msra.mxu0 %v456
  %591 = vmatpush.bf16.msra.mxu0 %v455
  %592 = vmatpush.bf16.msra.mxu0 %v454
  %593 = vmatpush.bf16.msra.mxu0 %v453
  %594 = vmatpush.bf16.msra.mxu0 %v452
  %595 = vmatpush.bf16.msra.mxu0 %v451
  %596 = vmatmul.bf16.gmra.mxu0 %v195
  %v597 = vpop.f32.mrf.mxu0
  %v598 = vadd.f32 %v579, %v597
  %v599 = vpop.f32.mrf.mxu0
  %v600 = vadd.f32 %v581, %v599
  %601 = vmatmul.bf16.gmra.mxu0 %v202
  %v602 = vpop.f32.mrf.mxu0
  %v603 = vadd.f32 %v584, %v602
  %v604 = vpop.f32.mrf.mxu0
  %v605 = vadd.f32 %v586, %v604
  %606 = vdwg.mxu0
  %607 = vmatpush.bf16.msra.mxu0 %v466
  %608 = vmatpush.bf16.msra.mxu0 %v465
  %609 = vmatpush.bf16.msra.mxu0 %v464
  %610 = vmatpush.bf16.msra.mxu0 %v463
  %611 = vmatpush.bf16.msra.mxu0 %v462
  %612 = vmatpush.bf16.msra.mxu0 %v461
  %613 = vmatpush.bf16.msra.mxu0 %v460
  %614 = vmatpush.bf16.msra.mxu0 %v459
  %615 = vmatmul.bf16.gmra.mxu0 %v196
  %v616 = vpop.f32.mrf.mxu0
  %v617 = vadd.f32 %v598, %v616
  %v618 = vpop.f32.mrf.mxu0
  %v619 = vadd.f32 %v600, %v618
  %620 = vmatmul.bf16.gmra.mxu0 %v203
  %v621 = vpop.f32.mrf.mxu0
  %v622 = vadd.f32 %v603, %v621
  %v623 = vpop.f32.mrf.mxu0
  %v624 = vadd.f32 %v605, %v623
  %625 = vdwg.mxu0
  %626 = vmatpush.bf16.msra.mxu0 %v474
  %627 = vmatpush.bf16.msra.mxu0 %v473
  %628 = vmatpush.bf16.msra.mxu0 %v472
  %629 = vmatpush.bf16.msra.mxu0 %v471
  %630 = vmatpush.bf16.msra.mxu0 %v470
  %631 = vmatpush.bf16.msra.mxu0 %v469
  %632 = vmatpush.bf16.msra.mxu0 %v468
  %633 = vmatpush.bf16.msra.mxu0 %v467
  %634 = vmatmul.bf16.gmra.mxu0 %v197
  %v635 = vpop.f32.mrf.mxu0
  %v636 = vadd.f32 %v617, %v635
  %v637 = vpop.f32.mrf.mxu0
  %v638 = vadd.f32 %v619, %v637
  %639 = vmatmul.bf16.gmra.mxu0 %v204
  %v640 = vpop.f32.mrf.mxu0
  %v641 = vadd.f32 %v622, %v640
  %v642 = vpop.f32.mrf.mxu0
  %v643 = vadd.f32 %v624, %v642
  %644 = vdwg.mxu0
  %645 = vmatpush.bf16.msra.mxu0 %v482
  %646 = vmatpush.bf16.msra.mxu0 %v481
  %647 = vmatpush.bf16.msra.mxu0 %v480
  %648 = vmatpush.bf16.msra.mxu0 %v479
  %649 = vmatpush.bf16.msra.mxu0 %v478
  %650 = vmatpush.bf16.msra.mxu0 %v477
  %651 = vmatpush.bf16.msra.mxu0 %v476
  %652 = vmatpush.bf16.msra.mxu0 %v475
  %653 = vmatmul.bf16.gmra.mxu0 %v198
  %v654 = vpop.f32.mrf.mxu0
  %v655 = vadd.f32 %v636, %v654
  %v656 = vpop.f32.mrf.mxu0
  %v657 = vadd.f32 %v638, %v656
  %658 = vmatmul.bf16.gmra.mxu0 %v205
  %v659 = vpop.f32.mrf.mxu0
  %v660 = vadd.f32 %v641, %v659
  %v661 = vpop.f32.mrf.mxu0
  %v662 = vadd.f32 %v643, %v661
  %663 = vdwg.mxu0
  %664 = vmatpush.bf16.msra.mxu0 0
  %665 = vmatpush.bf16.msra.mxu0 0
  %666 = vmatpush.bf16.msra.mxu0 %v488
  %667 = vmatpush.bf16.msra.mxu0 %v487
  %668 = vmatpush.bf16.msra.mxu0 %v486
  %669 = vmatpush.bf16.msra.mxu0 %v485
  %670 = vmatpush.bf16.msra.mxu0 %v484
  %671 = vmatpush.bf16.msra.mxu0 %v483
  %672 = vmatmul.bf16.gmra.mxu0 %v545
  %v673 = vpop.f32.mrf.mxu0
  %v674 = vadd.f32 %v655, %v673
  %v675 = vpop.f32.mrf.mxu0
  %v676 = vadd.f32 %v657, %v675
  %677 = vmatmul.bf16.gmra.mxu0 %v548
  %v678 = vpop.f32.mrf.mxu0
  %v679 = vadd.f32 %v660, %v678
  %v680 = vpop.f32.mrf.mxu0
  %v681 = vadd.f32 %v662, %v680
  %682 = vdwg.mxu0
  %v683 = vmax.f32 %v674, 0.0
  %v684 = vmax.f32 %v676, 0.0
  %v685 = vmax.f32 %v679, 0.0
  %v686 = vmax.f32 %v681, 0.0
  %v687 = vld [vmem:[%s3] sm:$0x1]
  %v689 = vperm.slane %v687, 0
  %v691 = vmul.f32 %v683, %v689
  %v692 = vmul.f32 %v684, %v689
  %v693 = vmul.f32 %v685, %v689
  %v694 = vmul.f32 %v686, %v689
  %v695 = vld [vmem:[%s4] sm:$0x1]
  %v697 = vperm.slane %v695, 0
  %v699 = vadd.f32 %v691, %v697
  %v700 = vadd.f32 %v692, %v697
  %v701 = vadd.f32 %v693, %v697
  %v702 = vadd.f32 %v694, %v697
  %v703 = vpack.c.bf16 %v699, %v699
  %v704 = vpack.c.bf16 %v700, %v700
  %v705 = vpack.c.bf16 %v701, %v701
  %v706 = vpack.c.bf16 %v702, %v702
  %707 = vst [vmem:[%s5] sm:$0xf] %v703
  %708 = vst [vmem:[%s5 + $0x4] sm:$0xf] %v704
  %709 = vst [vmem:[%s5 + $0x8] sm:$0xf] %v705
  %710 = vst [vmem:[%s5 + $0xc] sm:$0xf] %v706
  // Predicated region
  $region22: #{sardinet_forward.18} parent=0 // pred_check
    _
  $region23: #{sardinet_forward.18} parent=0 // pred_check_branch
    %712 = sbr.rel (0) target = $region25
  $region24: #{sardinet_forward.18} parent=0 // pred_region
    _
  $region25: #{sardinet_forward.18} parent=0 // pred_fallthru
    _
  // Predicated region
  $region26: #{sardinet_forward.18} parent=0 // pred_check
    _
  $region27: #{sardinet_forward.18} parent=0 // pred_check_branch
    %714 = sbr.rel (0) target = $region29
  $region28: #{sardinet_forward.18} parent=0 // pred_region
    _
  $region29: #{sardinet_forward.18} parent=0 // pred_fallthru
    _

// kernel: sardinet_forward.21
$region0: #{sardinet_forward.21}
  #allocation0 [shape = 'u32[]', space=smem, size = 0x4, offset = 0x4, fixed_abs, tag = 'smem constant byte address 0x4 - core index']
  #allocation1 [shape = 'u32[72,128]{1,0:T(1,128)}', space=vmem, size = 0x9000, scoped, tag = 'internal scratch']
  %s0 = inlined_call_operand.vmem [shape: bf16[128,432], index: 0, kind: input, shape index: {}]
  %s1 = inlined_call_operand.vmem [shape: bf16[432,128], index: 1, kind: input, shape index: {}]
  %s2 = inlined_call_operand.vmem [shape: f32[1,128], index: 2, kind: input, shape index: {}]
  %s3 = inlined_call_operand.vmem [shape: f32[128,128], index: 3, kind: output, shape index: {}]
  %s4 = sld [smem:[#allocation0]]
  $region22: #{sardinet_forward.21} parent=0
    _
  %s6 = ssub.s32 1, %s4
  %s7 = scalar_select 0, %s6, %s4
  // Predicated region
  $region2: #{sardinet_forward.21} parent=0 // pred_check
    _
  $region3: #{sardinet_forward.21} parent=0 // pred_check_branch
    %9 = sbr.rel (0) target = $region5
  $region4: #{sardinet_forward.21} parent=0 // pred_region
    _
  $region5: #{sardinet_forward.21} parent=0 // pred_fallthru
    _
  // Predicated region
  $region6: #{sardinet_forward.21} parent=0 // pred_check
    _
  $region7: #{sardinet_forward.21} parent=0 // pred_check_branch
    %11 = sbr.rel (0) target = $region9
  $region8: #{sardinet_forward.21} parent=0 // pred_region
    _
  $region9: #{sardinet_forward.21} parent=0 // pred_fallthru
    _
  // Predicated region
  $region10: #{sardinet_forward.21} parent=0 // pred_check
    _
  $region11: #{sardinet_forward.21} parent=0 // pred_check_branch
    %13 = sbr.rel (0) target = $region13
  $region12: #{sardinet_forward.21} parent=0 // pred_region
    _
  $region13: #{sardinet_forward.21} parent=0 // pred_fallthru
    _
  %v15 = vld [vmem:[%s0] sm:$0xff]
  %v16 = vld [vmem:[%s0 + $0x8] sm:$0xff]
  %v17 = vld [vmem:[%s0 + $0x10] sm:$0xff]
  %v18 = vld [vmem:[%s0 + $0x18] sm:$0xff]
  %v19 = vld [vmem:[%s0 + $0x20] sm:$0xff]
  %v20 = vld [vmem:[%s0 + $0x28] sm:$0xff]
  %v21 = vld [vmem:[%s0 + $0x30] sm:$0xff]
  %v22 = vld [vmem:[%s0 + $0x38] sm:$0xff]
  %v23 = vld [vmem:[%s0 + $0x40] sm:$0xff]
  %v24 = vld [vmem:[%s0 + $0x48] sm:$0xff]
  %v25 = vld [vmem:[%s0 + $0x50] sm:$0xff]
  %v26 = vld [vmem:[%s0 + $0x58] sm:$0xff]
  %v27 = vld [vmem:[%s0 + $0x60] sm:$0xff]
  %v28 = vld [vmem:[%s0 + $0x68] sm:$0xff]
  %v29 = vld [vmem:[%s0 + $0x70] sm:$0xff]
  %v30 = vld [vmem:[%s0 + $0x78] sm:$0xff]
  %v31 = vld [vmem:[%s0 + $0x80] sm:$0xff]
  %v32 = vld [vmem:[%s0 + $0x88] sm:$0xff]
  %v33 = vld [vmem:[%s0 + $0x90] sm:$0xff]
  %v34 = vld [vmem:[%s0 + $0x98] sm:$0xff]
  %v35 = vld [vmem:[%s0 + $0xa0] sm:$0xff]
  %v36 = vld [vmem:[%s0 + $0xa8] sm:$0xff]
  %v37 = vld [vmem:[%s0 + $0xb0] sm:$0xff]
  %v38 = vld [vmem:[%s0 + $0xb8] sm:$0xff]
  %v39 = vld [vmem:[%s0 + $0xc0] sm:$0xff]
  %v40 = vld [vmem:[%s0 + $0xc8] sm:$0xff]
  %v41 = vld [vmem:[%s0 + $0xd0] sm:$0xff]
  %v42 = vld [vmem:[%s0 + $0xd8] sm:$0xff]
  %v43 = vld [vmem:[%s0 + $0xe0] sm:$0xff]
  %v44 = vld [vmem:[%s0 + $0xe8] sm:$0xff]
  %v45 = vld [vmem:[%s0 + $0xf0] sm:$0xff]
  %v46 = vld [vmem:[%s0 + $0xf8] sm:$0xff]
  %v47 = vld [vmem:[%s1] sm:$0xf]
  %v48 = vld [vmem:[%s1 + $0x4] sm:$0xf]
  %v49 = vld [vmem:[%s1 + $0x8] sm:$0xf]
  %v50 = vld [vmem:[%s1 + $0xc] sm:$0xf]
  %v51 = vld [vmem:[%s1 + $0x10] sm:$0xf]
  %v52 = vld [vmem:[%s1 + $0x14] sm:$0xf]
  %v53 = vld [vmem:[%s1 + $0x18] sm:$0xf]
  %v54 = vld [vmem:[%s1 + $0x1c] sm:$0xf]
  %v55 = vld [vmem:[%s1 + $0x20] sm:$0xf]
  %v56 = vld [vmem:[%s1 + $0x24] sm:$0xf]
  %v57 = vld [vmem:[%s1 + $0x28] sm:$0xf]
  %v58 = vld [vmem:[%s1 + $0x2c] sm:$0xf]
  %v59 = vld [vmem:[%s1 + $0x30] sm:$0xf]
  %v60 = vld [vmem:[%s1 + $0x34] sm:$0xf]
  %v61 = vld [vmem:[%s1 + $0x38] sm:$0xf]
  %v62 = vld [vmem:[%s1 + $0x3c] sm:$0xf]
  %v63 = vld [vmem:[%s1 + $0x40] sm:$0xf]
  %v64 = vld [vmem:[%s1 + $0x44] sm:$0xf]
  %v65 = vld [vmem:[%s1 + $0x48] sm:$0xf]
  %v66 = vld [vmem:[%s1 + $0x4c] sm:$0xf]
  %v67 = vld [vmem:[%s1 + $0x50] sm:$0xf]
  %v68 = vld [vmem:[%s1 + $0x54] sm:$0xf]
  %v69 = vld [vmem:[%s1 + $0x58] sm:$0xf]
  %v70 = vld [vmem:[%s1 + $0x5c] sm:$0xf]
  %v71 = vld [vmem:[%s1 + $0x60] sm:$0xf]
  %v72 = vld [vmem:[%s1 + $0x64] sm:$0xf]
  %v73 = vld [vmem:[%s1 + $0x68] sm:$0xf]
  %v74 = vld [vmem:[%s1 + $0x6c] sm:$0xf]
  %v75 = vld [vmem:[%s1 + $0x70] sm:$0xf]
  %v76 = vld [vmem:[%s1 + $0x74] sm:$0xf]
  %v77 = vld [vmem:[%s1 + $0x78] sm:$0xf]
  %v78 = vld [vmem:[%s1 + $0x7c] sm:$0xf]
  %v79 = vld [vmem:[%s1 + $0x80] sm:$0xf]
  %v80 = vld [vmem:[%s1 + $0x84] sm:$0xf]
  %v81 = vld [vmem:[%s1 + $0x88] sm:$0xf]
  %v82 = vld [vmem:[%s1 + $0x8c] sm:$0xf]
  %v83 = vld [vmem:[%s1 + $0x90] sm:$0xf]
  %v84 = vld [vmem:[%s1 + $0x94] sm:$0xf]
  %v85 = vld [vmem:[%s1 + $0x98] sm:$0xf]
  %v86 = vld [vmem:[%s1 + $0x9c] sm:$0xf]
  %v87 = vld [vmem:[%s1 + $0xa0] sm:$0xf]
  %v88 = vld [vmem:[%s1 + $0xa4] sm:$0xf]
  %v89 = vld [vmem:[%s1 + $0xa8] sm:$0xf]
  %v90 = vld [vmem:[%s1 + $0xac] sm:$0xf]
  %v91 = vld [vmem:[%s1 + $0xb0] sm:$0xf]
  %v92 = vld [vmem:[%s1 + $0xb4] sm:$0xf]
  %v93 = vld [vmem:[%s1 + $0xb8] sm:$0xf]
  %v94 = vld [vmem:[%s1 + $0xbc] sm:$0xf]
  %v95 = vld [vmem:[%s1 + $0xc0] sm:$0xf]
  %v96 = vld [vmem:[%s1 + $0xc4] sm:$0xf]
  %v97 = vld [vmem:[%s1 + $0xc8] sm:$0xf]
  %v98 = vld [vmem:[%s1 + $0xcc] sm:$0xf]
  %v99 = vld [vmem:[%s1 + $0xd0] sm:$0xf]
  %v100 = vld [vmem:[%s1 + $0xd4] sm:$0xf]
  %v101 = vld [vmem:[%s2] sm:$0x1]
  %v103 = vperm.slane %v101, 0
  %v137 = vunpack.c.l.b16 %v15
  %v138 = vunpack.c.h.b16 %v15
  %v139 = vunpack.c.l.b16 %v16
  %v140 = vunpack.c.h.b16 %v16
  %v141 = vunpack.c.l.b16 %v17
  %v142 = vunpack.c.h.b16 %v17
  %v143 = vunpack.c.l.b16 %v18
  %v144 = vunpack.c.h.b16 %v18
  %v145 = vunpack.c.l.b16 %v19
  %v146 = vunpack.c.h.b16 %v19
  %v147 = vunpack.c.l.b16 %v20
  %v148 = vunpack.c.h.b16 %v20
  %v149 = vunpack.c.l.b16 %v21
  %v150 = vunpack.c.h.b16 %v21
  %v151 = vunpack.c.l.b16 %v22
  %v152 = vunpack.c.h.b16 %v22
  %v153 = vunpack.c.l.b16 %v23
  %v154 = vunpack.c.h.b16 %v23
  %v155 = vunpack.c.l.b16 %v24
  %v156 = vunpack.c.h.b16 %v24
  %v157 = vunpack.c.l.b16 %v25
  %v158 = vunpack.c.h.b16 %v25
  %v159 = vunpack.c.l.b16 %v26
  %v160 = vunpack.c.h.b16 %v26
  %v161 = vunpack.c.l.b16 %v27
  %v162 = vunpack.c.h.b16 %v27
  %v163 = vunpack.c.l.b16 %v28
  %v164 = vunpack.c.h.b16 %v28
  %v165 = vunpack.c.l.b16 %v29
  %v166 = vunpack.c.h.b16 %v29
  %v167 = vunpack.c.l.b16 %v30
  %v168 = vunpack.c.h.b16 %v30
  %v169 = vunpack.c.l.b16 %v31
  %v170 = vunpack.c.h.b16 %v31
  %v171 = vunpack.c.l.b16 %v32
  %v172 = vunpack.c.h.b16 %v32
  %v173 = vunpack.c.l.b16 %v33
  %v174 = vunpack.c.h.b16 %v33
  %v175 = vunpack.c.l.b16 %v34
  %v176 = vunpack.c.h.b16 %v34
  %v177 = vunpack.c.l.b16 %v35
  %v178 = vunpack.c.h.b16 %v35
  %v179 = vunpack.c.l.b16 %v36
  %v180 = vunpack.c.h.b16 %v36
  %v181 = vunpack.c.l.b16 %v37
  %v182 = vunpack.c.h.b16 %v37
  %v183 = vunpack.c.l.b16 %v38
  %v184 = vunpack.c.h.b16 %v38
  %v185 = vunpack.c.l.b16 %v39
  %v186 = vunpack.c.h.b16 %v39
  %v187 = vunpack.c.l.b16 %v40
  %v188 = vunpack.c.h.b16 %v40
  %v189 = vunpack.c.l.b16 %v41
  %v190 = vunpack.c.h.b16 %v41
  %v191 = vunpack.c.l.b16 %v42
  %v192 = vunpack.c.h.b16 %v42
  %v193 = vunpack.c.l.b16 %v43
  %v194 = vunpack.c.h.b16 %v43
  %v195 = vunpack.c.l.b16 %v44
  %v196 = vunpack.c.h.b16 %v44
  %v197 = vunpack.c.l.b16 %v45
  %v198 = vunpack.c.h.b16 %v45
  %v199 = vunpack.c.l.b16 %v46
  %v200 = vunpack.c.h.b16 %v46
  %v201 = vpack.c.b16 %v141, %v137
  %v202 = vpack.c.b16 %v142, %v138
  %v203 = vpack.c.b16 %v143, %v139
  %v204 = vpack.c.b16 %v144, %v140
  %v205 = vpack.c.b16 %v149, %v145
  %v206 = vpack.c.b16 %v150, %v146
  %v207 = vpack.c.b16 %v151, %v147
  %v208 = vpack.c.b16 %v152, %v148
  %v209 = vpack.c.b16 %v157, %v153
  %v210 = vpack.c.b16 %v158, %v154
  %v211 = vpack.c.b16 %v159, %v155
  %v212 = vpack.c.b16 %v160, %v156
  %v213 = vpack.c.b16 %v165, %v161
  %v214 = vpack.c.b16 %v166, %v162
  %v215 = vpack.c.b16 %v167, %v163
  %v216 = vpack.c.b16 %v168, %v164
  %v217 = vpack.c.b16 %v173, %v169
  %v218 = vpack.c.b16 %v174, %v170
  %v219 = vpack.c.b16 %v175, %v171
  %v220 = vpack.c.b16 %v176, %v172
  %v221 = vpack.c.b16 %v181, %v177
  %v222 = vpack.c.b16 %v182, %v178
  %v223 = vpack.c.b16 %v183, %v179
  %v224 = vpack.c.b16 %v184, %v180
  %v225 = vpack.c.b16 %v189, %v185
  %v226 = vpack.c.b16 %v190, %v186
  %v227 = vpack.c.b16 %v191, %v187
  %v228 = vpack.c.b16 %v192, %v188
  %v229 = vpack.c.b16 %v197, %v193
  %v230 = vpack.c.b16 %v198, %v194
  %v231 = vpack.c.b16 %v199, %v195
  %v232 = vpack.c.b16 %v200, %v196
  %v311 = vunpack.c.l.b16 %v47
  %v312 = vunpack.c.l.b16 %v48
  %v313 = vunpack.c.l.b16 %v49
  %v314 = vunpack.c.l.b16 %v50
  %v315 = vunpack.c.l.b16 %v51
  %v316 = vunpack.c.l.b16 %v52
  %v317 = vunpack.c.l.b16 %v53
  %v318 = vunpack.c.l.b16 %v54
  %v319 = vunpack.c.l.b16 %v55
  %v320 = vunpack.c.l.b16 %v56
  %v321 = vunpack.c.l.b16 %v57
  %v322 = vunpack.c.l.b16 %v58
  %v323 = vunpack.c.l.b16 %v59
  %v324 = vunpack.c.l.b16 %v60
  %v325 = vunpack.c.l.b16 %v61
  %v326 = vunpack.c.l.b16 %v62
  %v327 = vunpack.c.l.b16 %v63
  %v328 = vunpack.c.l.b16 %v64
  %v329 = vunpack.c.l.b16 %v65
  %v330 = vunpack.c.l.b16 %v66
  %v331 = vunpack.c.l.b16 %v67
  %v332 = vunpack.c.l.b16 %v68
  %v333 = vunpack.c.l.b16 %v69
  %v334 = vunpack.c.l.b16 %v70
  %v335 = vunpack.c.l.b16 %v71
  %v336 = vunpack.c.l.b16 %v72
  %v337 = vunpack.c.l.b16 %v73
  %v338 = vunpack.c.l.b16 %v74
  %v339 = vunpack.c.l.b16 %v75
  %v340 = vunpack.c.l.b16 %v76
  %v341 = vunpack.c.l.b16 %v77
  %v342 = vunpack.c.l.b16 %v78
  %v343 = vunpack.c.l.b16 %v79
  %v344 = vunpack.c.l.b16 %v80
  %v345 = vunpack.c.l.b16 %v81
  %v346 = vunpack.c.l.b16 %v82
  %v347 = vunpack.c.l.b16 %v83
  %v348 = vunpack.c.l.b16 %v84
  %v349 = vunpack.c.l.b16 %v85
  %v350 = vunpack.c.l.b16 %v86
  %v351 = vunpack.c.l.b16 %v87
  %v352 = vunpack.c.l.b16 %v88
  %v353 = vunpack.c.l.b16 %v89
  %v354 = vunpack.c.l.b16 %v90
  %v355 = vunpack.c.l.b16 %v91
  %v356 = vunpack.c.l.b16 %v92
  %v357 = vunpack.c.l.b16 %v93
  %v358 = vunpack.c.l.b16 %v94
  %v359 = vunpack.c.l.b16 %v95
  %v360 = vunpack.c.l.b16 %v96
  %v361 = vunpack.c.l.b16 %v97
  %v362 = vunpack.c.l.b16 %v98
  %v363 = vunpack.c.l.b16 %v99
  %v364 = vunpack.c.l.b16 %v100
  %v365 = vpack.c.b16 %v312, %v311
  %v366 = vpack.c.b16 %v314, %v313
  %v367 = vpack.c.b16 %v316, %v315
  %v368 = vpack.c.b16 %v318, %v317
  %v369 = vpack.c.b16 %v320, %v319
  %v370 = vpack.c.b16 %v322, %v321
  %v371 = vpack.c.b16 %v324, %v323
  %v372 = vpack.c.b16 %v326, %v325
  %v373 = vpack.c.b16 %v328, %v327
  %v374 = vpack.c.b16 %v330, %v329
  %v375 = vpack.c.b16 %v332, %v331
  %v376 = vpack.c.b16 %v334, %v333
  %v377 = vpack.c.b16 %v336, %v335
  %v378 = vpack.c.b16 %v338, %v337
  %v379 = vpack.c.b16 %v340, %v339
  %v380 = vpack.c.b16 %v342, %v341
  %v381 = vpack.c.b16 %v344, %v343
  %v382 = vpack.c.b16 %v346, %v345
  %v383 = vpack.c.b16 %v348, %v347
  %v384 = vpack.c.b16 %v350, %v349
  %v385 = vpack.c.b16 %v352, %v351
  %v386 = vpack.c.b16 %v354, %v353
  %v387 = vpack.c.b16 %v356, %v355
  %v388 = vpack.c.b16 %v358, %v357
  %v389 = vpack.c.b16 %v360, %v359
  %v390 = vpack.c.b16 %v362, %v361
  %v391 = vpack.c.b16 %v364, %v363
  %vm419 = vcmask 392192
  %v421 = vsel %vm419, %v204, 0
  %v424 = vsel %vm419, %v208, 0
  %v427 = vsel %vm419, %v212, 0
  %v430 = vsel %vm419, %v216, 0
  %v433 = vsel %vm419, %v220, 0
  %v436 = vsel %vm419, %v224, 0
  %v439 = vsel %vm419, %v228, 0
  %v442 = vsel %vm419, %v232, 0
  %444 = vmatpush.bf16.msra.mxu0 %v372
  %445 = vmatpush.bf16.msra.mxu0 %v371
  %446 = vmatpush.bf16.msra.mxu0 %v370
  %447 = vmatpush.bf16.msra.mxu0 %v369
  %448 = vmatpush.bf16.msra.mxu0 %v368
  %449 = vmatpush.bf16.msra.mxu0 %v367
  %450 = vmatpush.bf16.msra.mxu0 %v366
  %451 = vmatpush.bf16.msra.mxu0 %v365
  %452 = vmatmul.bf16.gmra.mxu0 %v201
  %v453 = vpop.f32.mrf.mxu0
  %v454 = vadd.f32 %v103, %v453
  %v455 = vpop.f32.mrf.mxu0
  %v456 = vadd.f32 %v103, %v455
  %457 = vmatmul.bf16.gmra.mxu0 %v205
  %v458 = vpop.f32.mrf.mxu0
  %v459 = vadd.f32 %v103, %v458
  %v460 = vpop.f32.mrf.mxu0
  %v461 = vadd.f32 %v103, %v460
  %462 = vmatmul.bf16.gmra.mxu0 %v209
  %v463 = vpop.f32.mrf.mxu0
  %v464 = vadd.f32 %v103, %v463
  %v465 = vpop.f32.mrf.mxu0
  %v466 = vadd.f32 %v103, %v465
  %467 = vmatmul.bf16.gmra.mxu0 %v213
  %v468 = vpop.f32.mrf.mxu0
  %v469 = vadd.f32 %v103, %v468
  %v470 = vpop.f32.mrf.mxu0
  %v471 = vadd.f32 %v103, %v470
  %472 = vmatmul.bf16.gmra.mxu0 %v217
  %v473 = vpop.f32.mrf.mxu0
  %v474 = vadd.f32 %v103, %v473
  %v475 = vpop.f32.mrf.mxu0
  %v476 = vadd.f32 %v103, %v475
  %477 = vmatmul.bf16.gmra.mxu0 %v221
  %v478 = vpop.f32.mrf.mxu0
  %v479 = vadd.f32 %v103, %v478
  %v480 = vpop.f32.mrf.mxu0
  %v481 = vadd.f32 %v103, %v480
  %482 = vmatmul.bf16.gmra.mxu0 %v225
  %v483 = vpop.f32.mrf.mxu0
  %v484 = vadd.f32 %v103, %v483
  %v485 = vpop.f32.mrf.mxu0
  %v486 = vadd.f32 %v103, %v485
  %487 = vmatmul.bf16.gmra.mxu0 %v229
  %v488 = vpop.f32.mrf.mxu0
  %v489 = vadd.f32 %v103, %v488
  %v490 = vpop.f32.mrf.mxu0
  %v491 = vadd.f32 %v103, %v490
  %492 = vdwg.mxu0
  %493 = vmatpush.bf16.msra.mxu0 %v380
  %494 = vmatpush.bf16.msra.mxu0 %v379
  %495 = vmatpush.bf16.msra.mxu0 %v378
  %496 = vmatpush.bf16.msra.mxu0 %v377
  %497 = vmatpush.bf16.msra.mxu0 %v376
  %498 = vmatpush.bf16.msra.mxu0 %v375
  %499 = vmatpush.bf16.msra.mxu0 %v374
  %500 = vmatpush.bf16.msra.mxu0 %v373
  %501 = vmatmul.bf16.gmra.mxu0 %v202
  %v502 = vpop.f32.mrf.mxu0
  %v503 = vadd.f32 %v454, %v502
  %v504 = vpop.f32.mrf.mxu0
  %v505 = vadd.f32 %v456, %v504
  %506 = vmatmul.bf16.gmra.mxu0 %v206
  %v507 = vpop.f32.mrf.mxu0
  %v508 = vadd.f32 %v459, %v507
  %v509 = vpop.f32.mrf.mxu0
  %v510 = vadd.f32 %v461, %v509
  %511 = vmatmul.bf16.gmra.mxu0 %v210
  %v512 = vpop.f32.mrf.mxu0
  %v513 = vadd.f32 %v464, %v512
  %v514 = vpop.f32.mrf.mxu0
  %v515 = vadd.f32 %v466, %v514
  %516 = vmatmul.bf16.gmra.mxu0 %v214
  %v517 = vpop.f32.mrf.mxu0
  %v518 = vadd.f32 %v469, %v517
  %v519 = vpop.f32.mrf.mxu0
  %v520 = vadd.f32 %v471, %v519
  %521 = vmatmul.bf16.gmra.mxu0 %v218
  %v522 = vpop.f32.mrf.mxu0
  %v523 = vadd.f32 %v474, %v522
  %v524 = vpop.f32.mrf.mxu0
  %v525 = vadd.f32 %v476, %v524
  %526 = vmatmul.bf16.gmra.mxu0 %v222
  %v527 = vpop.f32.mrf.mxu0
  %v528 = vadd.f32 %v479, %v527
  %v529 = vpop.f32.mrf.mxu0
  %v530 = vadd.f32 %v481, %v529
  %531 = vmatmul.bf16.gmra.mxu0 %v226
  %v532 = vpop.f32.mrf.mxu0
  %v533 = vadd.f32 %v484, %v532
  %v534 = vpop.f32.mrf.mxu0
  %v535 = vadd.f32 %v486, %v534
  %536 = vmatmul.bf16.gmra.mxu0 %v230
  %v537 = vpop.f32.mrf.mxu0
  %v538 = vadd.f32 %v489, %v537
  %v539 = vpop.f32.mrf.mxu0
  %v540 = vadd.f32 %v491, %v539
  %541 = vdwg.mxu0
  %542 = vmatpush.bf16.msra.mxu0 %v388
  %543 = vmatpush.bf16.msra.mxu0 %v387
  %544 = vmatpush.bf16.msra.mxu0 %v386
  %545 = vmatpush.bf16.msra.mxu0 %v385
  %546 = vmatpush.bf16.msra.mxu0 %v384
  %547 = vmatpush.bf16.msra.mxu0 %v383
  %548 = vmatpush.bf16.msra.mxu0 %v382
  %549 = vmatpush.bf16.msra.mxu0 %v381
  %550 = vmatmul.bf16.gmra.mxu0 %v203
  %v551 = vpop.f32.mrf.mxu0
  %v552 = vadd.f32 %v503, %v551
  %v553 = vpop.f32.mrf.mxu0
  %v554 = vadd.f32 %v505, %v553
  %555 = vmatmul.bf16.gmra.mxu0 %v207
  %v556 = vpop.f32.mrf.mxu0
  %v557 = vadd.f32 %v508, %v556
  %v558 = vpop.f32.mrf.mxu0
  %v559 = vadd.f32 %v510, %v558
  %560 = vmatmul.bf16.gmra.mxu0 %v211
  %v561 = vpop.f32.mrf.mxu0
  %v562 = vadd.f32 %v513, %v561
  %v563 = vpop.f32.mrf.mxu0
  %v564 = vadd.f32 %v515, %v563
  %565 = vmatmul.bf16.gmra.mxu0 %v215
  %v566 = vpop.f32.mrf.mxu0
  %v567 = vadd.f32 %v518, %v566
  %v568 = vpop.f32.mrf.mxu0
  %v569 = vadd.f32 %v520, %v568
  %570 = vmatmul.bf16.gmra.mxu0 %v219
  %v571 = vpop.f32.mrf.mxu0
  %v572 = vadd.f32 %v523, %v571
  %v573 = vpop.f32.mrf.mxu0
  %v574 = vadd.f32 %v525, %v573
  %575 = vmatmul.bf16.gmra.mxu0 %v223
  %v576 = vpop.f32.mrf.mxu0
  %v577 = vadd.f32 %v528, %v576
  %v578 = vpop.f32.mrf.mxu0
  %v579 = vadd.f32 %v530, %v578
  %580 = vmatmul.bf16.gmra.mxu0 %v227
  %v581 = vpop.f32.mrf.mxu0
  %v582 = vadd.f32 %v533, %v581
  %v583 = vpop.f32.mrf.mxu0
  %v584 = vadd.f32 %v535, %v583
  %585 = vmatmul.bf16.gmra.mxu0 %v231
  %v586 = vpop.f32.mrf.mxu0
  %v587 = vadd.f32 %v538, %v586
  %v588 = vpop.f32.mrf.mxu0
  %v589 = vadd.f32 %v540, %v588
  %590 = vdwg.mxu0
  %591 = vmatpush.bf16.msra.mxu0 0
  %592 = vmatpush.bf16.msra.mxu0 0
  %593 = vmatpush.bf16.msra.mxu0 0
  %594 = vmatpush.bf16.msra.mxu0 0
  %595 = vmatpush.bf16.msra.mxu0 0
  %596 = vmatpush.bf16.msra.mxu0 %v391
  %597 = vmatpush.bf16.msra.mxu0 %v390
  %598 = vmatpush.bf16.msra.mxu0 %v389
  %599 = vmatmul.bf16.gmra.mxu0 %v421
  %v600 = vpop.f32.mrf.mxu0
  %v601 = vadd.f32 %v552, %v600
  %v602 = vpop.f32.mrf.mxu0
  %v603 = vadd.f32 %v554, %v602
  %604 = vmatmul.bf16.gmra.mxu0 %v424
  %v605 = vpop.f32.mrf.mxu0
  %v606 = vadd.f32 %v557, %v605
  %v607 = vpop.f32.mrf.mxu0
  %v608 = vadd.f32 %v559, %v607
  %609 = vmatmul.bf16.gmra.mxu0 %v427
  %v610 = vpop.f32.mrf.mxu0
  %v611 = vadd.f32 %v562, %v610
  %v612 = vpop.f32.mrf.mxu0
  %v613 = vadd.f32 %v564, %v612
  %614 = vmatmul.bf16.gmra.mxu0 %v430
  %v615 = vpop.f32.mrf.mxu0
  %v616 = vadd.f32 %v567, %v615
  %v617 = vpop.f32.mrf.mxu0
  %v618 = vadd.f32 %v569, %v617
  %619 = vmatmul.bf16.gmra.mxu0 %v433
  %v620 = vpop.f32.mrf.mxu0
  %v621 = vadd.f32 %v572, %v620
  %v622 = vpop.f32.mrf.mxu0
  %v623 = vadd.f32 %v574, %v622
  %624 = vmatmul.bf16.gmra.mxu0 %v436
  %v625 = vpop.f32.mrf.mxu0
  %v626 = vadd.f32 %v577, %v625
  %v627 = vpop.f32.mrf.mxu0
  %v628 = vadd.f32 %v579, %v627
  %629 = vmatmul.bf16.gmra.mxu0 %v439
  %v630 = vpop.f32.mrf.mxu0
  %v631 = vadd.f32 %v582, %v630
  %v632 = vpop.f32.mrf.mxu0
  %v633 = vadd.f32 %v584, %v632
  %634 = vmatmul.bf16.gmra.mxu0 %v442
  %v635 = vpop.f32.mrf.mxu0
  %v636 = vadd.f32 %v587, %v635
  %v637 = vpop.f32.mrf.mxu0
  %v638 = vadd.f32 %v589, %v637
  %639 = vdwg.mxu0
  %v640 = vsub.f32 0.0, %v601
  %v641 = vsub.f32 0.0, %v603
  %v642 = vsub.f32 0.0, %v606
  %v643 = vsub.f32 0.0, %v608
  %v644 = vsub.f32 0.0, %v611
  %v645 = vsub.f32 0.0, %v613
  %v646 = vsub.f32 0.0, %v616
  %v647 = vsub.f32 0.0, %v618
  %v648 = vsub.f32 0.0, %v621
  %v649 = vsub.f32 0.0, %v623
  %v650 = vsub.f32 0.0, %v626
  %v651 = vsub.f32 0.0, %v628
  %v652 = vsub.f32 0.0, %v631
  %v653 = vsub.f32 0.0, %v633
  %v654 = vsub.f32 0.0, %v636
  %v655 = vsub.f32 0.0, %v638
  %v656 = vmul.f32 %v640, 1.442695
  %v657 = vpow.pop %v656
  %v658 = vmul.f32 %v641, 1.442695
  %v659 = vpow.pop %v658
  %v660 = vmul.f32 %v642, 1.442695
  %v661 = vpow.pop %v660
  %v662 = vmul.f32 %v643, 1.442695
  %v663 = vpow.pop %v662
  %v664 = vmul.f32 %v644, 1.442695
  %v665 = vpow.pop %v664
  %v666 = vmul.f32 %v645, 1.442695
  %v667 = vpow.pop %v666
  %v668 = vmul.f32 %v646, 1.442695
  %v669 = vpow.pop %v668
  %v670 = vmul.f32 %v647, 1.442695
  %v671 = vpow.pop %v670
  %v672 = vmul.f32 %v648, 1.442695
  %v673 = vpow.pop %v672
  %v674 = vmul.f32 %v649, 1.442695
  %v675 = vpow.pop %v674
  %v676 = vmul.f32 %v650, 1.442695
  %v677 = vpow.pop %v676
  %v678 = vmul.f32 %v651, 1.442695
  %v679 = vpow.pop %v678
  %v680 = vmul.f32 %v652, 1.442695
  %v681 = vpow.pop %v680
  %v682 = vmul.f32 %v653, 1.442695
  %v683 = vpow.pop %v682
  %v684 = vmul.f32 %v654, 1.442695
  %v685 = vpow.pop %v684
  %v686 = vmul.f32 %v655, 1.442695
  %v687 = vpow.pop %v686
  %v688 = vadd.f32 %v657, 1.0
  %v689 = vadd.f32 %v659, 1.0
  %v690 = vadd.f32 %v661, 1.0
  %v691 = vadd.f32 %v663, 1.0
  %v692 = vadd.f32 %v665, 1.0
  %v693 = vadd.f32 %v667, 1.0
  %v694 = vadd.f32 %v669, 1.0
  %v695 = vadd.f32 %v671, 1.0
  %v696 = vadd.f32 %v673, 1.0
  %v697 = vadd.f32 %v675, 1.0
  %v698 = vadd.f32 %v677, 1.0
  %v699 = vadd.f32 %v679, 1.0
  %v700 = vadd.f32 %v681, 1.0
  %v701 = vadd.f32 %v683, 1.0
  %v702 = vadd.f32 %v685, 1.0
  %v703 = vadd.f32 %v687, 1.0
  %v704 = vrcp.pop %v688
  %v705 = vrcp.pop %v689
  %v706 = vrcp.pop %v690
  %v707 = vrcp.pop %v691
  %v708 = vrcp.pop %v692
  %v709 = vrcp.pop %v693
  %v710 = vrcp.pop %v694
  %v711 = vrcp.pop %v695
  %v712 = vrcp.pop %v696
  %v713 = vrcp.pop %v697
  %v714 = vrcp.pop %v698
  %v715 = vrcp.pop %v699
  %v716 = vrcp.pop %v700
  %v717 = vrcp.pop %v701
  %v718 = vrcp.pop %v702
  %v719 = vrcp.pop %v703
  %720 = vst [vmem:[%s3] sm:$0xff] %v704
  %721 = vst [vmem:[%s3 + $0x8] sm:$0xff] %v705
  %722 = vst [vmem:[%s3 + $0x10] sm:$0xff] %v706
  %723 = vst [vmem:[%s3 + $0x18] sm:$0xff] %v707
  %724 = vst [vmem:[%s3 + $0x20] sm:$0xff] %v708
  %725 = vst [vmem:[%s3 + $0x28] sm:$0xff] %v709
  %726 = vst [vmem:[%s3 + $0x30] sm:$0xff] %v710
  %727 = vst [vmem:[%s3 + $0x38] sm:$0xff] %v711
  %728 = vst [vmem:[%s3 + $0x40] sm:$0xff] %v712
  %729 = vst [vmem:[%s3 + $0x48] sm:$0xff] %v713
  %730 = vst [vmem:[%s3 + $0x50] sm:$0xff] %v714
  %731 = vst [vmem:[%s3 + $0x58] sm:$0xff] %v715
  %732 = vst [vmem:[%s3 + $0x60] sm:$0xff] %v716
  %733 = vst [vmem:[%s3 + $0x68] sm:$0xff] %v717
  %734 = vst [vmem:[%s3 + $0x70] sm:$0xff] %v718
  %735 = vst [vmem:[%s3 + $0x78] sm:$0xff] %v719
  // Predicated region
  $region14: #{sardinet_forward.21} parent=0 // pred_check
    _
  $region15: #{sardinet_forward.21} parent=0 // pred_check_branch
    %737 = sbr.rel (0) target = $region17
  $region16: #{sardinet_forward.21} parent=0 // pred_region
    _
  $region17: #{sardinet_forward.21} parent=0 // pred_fallthru
    _
  // Predicated region
  $region18: #{sardinet_forward.21} parent=0 // pred_check
    _
  $region19: #{sardinet_forward.21} parent=0 // pred_check_branch
    %739 = sbr.rel (0) target = $region21
  $region20: #{sardinet_forward.21} parent=0 // pred_region
    _
  $region21: #{sardinet_forward.21} parent=0 // pred_fallthru
    _

// kernel: sardinet_forward.20
$region0: #{sardinet_forward.20}
  #allocation0 [shape = 'u32[]', space=smem, size = 0x4, offset = 0x4, fixed_abs, tag = 'smem constant byte address 0x4 - core index']
  #allocation1 [shape = 'u32[72,128]{1,0:T(1,128)}', space=vmem, size = 0x9000, scoped, tag = 'internal scratch']
  %s0 = inlined_call_operand.vmem [shape: bf16[128,432], index: 0, kind: input, shape index: {}]
  %s1 = inlined_call_operand.vmem [shape: bf16[432,128], index: 1, kind: input, shape index: {}]
  %s2 = inlined_call_operand.vmem [shape: f32[1,128], index: 2, kind: input, shape index: {}]
  %s3 = inlined_call_operand.vmem [shape: f32[1,128], index: 3, kind: input, shape index: {}]
  %s4 = inlined_call_operand.vmem [shape: f32[1,128], index: 4, kind: input, shape index: {}]
  %s5 = inlined_call_operand.vmem [shape: bf16[128,128], index: 5, kind: output, shape index: {}]
  %s6 = sld [smem:[#allocation0]]
  $region30: #{sardinet_forward.20} parent=0
    _
  %s8 = ssub.s32 1, %s6
  %s9 = scalar_select 0, %s8, %s6
  // Predicated region
  $region2: #{sardinet_forward.20} parent=0 // pred_check
    _
  $region3: #{sardinet_forward.20} parent=0 // pred_check_branch
    %11 = sbr.rel (0) target = $region5
  $region4: #{sardinet_forward.20} parent=0 // pred_region
    _
  $region5: #{sardinet_forward.20} parent=0 // pred_fallthru
    _
  // Predicated region
  $region6: #{sardinet_forward.20} parent=0 // pred_check
    _
  $region7: #{sardinet_forward.20} parent=0 // pred_check_branch
    %13 = sbr.rel (0) target = $region9
  $region8: #{sardinet_forward.20} parent=0 // pred_region
    _
  $region9: #{sardinet_forward.20} parent=0 // pred_fallthru
    _
  // Predicated region
  $region10: #{sardinet_forward.20} parent=0 // pred_check
    _
  $region11: #{sardinet_forward.20} parent=0 // pred_check_branch
    %15 = sbr.rel (0) target = $region13
  $region12: #{sardinet_forward.20} parent=0 // pred_region
    _
  $region13: #{sardinet_forward.20} parent=0 // pred_fallthru
    _
  // Predicated region
  $region14: #{sardinet_forward.20} parent=0 // pred_check
    _
  $region15: #{sardinet_forward.20} parent=0 // pred_check_branch
    %17 = sbr.rel (0) target = $region17
  $region16: #{sardinet_forward.20} parent=0 // pred_region
    _
  $region17: #{sardinet_forward.20} parent=0 // pred_fallthru
    _
  // Predicated region
  $region18: #{sardinet_forward.20} parent=0 // pred_check
    _
  $region19: #{sardinet_forward.20} parent=0 // pred_check_branch
    %19 = sbr.rel (0) target = $region21
  $region20: #{sardinet_forward.20} parent=0 // pred_region
    _
  $region21: #{sardinet_forward.20} parent=0 // pred_fallthru
    _
  %v21 = vld [vmem:[%s0] sm:$0xff]
  %v22 = vld [vmem:[%s0 + $0x8] sm:$0xff]
  %v23 = vld [vmem:[%s0 + $0x10] sm:$0xff]
  %v24 = vld [vmem:[%s0 + $0x18] sm:$0xff]
  %v25 = vld [vmem:[%s0 + $0x20] sm:$0xff]
  %v26 = vld [vmem:[%s0 + $0x28] sm:$0xff]
  %v27 = vld [vmem:[%s0 + $0x30] sm:$0xff]
  %v28 = vld [vmem:[%s0 + $0x38] sm:$0xff]
  %v29 = vld [vmem:[%s0 + $0x40] sm:$0xff]
  %v30 = vld [vmem:[%s0 + $0x48] sm:$0xff]
  %v31 = vld [vmem:[%s0 + $0x50] sm:$0xff]
  %v32 = vld [vmem:[%s0 + $0x58] sm:$0xff]
  %v33 = vld [vmem:[%s0 + $0x60] sm:$0xff]
  %v34 = vld [vmem:[%s0 + $0x68] sm:$0xff]
  %v35 = vld [vmem:[%s0 + $0x70] sm:$0xff]
  %v36 = vld [vmem:[%s0 + $0x78] sm:$0xff]
  %v37 = vld [vmem:[%s0 + $0x80] sm:$0xff]
  %v38 = vld [vmem:[%s0 + $0x88] sm:$0xff]
  %v39 = vld [vmem:[%s0 + $0x90] sm:$0xff]
  %v40 = vld [vmem:[%s0 + $0x98] sm:$0xff]
  %v41 = vld [vmem:[%s0 + $0xa0] sm:$0xff]
  %v42 = vld [vmem:[%s0 + $0xa8] sm:$0xff]
  %v43 = vld [vmem:[%s0 + $0xb0] sm:$0xff]
  %v44 = vld [vmem:[%s0 + $0xb8] sm:$0xff]
  %v45 = vld [vmem:[%s0 + $0xc0] sm:$0xff]
  %v46 = vld [vmem:[%s0 + $0xc8] sm:$0xff]
  %v47 = vld [vmem:[%s0 + $0xd0] sm:$0xff]
  %v48 = vld [vmem:[%s0 + $0xd8] sm:$0xff]
  %v49 = vld [vmem:[%s0 + $0xe0] sm:$0xff]
  %v50 = vld [vmem:[%s0 + $0xe8] sm:$0xff]
  %v51 = vld [vmem:[%s0 + $0xf0] sm:$0xff]
  %v52 = vld [vmem:[%s0 + $0xf8] sm:$0xff]
  %v53 = vld [vmem:[%s1] sm:$0xf]
  %v54 = vld [vmem:[%s1 + $0x4] sm:$0xf]
  %v55 = vld [vmem:[%s1 + $0x8] sm:$0xf]
  %v56 = vld [vmem:[%s1 + $0xc] sm:$0xf]
  %v57 = vld [vmem:[%s1 + $0x10] sm:$0xf]
  %v58 = vld [vmem:[%s1 + $0x14] sm:$0xf]
  %v59 = vld [vmem:[%s1 + $0x18] sm:$0xf]
  %v60 = vld [vmem:[%s1 + $0x1c] sm:$0xf]
  %v61 = vld [vmem:[%s1 + $0x20] sm:$0xf]
  %v62 = vld [vmem:[%s1 + $0x24] sm:$0xf]
  %v63 = vld [vmem:[%s1 + $0x28] sm:$0xf]
  %v64 = vld [vmem:[%s1 + $0x2c] sm:$0xf]
  %v65 = vld [vmem:[%s1 + $0x30] sm:$0xf]
  %v66 = vld [vmem:[%s1 + $0x34] sm:$0xf]
  %v67 = vld [vmem:[%s1 + $0x38] sm:$0xf]
  %v68 = vld [vmem:[%s1 + $0x3c] sm:$0xf]
  %v69 = vld [vmem:[%s1 + $0x40] sm:$0xf]
  %v70 = vld [vmem:[%s1 + $0x44] sm:$0xf]
  %v71 = vld [vmem:[%s1 + $0x48] sm:$0xf]
  %v72 = vld [vmem:[%s1 + $0x4c] sm:$0xf]
  %v73 = vld [vmem:[%s1 + $0x50] sm:$0xf]
  %v74 = vld [vmem:[%s1 + $0x54] sm:$0xf]
  %v75 = vld [vmem:[%s1 + $0x58] sm:$0xf]
  %v76 = vld [vmem:[%s1 + $0x5c] sm:$0xf]
  %v77 = vld [vmem:[%s1 + $0x60] sm:$0xf]
  %v78 = vld [vmem:[%s1 + $0x64] sm:$0xf]
  %v79 = vld [vmem:[%s1 + $0x68] sm:$0xf]
  %v80 = vld [vmem:[%s1 + $0x6c] sm:$0xf]
  %v81 = vld [vmem:[%s1 + $0x70] sm:$0xf]
  %v82 = vld [vmem:[%s1 + $0x74] sm:$0xf]
  %v83 = vld [vmem:[%s1 + $0x78] sm:$0xf]
  %v84 = vld [vmem:[%s1 + $0x7c] sm:$0xf]
  %v85 = vld [vmem:[%s1 + $0x80] sm:$0xf]
  %v86 = vld [vmem:[%s1 + $0x84] sm:$0xf]
  %v87 = vld [vmem:[%s1 + $0x88] sm:$0xf]
  %v88 = vld [vmem:[%s1 + $0x8c] sm:$0xf]
  %v89 = vld [vmem:[%s1 + $0x90] sm:$0xf]
  %v90 = vld [vmem:[%s1 + $0x94] sm:$0xf]
  %v91 = vld [vmem:[%s1 + $0x98] sm:$0xf]
  %v92 = vld [vmem:[%s1 + $0x9c] sm:$0xf]
  %v93 = vld [vmem:[%s1 + $0xa0] sm:$0xf]
  %v94 = vld [vmem:[%s1 + $0xa4] sm:$0xf]
  %v95 = vld [vmem:[%s1 + $0xa8] sm:$0xf]
  %v96 = vld [vmem:[%s1 + $0xac] sm:$0xf]
  %v97 = vld [vmem:[%s1 + $0xb0] sm:$0xf]
  %v98 = vld [vmem:[%s1 + $0xb4] sm:$0xf]
  %v99 = vld [vmem:[%s1 + $0xb8] sm:$0xf]
  %v100 = vld [vmem:[%s1 + $0xbc] sm:$0xf]
  %v101 = vld [vmem:[%s1 + $0xc0] sm:$0xf]
  %v102 = vld [vmem:[%s1 + $0xc4] sm:$0xf]
  %v103 = vld [vmem:[%s1 + $0xc8] sm:$0xf]
  %v104 = vld [vmem:[%s1 + $0xcc] sm:$0xf]
  %v105 = vld [vmem:[%s1 + $0xd0] sm:$0xf]
  %v106 = vld [vmem:[%s1 + $0xd4] sm:$0xf]
  %v107 = vld [vmem:[%s2] sm:$0x1]
  %v109 = vperm.slane %v107, 0
  %v143 = vunpack.c.l.b16 %v21
  %v144 = vunpack.c.h.b16 %v21
  %v145 = vunpack.c.l.b16 %v22
  %v146 = vunpack.c.h.b16 %v22
  %v147 = vunpack.c.l.b16 %v23
  %v148 = vunpack.c.h.b16 %v23
  %v149 = vunpack.c.l.b16 %v24
  %v150 = vunpack.c.h.b16 %v24
  %v151 = vunpack.c.l.b16 %v25
  %v152 = vunpack.c.h.b16 %v25
  %v153 = vunpack.c.l.b16 %v26
  %v154 = vunpack.c.h.b16 %v26
  %v155 = vunpack.c.l.b16 %v27
  %v156 = vunpack.c.h.b16 %v27
  %v157 = vunpack.c.l.b16 %v28
  %v158 = vunpack.c.h.b16 %v28
  %v159 = vunpack.c.l.b16 %v29
  %v160 = vunpack.c.h.b16 %v29
  %v161 = vunpack.c.l.b16 %v30
  %v162 = vunpack.c.h.b16 %v30
  %v163 = vunpack.c.l.b16 %v31
  %v164 = vunpack.c.h.b16 %v31
  %v165 = vunpack.c.l.b16 %v32
  %v166 = vunpack.c.h.b16 %v32
  %v167 = vunpack.c.l.b16 %v33
  %v168 = vunpack.c.h.b16 %v33
  %v169 = vunpack.c.l.b16 %v34
  %v170 = vunpack.c.h.b16 %v34
  %v171 = vunpack.c.l.b16 %v35
  %v172 = vunpack.c.h.b16 %v35
  %v173 = vunpack.c.l.b16 %v36
  %v174 = vunpack.c.h.b16 %v36
  %v175 = vunpack.c.l.b16 %v37
  %v176 = vunpack.c.h.b16 %v37
  %v177 = vunpack.c.l.b16 %v38
  %v178 = vunpack.c.h.b16 %v38
  %v179 = vunpack.c.l.b16 %v39
  %v180 = vunpack.c.h.b16 %v39
  %v181 = vunpack.c.l.b16 %v40
  %v182 = vunpack.c.h.b16 %v40
  %v183 = vunpack.c.l.b16 %v41
  %v184 = vunpack.c.h.b16 %v41
  %v185 = vunpack.c.l.b16 %v42
  %v186 = vunpack.c.h.b16 %v42
  %v187 = vunpack.c.l.b16 %v43
  %v188 = vunpack.c.h.b16 %v43
  %v189 = vunpack.c.l.b16 %v44
  %v190 = vunpack.c.h.b16 %v44
  %v191 = vunpack.c.l.b16 %v45
  %v192 = vunpack.c.h.b16 %v45
  %v193 = vunpack.c.l.b16 %v46
  %v194 = vunpack.c.h.b16 %v46
  %v195 = vunpack.c.l.b16 %v47
  %v196 = vunpack.c.h.b16 %v47
  %v197 = vunpack.c.l.b16 %v48
  %v198 = vunpack.c.h.b16 %v48
  %v199 = vunpack.c.l.b16 %v49
  %v200 = vunpack.c.h.b16 %v49
  %v201 = vunpack.c.l.b16 %v50
  %v202 = vunpack.c.h.b16 %v50
  %v203 = vunpack.c.l.b16 %v51
  %v204 = vunpack.c.h.b16 %v51
  %v205 = vunpack.c.l.b16 %v52
  %v206 = vunpack.c.h.b16 %v52
  %v207 = vpack.c.b16 %v147, %v143
  %v208 = vpack.c.b16 %v148, %v144
  %v209 = vpack.c.b16 %v149, %v145
  %v210 = vpack.c.b16 %v150, %v146
  %v211 = vpack.c.b16 %v155, %v151
  %v212 = vpack.c.b16 %v156, %v152
  %v213 = vpack.c.b16 %v157, %v153
  %v214 = vpack.c.b16 %v158, %v154
  %v215 = vpack.c.b16 %v163, %v159
  %v216 = vpack.c.b16 %v164, %v160
  %v217 = vpack.c.b16 %v165, %v161
  %v218 = vpack.c.b16 %v166, %v162
  %v219 = vpack.c.b16 %v171, %v167
  %v220 = vpack.c.b16 %v172, %v168
  %v221 = vpack.c.b16 %v173, %v169
  %v222 = vpack.c.b16 %v174, %v170
  %v223 = vpack.c.b16 %v179, %v175
  %v224 = vpack.c.b16 %v180, %v176
  %v225 = vpack.c.b16 %v181, %v177
  %v226 = vpack.c.b16 %v182, %v178
  %v227 = vpack.c.b16 %v187, %v183
  %v228 = vpack.c.b16 %v188, %v184
  %v229 = vpack.c.b16 %v189, %v185
  %v230 = vpack.c.b16 %v190, %v186
  %v231 = vpack.c.b16 %v195, %v191
  %v232 = vpack.c.b16 %v196, %v192
  %v233 = vpack.c.b16 %v197, %v193
  %v234 = vpack.c.b16 %v198, %v194
  %v235 = vpack.c.b16 %v203, %v199
  %v236 = vpack.c.b16 %v204, %v200
  %v237 = vpack.c.b16 %v205, %v201
  %v238 = vpack.c.b16 %v206, %v202
  %v317 = vunpack.c.l.b16 %v53
  %v318 = vunpack.c.l.b16 %v54
  %v319 = vunpack.c.l.b16 %v55
  %v320 = vunpack.c.l.b16 %v56
  %v321 = vunpack.c.l.b16 %v57
  %v322 = vunpack.c.l.b16 %v58
  %v323 = vunpack.c.l.b16 %v59
  %v324 = vunpack.c.l.b16 %v60
  %v325 = vunpack.c.l.b16 %v61
  %v326 = vunpack.c.l.b16 %v62
  %v327 = vunpack.c.l.b16 %v63
  %v328 = vunpack.c.l.b16 %v64
  %v329 = vunpack.c.l.b16 %v65
  %v330 = vunpack.c.l.b16 %v66
  %v331 = vunpack.c.l.b16 %v67
  %v332 = vunpack.c.l.b16 %v68
  %v333 = vunpack.c.l.b16 %v69
  %v334 = vunpack.c.l.b16 %v70
  %v335 = vunpack.c.l.b16 %v71
  %v336 = vunpack.c.l.b16 %v72
  %v337 = vunpack.c.l.b16 %v73
  %v338 = vunpack.c.l.b16 %v74
  %v339 = vunpack.c.l.b16 %v75
  %v340 = vunpack.c.l.b16 %v76
  %v341 = vunpack.c.l.b16 %v77
  %v342 = vunpack.c.l.b16 %v78
  %v343 = vunpack.c.l.b16 %v79
  %v344 = vunpack.c.l.b16 %v80
  %v345 = vunpack.c.l.b16 %v81
  %v346 = vunpack.c.l.b16 %v82
  %v347 = vunpack.c.l.b16 %v83
  %v348 = vunpack.c.l.b16 %v84
  %v349 = vunpack.c.l.b16 %v85
  %v350 = vunpack.c.l.b16 %v86
  %v351 = vunpack.c.l.b16 %v87
  %v352 = vunpack.c.l.b16 %v88
  %v353 = vunpack.c.l.b16 %v89
  %v354 = vunpack.c.l.b16 %v90
  %v355 = vunpack.c.l.b16 %v91
  %v356 = vunpack.c.l.b16 %v92
  %v357 = vunpack.c.l.b16 %v93
  %v358 = vunpack.c.l.b16 %v94
  %v359 = vunpack.c.l.b16 %v95
  %v360 = vunpack.c.l.b16 %v96
  %v361 = vunpack.c.l.b16 %v97
  %v362 = vunpack.c.l.b16 %v98
  %v363 = vunpack.c.l.b16 %v99
  %v364 = vunpack.c.l.b16 %v100
  %v365 = vunpack.c.l.b16 %v101
  %v366 = vunpack.c.l.b16 %v102
  %v367 = vunpack.c.l.b16 %v103
  %v368 = vunpack.c.l.b16 %v104
  %v369 = vunpack.c.l.b16 %v105
  %v370 = vunpack.c.l.b16 %v106
  %v371 = vpack.c.b16 %v318, %v317
  %v372 = vpack.c.b16 %v320, %v319
  %v373 = vpack.c.b16 %v322, %v321
  %v374 = vpack.c.b16 %v324, %v323
  %v375 = vpack.c.b16 %v326, %v325
  %v376 = vpack.c.b16 %v328, %v327
  %v377 = vpack.c.b16 %v330, %v329
  %v378 = vpack.c.b16 %v332, %v331
  %v379 = vpack.c.b16 %v334, %v333
  %v380 = vpack.c.b16 %v336, %v335
  %v381 = vpack.c.b16 %v338, %v337
  %v382 = vpack.c.b16 %v340, %v339
  %v383 = vpack.c.b16 %v342, %v341
  %v384 = vpack.c.b16 %v344, %v343
  %v385 = vpack.c.b16 %v346, %v345
  %v386 = vpack.c.b16 %v348, %v347
  %v387 = vpack.c.b16 %v350, %v349
  %v388 = vpack.c.b16 %v352, %v351
  %v389 = vpack.c.b16 %v354, %v353
  %v390 = vpack.c.b16 %v356, %v355
  %v391 = vpack.c.b16 %v358, %v357
  %v392 = vpack.c.b16 %v360, %v359
  %v393 = vpack.c.b16 %v362, %v361
  %v394 = vpack.c.b16 %v364, %v363
  %v395 = vpack.c.b16 %v366, %v365
  %v396 = vpack.c.b16 %v368, %v367
  %v397 = vpack.c.b16 %v370, %v369
  %vm425 = vcmask 392192
  %v427 = vsel %vm425, %v210, 0
  %v430 = vsel %vm425, %v214, 0
  %v433 = vsel %vm425, %v218, 0
  %v436 = vsel %vm425, %v222, 0
  %v439 = vsel %vm425, %v226, 0
  %v442 = vsel %vm425, %v230, 0
  %v445 = vsel %vm425, %v234, 0
  %v448 = vsel %vm425, %v238, 0
  %450 = vmatpush.bf16.msra.mxu0 %v378
  %451 = vmatpush.bf16.msra.mxu0 %v377
  %452 = vmatpush.bf16.msra.mxu0 %v376
  %453 = vmatpush.bf16.msra.mxu0 %v375
  %454 = vmatpush.bf16.msra.mxu0 %v374
  %455 = vmatpush.bf16.msra.mxu0 %v373
  %456 = vmatpush.bf16.msra.mxu0 %v372
  %457 = vmatpush.bf16.msra.mxu0 %v371
  %458 = vmatmul.bf16.gmra.mxu0 %v207
  %v459 = vpop.f32.mrf.mxu0
  %v460 = vadd.f32 %v109, %v459
  %v461 = vpop.f32.mrf.mxu0
  %v462 = vadd.f32 %v109, %v461
  %463 = vmatmul.bf16.gmra.mxu0 %v211
  %v464 = vpop.f32.mrf.mxu0
  %v465 = vadd.f32 %v109, %v464
  %v466 = vpop.f32.mrf.mxu0
  %v467 = vadd.f32 %v109, %v466
  %468 = vmatmul.bf16.gmra.mxu0 %v215
  %v469 = vpop.f32.mrf.mxu0
  %v470 = vadd.f32 %v109, %v469
  %v471 = vpop.f32.mrf.mxu0
  %v472 = vadd.f32 %v109, %v471
  %473 = vmatmul.bf16.gmra.mxu0 %v219
  %v474 = vpop.f32.mrf.mxu0
  %v475 = vadd.f32 %v109, %v474
  %v476 = vpop.f32.mrf.mxu0
  %v477 = vadd.f32 %v109, %v476
  %478 = vmatmul.bf16.gmra.mxu0 %v223
  %v479 = vpop.f32.mrf.mxu0
  %v480 = vadd.f32 %v109, %v479
  %v481 = vpop.f32.mrf.mxu0
  %v482 = vadd.f32 %v109, %v481
  %483 = vmatmul.bf16.gmra.mxu0 %v227
  %v484 = vpop.f32.mrf.mxu0
  %v485 = vadd.f32 %v109, %v484
  %v486 = vpop.f32.mrf.mxu0
  %v487 = vadd.f32 %v109, %v486
  %488 = vmatmul.bf16.gmra.mxu0 %v231
  %v489 = vpop.f32.mrf.mxu0
  %v490 = vadd.f32 %v109, %v489
  %v491 = vpop.f32.mrf.mxu0
  %v492 = vadd.f32 %v109, %v491
  %493 = vmatmul.bf16.gmra.mxu0 %v235
  %v494 = vpop.f32.mrf.mxu0
  %v495 = vadd.f32 %v109, %v494
  %v496 = vpop.f32.mrf.mxu0
  %v497 = vadd.f32 %v109, %v496
  %498 = vdwg.mxu0
  %499 = vmatpush.bf16.msra.mxu0 %v386
  %500 = vmatpush.bf16.msra.mxu0 %v385
  %501 = vmatpush.bf16.msra.mxu0 %v384
  %502 = vmatpush.bf16.msra.mxu0 %v383
  %503 = vmatpush.bf16.msra.mxu0 %v382
  %504 = vmatpush.bf16.msra.mxu0 %v381
  %505 = vmatpush.bf16.msra.mxu0 %v380
  %506 = vmatpush.bf16.msra.mxu0 %v379
  %507 = vmatmul.bf16.gmra.mxu0 %v208
  %v508 = vpop.f32.mrf.mxu0
  %v509 = vadd.f32 %v460, %v508
  %v510 = vpop.f32.mrf.mxu0
  %v511 = vadd.f32 %v462, %v510
  %512 = vmatmul.bf16.gmra.mxu0 %v212
  %v513 = vpop.f32.mrf.mxu0
  %v514 = vadd.f32 %v465, %v513
  %v515 = vpop.f32.mrf.mxu0
  %v516 = vadd.f32 %v467, %v515
  %517 = vmatmul.bf16.gmra.mxu0 %v216
  %v518 = vpop.f32.mrf.mxu0
  %v519 = vadd.f32 %v470, %v518
  %v520 = vpop.f32.mrf.mxu0
  %v521 = vadd.f32 %v472, %v520
  %522 = vmatmul.bf16.gmra.mxu0 %v220
  %v523 = vpop.f32.mrf.mxu0
  %v524 = vadd.f32 %v475, %v523
  %v525 = vpop.f32.mrf.mxu0
  %v526 = vadd.f32 %v477, %v525
  %527 = vmatmul.bf16.gmra.mxu0 %v224
  %v528 = vpop.f32.mrf.mxu0
  %v529 = vadd.f32 %v480, %v528
  %v530 = vpop.f32.mrf.mxu0
  %v531 = vadd.f32 %v482, %v530
  %532 = vmatmul.bf16.gmra.mxu0 %v228
  %v533 = vpop.f32.mrf.mxu0
  %v534 = vadd.f32 %v485, %v533
  %v535 = vpop.f32.mrf.mxu0
  %v536 = vadd.f32 %v487, %v535
  %537 = vmatmul.bf16.gmra.mxu0 %v232
  %v538 = vpop.f32.mrf.mxu0
  %v539 = vadd.f32 %v490, %v538
  %v540 = vpop.f32.mrf.mxu0
  %v541 = vadd.f32 %v492, %v540
  %542 = vmatmul.bf16.gmra.mxu0 %v236
  %v543 = vpop.f32.mrf.mxu0
  %v544 = vadd.f32 %v495, %v543
  %v545 = vpop.f32.mrf.mxu0
  %v546 = vadd.f32 %v497, %v545
  %547 = vdwg.mxu0
  %548 = vmatpush.bf16.msra.mxu0 %v394
  %549 = vmatpush.bf16.msra.mxu0 %v393
  %550 = vmatpush.bf16.msra.mxu0 %v392
  %551 = vmatpush.bf16.msra.mxu0 %v391
  %552 = vmatpush.bf16.msra.mxu0 %v390
  %553 = vmatpush.bf16.msra.mxu0 %v389
  %554 = vmatpush.bf16.msra.mxu0 %v388
  %555 = vmatpush.bf16.msra.mxu0 %v387
  %556 = vmatmul.bf16.gmra.mxu0 %v209
  %v557 = vpop.f32.mrf.mxu0
  %v558 = vadd.f32 %v509, %v557
  %v559 = vpop.f32.mrf.mxu0
  %v560 = vadd.f32 %v511, %v559
  %561 = vmatmul.bf16.gmra.mxu0 %v213
  %v562 = vpop.f32.mrf.mxu0
  %v563 = vadd.f32 %v514, %v562
  %v564 = vpop.f32.mrf.mxu0
  %v565 = vadd.f32 %v516, %v564
  %566 = vmatmul.bf16.gmra.mxu0 %v217
  %v567 = vpop.f32.mrf.mxu0
  %v568 = vadd.f32 %v519, %v567
  %v569 = vpop.f32.mrf.mxu0
  %v570 = vadd.f32 %v521, %v569
  %571 = vmatmul.bf16.gmra.mxu0 %v221
  %v572 = vpop.f32.mrf.mxu0
  %v573 = vadd.f32 %v524, %v572
  %v574 = vpop.f32.mrf.mxu0
  %v575 = vadd.f32 %v526, %v574
  %576 = vmatmul.bf16.gmra.mxu0 %v225
  %v577 = vpop.f32.mrf.mxu0
  %v578 = vadd.f32 %v529, %v577
  %v579 = vpop.f32.mrf.mxu0
  %v580 = vadd.f32 %v531, %v579
  %581 = vmatmul.bf16.gmra.mxu0 %v229
  %v582 = vpop.f32.mrf.mxu0
  %v583 = vadd.f32 %v534, %v582
  %v584 = vpop.f32.mrf.mxu0
  %v585 = vadd.f32 %v536, %v584
  %586 = vmatmul.bf16.gmra.mxu0 %v233
  %v587 = vpop.f32.mrf.mxu0
  %v588 = vadd.f32 %v539, %v587
  %v589 = vpop.f32.mrf.mxu0
  %v590 = vadd.f32 %v541, %v589
  %591 = vmatmul.bf16.gmra.mxu0 %v237
  %v592 = vpop.f32.mrf.mxu0
  %v593 = vadd.f32 %v544, %v592
  %v594 = vpop.f32.mrf.mxu0
  %v595 = vadd.f32 %v546, %v594
  %596 = vdwg.mxu0
  %597 = vmatpush.bf16.msra.mxu0 0
  %598 = vmatpush.bf16.msra.mxu0 0
  %599 = vmatpush.bf16.msra.mxu0 0
  %600 = vmatpush.bf16.msra.mxu0 0
  %601 = vmatpush.bf16.msra.mxu0 0
  %602 = vmatpush.bf16.msra.mxu0 %v397
  %603 = vmatpush.bf16.msra.mxu0 %v396
  %604 = vmatpush.bf16.msra.mxu0 %v395
  %605 = vmatmul.bf16.gmra.mxu0 %v427
  %v606 = vpop.f32.mrf.mxu0
  %v607 = vadd.f32 %v558, %v606
  %v608 = vpop.f32.mrf.mxu0
  %v609 = vadd.f32 %v560, %v608
  %610 = vmatmul.bf16.gmra.mxu0 %v430
  %v611 = vpop.f32.mrf.mxu0
  %v612 = vadd.f32 %v563, %v611
  %v613 = vpop.f32.mrf.mxu0
  %v614 = vadd.f32 %v565, %v613
  %615 = vmatmul.bf16.gmra.mxu0 %v433
  %v616 = vpop.f32.mrf.mxu0
  %v617 = vadd.f32 %v568, %v616
  %v618 = vpop.f32.mrf.mxu0
  %v619 = vadd.f32 %v570, %v618
  %620 = vmatmul.bf16.gmra.mxu0 %v436
  %v621 = vpop.f32.mrf.mxu0
  %v622 = vadd.f32 %v573, %v621
  %v623 = vpop.f32.mrf.mxu0
  %v624 = vadd.f32 %v575, %v623
  %625 = vmatmul.bf16.gmra.mxu0 %v439
  %v626 = vpop.f32.mrf.mxu0
  %v627 = vadd.f32 %v578, %v626
  %v628 = vpop.f32.mrf.mxu0
  %v629 = vadd.f32 %v580, %v628
  %630 = vmatmul.bf16.gmra.mxu0 %v442
  %v631 = vpop.f32.mrf.mxu0
  %v632 = vadd.f32 %v583, %v631
  %v633 = vpop.f32.mrf.mxu0
  %v634 = vadd.f32 %v585, %v633
  %635 = vmatmul.bf16.gmra.mxu0 %v445
  %v636 = vpop.f32.mrf.mxu0
  %v637 = vadd.f32 %v588, %v636
  %v638 = vpop.f32.mrf.mxu0
  %v639 = vadd.f32 %v590, %v638
  %640 = vmatmul.bf16.gmra.mxu0 %v448
  %v641 = vpop.f32.mrf.mxu0
  %v642 = vadd.f32 %v593, %v641
  %v643 = vpop.f32.mrf.mxu0
  %v644 = vadd.f32 %v595, %v643
  %645 = vdwg.mxu0
  %v646 = vmax.f32 %v607, 0.0
  %v647 = vmax.f32 %v609, 0.0
  %v648 = vmax.f32 %v612, 0.0
  %v649 = vmax.f32 %v614, 0.0
  %v650 = vmax.f32 %v617, 0.0
  %v651 = vmax.f32 %v619, 0.0
  %v652 = vmax.f32 %v622, 0.0
  %v653 = vmax.f32 %v624, 0.0
  %v654 = vmax.f32 %v627, 0.0
  %v655 = vmax.f32 %v629, 0.0
  %v656 = vmax.f32 %v632, 0.0
  %v657 = vmax.f32 %v634, 0.0
  %v658 = vmax.f32 %v637, 0.0
  %v659 = vmax.f32 %v639, 0.0
  %v660 = vmax.f32 %v642, 0.0
  %v661 = vmax.f32 %v644, 0.0
  %v662 = vld [vmem:[%s3] sm:$0x1]
  %v664 = vperm.slane %v662, 0
  %v666 = vmul.f32 %v646, %v664
  %v667 = vmul.f32 %v647, %v664
  %v668 = vmul.f32 %v648, %v664
  %v669 = vmul.f32 %v649, %v664
  %v670 = vmul.f32 %v650, %v664
  %v671 = vmul.f32 %v651, %v664
  %v672 = vmul.f32 %v652, %v664
  %v673 = vmul.f32 %v653, %v664
  %v674 = vmul.f32 %v654, %v664
  %v675 = vmul.f32 %v655, %v664
  %v676 = vmul.f32 %v656, %v664
  %v677 = vmul.f32 %v657, %v664
  %v678 = vmul.f32 %v658, %v664
  %v679 = vmul.f32 %v659, %v664
  %v680 = vmul.f32 %v660, %v664
  %v681 = vmul.f32 %v661, %v664
  %v682 = vld [vmem:[%s4] sm:$0x1]
  %v684 = vperm.slane %v682, 0
  %v686 = vadd.f32 %v666, %v684
  %v687 = vadd.f32 %v667, %v684
  %v688 = vadd.f32 %v668, %v684
  %v689 = vadd.f32 %v669, %v684
  %v690 = vadd.f32 %v670, %v684
  %v691 = vadd.f32 %v671, %v684
  %v692 = vadd.f32 %v672, %v684
  %v693 = vadd.f32 %v673, %v684
  %v694 = vadd.f32 %v674, %v684
  %v695 = vadd.f32 %v675, %v684
  %v696 = vadd.f32 %v676, %v684
  %v697 = vadd.f32 %v677, %v684
  %v698 = vadd.f32 %v678, %v684
  %v699 = vadd.f32 %v679, %v684
  %v700 = vadd.f32 %v680, %v684
  %v701 = vadd.f32 %v681, %v684
  %v702 = vpack.c.bf16 %v686, %v686
  %v703 = vpack.c.bf16 %v687, %v687
  %v704 = vpack.c.bf16 %v688, %v688
  %v705 = vpack.c.bf16 %v689, %v689
  %v706 = vpack.c.bf16 %v690, %v690
  %v707 = vpack.c.bf16 %v691, %v691
  %v708 = vpack.c.bf16 %v692, %v692
  %v709 = vpack.c.bf16 %v693, %v693
  %v710 = vpack.c.bf16 %v694, %v694
  %v711 = vpack.c.bf16 %v695, %v695
  %v712 = vpack.c.bf16 %v696, %v696
  %v713 = vpack.c.bf16 %v697, %v697
  %v714 = vpack.c.bf16 %v698, %v698
  %v715 = vpack.c.bf16 %v699, %v699
  %v716 = vpack.c.bf16 %v700, %v700
  %v717 = vpack.c.bf16 %v701, %v701
  %718 = vst [vmem:[%s5] sm:$0xf] %v702
  %719 = vst [vmem:[%s5 + $0x4] sm:$0xf] %v703
  %720 = vst [vmem:[%s5 + $0x8] sm:$0xf] %v704
  %721 = vst [vmem:[%s5 + $0xc] sm:$0xf] %v705
  %722 = vst [vmem:[%s5 + $0x10] sm:$0xf] %v706
  %723 = vst [vmem:[%s5 + $0x14] sm:$0xf] %v707
  %724 = vst [vmem:[%s5 + $0x18] sm:$0xf] %v708
  %725 = vst [vmem:[%s5 + $0x1c] sm:$0xf] %v709
  %726 = vst [vmem:[%s5 + $0x20] sm:$0xf] %v710
  %727 = vst [vmem:[%s5 + $0x24] sm:$0xf] %v711
  %728 = vst [vmem:[%s5 + $0x28] sm:$0xf] %v712
  %729 = vst [vmem:[%s5 + $0x2c] sm:$0xf] %v713
  %730 = vst [vmem:[%s5 + $0x30] sm:$0xf] %v714
  %731 = vst [vmem:[%s5 + $0x34] sm:$0xf] %v715
  %732 = vst [vmem:[%s5 + $0x38] sm:$0xf] %v716
  %733 = vst [vmem:[%s5 + $0x3c] sm:$0xf] %v717
  // Predicated region
  $region22: #{sardinet_forward.20} parent=0 // pred_check
    _
  $region23: #{sardinet_forward.20} parent=0 // pred_check_branch
    %735 = sbr.rel (0) target = $region25
  $region24: #{sardinet_forward.20} parent=0 // pred_region
    _
  $region25: #{sardinet_forward.20} parent=0 // pred_fallthru
    _
  // Predicated region
  $region26: #{sardinet_forward.20} parent=0 // pred_check
    _
  $region27: #{sardinet_forward.20} parent=0 // pred_check_branch
    %737 = sbr.rel (0) target = $region29
  $region28: #{sardinet_forward.20} parent=0 // pred_region
    _
  $region29: #{sardinet_forward.20} parent=0 // pred_fallthru
    _

</llo_original>
